<compile_context>
chip_gen: v7x
topology: tpu7x:2x2x1
jax: 0.10.0
libtpu: 0.0.40
codegen_flags: <defaults>
</compile_context>

<pallas_src>
import math

import jax
import jax.numpy as jnp
from jax.experimental import pallas as pl
from jax.experimental.pallas import tpu as pltpu


# Tile caps (v6e defaults).  v5e: prefer 128/256 wide N/K tiles (4x128^2 MXU, 16 MiB
# scoped VMEM default); v7x: keep <=256 (64 MiB VMEM per TC).
_TM, _TN, _TK = 256, 256, 512


def _default_vmem_limit():
    try:
        cap = int(pltpu.get_tpu_info().vmem_capacity_bytes)
        return max(16 * 1024 * 1024, min(cap // 2, 64 * 1024 * 1024))
    except Exception:
        return 32 * 1024 * 1024


_VMEM_LIMIT = _default_vmem_limit()


def _round_up(x, m):
    return ((x + m - 1) // m) * m


def _row_tile(m, cap=_TM):
    """Row tile (sublane-aligned) and padded row count."""
    if m <= cap:
        t = _round_up(m, 8)
        return t, t
    return cap, _round_up(m, cap)


# ----------------------------------------------------------------------------- kernels

def _linear_pallas(x, w, b, activation=None, out_dtype=jnp.float32):
    """act(x @ w + b), bf16 operands / f32 accumulation.  x:(M,K) w:(K,N) b:(N,).
    Lane dims (N, K) are padded to multiples of 128; nk==1 case skips the accumulator."""
    M, K = x.shape
    N = w.shape[1]

    tm, Mp = _row_tile(M, _TM)
    tn = _TN if N > _TN else _round_up(N, 128)
    tk = _TK if K > _TK else _round_up(K, 128)
    Np, Kp = _round_up(N, tn), _round_up(K, tk)

    xp = x.astype(jnp.bfloat16)
    if (M, K) != (Mp, Kp):
        xp = jnp.pad(xp, ((0, Mp - M), (0, Kp - K)))
    wp = w.astype(jnp.bfloat16)
    if (K, N) != (Kp, Np):
        wp = jnp.pad(wp, ((0, Kp - K), (0, Np - N)))
    bp = (b if N == Np else jnp.pad(b, (0, Np - N))).astype(jnp.float32).reshape(1, Np)

    nk = Kp // tk

    def finalize(acc):
        if activation == "relu":
            acc = jnp.maximum(acc, 0.0)
        elif activation == "sigmoid":
            acc = 1.0 / (1.0 + jnp.exp(-acc))
        return acc

    if nk == 1:
        # Single K pass: write dot + bias (+ activation) straight to the output block.
        def kernel(x_ref, w_ref, b_ref, o_ref):
            acc = jnp.dot(x_ref[...], w_ref[...],
                          preferred_element_type=jnp.float32) + b_ref[...]
            o_ref[...] = finalize(acc).astype(o_ref.dtype)

        out = pl.pallas_call(
            kernel,
            out_shape=jax.ShapeDtypeStruct((Mp, Np), out_dtype),
            grid=(Mp // tm, Np // tn),
            in_specs=[
                pl.BlockSpec((tm, tk), lambda i, j: (i, 0)),
                pl.BlockSpec((tk, tn), lambda i, j: (0, j)),
                pl.BlockSpec((1, tn), lambda i, j: (0, j)),
            ],
            out_specs=pl.BlockSpec((tm, tn), lambda i, j: (i, j)),
            compiler_params=pltpu.CompilerParams(
                dimension_semantics=("parallel", "parallel"),
                vmem_limit_bytes=_VMEM_LIMIT),
        )(xp, wp, bp)
    else:
        def kernel(x_ref, w_ref, b_ref, o_ref, acc_ref):
            @pl.when(pl.program_id(2) == 0)
            def _():
                acc_ref[...] = jnp.zeros_like(acc_ref)

            acc_ref[...] += jnp.dot(x_ref[...], w_ref[...],
                                    preferred_element_type=jnp.float32)

            @pl.when(pl.program_id(2) == nk - 1)
            def _():
                o_ref[...] = finalize(acc_ref[...] + b_ref[...]).astype(o_ref.dtype)

        out = pl.pallas_call(
            kernel,
            out_shape=jax.ShapeDtypeStruct((Mp, Np), out_dtype),
            grid=(Mp // tm, Np // tn, nk),
            in_specs=[
                pl.BlockSpec((tm, tk), lambda i, j, k: (i, k)),
                pl.BlockSpec((tk, tn), lambda i, j, k: (k, j)),
                pl.BlockSpec((1, tn), lambda i, j, k: (0, j)),
            ],
            out_specs=pl.BlockSpec((tm, tn), lambda i, j, k: (i, j)),
            scratch_shapes=[pltpu.VMEM((tm, tn), jnp.float32)],
            compiler_params=pltpu.CompilerParams(
                dimension_semantics=("parallel", "parallel", "arbitrary"),
                vmem_limit_bytes=_VMEM_LIMIT),
        )(xp, wp, bp)

    if (Mp, Np) != (M, N):
        out = out[:M, :N]
    return out


def _layernorm_pallas(x, gamma, beta, eps=1e-5):
    """LayerNorm over the last dim, row-tiled.  x:(M,D)."""
    M, D = x.shape
    tm, Mp = _row_tile(M)
    xp = x if Mp == M else jnp.pad(x, ((0, Mp - M), (0, 0)))

    def kernel(x_ref, g_ref, b_ref, o_ref):
        v = x_ref[...].astype(jnp.float32)
        mu = jnp.mean(v, axis=-1, keepdims=True)
        var = jnp.mean(jnp.square(v - mu), axis=-1, keepdims=True)
        o_ref[...] = ((v - mu) * jax.lax.rsqrt(var + eps) * g_ref[...]
                      + b_ref[...]).astype(o_ref.dtype)

    out = pl.pallas_call(
        kernel,
        out_shape=jax.ShapeDtypeStruct((Mp, D), jnp.float32),
        grid=(Mp // tm,),
        in_specs=[
            pl.BlockSpec((tm, D), lambda i: (i, 0)),
            pl.BlockSpec((1, D), lambda i: (0, 0)),
            pl.BlockSpec((1, D), lambda i: (0, 0)),
        ],
        out_specs=pl.BlockSpec((tm, D), lambda i: (i, 0)),
        compiler_params=pltpu.CompilerParams(dimension_semantics=("parallel",)),
    )(xp, gamma.reshape(1, D), beta.reshape(1, D))
    return out[:M] if Mp != M else out


def _proj_add_ln_pallas(attn, wo, bo, resid, gamma, beta, eps=1e-5):
    """Fused attention epilogue: LayerNorm(resid + attn @ wo + bo).
    attn:(M,D) bf16, resid:(M,D) f32; weight resident in bf16."""
    M, D = attn.shape
    tm, Mp = _row_tile(M, 128)
    ap = attn if Mp == M else jnp.pad(attn, ((0, Mp - M), (0, 0)))
    rp = resid if Mp == M else jnp.pad(resid, ((0, Mp - M), (0, 0)))

    def kernel(a_ref, w_ref, b_ref, r_ref, g_ref, bt_ref, o_ref):
        v = (r_ref[...].astype(jnp.float32)
             + jnp.dot(a_ref[...], w_ref[...], preferred_element_type=jnp.float32)
             + b_ref[...])
        mu = jnp.mean(v, axis=-1, keepdims=True)
        var = jnp.mean(jnp.square(v - mu), axis=-1, keepdims=True)
        o_ref[...] = ((v - mu) * jax.lax.rsqrt(var + eps) * g_ref[...]
                      + bt_ref[...]).astype(o_ref.dtype)

    out = pl.pallas_call(
        kernel,
        out_shape=jax.ShapeDtypeStruct((Mp, D), jnp.float32),
        grid=(Mp // tm,),
        in_specs=[
            pl.BlockSpec((tm, D), lambda i: (i, 0)),
            pl.BlockSpec((D, D), lambda i: (0, 0)),
            pl.BlockSpec((1, D), lambda i: (0, 0)),
            pl.BlockSpec((tm, D), lambda i: (i, 0)),
            pl.BlockSpec((1, D), lambda i: (0, 0)),
            pl.BlockSpec((1, D), lambda i: (0, 0)),
        ],
        out_specs=pl.BlockSpec((tm, D), lambda i: (i, 0)),
        compiler_params=pltpu.CompilerParams(
            dimension_semantics=("parallel",), vmem_limit_bytes=_VMEM_LIMIT),
    )(ap, wo.astype(jnp.bfloat16), bo.astype(jnp.float32).reshape(1, D), rp,
      gamma.reshape(1, D), beta.reshape(1, D))
    return out[:M] if Mp != M else out


def _ffn_ln_pallas(src, w1, b1, w2, b2, gamma, beta, eps=1e-5):
    """Fused transformer FFN block: LayerNorm(src + relu(src@w1+b1)@w2 + b2).
    Row tile capped at 128 to bound the (tm, F) intermediate; bf16-resident weights."""
    M, D = src.shape
    F = w1.shape[1]
    tm, Mp = _row_tile(M, 128)
    sp = src if Mp == M else jnp.pad(src, ((0, Mp - M), (0, 0)))

    def kernel(s_ref, w1_ref, b1_ref, w2_ref, b2_ref, g_ref, bt_ref, o_ref):
        s = s_ref[...].astype(jnp.float32)
        h = jnp.maximum(
            jnp.dot(s.astype(jnp.bfloat16), w1_ref[...],
                    preferred_element_type=jnp.float32) + b1_ref[...], 0.0)
        v = s + jnp.dot(h.astype(jnp.bfloat16), w2_ref[...],
                        preferred_element_type=jnp.float32) + b2_ref[...]
        mu = jnp.mean(v, axis=-1, keepdims=True)
        var = jnp.mean(jnp.square(v - mu), axis=-1, keepdims=True)
        o_ref[...] = ((v - mu) * jax.lax.rsqrt(var + eps) * g_ref[...]
                      + bt_ref[...]).astype(o_ref.dtype)

    out = pl.pallas_call(
        kernel,
        out_shape=jax.ShapeDtypeStruct((Mp, D), jnp.float32),
        grid=(Mp // tm,),
        in_specs=[
            pl.BlockSpec((tm, D), lambda i: (i, 0)),
            pl.BlockSpec((D, F), lambda i: (0, 0)),
            pl.BlockSpec((1, F), lambda i: (0, 0)),
            pl.BlockSpec((F, D), lambda i: (0, 0)),
            pl.BlockSpec((1, D), lambda i: (0, 0)),
            pl.BlockSpec((1, D), lambda i: (0, 0)),
            pl.BlockSpec((1, D), lambda i: (0, 0)),
        ],
        out_specs=pl.BlockSpec((tm, D), lambda i: (i, 0)),
        compiler_params=pltpu.CompilerParams(
            dimension_semantics=("parallel",), vmem_limit_bytes=_VMEM_LIMIT),
    )(sp, w1.astype(jnp.bfloat16), b1.astype(jnp.float32).reshape(1, F),
      w2.astype(jnp.bfloat16), b2.astype(jnp.float32).reshape(1, D),
      gamma.reshape(1, D), beta.reshape(1, D))
    return out[:M] if Mp != M else out


def _attention_pallas(q, k, v, bias, scale):
    """Batched softmax attention.  q:(B,H,Lq,Dh) k,v:(B,H,Lk,Dh) (bf16), bias:(B,1,Lk) f32.
    Grid (batch, Lq tiles) both "parallel"; all heads contracted with one batched
    dot_general; output assembled lane-dense as (B, Lq, H*Dh) in bf16."""
    B, H, Lq, Dh = q.shape
    Lk = k.shape[2]
    D = H * Dh

    tq, Lqp = _row_tile(Lq, 128)
    qp = q if Lqp == Lq else jnp.pad(q, ((0, 0), (0, 0), (0, Lqp - Lq), (0, 0)))

    # TODO(synk): for very long sequences (S >~ 2k) tile Lk with a flash-style online softmax.
    def kernel(q_ref, k_ref, v_ref, b_ref, o_ref):
        qh = q_ref[0]                                   # (H, tq, Dh) bf16
        kh = k_ref[0]                                   # (H, Lk, Dh) bf16
        vh = v_ref[0]                                   # (H, Lk, Dh) bf16
        s = jnp.einsum("hqd,hkd->hqk", qh, kh,
                       preferred_element_type=jnp.float32) * scale
        s = s + b_ref[0][None]                          # + (1, 1, Lk) key-padding bias
        s = s - jnp.max(s, axis=-1, keepdims=True)
        p = jnp.exp(s)
        p = p * pl.reciprocal(jnp.sum(p, axis=-1, keepdims=True), approx=True)
        o = jnp.einsum("hqk,hkd->hqd", p.astype(vh.dtype), vh,
                       preferred_element_type=jnp.float32)  # (H, tq, Dh)
        # concat heads in-register -> single lane-dense (tq, H*Dh) store
        o_ref[0] = jnp.concatenate([o[h] for h in range(H)],
                                   axis=-1).astype(o_ref.dtype)

    out = pl.pallas_call(
        kernel,
        out_shape=jax.ShapeDtypeStruct((B, Lqp, D), jnp.bfloat16),
        grid=(B, Lqp // tq),
        in_specs=[
            pl.BlockSpec((1, H, tq, Dh), lambda b, i: (b, 0, i, 0)),
            pl.BlockSpec((1, H, Lk, Dh), lambda b, i: (b, 0, 0, 0)),
            pl.BlockSpec((1, H, Lk, Dh), lambda b, i: (b, 0, 0, 0)),
            pl.BlockSpec((1, 1, Lk), lambda b, i: (b, 0, 0)),
        ],
        out_specs=pl.BlockSpec((1, tq, D), lambda b, i: (b, i, 0)),
        compiler_params=pltpu.CompilerParams(
            dimension_semantics=("parallel", "parallel"),
            vmem_limit_bytes=_VMEM_LIMIT),
    )(qp, k, v, bias)
    return out if Lqp == Lq else out[:, :Lq]


def _heads_pallas(x, wc, bc, w1, b1, w2, b2, w3, b3, num_classes_p1):
    """Fused prediction heads (final decoder layer only): class logits and
    sigmoid(bbox MLP).  Small output widths padded to 128 lanes, sliced afterwards."""
    M, D = x.shape
    C = num_classes_p1
    Cp = _round_up(C, 128)
    Bx = 128                                     # bbox width 4 -> 128 lanes
    tm, Mp = _row_tile(M, 128)

    xp = x if Mp == M else jnp.pad(x, ((0, Mp - M), (0, 0)))
    wcp = jnp.pad(wc, ((0, 0), (0, Cp - C))).astype(jnp.bfloat16)
    bcp = jnp.pad(bc, (0, Cp - C)).astype(jnp.float32).reshape(1, Cp)
    w3p = jnp.pad(w3, ((0, 0), (0, Bx - 4))).astype(jnp.bfloat16)
    b3p = jnp.pad(b3, (0, Bx - 4)).astype(jnp.float32).reshape(1, Bx)

    def kernel(x_ref, wc_ref, bc_ref, w1_ref, b1_ref, w2_ref, b2_ref,
               w3_ref, b3_ref, logit_ref, box_ref):
        xb = x_ref[...].astype(jnp.bfloat16)
        logit_ref[...] = (jnp.dot(xb, wc_ref[...], preferred_element_type=jnp.float32)
                          + bc_ref[...]).astype(logit_ref.dtype)
        h = jnp.maximum(
            jnp.dot(xb, w1_ref[...], preferred_element_type=jnp.float32) + b1_ref[...], 0.0)
        h = jnp.maximum(
            jnp.dot(h.astype(jnp.bfloat16), w2_ref[...],
                    preferred_element_type=jnp.float32) + b2_ref[...], 0.0)
        box = (jnp.dot(h.astype(jnp.bfloat16), w3_ref[...],
                       preferred_element_type=jnp.float32) + b3_ref[...])
        box_ref[...] = (1.0 / (1.0 + jnp.exp(-box))).astype(box_ref.dtype)

    logits, boxes = pl.pallas_call(
        kernel,
        out_shape=(jax.ShapeDtypeStruct((Mp, Cp), jnp.float32),
                   jax.ShapeDtypeStruct((Mp, Bx), jnp.float32)),
        grid=(Mp // tm,),
        in_specs=[
            pl.BlockSpec((tm, D), lambda i: (i, 0)),
            pl.BlockSpec((D, Cp), lambda i: (0, 0)),
            pl.BlockSpec((1, Cp), lambda i: (0, 0)),
            pl.BlockSpec((D, D), lambda i: (0, 0)),
            pl.BlockSpec((1, D), lambda i: (0, 0)),
            pl.BlockSpec((D, D), lambda i: (0, 0)),
            pl.BlockSpec((1, D), lambda i: (0, 0)),
            pl.BlockSpec((D, Bx), lambda i: (0, 0)),
            pl.BlockSpec((1, Bx), lambda i: (0, 0)),
        ],
        out_specs=(pl.BlockSpec((tm, Cp), lambda i: (i, 0)),
                   pl.BlockSpec((tm, Bx), lambda i: (i, 0))),
        compiler_params=pltpu.CompilerParams(
            dimension_semantics=("parallel",), vmem_limit_bytes=_VMEM_LIMIT),
    )(xp, wcp, bcp,
      w1.astype(jnp.bfloat16), b1.astype(jnp.float32).reshape(1, D),
      w2.astype(jnp.bfloat16), b2.astype(jnp.float32).reshape(1, D), w3p, b3p)
    return logits[:M, :C], boxes[:M, :4]


def _normalize_pallas(images, mean, std):
    """(x/255 - mean)/std on NCHW images, processed as lane-dense (B*C, H*W) rows with the
    lane (H*W) axis tiled so large images stay inside the VMEM budget."""
    B, C, H, W = images.shape
    M, L = B * C, H * W
    xf = images.reshape(M, L)
    scale = jnp.tile(1.0 / (255.0 * std), B).reshape(M, 1)
    offset = jnp.tile(-mean / std, B).reshape(M, 1)

    tm, Mp = _row_tile(M)
    tl = min(_round_up(L, 128), 4096)
    Lp = _round_up(L, tl)
    if (Mp, Lp) != (M, L):
        xf = jnp.pad(xf, ((0, Mp - M), (0, Lp - L)))
    if Mp != M:
        scale = jnp.pad(scale, ((0, Mp - M), (0, 0)))
        offset = jnp.pad(offset, ((0, Mp - M), (0, 0)))

    def kernel(x_ref, sc_ref, off_ref, o_ref):
        o_ref[...] = x_ref[...] * sc_ref[...] + off_ref[...]

    out = pl.pallas_call(
        kernel,
        out_shape=jax.ShapeDtypeStruct((Mp, Lp), jnp.float32),
        grid=(Mp // tm, Lp // tl),
        in_specs=[
            pl.BlockSpec((tm, tl), lambda i, j: (i, j)),
            pl.BlockSpec((tm, 1), lambda i, j: (i, 0)),
            pl.BlockSpec((tm, 1), lambda i, j: (i, 0)),
        ],
        out_specs=pl.BlockSpec((tm, tl), lambda i, j: (i, j)),
        compiler_params=pltpu.CompilerParams(
            dimension_semantics=("parallel", "parallel")),
    )(xf, scale, offset)
    return out[:M, :L].reshape(B, C, H, W)


# ----------------------------------------------------------------------- model pieces

def _split_heads(x, num_heads):
    """(B, L, D) -> (B, H, L, Dh)."""
    B, L, D = x.shape
    return x.reshape(B, L, num_heads, D // num_heads).transpose(0, 2, 1, 3)


def mha_block(q_in, k_in, v_in, residual, key_padding_mask, p, ln_g, ln_b, num_heads):
    """nn.MultiheadAttention + output projection + residual add + LayerNorm, batch-first.
    q_in:(B,Lq,D) k_in,v_in:(B,Lk,D) residual:(B,Lq,D) -> (B,Lq,D) f32."""
    B, Lq, D = q_in.shape
    Lk = k_in.shape[1]
    Dh = D // num_heads

    if q_in is k_in:                       # self-attention: fused Q|K projection
        qk = _linear_pallas(q_in.reshape(B * Lq, D),
                            jnp.concatenate([p["wq"], p["wk"]], axis=1),
                            jnp.concatenate([p["bq"], p["bk"]]),
                            out_dtype=jnp.bfloat16).reshape(B, Lq, 2 * D)
        q, k = qk[:, :, :D], qk[:, :, D:]
    else:
        q = _linear_pallas(q_in.reshape(B * Lq, D), p["wq"], p["bq"],
                           out_dtype=jnp.bfloat16).reshape(B, Lq, D)
        k = _linear_pallas(k_in.reshape(B * Lk, D), p["wk"], p["bk"],
                           out_dtype=jnp.bfloat16).reshape(B, Lk, D)
    v = _linear_pallas(v_in.reshape(B * Lk, D), p["wv"], p["bv"],
                       out_dtype=jnp.bfloat16).reshape(B, Lk, D)

    q = _split_heads(q, num_heads)
    k = _split_heads(k, num_heads)
    v = _split_heads(v, num_heads)

    if key_padding_mask is None:
        bias = jnp.zeros((B, 1, Lk), jnp.float32)
    else:
        bias = jnp.where(key_padding_mask, -1e9, 0.0).astype(jnp.float32).reshape(B, 1, Lk)

    o = _attention_pallas(q, k, v, bias, 1.0 / math.sqrt(Dh))       # (B, Lq, D) bf16
    out = _proj_add_ln_pallas(o.reshape(B * Lq, D), p["wo"], p["bo"],
                              residual.reshape(B * Lq, D), ln_g, ln_b)
    return out.reshape(B, Lq, D)


def encoder_layer(src, pos, mask, p, nh):
    B, S, D = src.shape
    q = src + pos
    src = mha_block(q, q, src, src, mask, p["attn"], p["ln1_g"], p["ln1_b"], nh)
    src = _ffn_ln_pallas(src.reshape(B * S, D), p["ffn_w1"], p["ffn_b1"],
                         p["ffn_w2"], p["ffn_b2"],
                         p["ln2_g"], p["ln2_b"]).reshape(B, S, D)
    return src


def decoder_layer(tgt, mem_k, memory, query_pos, mem_mask, p, nh):
    B, Qn, D = tgt.shape
    q = tgt + query_pos
    tgt = mha_block(q, q, tgt, tgt, None, p["self_attn"], p["ln1_g"], p["ln1_b"], nh)
    tgt = mha_block(tgt + query_pos, mem_k, memory, tgt, mem_mask,
                    p["cross_attn"], p["ln2_g"], p["ln2_b"], nh)
    tgt = _ffn_ln_pallas(tgt.reshape(B * Qn, D), p["ffn_w1"], p["ffn_b1"],
                         p["ffn_w2"], p["ffn_b2"],
                         p["ln3_g"], p["ln3_b"]).reshape(B, Qn, D)
    return tgt


def transformer_forward(src, mask_flat, query_embed, pos_embed, params, cfg):
    nh = cfg["num_heads"]
    B, S, D = src.shape
    memory = src
    for lp in params["encoder"]:
        memory = encoder_layer(memory, pos_embed, mask_flat, lp, nh)
    mem_k = memory + pos_embed                 # hoisted: constant across decoder layers
    Qn = query_embed.shape[0]
    query_pos = jnp.broadcast_to(query_embed[None, :, :], (B, Qn, D))
    tgt = jnp.zeros((B, Qn, D), jnp.float32)
    for lp in params["decoder"]:
        tgt = decoder_layer(tgt, mem_k, memory, query_pos, mask_flat, lp, nh)
    # Inference: only the final decoder layer output feeds the prediction heads.
    hs_last = _layernorm_pallas(tgt.reshape(B * Qn, D),
                                params["dec_norm_g"],
                                params["dec_norm_b"]).reshape(B, Qn, D)
    return hs_last


def sine_pos_embed(mask, num_pos_feats, temperature):
    """PositionEmbeddingSine(normalize=True).  mask:(B,Hf,Wf) bool -> (B,Hf,Wf,2*num_pos_feats)."""
    not_mask = (~mask).astype(jnp.float32)
    y_embed = jnp.cumsum(not_mask, axis=1)
    x_embed = jnp.cumsum(not_mask, axis=2)
    eps = 1e-6
    scale = 2.0 * math.pi
    y_embed = y_embed / (y_embed[:, -1:, :] + eps) * scale
    x_embed = x_embed / (x_embed[:, :, -1:] + eps) * scale
    dim_t = jnp.arange(num_pos_feats, dtype=jnp.float32)
    dim_t = temperature ** (2.0 * jnp.floor(dim_t / 2.0) / num_pos_feats)
    pos_x = x_embed[..., None] / dim_t
    pos_y = y_embed[..., None] / dim_t

    def interleave(p):
        s = jnp.sin(p[..., 0::2])
        c = jnp.cos(p[..., 1::2])
        return jnp.stack([s, c], axis=-1).reshape(p.shape[0], p.shape[1], p.shape[2], -1)

    return jnp.concatenate([interleave(pos_y), interleave(pos_x)], axis=-1)


def box_cxcywh_to_xyxy(x):
    cx, cy, w, h = jnp.split(x, 4, axis=-1)
    return jnp.concatenate([cx - 0.5 * w, cy - 0.5 * h, cx + 0.5 * w, cy + 0.5 * h], axis=-1)


def post_process(out, target_sizes):
    """PostProcess.forward (inference)."""
    logits, bbox = out["pred_logits"], out["pred_boxes"]
    prob = jax.nn.softmax(logits, -1)
    scores = prob[..., :-1].max(-1)
    labels = prob[..., :-1].argmax(-1)
    boxes = box_cxcywh_to_xyxy(bbox)
    img_h, img_w = target_sizes[:, 0], target_sizes[:, 1]
    scale_fct = jnp.stack([img_w, img_h, img_w, img_h], axis=1)
    boxes = boxes * scale_fct[:, None, :]
    return [{"scores": scores[i], "labels": labels[i], "boxes": boxes[i]}
            for i in range(logits.shape[0])]


# --------------------------------------------------------------------------- DETR fwd

def detr_forward(images, params, cfg):
    B, C, H, W = images.shape
    patch, D = cfg["patch"], cfg["hidden_dim"]

    # preprocess_image: (x/255 - mean)/std  (STRIDE_IN_1X1=False path)
    x = _normalize_pallas(images, params["pixel_mean"], params["pixel_std"])   # (B,C,H,W)
    x = x.transpose(0, 2, 3, 1)                                                # NHWC

    # TODO(synk): cfg.build_backbone ResNet 'res5' is replaced by a deterministic patchify+linear stand-in.
    Hf, Wf = H // patch, W // patch
    patches = x.reshape(B, Hf, patch, Wf, patch, C).transpose(0, 1, 3, 2, 4, 5)
    patches = patches.reshape(B * Hf * Wf, patch * patch * C)
    feat = _linear_pallas(patches, params["backbone"]["w"], params["backbone"]["b"],
                          activation="relu")                                   # (B*Hf*Wf, Cb)

    # images fill the whole batch tensor -> mask is all-valid (all False)
    mask = jnp.zeros((B, Hf, Wf), bool)
    pos = sine_pos_embed(mask, D // 2, cfg["temperature"])                     # (B,Hf,Wf,D)

    # input_proj: 1x1 Conv2d == per-pixel linear
    src = _linear_pallas(feat, params["input_proj"]["w"], params["input_proj"]["b"])

    S = Hf * Wf
    src = src.reshape(B, S, D)
    pos_flat = pos.reshape(B, S, D)
    mask_flat = mask.reshape(B, S)

    hs_last = transformer_forward(src, mask_flat, params["query_embed"], pos_flat,
                                  params, cfg)                                 # (B, Qn, D)
    Qn = hs_last.shape[1]

    logits, coords = _heads_pallas(
        hs_last.reshape(B * Qn, D),
        params["class_embed"]["w"], params["class_embed"]["b"],
        params["bbox1"]["w"], params["bbox1"]["b"],
        params["bbox2"]["w"], params["bbox2"]["b"],
        params["bbox3"]["w"], params["bbox3"]["b"],
        cfg["num_classes"] + 1)

    out = {"pred_logits": logits.reshape(B, Qn, -1),
           "pred_boxes": coords.reshape(B, Qn, 4)}
    # TODO(synk): training path (aux_outputs / SetCriterion / HungarianMatcher) not implemented
    # (data-dependent bipartite matching; inference output matches the reference eval path).
    return out


# ------------------------------------------------------------------------------ init

def init_params(key, cfg):
    D = cfg["hidden_dim"]
    keys = iter(jax.random.split(key, 512))

    def lin(din, dout):
        w = jax.random.normal(next(keys), (din, dout), jnp.float32) * (1.0 / math.sqrt(din))
        return {"w": w, "b": jnp.zeros((dout,), jnp.float32)}

    def mha_p():
        d = {}
        for n in ("q", "k", "v", "o"):
            l = lin(D, D)
            d["w" + n], d["b" + n] = l["w"], l["b"]
        return d

    def enc_layer():
        f1, f2 = lin(D, cfg["ffn_dim"]), lin(cfg["ffn_dim"], D)
        return {"attn": mha_p(),
                "ln1_g": jnp.ones((D,)), "ln1_b": jnp.zeros((D,)),
                "ln2_g": jnp.ones((D,)), "ln2_b": jnp.zeros((D,)),
                "ffn_w1": f1["w"], "ffn_b1": f1["b"],
                "ffn_w2": f2["w"], "ffn_b2": f2["b"]}

    def dec_layer():
        f1, f2 = lin(D, cfg["ffn_dim"]), lin(cfg["ffn_dim"], D)
        return {"self_attn": mha_p(), "cross_attn": mha_p(),
                "ln1_g": jnp.ones((D,)), "ln1_b": jnp.zeros((D,)),
                "ln2_g": jnp.ones((D,)), "ln2_b": jnp.zeros((D,)),
                "ln3_g": jnp.ones((D,)), "ln3_b": jnp.zeros((D,)),
                "ffn_w1": f1["w"], "ffn_b1": f1["b"],
                "ffn_w2": f2["w"], "ffn_b2": f2["b"]}

    params = {
        "pixel_mean": jnp.array([0.485, 0.456, 0.406], jnp.float32),
        "pixel_std": jnp.array([0.229, 0.224, 0.225], jnp.float32),
        "backbone": lin(cfg["patch"] * cfg["patch"] * 3, cfg["backbone_ch"]),
        "input_proj": lin(cfg["backbone_ch"], D),
        "query_embed": jax.random.normal(next(keys), (cfg["num_queries"], D), jnp.float32),
        "encoder": [enc_layer() for _ in range(cfg["num_enc_layers"])],
        "decoder": [dec_layer() for _ in range(cfg["num_dec_layers"])],
        "dec_norm_g": jnp.ones((D,)), "dec_norm_b": jnp.zeros((D,)),
        "class_embed": lin(D, cfg["num_classes"] + 1),
        "bbox1": lin(D, D), "bbox2": lin(D, D), "bbox3": lin(D, 4),
    }
    return params


# ------------------------------------------------------------------------------ main

if __name__ == "__main__":
    cfg = {
        "hidden_dim": 32, "num_heads": 4, "ffn_dim": 64,
        "num_enc_layers": 2, "num_dec_layers": 2,
        "num_queries": 8, "num_classes": 6,
        "patch": 8, "backbone_ch": 64, "temperature": 10000.0,
    }

    key = jax.random.PRNGKey(0)
    k_img, k_par = jax.random.split(key)

    B, C, H, W = 2, 3, 32, 32
    images = jax.random.uniform(k_img, (B, C, H, W), jnp.float32, 0.0, 255.0)
    params = init_params(k_par, cfg)

    forward = jax.jit(lambda imgs, prm: detr_forward(imgs, prm, cfg))
    out = forward(images, params)

    target_sizes = jnp.array([[H, W], [H, W]], jnp.float32)
    results = post_process(out, target_sizes)

    jax.block_until_ready((out["pred_logits"], out["pred_boxes"], results))
    print("KERNEL_OK")
</pallas_src>

<mosaic_0001>
module attributes {stable_mosaic.version = 11 : i64} {
  func.func @kernel(%arg0: i32, %arg1: i32, %arg2: memref<16x128xbf16, #tpu.memory_space<vmem>>, %arg3: memref<128x128xbf16, #tpu.memory_space<vmem>>, %arg4: memref<1x128xf32, #tpu.memory_space<vmem>>, %arg5: memref<16x128xbf16, #tpu.memory_space<vmem>>) attributes {dimension_semantics = [#tpu.dimension_semantics<parallel>, #tpu.dimension_semantics<parallel>], iteration_bounds = array<i64: 1, 1>, scalar_prefetch = 0 : i64, scratch_operands = 0 : i64, tpu.core_type = #tpu.core_type<tc>, window_params = [{transform_indices = @transform_0, window_bounds = array<i64: 16, 128>}, {transform_indices = @transform_1, window_bounds = array<i64: 128, 128>}, {transform_indices = @transform_2, window_bounds = array<i64: 1, 128>}, {transform_indices = @transform_3, window_bounds = array<i64: 16, 128>}]} {
    %c0 = arith.constant 0 : index
    %c0_0 = arith.constant 0 : index
    %0 = vector.load %arg2[%c0, %c0_0] : memref<16x128xbf16, #tpu.memory_space<vmem>>, vector<16x128xbf16>
    %c0_1 = arith.constant 0 : index
    %c0_2 = arith.constant 0 : index
    %1 = vector.load %arg3[%c0_1, %c0_2] : memref<128x128xbf16, #tpu.memory_space<vmem>>, vector<128x128xbf16>
    %cst = arith.constant dense<0.000000e+00> : vector<16x128xf32>
    %2 = tpu.matmul %0, %1, %cst {dimension_numbers = #tpu.dot_dimension_numbers<[1], [0], [0], [1], [0, 0, 1, 1], [], []>} : vector<16x128xbf16>, vector<128x128xbf16>, vector<16x128xf32> -> vector<16x128xf32>
    %c0_3 = arith.constant 0 : index
    %c0_4 = arith.constant 0 : index
    %3 = vector.load %arg4[%c0_3, %c0_4] : memref<1x128xf32, #tpu.memory_space<vmem>>, vector<1x128xf32>
    %4 = vector.broadcast %3 : vector<1x128xf32> to vector<16x128xf32>
    %5 = arith.addf %2, %4 : vector<16x128xf32>
    %6 = arith.truncf %5 : vector<16x128xf32> to vector<16x128xbf16>
    %c0_5 = arith.constant 0 : index
    %c0_6 = arith.constant 0 : index
    %7 = vector.load %arg5[%c0_5, %c0_6] : memref<16x128xbf16, #tpu.memory_space<vmem>>, vector<16x128xbf16>
    tpu.vector_store %arg5[%c0_5, %c0_6], %6 {strides = array<i32>} : memref<16x128xbf16, #tpu.memory_space<vmem>>, vector<16x128xbf16>,
    return
  }
  func.func @transform_0(%arg0: i32, %arg1: i32) -> (i32, i32) {
    %c0_i32 = arith.constant 0 : i32
    %c0_i32_0 = arith.constant 0 : i32
    return %arg0, %c0_i32 : i32, i32
  }
  func.func @transform_1(%arg0: i32, %arg1: i32) -> (i32, i32) {
    %c0_i32 = arith.constant 0 : i32
    %c0_i32_0 = arith.constant 0 : i32
    return %c0_i32, %arg1 : i32, i32
  }
  func.func @transform_2(%arg0: i32, %arg1: i32) -> (i32, i32) {
    %c0_i32 = arith.constant 0 : i32
    %c0_i32_0 = arith.constant 0 : i32
    return %c0_i32, %arg1 : i32, i32
  }
  func.func @transform_3(%arg0: i32, %arg1: i32) -> (i32, i32) {
    %c0_i32 = arith.constant 0 : i32
    return %arg0, %arg1 : i32, i32
  }
}

module attributes {stable_mosaic.version = 11 : i64} {
  func.func @kernel(%arg0: i32, %arg1: i32, %arg2: memref<1x4x8x8xbf16, #tpu.memory_space<vmem>>, %arg3: memref<1x4x8x8xbf16, #tpu.memory_space<vmem>>, %arg4: memref<1x4x8x8xbf16, #tpu.memory_space<vmem>>, %arg5: memref<1x1x8xf32, #tpu.memory_space<vmem>>, %arg6: memref<1x8x32xbf16, #tpu.memory_space<vmem>>) attributes {dimension_semantics = [#tpu.dimension_semantics<parallel>, #tpu.dimension_semantics<parallel>], iteration_bounds = array<i64: 2, 1>, scalar_prefetch = 0 : i64, scratch_operands = 0 : i64, tpu.core_type = #tpu.core_type<tc>, window_params = [{transform_indices = @transform_0, window_bounds = array<i64: 1, 4, 8, 8>}, {transform_indices = @transform_1, window_bounds = array<i64: 1, 4, 8, 8>}, {transform_indices = @transform_2, window_bounds = array<i64: 1, 4, 8, 8>}, {transform_indices = @transform_3, window_bounds = array<i64: 1, 1, 8>}, {transform_indices = @transform_4, window_bounds = array<i64: 1, 8, 32>}]} {
    %c0 = arith.constant 0 : index
    %c0_0 = arith.constant 0 : index
    %c0_1 = arith.constant 0 : index
    %c0_2 = arith.constant 0 : index
    %0 = vector.load %arg2[%c0, %c0_0, %c0_1, %c0_2] : memref<1x4x8x8xbf16, #tpu.memory_space<vmem>>, vector<1x4x8x8xbf16>
    %1 = vector.shape_cast %0 : vector<1x4x8x8xbf16> to vector<4x8x8xbf16>
    %c0_3 = arith.constant 0 : index
    %c0_4 = arith.constant 0 : index
    %c0_5 = arith.constant 0 : index
    %c0_6 = arith.constant 0 : index
    %2 = vector.load %arg3[%c0_3, %c0_4, %c0_5, %c0_6] : memref<1x4x8x8xbf16, #tpu.memory_space<vmem>>, vector<1x4x8x8xbf16>
    %3 = vector.shape_cast %2 : vector<1x4x8x8xbf16> to vector<4x8x8xbf16>
    %c0_7 = arith.constant 0 : index
    %c0_8 = arith.constant 0 : index
    %c0_9 = arith.constant 0 : index
    %c0_10 = arith.constant 0 : index
    %4 = vector.load %arg4[%c0_7, %c0_8, %c0_9, %c0_10] : memref<1x4x8x8xbf16, #tpu.memory_space<vmem>>, vector<1x4x8x8xbf16>
    %5 = vector.shape_cast %4 : vector<1x4x8x8xbf16> to vector<4x8x8xbf16>
    "tpu.trace_start"() <{level = 10 : i32, message = "hqd,hkd->hqk"}> : () -> ()
    %cst = arith.constant dense<0.000000e+00> : vector<4x8x8xf32>
    %6 = tpu.matmul %1, %3, %cst {dimension_numbers = #tpu.dot_dimension_numbers<[2], [2], [1], [1], [0, 0, 0, 1, 1, 1], [0], [0]>} : vector<4x8x8xbf16>, vector<4x8x8xbf16>, vector<4x8x8xf32> -> vector<4x8x8xf32>
    "tpu.trace_stop"() : () -> ()
    %cst_11 = arith.constant 0.353553385 : f32
    %7 = vector.broadcast %cst_11 : f32 to vector<4x8x8xf32>
    %8 = arith.mulf %6, %7 : vector<4x8x8xf32>
    %c0_12 = arith.constant 0 : index
    %c0_13 = arith.constant 0 : index
    %c0_14 = arith.constant 0 : index
    %9 = vector.load %arg5[%c0_12, %c0_13, %c0_14] : memref<1x1x8xf32, #tpu.memory_space<vmem>>, vector<1x1x8xf32>
    %10 = vector.shape_cast %9 : vector<1x1x8xf32> to vector<1x8xf32>
    %11 = vector.shape_cast %10 : vector<1x8xf32> to vector<1x1x8xf32>
    %12 = vector.broadcast %11 : vector<1x1x8xf32> to vector<4x8x8xf32>
    %13 = arith.addf %8, %12 : vector<4x8x8xf32>
    %cst_15 = arith.constant dense<0xFF800000> : vector<4x8xf32>
    %14 = vector.multi_reduction <maximumf>, %13, %cst_15 [2] : vector<4x8x8xf32> to vector<4x8xf32>
    %15 = vector.shape_cast %14 : vector<4x8xf32> to vector<4x8x1xf32>
    %16 = vector.broadcast %15 : vector<4x8x1xf32> to vector<4x8x8xf32>
    %17 = arith.subf %13, %16 : vector<4x8x8xf32>
    %18 = math.exp %17 : vector<4x8x8xf32>
    %cst_16 = arith.constant dense<0.000000e+00> : vector<4x8xf32>
    %19 = vector.multi_reduction <add>, %18, %cst_16 [2] : vector<4x8x8xf32> to vector<4x8xf32>
    %20 = vector.shape_cast %19 : vector<4x8xf32> to vector<4x8x1xf32>
    %21 = tpu.reciprocal %20 {approx = true} : vector<4x8x1xf32> -> vector<4x8x1xf32>
    %22 = vector.broadcast %21 : vector<4x8x1xf32> to vector<4x8x8xf32>
    %23 = arith.mulf %18, %22 : vector<4x8x8xf32>
    %24 = arith.truncf %23 : vector<4x8x8xf32> to vector<4x8x8xbf16>
    "tpu.trace_start"() <{level = 10 : i32, message = "hqk,hkd->hqd"}> : () -> ()
    %cst_17 = arith.constant dense<0.000000e+00> : vector<4x8x8xf32>
    %25 = tpu.matmul %24, %5, %cst_17 {dimension_numbers = #tpu.dot_dimension_numbers<[2], [1], [1], [2], [0, 0, 0, 1, 1, 2], [0], [0]>} : vector<4x8x8xbf16>, vector<4x8x8xbf16>, vector<4x8x8xf32> -> vector<4x8x8xf32>
    "tpu.trace_stop"() : () -> ()
    %26 = vector.extract_strided_slice %25 {offsets = [0, 0, 0], sizes = [1, 8, 8], strides = [1, 1, 1]} : vector<4x8x8xf32> to vector<1x8x8xf32>
    %27 = vector.shape_cast %26 : vector<1x8x8xf32> to vector<8x8xf32>
    %28 = vector.extract_strided_slice %25 {offsets = [1, 0, 0], sizes = [1, 8, 8], strides = [1, 1, 1]} : vector<4x8x8xf32> to vector<1x8x8xf32>
    %29 = vector.shape_cast %28 : vector<1x8x8xf32> to vector<8x8xf32>
    %30 = vector.extract_strided_slice %25 {offsets = [2, 0, 0], sizes = [1, 8, 8], strides = [1, 1, 1]} : vector<4x8x8xf32> to vector<1x8x8xf32>
    %31 = vector.shape_cast %30 : vector<1x8x8xf32> to vector<8x8xf32>
    %32 = vector.extract_strided_slice %25 {offsets = [3, 0, 0], sizes = [1, 8, 8], strides = [1, 1, 1]} : vector<4x8x8xf32> to vector<1x8x8xf32>
    %33 = vector.shape_cast %32 : vector<1x8x8xf32> to vector<8x8xf32>
    %34 = tpu.concatenate %27, %29, %31, %33 in 1 : vector<8x8xf32>, vector<8x8xf32>, vector<8x8xf32>, vector<8x8xf32> -> vector<8x32xf32>
    %35 = arith.truncf %34 : vector<8x32xf32> to vector<8x32xbf16>
    %c0_18 = arith.constant 0 : index
    %c0_19 = arith.constant 0 : index
    %c0_20 = arith.constant 0 : index
    %36 = vector.load %arg6[%c0_18, %c0_19, %c0_20] : memref<1x8x32xbf16, #tpu.memory_space<vmem>>, vector<1x8x32xbf16>
    %37 = vector.shape_cast %36 : vector<1x8x32xbf16> to vector<8x32xbf16>
    %38 = vector.shape_cast %35 : vector<8x32xbf16> to vector<1x8x32xbf16>
    tpu.vector_store %arg6[%c0_18, %c0_19, %c0_20], %38 {strides = array<i32>} : memref<1x8x32xbf16, #tpu.memory_space<vmem>>, vector<1x8x32xbf16>,
    return
  }
  func.func @transform_0(%arg0: i32, %arg1: i32) -> (i32, i32, i32, i32) {
    %c0_i32 = arith.constant 0 : i32
    %c0_i32_0 = arith.constant 0 : i32
    %c0_i32_1 = arith.constant 0 : i32
    return %arg0, %c0_i32, %arg1, %c0_i32_0 : i32, i32, i32, i32
  }
  func.func @transform_1(%arg0: i32, %arg1: i32) -> (i32, i32, i32, i32) {
    %c0_i32 = arith.constant 0 : i32
    %c0_i32_0 = arith.constant 0 : i32
    %c0_i32_1 = arith.constant 0 : i32
    %c0_i32_2 = arith.constant 0 : i32
    return %arg0, %c0_i32, %c0_i32_0, %c0_i32_1 : i32, i32, i32, i32
  }
  func.func @transform_2(%arg0: i32, %arg1: i32) -> (i32, i32, i32, i32) {
    %c0_i32 = arith.constant 0 : i32
    %c0_i32_0 = arith.constant 0 : i32
    %c0_i32_1 = arith.constant 0 : i32
    %c0_i32_2 = arith.constant 0 : i32
    return %arg0, %c0_i32, %c0_i32_0, %c0_i32_1 : i32, i32, i32, i32
  }
  func.func @transform_3(%arg0: i32, %arg1: i32) -> (i32, i32, i32) {
    %c0_i32 = arith.constant 0 : i32
    %c0_i32_0 = arith.constant 0 : i32
    %c0_i32_1 = arith.constant 0 : i32
    return %arg0, %c0_i32, %c0_i32_0 : i32, i32, i32
  }
  func.func @transform_4(%arg0: i32, %arg1: i32) -> (i32, i32, i32) {
    %c0_i32 = arith.constant 0 : i32
    %c0_i32_0 = arith.constant 0 : i32
    return %arg0, %arg1, %c0_i32 : i32, i32, i32
  }
}

module attributes {stable_mosaic.version = 11 : i64} {
  func.func @kernel(%arg0: i32, %arg1: memref<16x32xbf16, #tpu.memory_space<vmem>>, %arg2: memref<32x32xbf16, #tpu.memory_space<vmem>>, %arg3: memref<1x32xf32, #tpu.memory_space<vmem>>, %arg4: memref<16x32xf32, #tpu.memory_space<vmem>>, %arg5: memref<1x32xf32, #tpu.memory_space<vmem>>, %arg6: memref<1x32xf32, #tpu.memory_space<vmem>>, %arg7: memref<16x32xf32, #tpu.memory_space<vmem>>) attributes {dimension_semantics = [#tpu.dimension_semantics<parallel>], iteration_bounds = array<i64: 1>, scalar_prefetch = 0 : i64, scratch_operands = 0 : i64, tpu.core_type = #tpu.core_type<tc>, window_params = [{transform_indices = @transform_0, window_bounds = array<i64: 16, 32>}, {pipeline_mode = #tpu.pipeline_mode<synchronous>, transform_indices = @transform_1, window_bounds = array<i64: 32, 32>}, {pipeline_mode = #tpu.pipeline_mode<synchronous>, transform_indices = @transform_2, window_bounds = array<i64: 1, 32>}, {transform_indices = @transform_3, window_bounds = array<i64: 16, 32>}, {pipeline_mode = #tpu.pipeline_mode<synchronous>, transform_indices = @transform_4, window_bounds = array<i64: 1, 32>}, {pipeline_mode = #tpu.pipeline_mode<synchronous>, transform_indices = @transform_5, window_bounds = array<i64: 1, 32>}, {transform_indices = @transform_6, window_bounds = array<i64: 16, 32>}]} {
    %c0 = arith.constant 0 : index
    %c0_0 = arith.constant 0 : index
    %0 = vector.load %arg4[%c0, %c0_0] : memref<16x32xf32, #tpu.memory_space<vmem>>, vector<16x32xf32>
    %c0_1 = arith.constant 0 : index
    %c0_2 = arith.constant 0 : index
    %1 = vector.load %arg1[%c0_1, %c0_2] : memref<16x32xbf16, #tpu.memory_space<vmem>>, vector<16x32xbf16>
    %c0_3 = arith.constant 0 : index
    %c0_4 = arith.constant 0 : index
    %2 = vector.load %arg2[%c0_3, %c0_4] : memref<32x32xbf16, #tpu.memory_space<vmem>>, vector<32x32xbf16>
    %cst = arith.constant dense<0.000000e+00> : vector<16x32xf32>
    %3 = tpu.matmul %1, %2, %cst {dimension_numbers = #tpu.dot_dimension_numbers<[1], [0], [0], [1], [0, 0, 1, 1], [], []>} : vector<16x32xbf16>, vector<32x32xbf16>, vector<16x32xf32> -> vector<16x32xf32>
    %4 = arith.addf %0, %3 : vector<16x32xf32>
    %c0_5 = arith.constant 0 : index
    %c0_6 = arith.constant 0 : index
    %5 = vector.load %arg3[%c0_5, %c0_6] : memref<1x32xf32, #tpu.memory_space<vmem>>, vector<1x32xf32>
    %6 = vector.broadcast %5 : vector<1x32xf32> to vector<16x32xf32>
    %7 = arith.addf %4, %6 : vector<16x32xf32>
    %cst_7 = arith.constant dense<0.000000e+00> : vector<16xf32>
    %8 = vector.multi_reduction <add>, %7, %cst_7 [1] : vector<16x32xf32> to vector<16xf32>
    %9 = vector.shape_cast %8 : vector<16xf32> to vector<16x1xf32>
    %cst_8 = arith.constant 3.200000e+01 : f32
    %10 = vector.broadcast %cst_8 : f32 to vector<16x1xf32>
    %11 = arith.divf %9, %10 : vector<16x1xf32>
    %12 = vector.broadcast %11 : vector<16x1xf32> to vector<16x32xf32>
    %13 = arith.subf %7, %12 : vector<16x32xf32>
    %14 = arith.mulf %13, %13 : vector<16x32xf32>
    %cst_9 = arith.constant dense<0.000000e+00> : vector<16xf32>
    %15 = vector.multi_reduction <add>, %14, %cst_9 [1] : vector<16x32xf32> to vector<16xf32>
    %16 = vector.shape_cast %15 : vector<16xf32> to vector<16x1xf32>
    %cst_10 = arith.constant 3.200000e+01 : f32
    %17 = vector.broadcast %cst_10 : f32 to vector<16x1xf32>
    %18 = arith.divf %16, %17 : vector<16x1xf32>
    %19 = vector.broadcast %11 : vector<16x1xf32> to vector<16x32xf32>
    %20 = arith.subf %7, %19 : vector<16x32xf32>
    %cst_11 = arith.constant 9.99999974E-6 : f32
    %21 = vector.broadcast %cst_11 : f32 to vector<16x1xf32>
    %22 = arith.addf %18, %21 : vector<16x1xf32>
    %23 = math.rsqrt %22 : vector<16x1xf32>
    %24 = vector.broadcast %23 : vector<16x1xf32> to vector<16x32xf32>
    %25 = arith.mulf %20, %24 : vector<16x32xf32>
    %c0_12 = arith.constant 0 : index
    %c0_13 = arith.constant 0 : index
    %26 = vector.load %arg5[%c0_12, %c0_13] : memref<1x32xf32, #tpu.memory_space<vmem>>, vector<1x32xf32>
    %27 = vector.broadcast %26 : vector<1x32xf32> to vector<16x32xf32>
    %28 = arith.mulf %25, %27 : vector<16x32xf32>
    %c0_14 = arith.constant 0 : index
    %c0_15 = arith.constant 0 : index
    %29 = vector.load %arg6[%c0_14, %c0_15] : memref<1x32xf32, #tpu.memory_space<vmem>>, vector<1x32xf32>
    %30 = vector.broadcast %29 : vector<1x32xf32> to vector<16x32xf32>
    %31 = arith.addf %28, %30 : vector<16x32xf32>
    %c0_16 = arith.constant 0 : index
    %c0_17 = arith.constant 0 : index
    %32 = vector.load %arg7[%c0_16, %c0_17] : memref<16x32xf32, #tpu.memory_space<vmem>>, vector<16x32xf32>
    tpu.vector_store %arg7[%c0_16, %c0_17], %31 {strides = array<i32>} : memref<16x32xf32, #tpu.memory_space<vmem>>, vector<16x32xf32>,
    return
  }
  func.func @transform_0(%arg0: i32) -> (i32, i32) {
    %c0_i32 = arith.constant 0 : i32
    %c0_i32_0 = arith.constant 0 : i32
    return %arg0, %c0_i32 : i32, i32
  }
  func.func @transform_1(%arg0: i32) -> (i32, i32) {
    %c0_i32 = arith.constant 0 : i32
    %c0_i32_0 = arith.constant 0 : i32
    %c0_i32_1 = arith.constant 0 : i32
    return %c0_i32, %c0_i32_0 : i32, i32
  }
  func.func @transform_2(%arg0: i32) -> (i32, i32) {
    %c0_i32 = arith.constant 0 : i32
    %c0_i32_0 = arith.constant 0 : i32
    %c0_i32_1 = arith.constant 0 : i32
    return %c0_i32, %c0_i32_0 : i32, i32
  }
  func.func @transform_3(%arg0: i32) -> (i32, i32) {
    %c0_i32 = arith.constant 0 : i32
    %c0_i32_0 = arith.constant 0 : i32
    return %arg0, %c0_i32 : i32, i32
  }
  func.func @transform_4(%arg0: i32) -> (i32, i32) {
    %c0_i32 = arith.constant 0 : i32
    %c0_i32_0 = arith.constant 0 : i32
    %c0_i32_1 = arith.constant 0 : i32
    return %c0_i32, %c0_i32_0 : i32, i32
  }
  func.func @transform_5(%arg0: i32) -> (i32, i32) {
    %c0_i32 = arith.constant 0 : i32
    %c0_i32_0 = arith.constant 0 : i32
    %c0_i32_1 = arith.constant 0 : i32
    return %c0_i32, %c0_i32_0 : i32, i32
  }
  func.func @transform_6(%arg0: i32) -> (i32, i32) {
    %c0_i32 = arith.constant 0 : i32
    %c0_i32_0 = arith.constant 0 : i32
    return %arg0, %c0_i32 : i32, i32
  }
}

module attributes {stable_mosaic.version = 11 : i64} {
  func.func @kernel(%arg0: i32, %arg1: i32, %arg2: memref<8x1024xf32, #tpu.memory_space<vmem>>, %arg3: memref<8x1xf32, #tpu.memory_space<vmem>>, %arg4: memref<8x1xf32, #tpu.memory_space<vmem>>, %arg5: memref<8x1024xf32, #tpu.memory_space<vmem>>) attributes {dimension_semantics = [#tpu.dimension_semantics<parallel>, #tpu.dimension_semantics<parallel>], iteration_bounds = array<i64: 1, 1>, scalar_prefetch = 0 : i64, scratch_operands = 0 : i64, tpu.core_type = #tpu.core_type<tc>, window_params = [{transform_indices = @transform_0, window_bounds = array<i64: 8, 1024>}, {transform_indices = @transform_1, window_bounds = array<i64: 8, 1>}, {transform_indices = @transform_2, window_bounds = array<i64: 8, 1>}, {transform_indices = @transform_3, window_bounds = array<i64: 8, 1024>}]} {
    %c0 = arith.constant 0 : index
    %c0_0 = arith.constant 0 : index
    %0 = vector.load %arg2[%c0, %c0_0] : memref<8x1024xf32, #tpu.memory_space<vmem>>, vector<8x1024xf32>
    %c0_1 = arith.constant 0 : index
    %c0_2 = arith.constant 0 : index
    %1 = vector.load %arg3[%c0_1, %c0_2] : memref<8x1xf32, #tpu.memory_space<vmem>>, vector<8x1xf32>
    %2 = vector.broadcast %1 : vector<8x1xf32> to vector<8x1024xf32>
    %3 = arith.mulf %0, %2 : vector<8x1024xf32>
    %c0_3 = arith.constant 0 : index
    %c0_4 = arith.constant 0 : index
    %4 = vector.load %arg4[%c0_3, %c0_4] : memref<8x1xf32, #tpu.memory_space<vmem>>, vector<8x1xf32>
    %5 = vector.broadcast %4 : vector<8x1xf32> to vector<8x1024xf32>
    %6 = arith.addf %3, %5 : vector<8x1024xf32>
    %c0_5 = arith.constant 0 : index
    %c0_6 = arith.constant 0 : index
    %7 = vector.load %arg5[%c0_5, %c0_6] : memref<8x1024xf32, #tpu.memory_space<vmem>>, vector<8x1024xf32>
    tpu.vector_store %arg5[%c0_5, %c0_6], %6 {strides = array<i32>} : memref<8x1024xf32, #tpu.memory_space<vmem>>, vector<8x1024xf32>,
    return
  }
  func.func @transform_0(%arg0: i32, %arg1: i32) -> (i32, i32) {
    %c0_i32 = arith.constant 0 : i32
    return %arg0, %arg1 : i32, i32
  }
  func.func @transform_1(%arg0: i32, %arg1: i32) -> (i32, i32) {
    %c0_i32 = arith.constant 0 : i32
    %c0_i32_0 = arith.constant 0 : i32
    return %arg0, %c0_i32 : i32, i32
  }
  func.func @transform_2(%arg0: i32, %arg1: i32) -> (i32, i32) {
    %c0_i32 = arith.constant 0 : i32
    %c0_i32_0 = arith.constant 0 : i32
    return %arg0, %c0_i32 : i32, i32
  }
  func.func @transform_3(%arg0: i32, %arg1: i32) -> (i32, i32) {
    %c0_i32 = arith.constant 0 : i32
    return %arg0, %arg1 : i32, i32
  }
}

module attributes {stable_mosaic.version = 11 : i64} {
  func.func @kernel(%arg0: i32, %arg1: i32, %arg2: memref<32x256xbf16, #tpu.memory_space<vmem>>, %arg3: memref<256x128xbf16, #tpu.memory_space<vmem>>, %arg4: memref<1x128xf32, #tpu.memory_space<vmem>>, %arg5: memref<32x128xf32, #tpu.memory_space<vmem>>) attributes {dimension_semantics = [#tpu.dimension_semantics<parallel>, #tpu.dimension_semantics<parallel>], iteration_bounds = array<i64: 1, 1>, scalar_prefetch = 0 : i64, scratch_operands = 0 : i64, tpu.core_type = #tpu.core_type<tc>, window_params = [{transform_indices = @transform_0, window_bounds = array<i64: 32, 256>}, {transform_indices = @transform_1, window_bounds = array<i64: 256, 128>}, {transform_indices = @transform_2, window_bounds = array<i64: 1, 128>}, {transform_indices = @transform_3, window_bounds = array<i64: 32, 128>}]} {
    %c0 = arith.constant 0 : index
    %c0_0 = arith.constant 0 : index
    %0 = vector.load %arg2[%c0, %c0_0] : memref<32x256xbf16, #tpu.memory_space<vmem>>, vector<32x256xbf16>
    %c0_1 = arith.constant 0 : index
    %c0_2 = arith.constant 0 : index
    %1 = vector.load %arg3[%c0_1, %c0_2] : memref<256x128xbf16, #tpu.memory_space<vmem>>, vector<256x128xbf16>
    %cst = arith.constant dense<0.000000e+00> : vector<32x128xf32>
    %2 = tpu.matmul %0, %1, %cst {dimension_numbers = #tpu.dot_dimension_numbers<[1], [0], [0], [1], [0, 0, 1, 1], [], []>} : vector<32x256xbf16>, vector<256x128xbf16>, vector<32x128xf32> -> vector<32x128xf32>
    %c0_3 = arith.constant 0 : index
    %c0_4 = arith.constant 0 : index
    %3 = vector.load %arg4[%c0_3, %c0_4] : memref<1x128xf32, #tpu.memory_space<vmem>>, vector<1x128xf32>
    %4 = vector.broadcast %3 : vector<1x128xf32> to vector<32x128xf32>
    %5 = arith.addf %2, %4 : vector<32x128xf32>
    %cst_5 = arith.constant 0.000000e+00 : f32
    %6 = vector.broadcast %cst_5 : f32 to vector<32x128xf32>
    %7 = arith.maximumf %5, %6 : vector<32x128xf32>
    %c0_6 = arith.constant 0 : index
    %c0_7 = arith.constant 0 : index
    %8 = vector.load %arg5[%c0_6, %c0_7] : memref<32x128xf32, #tpu.memory_space<vmem>>, vector<32x128xf32>
    tpu.vector_store %arg5[%c0_6, %c0_7], %7 {strides = array<i32>} : memref<32x128xf32, #tpu.memory_space<vmem>>, vector<32x128xf32>,
    return
  }
  func.func @transform_0(%arg0: i32, %arg1: i32) -> (i32, i32) {
    %c0_i32 = arith.constant 0 : i32
    %c0_i32_0 = arith.constant 0 : i32
    return %arg0, %c0_i32 : i32, i32
  }
  func.func @transform_1(%arg0: i32, %arg1: i32) -> (i32, i32) {
    %c0_i32 = arith.constant 0 : i32
    %c0_i32_0 = arith.constant 0 : i32
    return %c0_i32, %arg1 : i32, i32
  }
  func.func @transform_2(%arg0: i32, %arg1: i32) -> (i32, i32) {
    %c0_i32 = arith.constant 0 : i32
    %c0_i32_0 = arith.constant 0 : i32
    return %c0_i32, %arg1 : i32, i32
  }
  func.func @transform_3(%arg0: i32, %arg1: i32) -> (i32, i32) {
    %c0_i32 = arith.constant 0 : i32
    return %arg0, %arg1 : i32, i32
  }
}

module attributes {stable_mosaic.version = 11 : i64} {
  func.func @kernel(%arg0: i32, %arg1: i32, %arg2: memref<32x128xbf16, #tpu.memory_space<vmem>>, %arg3: memref<128x128xbf16, #tpu.memory_space<vmem>>, %arg4: memref<1x128xf32, #tpu.memory_space<vmem>>, %arg5: memref<32x128xf32, #tpu.memory_space<vmem>>) attributes {dimension_semantics = [#tpu.dimension_semantics<parallel>, #tpu.dimension_semantics<parallel>], iteration_bounds = array<i64: 1, 1>, scalar_prefetch = 0 : i64, scratch_operands = 0 : i64, tpu.core_type = #tpu.core_type<tc>, window_params = [{transform_indices = @transform_0, window_bounds = array<i64: 32, 128>}, {transform_indices = @transform_1, window_bounds = array<i64: 128, 128>}, {transform_indices = @transform_2, window_bounds = array<i64: 1, 128>}, {transform_indices = @transform_3, window_bounds = array<i64: 32, 128>}]} {
    %c0 = arith.constant 0 : index
    %c0_0 = arith.constant 0 : index
    %0 = vector.load %arg2[%c0, %c0_0] : memref<32x128xbf16, #tpu.memory_space<vmem>>, vector<32x128xbf16>
    %c0_1 = arith.constant 0 : index
    %c0_2 = arith.constant 0 : index
    %1 = vector.load %arg3[%c0_1, %c0_2] : memref<128x128xbf16, #tpu.memory_space<vmem>>, vector<128x128xbf16>
    %cst = arith.constant dense<0.000000e+00> : vector<32x128xf32>
    %2 = tpu.matmul %0, %1, %cst {dimension_numbers = #tpu.dot_dimension_numbers<[1], [0], [0], [1], [0, 0, 1, 1], [], []>} : vector<32x128xbf16>, vector<128x128xbf16>, vector<32x128xf32> -> vector<32x128xf32>
    %c0_3 = arith.constant 0 : index
    %c0_4 = arith.constant 0 : index
    %3 = vector.load %arg4[%c0_3, %c0_4] : memref<1x128xf32, #tpu.memory_space<vmem>>, vector<1x128xf32>
    %4 = vector.broadcast %3 : vector<1x128xf32> to vector<32x128xf32>
    %5 = arith.addf %2, %4 : vector<32x128xf32>
    %c0_5 = arith.constant 0 : index
    %c0_6 = arith.constant 0 : index
    %6 = vector.load %arg5[%c0_5, %c0_6] : memref<32x128xf32, #tpu.memory_space<vmem>>, vector<32x128xf32>
    tpu.vector_store %arg5[%c0_5, %c0_6], %5 {strides = array<i32>} : memref<32x128xf32, #tpu.memory_space<vmem>>, vector<32x128xf32>,
    return
  }
  func.func @transform_0(%arg0: i32, %arg1: i32) -> (i32, i32) {
    %c0_i32 = arith.constant 0 : i32
    %c0_i32_0 = arith.constant 0 : i32
    return %arg0, %c0_i32 : i32, i32
  }
  func.func @transform_1(%arg0: i32, %arg1: i32) -> (i32, i32) {
    %c0_i32 = arith.constant 0 : i32
    %c0_i32_0 = arith.constant 0 : i32
    return %c0_i32, %arg1 : i32, i32
  }
  func.func @transform_2(%arg0: i32, %arg1: i32) -> (i32, i32) {
    %c0_i32 = arith.constant 0 : i32
    %c0_i32_0 = arith.constant 0 : i32
    return %c0_i32, %arg1 : i32, i32
  }
  func.func @transform_3(%arg0: i32, %arg1: i32) -> (i32, i32) {
    %c0_i32 = arith.constant 0 : i32
    return %arg0, %arg1 : i32, i32
  }
}

module attributes {stable_mosaic.version = 11 : i64} {
  func.func @kernel(%arg0: i32, %arg1: i32, %arg2: memref<32x128xbf16, #tpu.memory_space<vmem>>, %arg3: memref<128x128xbf16, #tpu.memory_space<vmem>>, %arg4: memref<1x128xf32, #tpu.memory_space<vmem>>, %arg5: memref<32x128xbf16, #tpu.memory_space<vmem>>) attributes {dimension_semantics = [#tpu.dimension_semantics<parallel>, #tpu.dimension_semantics<parallel>], iteration_bounds = array<i64: 1, 1>, scalar_prefetch = 0 : i64, scratch_operands = 0 : i64, tpu.core_type = #tpu.core_type<tc>, window_params = [{transform_indices = @transform_0, window_bounds = array<i64: 32, 128>}, {transform_indices = @transform_1, window_bounds = array<i64: 128, 128>}, {transform_indices = @transform_2, window_bounds = array<i64: 1, 128>}, {transform_indices = @transform_3, window_bounds = array<i64: 32, 128>}]} {
    %c0 = arith.constant 0 : index
    %c0_0 = arith.constant 0 : index
    %0 = vector.load %arg2[%c0, %c0_0] : memref<32x128xbf16, #tpu.memory_space<vmem>>, vector<32x128xbf16>
    %c0_1 = arith.constant 0 : index
    %c0_2 = arith.constant 0 : index
    %1 = vector.load %arg3[%c0_1, %c0_2] : memref<128x128xbf16, #tpu.memory_space<vmem>>, vector<128x128xbf16>
    %cst = arith.constant dense<0.000000e+00> : vector<32x128xf32>
    %2 = tpu.matmul %0, %1, %cst {dimension_numbers = #tpu.dot_dimension_numbers<[1], [0], [0], [1], [0, 0, 1, 1], [], []>} : vector<32x128xbf16>, vector<128x128xbf16>, vector<32x128xf32> -> vector<32x128xf32>
    %c0_3 = arith.constant 0 : index
    %c0_4 = arith.constant 0 : index
    %3 = vector.load %arg4[%c0_3, %c0_4] : memref<1x128xf32, #tpu.memory_space<vmem>>, vector<1x128xf32>
    %4 = vector.broadcast %3 : vector<1x128xf32> to vector<32x128xf32>
    %5 = arith.addf %2, %4 : vector<32x128xf32>
    %6 = arith.truncf %5 : vector<32x128xf32> to vector<32x128xbf16>
    %c0_5 = arith.constant 0 : index
    %c0_6 = arith.constant 0 : index
    %7 = vector.load %arg5[%c0_5, %c0_6] : memref<32x128xbf16, #tpu.memory_space<vmem>>, vector<32x128xbf16>
    tpu.vector_store %arg5[%c0_5, %c0_6], %6 {strides = array<i32>} : memref<32x128xbf16, #tpu.memory_space<vmem>>, vector<32x128xbf16>,
    return
  }
  func.func @transform_0(%arg0: i32, %arg1: i32) -> (i32, i32) {
    %c0_i32 = arith.constant 0 : i32
    %c0_i32_0 = arith.constant 0 : i32
    return %arg0, %c0_i32 : i32, i32
  }
  func.func @transform_1(%arg0: i32, %arg1: i32) -> (i32, i32) {
    %c0_i32 = arith.constant 0 : i32
    %c0_i32_0 = arith.constant 0 : i32
    return %c0_i32, %arg1 : i32, i32
  }
  func.func @transform_2(%arg0: i32, %arg1: i32) -> (i32, i32) {
    %c0_i32 = arith.constant 0 : i32
    %c0_i32_0 = arith.constant 0 : i32
    return %c0_i32, %arg1 : i32, i32
  }
  func.func @transform_3(%arg0: i32, %arg1: i32) -> (i32, i32) {
    %c0_i32 = arith.constant 0 : i32
    return %arg0, %arg1 : i32, i32
  }
}

module attributes {stable_mosaic.version = 11 : i64} {
  func.func @kernel(%arg0: i32, %arg1: i32, %arg2: memref<1x4x16x8xbf16, #tpu.memory_space<vmem>>, %arg3: memref<1x4x16x8xbf16, #tpu.memory_space<vmem>>, %arg4: memref<1x4x16x8xbf16, #tpu.memory_space<vmem>>, %arg5: memref<1x1x16xf32, #tpu.memory_space<vmem>>, %arg6: memref<1x16x32xbf16, #tpu.memory_space<vmem>>) attributes {dimension_semantics = [#tpu.dimension_semantics<parallel>, #tpu.dimension_semantics<parallel>], iteration_bounds = array<i64: 2, 1>, scalar_prefetch = 0 : i64, scratch_operands = 0 : i64, tpu.core_type = #tpu.core_type<tc>, window_params = [{transform_indices = @transform_0, window_bounds = array<i64: 1, 4, 16, 8>}, {transform_indices = @transform_1, window_bounds = array<i64: 1, 4, 16, 8>}, {transform_indices = @transform_2, window_bounds = array<i64: 1, 4, 16, 8>}, {transform_indices = @transform_3, window_bounds = array<i64: 1, 1, 16>}, {transform_indices = @transform_4, window_bounds = array<i64: 1, 16, 32>}]} {
    %c0 = arith.constant 0 : index
    %c0_0 = arith.constant 0 : index
    %c0_1 = arith.constant 0 : index
    %c0_2 = arith.constant 0 : index
    %0 = vector.load %arg2[%c0, %c0_0, %c0_1, %c0_2] : memref<1x4x16x8xbf16, #tpu.memory_space<vmem>>, vector<1x4x16x8xbf16>
    %1 = vector.shape_cast %0 : vector<1x4x16x8xbf16> to vector<4x16x8xbf16>
    %c0_3 = arith.constant 0 : index
    %c0_4 = arith.constant 0 : index
    %c0_5 = arith.constant 0 : index
    %c0_6 = arith.constant 0 : index
    %2 = vector.load %arg3[%c0_3, %c0_4, %c0_5, %c0_6] : memref<1x4x16x8xbf16, #tpu.memory_space<vmem>>, vector<1x4x16x8xbf16>
    %3 = vector.shape_cast %2 : vector<1x4x16x8xbf16> to vector<4x16x8xbf16>
    %c0_7 = arith.constant 0 : index
    %c0_8 = arith.constant 0 : index
    %c0_9 = arith.constant 0 : index
    %c0_10 = arith.constant 0 : index
    %4 = vector.load %arg4[%c0_7, %c0_8, %c0_9, %c0_10] : memref<1x4x16x8xbf16, #tpu.memory_space<vmem>>, vector<1x4x16x8xbf16>
    %5 = vector.shape_cast %4 : vector<1x4x16x8xbf16> to vector<4x16x8xbf16>
    "tpu.trace_start"() <{level = 10 : i32, message = "hqd,hkd->hqk"}> : () -> ()
    %cst = arith.constant dense<0.000000e+00> : vector<4x16x16xf32>
    %6 = tpu.matmul %1, %3, %cst {dimension_numbers = #tpu.dot_dimension_numbers<[2], [2], [1], [1], [0, 0, 0, 1, 1, 1], [0], [0]>} : vector<4x16x8xbf16>, vector<4x16x8xbf16>, vector<4x16x16xf32> -> vector<4x16x16xf32>
    "tpu.trace_stop"() : () -> ()
    %cst_11 = arith.constant 0.353553385 : f32
    %7 = vector.broadcast %cst_11 : f32 to vector<4x16x16xf32>
    %8 = arith.mulf %6, %7 : vector<4x16x16xf32>
    %c0_12 = arith.constant 0 : index
    %c0_13 = arith.constant 0 : index
    %c0_14 = arith.constant 0 : index
    %9 = vector.load %arg5[%c0_12, %c0_13, %c0_14] : memref<1x1x16xf32, #tpu.memory_space<vmem>>, vector<1x1x16xf32>
    %10 = vector.shape_cast %9 : vector<1x1x16xf32> to vector<1x16xf32>
    %11 = vector.shape_cast %10 : vector<1x16xf32> to vector<1x1x16xf32>
    %12 = vector.broadcast %11 : vector<1x1x16xf32> to vector<4x16x16xf32>
    %13 = arith.addf %8, %12 : vector<4x16x16xf32>
    %cst_15 = arith.constant dense<0xFF800000> : vector<4x16xf32>
    %14 = vector.multi_reduction <maximumf>, %13, %cst_15 [2] : vector<4x16x16xf32> to vector<4x16xf32>
    %15 = vector.shape_cast %14 : vector<4x16xf32> to vector<4x16x1xf32>
    %16 = vector.broadcast %15 : vector<4x16x1xf32> to vector<4x16x16xf32>
    %17 = arith.subf %13, %16 : vector<4x16x16xf32>
    %18 = math.exp %17 : vector<4x16x16xf32>
    %cst_16 = arith.constant dense<0.000000e+00> : vector<4x16xf32>
    %19 = vector.multi_reduction <add>, %18, %cst_16 [2] : vector<4x16x16xf32> to vector<4x16xf32>
    %20 = vector.shape_cast %19 : vector<4x16xf32> to vector<4x16x1xf32>
    %21 = tpu.reciprocal %20 {approx = true} : vector<4x16x1xf32> -> vector<4x16x1xf32>
    %22 = vector.broadcast %21 : vector<4x16x1xf32> to vector<4x16x16xf32>
    %23 = arith.mulf %18, %22 : vector<4x16x16xf32>
    %24 = arith.truncf %23 : vector<4x16x16xf32> to vector<4x16x16xbf16>
    "tpu.trace_start"() <{level = 10 : i32, message = "hqk,hkd->hqd"}> : () -> ()
    %cst_17 = arith.constant dense<0.000000e+00> : vector<4x16x8xf32>
    %25 = tpu.matmul %24, %5, %cst_17 {dimension_numbers = #tpu.dot_dimension_numbers<[2], [1], [1], [2], [0, 0, 0, 1, 1, 2], [0], [0]>} : vector<4x16x16xbf16>, vector<4x16x8xbf16>, vector<4x16x8xf32> -> vector<4x16x8xf32>
    "tpu.trace_stop"() : () -> ()
    %26 = vector.extract_strided_slice %25 {offsets = [0, 0, 0], sizes = [1, 16, 8], strides = [1, 1, 1]} : vector<4x16x8xf32> to vector<1x16x8xf32>
    %27 = vector.shape_cast %26 : vector<1x16x8xf32> to vector<16x8xf32>
    %28 = vector.extract_strided_slice %25 {offsets = [1, 0, 0], sizes = [1, 16, 8], strides = [1, 1, 1]} : vector<4x16x8xf32> to vector<1x16x8xf32>
    %29 = vector.shape_cast %28 : vector<1x16x8xf32> to vector<16x8xf32>
    %30 = vector.extract_strided_slice %25 {offsets = [2, 0, 0], sizes = [1, 16, 8], strides = [1, 1, 1]} : vector<4x16x8xf32> to vector<1x16x8xf32>
    %31 = vector.shape_cast %30 : vector<1x16x8xf32> to vector<16x8xf32>
    %32 = vector.extract_strided_slice %25 {offsets = [3, 0, 0], sizes = [1, 16, 8], strides = [1, 1, 1]} : vector<4x16x8xf32> to vector<1x16x8xf32>
    %33 = vector.shape_cast %32 : vector<1x16x8xf32> to vector<16x8xf32>
    %34 = tpu.concatenate %27, %29, %31, %33 in 1 : vector<16x8xf32>, vector<16x8xf32>, vector<16x8xf32>, vector<16x8xf32> -> vector<16x32xf32>
    %35 = arith.truncf %34 : vector<16x32xf32> to vector<16x32xbf16>
    %c0_18 = arith.constant 0 : index
    %c0_19 = arith.constant 0 : index
    %c0_20 = arith.constant 0 : index
    %36 = vector.load %arg6[%c0_18, %c0_19, %c0_20] : memref<1x16x32xbf16, #tpu.memory_space<vmem>>, vector<1x16x32xbf16>
    %37 = vector.shape_cast %36 : vector<1x16x32xbf16> to vector<16x32xbf16>
    %38 = vector.shape_cast %35 : vector<16x32xbf16> to vector<1x16x32xbf16>
    tpu.vector_store %arg6[%c0_18, %c0_19, %c0_20], %38 {strides = array<i32>} : memref<1x16x32xbf16, #tpu.memory_space<vmem>>, vector<1x16x32xbf16>,
    return
  }
  func.func @transform_0(%arg0: i32, %arg1: i32) -> (i32, i32, i32, i32) {
    %c0_i32 = arith.constant 0 : i32
    %c0_i32_0 = arith.constant 0 : i32
    %c0_i32_1 = arith.constant 0 : i32
    return %arg0, %c0_i32, %arg1, %c0_i32_0 : i32, i32, i32, i32
  }
  func.func @transform_1(%arg0: i32, %arg1: i32) -> (i32, i32, i32, i32) {
    %c0_i32 = arith.constant 0 : i32
    %c0_i32_0 = arith.constant 0 : i32
    %c0_i32_1 = arith.constant 0 : i32
    %c0_i32_2 = arith.constant 0 : i32
    return %arg0, %c0_i32, %c0_i32_0, %c0_i32_1 : i32, i32, i32, i32
  }
  func.func @transform_2(%arg0: i32, %arg1: i32) -> (i32, i32, i32, i32) {
    %c0_i32 = arith.constant 0 : i32
    %c0_i32_0 = arith.constant 0 : i32
    %c0_i32_1 = arith.constant 0 : i32
    %c0_i32_2 = arith.constant 0 : i32
    return %arg0, %c0_i32, %c0_i32_0, %c0_i32_1 : i32, i32, i32, i32
  }
  func.func @transform_3(%arg0: i32, %arg1: i32) -> (i32, i32, i32) {
    %c0_i32 = arith.constant 0 : i32
    %c0_i32_0 = arith.constant 0 : i32
    %c0_i32_1 = arith.constant 0 : i32
    return %arg0, %c0_i32, %c0_i32_0 : i32, i32, i32
  }
  func.func @transform_4(%arg0: i32, %arg1: i32) -> (i32, i32, i32) {
    %c0_i32 = arith.constant 0 : i32
    %c0_i32_0 = arith.constant 0 : i32
    return %arg0, %arg1, %c0_i32 : i32, i32, i32
  }
}

module attributes {stable_mosaic.version = 11 : i64} {
  func.func @kernel(%arg0: i32, %arg1: memref<32x32xbf16, #tpu.memory_space<vmem>>, %arg2: memref<32x32xbf16, #tpu.memory_space<vmem>>, %arg3: memref<1x32xf32, #tpu.memory_space<vmem>>, %arg4: memref<32x32xf32, #tpu.memory_space<vmem>>, %arg5: memref<1x32xf32, #tpu.memory_space<vmem>>, %arg6: memref<1x32xf32, #tpu.memory_space<vmem>>, %arg7: memref<32x32xf32, #tpu.memory_space<vmem>>) attributes {dimension_semantics = [#tpu.dimension_semantics<parallel>], iteration_bounds = array<i64: 1>, scalar_prefetch = 0 : i64, scratch_operands = 0 : i64, tpu.core_type = #tpu.core_type<tc>, window_params = [{transform_indices = @transform_0, window_bounds = array<i64: 32, 32>}, {pipeline_mode = #tpu.pipeline_mode<synchronous>, transform_indices = @transform_1, window_bounds = array<i64: 32, 32>}, {pipeline_mode = #tpu.pipeline_mode<synchronous>, transform_indices = @transform_2, window_bounds = array<i64: 1, 32>}, {transform_indices = @transform_3, window_bounds = array<i64: 32, 32>}, {pipeline_mode = #tpu.pipeline_mode<synchronous>, transform_indices = @transform_4, window_bounds = array<i64: 1, 32>}, {pipeline_mode = #tpu.pipeline_mode<synchronous>, transform_indices = @transform_5, window_bounds = array<i64: 1, 32>}, {transform_indices = @transform_6, window_bounds = array<i64: 32, 32>}]} {
    %c0 = arith.constant 0 : index
    %c0_0 = arith.constant 0 : index
    %0 = vector.load %arg4[%c0, %c0_0] : memref<32x32xf32, #tpu.memory_space<vmem>>, vector<32x32xf32>
    %c0_1 = arith.constant 0 : index
    %c0_2 = arith.constant 0 : index
    %1 = vector.load %arg1[%c0_1, %c0_2] : memref<32x32xbf16, #tpu.memory_space<vmem>>, vector<32x32xbf16>
    %c0_3 = arith.constant 0 : index
    %c0_4 = arith.constant 0 : index
    %2 = vector.load %arg2[%c0_3, %c0_4] : memref<32x32xbf16, #tpu.memory_space<vmem>>, vector<32x32xbf16>
    %cst = arith.constant dense<0.000000e+00> : vector<32x32xf32>
    %3 = tpu.matmul %1, %2, %cst {dimension_numbers = #tpu.dot_dimension_numbers<[1], [0], [0], [1], [0, 0, 1, 1], [], []>} : vector<32x32xbf16>, vector<32x32xbf16>, vector<32x32xf32> -> vector<32x32xf32>
    %4 = arith.addf %0, %3 : vector<32x32xf32>
    %c0_5 = arith.constant 0 : index
    %c0_6 = arith.constant 0 : index
    %5 = vector.load %arg3[%c0_5, %c0_6] : memref<1x32xf32, #tpu.memory_space<vmem>>, vector<1x32xf32>
    %6 = vector.broadcast %5 : vector<1x32xf32> to vector<32x32xf32>
    %7 = arith.addf %4, %6 : vector<32x32xf32>
    %cst_7 = arith.constant dense<0.000000e+00> : vector<32xf32>
    %8 = vector.multi_reduction <add>, %7, %cst_7 [1] : vector<32x32xf32> to vector<32xf32>
    %9 = vector.shape_cast %8 : vector<32xf32> to vector<32x1xf32>
    %cst_8 = arith.constant 3.200000e+01 : f32
    %10 = vector.broadcast %cst_8 : f32 to vector<32x1xf32>
    %11 = arith.divf %9, %10 : vector<32x1xf32>
    %12 = vector.broadcast %11 : vector<32x1xf32> to vector<32x32xf32>
    %13 = arith.subf %7, %12 : vector<32x32xf32>
    %14 = arith.mulf %13, %13 : vector<32x32xf32>
    %cst_9 = arith.constant dense<0.000000e+00> : vector<32xf32>
    %15 = vector.multi_reduction <add>, %14, %cst_9 [1] : vector<32x32xf32> to vector<32xf32>
    %16 = vector.shape_cast %15 : vector<32xf32> to vector<32x1xf32>
    %cst_10 = arith.constant 3.200000e+01 : f32
    %17 = vector.broadcast %cst_10 : f32 to vector<32x1xf32>
    %18 = arith.divf %16, %17 : vector<32x1xf32>
    %19 = vector.broadcast %11 : vector<32x1xf32> to vector<32x32xf32>
    %20 = arith.subf %7, %19 : vector<32x32xf32>
    %cst_11 = arith.constant 9.99999974E-6 : f32
    %21 = vector.broadcast %cst_11 : f32 to vector<32x1xf32>
    %22 = arith.addf %18, %21 : vector<32x1xf32>
    %23 = math.rsqrt %22 : vector<32x1xf32>
    %24 = vector.broadcast %23 : vector<32x1xf32> to vector<32x32xf32>
    %25 = arith.mulf %20, %24 : vector<32x32xf32>
    %c0_12 = arith.constant 0 : index
    %c0_13 = arith.constant 0 : index
    %26 = vector.load %arg5[%c0_12, %c0_13] : memref<1x32xf32, #tpu.memory_space<vmem>>, vector<1x32xf32>
    %27 = vector.broadcast %26 : vector<1x32xf32> to vector<32x32xf32>
    %28 = arith.mulf %25, %27 : vector<32x32xf32>
    %c0_14 = arith.constant 0 : index
    %c0_15 = arith.constant 0 : index
    %29 = vector.load %arg6[%c0_14, %c0_15] : memref<1x32xf32, #tpu.memory_space<vmem>>, vector<1x32xf32>
    %30 = vector.broadcast %29 : vector<1x32xf32> to vector<32x32xf32>
    %31 = arith.addf %28, %30 : vector<32x32xf32>
    %c0_16 = arith.constant 0 : index
    %c0_17 = arith.constant 0 : index
    %32 = vector.load %arg7[%c0_16, %c0_17] : memref<32x32xf32, #tpu.memory_space<vmem>>, vector<32x32xf32>
    tpu.vector_store %arg7[%c0_16, %c0_17], %31 {strides = array<i32>} : memref<32x32xf32, #tpu.memory_space<vmem>>, vector<32x32xf32>,
    return
  }
  func.func @transform_0(%arg0: i32) -> (i32, i32) {
    %c0_i32 = arith.constant 0 : i32
    %c0_i32_0 = arith.constant 0 : i32
    return %arg0, %c0_i32 : i32, i32
  }
  func.func @transform_1(%arg0: i32) -> (i32, i32) {
    %c0_i32 = arith.constant 0 : i32
    %c0_i32_0 = arith.constant 0 : i32
    %c0_i32_1 = arith.constant 0 : i32
    return %c0_i32, %c0_i32_0 : i32, i32
  }
  func.func @transform_2(%arg0: i32) -> (i32, i32) {
    %c0_i32 = arith.constant 0 : i32
    %c0_i32_0 = arith.constant 0 : i32
    %c0_i32_1 = arith.constant 0 : i32
    return %c0_i32, %c0_i32_0 : i32, i32
  }
  func.func @transform_3(%arg0: i32) -> (i32, i32) {
    %c0_i32 = arith.constant 0 : i32
    %c0_i32_0 = arith.constant 0 : i32
    return %arg0, %c0_i32 : i32, i32
  }
  func.func @transform_4(%arg0: i32) -> (i32, i32) {
    %c0_i32 = arith.constant 0 : i32
    %c0_i32_0 = arith.constant 0 : i32
    %c0_i32_1 = arith.constant 0 : i32
    return %c0_i32, %c0_i32_0 : i32, i32
  }
  func.func @transform_5(%arg0: i32) -> (i32, i32) {
    %c0_i32 = arith.constant 0 : i32
    %c0_i32_0 = arith.constant 0 : i32
    %c0_i32_1 = arith.constant 0 : i32
    return %c0_i32, %c0_i32_0 : i32, i32
  }
  func.func @transform_6(%arg0: i32) -> (i32, i32) {
    %c0_i32 = arith.constant 0 : i32
    %c0_i32_0 = arith.constant 0 : i32
    return %arg0, %c0_i32 : i32, i32
  }
}

module attributes {stable_mosaic.version = 11 : i64} {
  func.func @kernel(%arg0: i32, %arg1: memref<16x32xf32, #tpu.memory_space<vmem>>, %arg2: memref<32x64xbf16, #tpu.memory_space<vmem>>, %arg3: memref<1x64xf32, #tpu.memory_space<vmem>>, %arg4: memref<64x32xbf16, #tpu.memory_space<vmem>>, %arg5: memref<1x32xf32, #tpu.memory_space<vmem>>, %arg6: memref<1x32xf32, #tpu.memory_space<vmem>>, %arg7: memref<1x32xf32, #tpu.memory_space<vmem>>, %arg8: memref<16x32xf32, #tpu.memory_space<vmem>>) attributes {dimension_semantics = [#tpu.dimension_semantics<parallel>], iteration_bounds = array<i64: 1>, scalar_prefetch = 0 : i64, scratch_operands = 0 : i64, tpu.core_type = #tpu.core_type<tc>, window_params = [{transform_indices = @transform_0, window_bounds = array<i64: 16, 32>}, {pipeline_mode = #tpu.pipeline_mode<synchronous>, transform_indices = @transform_1, window_bounds = array<i64: 32, 64>}, {pipeline_mode = #tpu.pipeline_mode<synchronous>, transform_indices = @transform_2, window_bounds = array<i64: 1, 64>}, {pipeline_mode = #tpu.pipeline_mode<synchronous>, transform_indices = @transform_3, window_bounds = array<i64: 64, 32>}, {pipeline_mode = #tpu.pipeline_mode<synchronous>, transform_indices = @transform_4, window_bounds = array<i64: 1, 32>}, {pipeline_mode = #tpu.pipeline_mode<synchronous>, transform_indices = @transform_5, window_bounds = array<i64: 1, 32>}, {pipeline_mode = #tpu.pipeline_mode<synchronous>, transform_indices = @transform_6, window_bounds = array<i64: 1, 32>}, {transform_indices = @transform_7, window_bounds = array<i64: 16, 32>}]} {
    %c0 = arith.constant 0 : index
    %c0_0 = arith.constant 0 : index
    %0 = vector.load %arg1[%c0, %c0_0] : memref<16x32xf32, #tpu.memory_space<vmem>>, vector<16x32xf32>
    %1 = arith.truncf %0 : vector<16x32xf32> to vector<16x32xbf16>
    %c0_1 = arith.constant 0 : index
    %c0_2 = arith.constant 0 : index
    %2 = vector.load %arg2[%c0_1, %c0_2] : memref<32x64xbf16, #tpu.memory_space<vmem>>, vector<32x64xbf16>
    %cst = arith.constant dense<0.000000e+00> : vector<16x64xf32>
    %3 = tpu.matmul %1, %2, %cst {dimension_numbers = #tpu.dot_dimension_numbers<[1], [0], [0], [1], [0, 0, 1, 1], [], []>} : vector<16x32xbf16>, vector<32x64xbf16>, vector<16x64xf32> -> vector<16x64xf32>
    %c0_3 = arith.constant 0 : index
    %c0_4 = arith.constant 0 : index
    %4 = vector.load %arg3[%c0_3, %c0_4] : memref<1x64xf32, #tpu.memory_space<vmem>>, vector<1x64xf32>
    %5 = vector.broadcast %4 : vector<1x64xf32> to vector<16x64xf32>
    %6 = arith.addf %3, %5 : vector<16x64xf32>
    %cst_5 = arith.constant 0.000000e+00 : f32
    %7 = vector.broadcast %cst_5 : f32 to vector<16x64xf32>
    %8 = arith.maximumf %6, %7 : vector<16x64xf32>
    %9 = arith.truncf %8 : vector<16x64xf32> to vector<16x64xbf16>
    %c0_6 = arith.constant 0 : index
    %c0_7 = arith.constant 0 : index
    %10 = vector.load %arg4[%c0_6, %c0_7] : memref<64x32xbf16, #tpu.memory_space<vmem>>, vector<64x32xbf16>
    %cst_8 = arith.constant dense<0.000000e+00> : vector<16x32xf32>
    %11 = tpu.matmul %9, %10, %cst_8 {dimension_numbers = #tpu.dot_dimension_numbers<[1], [0], [0], [1], [0, 0, 1, 1], [], []>} : vector<16x64xbf16>, vector<64x32xbf16>, vector<16x32xf32> -> vector<16x32xf32>
    %12 = arith.addf %0, %11 : vector<16x32xf32>
    %c0_9 = arith.constant 0 : index
    %c0_10 = arith.constant 0 : index
    %13 = vector.load %arg5[%c0_9, %c0_10] : memref<1x32xf32, #tpu.memory_space<vmem>>, vector<1x32xf32>
    %14 = vector.broadcast %13 : vector<1x32xf32> to vector<16x32xf32>
    %15 = arith.addf %12, %14 : vector<16x32xf32>
    %cst_11 = arith.constant dense<0.000000e+00> : vector<16xf32>
    %16 = vector.multi_reduction <add>, %15, %cst_11 [1] : vector<16x32xf32> to vector<16xf32>
    %17 = vector.shape_cast %16 : vector<16xf32> to vector<16x1xf32>
    %cst_12 = arith.constant 3.200000e+01 : f32
    %18 = vector.broadcast %cst_12 : f32 to vector<16x1xf32>
    %19 = arith.divf %17, %18 : vector<16x1xf32>
    %20 = vector.broadcast %19 : vector<16x1xf32> to vector<16x32xf32>
    %21 = arith.subf %15, %20 : vector<16x32xf32>
    %22 = arith.mulf %21, %21 : vector<16x32xf32>
    %cst_13 = arith.constant dense<0.000000e+00> : vector<16xf32>
    %23 = vector.multi_reduction <add>, %22, %cst_13 [1] : vector<16x32xf32> to vector<16xf32>
    %24 = vector.shape_cast %23 : vector<16xf32> to vector<16x1xf32>
    %cst_14 = arith.constant 3.200000e+01 : f32
    %25 = vector.broadcast %cst_14 : f32 to vector<16x1xf32>
    %26 = arith.divf %24, %25 : vector<16x1xf32>
    %27 = vector.broadcast %19 : vector<16x1xf32> to vector<16x32xf32>
    %28 = arith.subf %15, %27 : vector<16x32xf32>
    %cst_15 = arith.constant 9.99999974E-6 : f32
    %29 = vector.broadcast %cst_15 : f32 to vector<16x1xf32>
    %30 = arith.addf %26, %29 : vector<16x1xf32>
    %31 = math.rsqrt %30 : vector<16x1xf32>
    %32 = vector.broadcast %31 : vector<16x1xf32> to vector<16x32xf32>
    %33 = arith.mulf %28, %32 : vector<16x32xf32>
    %c0_16 = arith.constant 0 : index
    %c0_17 = arith.constant 0 : index
    %34 = vector.load %arg6[%c0_16, %c0_17] : memref<1x32xf32, #tpu.memory_space<vmem>>, vector<1x32xf32>
    %35 = vector.broadcast %34 : vector<1x32xf32> to vector<16x32xf32>
    %36 = arith.mulf %33, %35 : vector<16x32xf32>
    %c0_18 = arith.constant 0 : index
    %c0_19 = arith.constant 0 : index
    %37 = vector.load %arg7[%c0_18, %c0_19] : memref<1x32xf32, #tpu.memory_space<vmem>>, vector<1x32xf32>
    %38 = vector.broadcast %37 : vector<1x32xf32> to vector<16x32xf32>
    %39 = arith.addf %36, %38 : vector<16x32xf32>
    %c0_20 = arith.constant 0 : index
    %c0_21 = arith.constant 0 : index
    %40 = vector.load %arg8[%c0_20, %c0_21] : memref<16x32xf32, #tpu.memory_space<vmem>>, vector<16x32xf32>
    tpu.vector_store %arg8[%c0_20, %c0_21], %39 {strides = array<i32>} : memref<16x32xf32, #tpu.memory_space<vmem>>, vector<16x32xf32>,
    return
  }
  func.func @transform_0(%arg0: i32) -> (i32, i32) {
    %c0_i32 = arith.constant 0 : i32
    %c0_i32_0 = arith.constant 0 : i32
    return %arg0, %c0_i32 : i32, i32
  }
  func.func @transform_1(%arg0: i32) -> (i32, i32) {
    %c0_i32 = arith.constant 0 : i32
    %c0_i32_0 = arith.constant 0 : i32
    %c0_i32_1 = arith.constant 0 : i32
    return %c0_i32, %c0_i32_0 : i32, i32
  }
  func.func @transform_2(%arg0: i32) -> (i32, i32) {
    %c0_i32 = arith.constant 0 : i32
    %c0_i32_0 = arith.constant 0 : i32
    %c0_i32_1 = arith.constant 0 : i32
    return %c0_i32, %c0_i32_0 : i32, i32
  }
  func.func @transform_3(%arg0: i32) -> (i32, i32) {
    %c0_i32 = arith.constant 0 : i32
    %c0_i32_0 = arith.constant 0 : i32
    %c0_i32_1 = arith.constant 0 : i32
    return %c0_i32, %c0_i32_0 : i32, i32
  }
  func.func @transform_4(%arg0: i32) -> (i32, i32) {
    %c0_i32 = arith.constant 0 : i32
    %c0_i32_0 = arith.constant 0 : i32
    %c0_i32_1 = arith.constant 0 : i32
    return %c0_i32, %c0_i32_0 : i32, i32
  }
  func.func @transform_5(%arg0: i32) -> (i32, i32) {
    %c0_i32 = arith.constant 0 : i32
    %c0_i32_0 = arith.constant 0 : i32
    %c0_i32_1 = arith.constant 0 : i32
    return %c0_i32, %c0_i32_0 : i32, i32
  }
  func.func @transform_6(%arg0: i32) -> (i32, i32) {
    %c0_i32 = arith.constant 0 : i32
    %c0_i32_0 = arith.constant 0 : i32
    %c0_i32_1 = arith.constant 0 : i32
    return %c0_i32, %c0_i32_0 : i32, i32
  }
  func.func @transform_7(%arg0: i32) -> (i32, i32) {
    %c0_i32 = arith.constant 0 : i32
    %c0_i32_0 = arith.constant 0 : i32
    return %arg0, %c0_i32 : i32, i32
  }
}

module attributes {stable_mosaic.version = 11 : i64} {
  func.func @kernel(%arg0: i32, %arg1: memref<32x32xf32, #tpu.memory_space<vmem>>, %arg2: memref<32x64xbf16, #tpu.memory_space<vmem>>, %arg3: memref<1x64xf32, #tpu.memory_space<vmem>>, %arg4: memref<64x32xbf16, #tpu.memory_space<vmem>>, %arg5: memref<1x32xf32, #tpu.memory_space<vmem>>, %arg6: memref<1x32xf32, #tpu.memory_space<vmem>>, %arg7: memref<1x32xf32, #tpu.memory_space<vmem>>, %arg8: memref<32x32xf32, #tpu.memory_space<vmem>>) attributes {dimension_semantics = [#tpu.dimension_semantics<parallel>], iteration_bounds = array<i64: 1>, scalar_prefetch = 0 : i64, scratch_operands = 0 : i64, tpu.core_type = #tpu.core_type<tc>, window_params = [{transform_indices = @transform_0, window_bounds = array<i64: 32, 32>}, {pipeline_mode = #tpu.pipeline_mode<synchronous>, transform_indices = @transform_1, window_bounds = array<i64: 32, 64>}, {pipeline_mode = #tpu.pipeline_mode<synchronous>, transform_indices = @transform_2, window_bounds = array<i64: 1, 64>}, {pipeline_mode = #tpu.pipeline_mode<synchronous>, transform_indices = @transform_3, window_bounds = array<i64: 64, 32>}, {pipeline_mode = #tpu.pipeline_mode<synchronous>, transform_indices = @transform_4, window_bounds = array<i64: 1, 32>}, {pipeline_mode = #tpu.pipeline_mode<synchronous>, transform_indices = @transform_5, window_bounds = array<i64: 1, 32>}, {pipeline_mode = #tpu.pipeline_mode<synchronous>, transform_indices = @transform_6, window_bounds = array<i64: 1, 32>}, {transform_indices = @transform_7, window_bounds = array<i64: 32, 32>}]} {
    %c0 = arith.constant 0 : index
    %c0_0 = arith.constant 0 : index
    %0 = vector.load %arg1[%c0, %c0_0] : memref<32x32xf32, #tpu.memory_space<vmem>>, vector<32x32xf32>
    %1 = arith.truncf %0 : vector<32x32xf32> to vector<32x32xbf16>
    %c0_1 = arith.constant 0 : index
    %c0_2 = arith.constant 0 : index
    %2 = vector.load %arg2[%c0_1, %c0_2] : memref<32x64xbf16, #tpu.memory_space<vmem>>, vector<32x64xbf16>
    %cst = arith.constant dense<0.000000e+00> : vector<32x64xf32>
    %3 = tpu.matmul %1, %2, %cst {dimension_numbers = #tpu.dot_dimension_numbers<[1], [0], [0], [1], [0, 0, 1, 1], [], []>} : vector<32x32xbf16>, vector<32x64xbf16>, vector<32x64xf32> -> vector<32x64xf32>
    %c0_3 = arith.constant 0 : index
    %c0_4 = arith.constant 0 : index
    %4 = vector.load %arg3[%c0_3, %c0_4] : memref<1x64xf32, #tpu.memory_space<vmem>>, vector<1x64xf32>
    %5 = vector.broadcast %4 : vector<1x64xf32> to vector<32x64xf32>
    %6 = arith.addf %3, %5 : vector<32x64xf32>
    %cst_5 = arith.constant 0.000000e+00 : f32
    %7 = vector.broadcast %cst_5 : f32 to vector<32x64xf32>
    %8 = arith.maximumf %6, %7 : vector<32x64xf32>
    %9 = arith.truncf %8 : vector<32x64xf32> to vector<32x64xbf16>
    %c0_6 = arith.constant 0 : index
    %c0_7 = arith.constant 0 : index
    %10 = vector.load %arg4[%c0_6, %c0_7] : memref<64x32xbf16, #tpu.memory_space<vmem>>, vector<64x32xbf16>
    %cst_8 = arith.constant dense<0.000000e+00> : vector<32x32xf32>
    %11 = tpu.matmul %9, %10, %cst_8 {dimension_numbers = #tpu.dot_dimension_numbers<[1], [0], [0], [1], [0, 0, 1, 1], [], []>} : vector<32x64xbf16>, vector<64x32xbf16>, vector<32x32xf32> -> vector<32x32xf32>
    %12 = arith.addf %0, %11 : vector<32x32xf32>
    %c0_9 = arith.constant 0 : index
    %c0_10 = arith.constant 0 : index
    %13 = vector.load %arg5[%c0_9, %c0_10] : memref<1x32xf32, #tpu.memory_space<vmem>>, vector<1x32xf32>
    %14 = vector.broadcast %13 : vector<1x32xf32> to vector<32x32xf32>
    %15 = arith.addf %12, %14 : vector<32x32xf32>
    %cst_11 = arith.constant dense<0.000000e+00> : vector<32xf32>
    %16 = vector.multi_reduction <add>, %15, %cst_11 [1] : vector<32x32xf32> to vector<32xf32>
    %17 = vector.shape_cast %16 : vector<32xf32> to vector<32x1xf32>
    %cst_12 = arith.constant 3.200000e+01 : f32
    %18 = vector.broadcast %cst_12 : f32 to vector<32x1xf32>
    %19 = arith.divf %17, %18 : vector<32x1xf32>
    %20 = vector.broadcast %19 : vector<32x1xf32> to vector<32x32xf32>
    %21 = arith.subf %15, %20 : vector<32x32xf32>
    %22 = arith.mulf %21, %21 : vector<32x32xf32>
    %cst_13 = arith.constant dense<0.000000e+00> : vector<32xf32>
    %23 = vector.multi_reduction <add>, %22, %cst_13 [1] : vector<32x32xf32> to vector<32xf32>
    %24 = vector.shape_cast %23 : vector<32xf32> to vector<32x1xf32>
    %cst_14 = arith.constant 3.200000e+01 : f32
    %25 = vector.broadcast %cst_14 : f32 to vector<32x1xf32>
    %26 = arith.divf %24, %25 : vector<32x1xf32>
    %27 = vector.broadcast %19 : vector<32x1xf32> to vector<32x32xf32>
    %28 = arith.subf %15, %27 : vector<32x32xf32>
    %cst_15 = arith.constant 9.99999974E-6 : f32
    %29 = vector.broadcast %cst_15 : f32 to vector<32x1xf32>
    %30 = arith.addf %26, %29 : vector<32x1xf32>
    %31 = math.rsqrt %30 : vector<32x1xf32>
    %32 = vector.broadcast %31 : vector<32x1xf32> to vector<32x32xf32>
    %33 = arith.mulf %28, %32 : vector<32x32xf32>
    %c0_16 = arith.constant 0 : index
    %c0_17 = arith.constant 0 : index
    %34 = vector.load %arg6[%c0_16, %c0_17] : memref<1x32xf32, #tpu.memory_space<vmem>>, vector<1x32xf32>
    %35 = vector.broadcast %34 : vector<1x32xf32> to vector<32x32xf32>
    %36 = arith.mulf %33, %35 : vector<32x32xf32>
    %c0_18 = arith.constant 0 : index
    %c0_19 = arith.constant 0 : index
    %37 = vector.load %arg7[%c0_18, %c0_19] : memref<1x32xf32, #tpu.memory_space<vmem>>, vector<1x32xf32>
    %38 = vector.broadcast %37 : vector<1x32xf32> to vector<32x32xf32>
    %39 = arith.addf %36, %38 : vector<32x32xf32>
    %c0_20 = arith.constant 0 : index
    %c0_21 = arith.constant 0 : index
    %40 = vector.load %arg8[%c0_20, %c0_21] : memref<32x32xf32, #tpu.memory_space<vmem>>, vector<32x32xf32>
    tpu.vector_store %arg8[%c0_20, %c0_21], %39 {strides = array<i32>} : memref<32x32xf32, #tpu.memory_space<vmem>>, vector<32x32xf32>,
    return
  }
  func.func @transform_0(%arg0: i32) -> (i32, i32) {
    %c0_i32 = arith.constant 0 : i32
    %c0_i32_0 = arith.constant 0 : i32
    return %arg0, %c0_i32 : i32, i32
  }
  func.func @transform_1(%arg0: i32) -> (i32, i32) {
    %c0_i32 = arith.constant 0 : i32
    %c0_i32_0 = arith.constant 0 : i32
    %c0_i32_1 = arith.constant 0 : i32
    return %c0_i32, %c0_i32_0 : i32, i32
  }
  func.func @transform_2(%arg0: i32) -> (i32, i32) {
    %c0_i32 = arith.constant 0 : i32
    %c0_i32_0 = arith.constant 0 : i32
    %c0_i32_1 = arith.constant 0 : i32
    return %c0_i32, %c0_i32_0 : i32, i32
  }
  func.func @transform_3(%arg0: i32) -> (i32, i32) {
    %c0_i32 = arith.constant 0 : i32
    %c0_i32_0 = arith.constant 0 : i32
    %c0_i32_1 = arith.constant 0 : i32
    return %c0_i32, %c0_i32_0 : i32, i32
  }
  func.func @transform_4(%arg0: i32) -> (i32, i32) {
    %c0_i32 = arith.constant 0 : i32
    %c0_i32_0 = arith.constant 0 : i32
    %c0_i32_1 = arith.constant 0 : i32
    return %c0_i32, %c0_i32_0 : i32, i32
  }
  func.func @transform_5(%arg0: i32) -> (i32, i32) {
    %c0_i32 = arith.constant 0 : i32
    %c0_i32_0 = arith.constant 0 : i32
    %c0_i32_1 = arith.constant 0 : i32
    return %c0_i32, %c0_i32_0 : i32, i32
  }
  func.func @transform_6(%arg0: i32) -> (i32, i32) {
    %c0_i32 = arith.constant 0 : i32
    %c0_i32_0 = arith.constant 0 : i32
    %c0_i32_1 = arith.constant 0 : i32
    return %c0_i32, %c0_i32_0 : i32, i32
  }
  func.func @transform_7(%arg0: i32) -> (i32, i32) {
    %c0_i32 = arith.constant 0 : i32
    %c0_i32_0 = arith.constant 0 : i32
    return %arg0, %c0_i32 : i32, i32
  }
}

module attributes {stable_mosaic.version = 11 : i64} {
  func.func @kernel(%arg0: i32, %arg1: i32, %arg2: memref<1x4x8x8xbf16, #tpu.memory_space<vmem>>, %arg3: memref<1x4x16x8xbf16, #tpu.memory_space<vmem>>, %arg4: memref<1x4x16x8xbf16, #tpu.memory_space<vmem>>, %arg5: memref<1x1x16xf32, #tpu.memory_space<vmem>>, %arg6: memref<1x8x32xbf16, #tpu.memory_space<vmem>>) attributes {dimension_semantics = [#tpu.dimension_semantics<parallel>, #tpu.dimension_semantics<parallel>], iteration_bounds = array<i64: 2, 1>, scalar_prefetch = 0 : i64, scratch_operands = 0 : i64, tpu.core_type = #tpu.core_type<tc>, window_params = [{transform_indices = @transform_0, window_bounds = array<i64: 1, 4, 8, 8>}, {transform_indices = @transform_1, window_bounds = array<i64: 1, 4, 16, 8>}, {transform_indices = @transform_2, window_bounds = array<i64: 1, 4, 16, 8>}, {transform_indices = @transform_3, window_bounds = array<i64: 1, 1, 16>}, {transform_indices = @transform_4, window_bounds = array<i64: 1, 8, 32>}]} {
    %c0 = arith.constant 0 : index
    %c0_0 = arith.constant 0 : index
    %c0_1 = arith.constant 0 : index
    %c0_2 = arith.constant 0 : index
    %0 = vector.load %arg2[%c0, %c0_0, %c0_1, %c0_2] : memref<1x4x8x8xbf16, #tpu.memory_space<vmem>>, vector<1x4x8x8xbf16>
    %1 = vector.shape_cast %0 : vector<1x4x8x8xbf16> to vector<4x8x8xbf16>
    %c0_3 = arith.constant 0 : index
    %c0_4 = arith.constant 0 : index
    %c0_5 = arith.constant 0 : index
    %c0_6 = arith.constant 0 : index
    %2 = vector.load %arg3[%c0_3, %c0_4, %c0_5, %c0_6] : memref<1x4x16x8xbf16, #tpu.memory_space<vmem>>, vector<1x4x16x8xbf16>
    %3 = vector.shape_cast %2 : vector<1x4x16x8xbf16> to vector<4x16x8xbf16>
    %c0_7 = arith.constant 0 : index
    %c0_8 = arith.constant 0 : index
    %c0_9 = arith.constant 0 : index
    %c0_10 = arith.constant 0 : index
    %4 = vector.load %arg4[%c0_7, %c0_8, %c0_9, %c0_10] : memref<1x4x16x8xbf16, #tpu.memory_space<vmem>>, vector<1x4x16x8xbf16>
    %5 = vector.shape_cast %4 : vector<1x4x16x8xbf16> to vector<4x16x8xbf16>
    "tpu.trace_start"() <{level = 10 : i32, message = "hqd,hkd->hqk"}> : () -> ()
    %cst = arith.constant dense<0.000000e+00> : vector<4x8x16xf32>
    %6 = tpu.matmul %1, %3, %cst {dimension_numbers = #tpu.dot_dimension_numbers<[2], [2], [1], [1], [0, 0, 0, 1, 1, 1], [0], [0]>} : vector<4x8x8xbf16>, vector<4x16x8xbf16>, vector<4x8x16xf32> -> vector<4x8x16xf32>
    "tpu.trace_stop"() : () -> ()
    %cst_11 = arith.constant 0.353553385 : f32
    %7 = vector.broadcast %cst_11 : f32 to vector<4x8x16xf32>
    %8 = arith.mulf %6, %7 : vector<4x8x16xf32>
    %c0_12 = arith.constant 0 : index
    %c0_13 = arith.constant 0 : index
    %c0_14 = arith.constant 0 : index
    %9 = vector.load %arg5[%c0_12, %c0_13, %c0_14] : memref<1x1x16xf32, #tpu.memory_space<vmem>>, vector<1x1x16xf32>
    %10 = vector.shape_cast %9 : vector<1x1x16xf32> to vector<1x16xf32>
    %11 = vector.shape_cast %10 : vector<1x16xf32> to vector<1x1x16xf32>
    %12 = vector.broadcast %11 : vector<1x1x16xf32> to vector<4x8x16xf32>
    %13 = arith.addf %8, %12 : vector<4x8x16xf32>
    %cst_15 = arith.constant dense<0xFF800000> : vector<4x8xf32>
    %14 = vector.multi_reduction <maximumf>, %13, %cst_15 [2] : vector<4x8x16xf32> to vector<4x8xf32>
    %15 = vector.shape_cast %14 : vector<4x8xf32> to vector<4x8x1xf32>
    %16 = vector.broadcast %15 : vector<4x8x1xf32> to vector<4x8x16xf32>
    %17 = arith.subf %13, %16 : vector<4x8x16xf32>
    %18 = math.exp %17 : vector<4x8x16xf32>
    %cst_16 = arith.constant dense<0.000000e+00> : vector<4x8xf32>
    %19 = vector.multi_reduction <add>, %18, %cst_16 [2] : vector<4x8x16xf32> to vector<4x8xf32>
    %20 = vector.shape_cast %19 : vector<4x8xf32> to vector<4x8x1xf32>
    %21 = tpu.reciprocal %20 {approx = true} : vector<4x8x1xf32> -> vector<4x8x1xf32>
    %22 = vector.broadcast %21 : vector<4x8x1xf32> to vector<4x8x16xf32>
    %23 = arith.mulf %18, %22 : vector<4x8x16xf32>
    %24 = arith.truncf %23 : vector<4x8x16xf32> to vector<4x8x16xbf16>
    "tpu.trace_start"() <{level = 10 : i32, message = "hqk,hkd->hqd"}> : () -> ()
    %cst_17 = arith.constant dense<0.000000e+00> : vector<4x8x8xf32>
    %25 = tpu.matmul %24, %5, %cst_17 {dimension_numbers = #tpu.dot_dimension_numbers<[2], [1], [1], [2], [0, 0, 0, 1, 1, 2], [0], [0]>} : vector<4x8x16xbf16>, vector<4x16x8xbf16>, vector<4x8x8xf32> -> vector<4x8x8xf32>
    "tpu.trace_stop"() : () -> ()
    %26 = vector.extract_strided_slice %25 {offsets = [0, 0, 0], sizes = [1, 8, 8], strides = [1, 1, 1]} : vector<4x8x8xf32> to vector<1x8x8xf32>
    %27 = vector.shape_cast %26 : vector<1x8x8xf32> to vector<8x8xf32>
    %28 = vector.extract_strided_slice %25 {offsets = [1, 0, 0], sizes = [1, 8, 8], strides = [1, 1, 1]} : vector<4x8x8xf32> to vector<1x8x8xf32>
    %29 = vector.shape_cast %28 : vector<1x8x8xf32> to vector<8x8xf32>
    %30 = vector.extract_strided_slice %25 {offsets = [2, 0, 0], sizes = [1, 8, 8], strides = [1, 1, 1]} : vector<4x8x8xf32> to vector<1x8x8xf32>
    %31 = vector.shape_cast %30 : vector<1x8x8xf32> to vector<8x8xf32>
    %32 = vector.extract_strided_slice %25 {offsets = [3, 0, 0], sizes = [1, 8, 8], strides = [1, 1, 1]} : vector<4x8x8xf32> to vector<1x8x8xf32>
    %33 = vector.shape_cast %32 : vector<1x8x8xf32> to vector<8x8xf32>
    %34 = tpu.concatenate %27, %29, %31, %33 in 1 : vector<8x8xf32>, vector<8x8xf32>, vector<8x8xf32>, vector<8x8xf32> -> vector<8x32xf32>
    %35 = arith.truncf %34 : vector<8x32xf32> to vector<8x32xbf16>
    %c0_18 = arith.constant 0 : index
    %c0_19 = arith.constant 0 : index
    %c0_20 = arith.constant 0 : index
    %36 = vector.load %arg6[%c0_18, %c0_19, %c0_20] : memref<1x8x32xbf16, #tpu.memory_space<vmem>>, vector<1x8x32xbf16>
    %37 = vector.shape_cast %36 : vector<1x8x32xbf16> to vector<8x32xbf16>
    %38 = vector.shape_cast %35 : vector<8x32xbf16> to vector<1x8x32xbf16>
    tpu.vector_store %arg6[%c0_18, %c0_19, %c0_20], %38 {strides = array<i32>} : memref<1x8x32xbf16, #tpu.memory_space<vmem>>, vector<1x8x32xbf16>,
    return
  }
  func.func @transform_0(%arg0: i32, %arg1: i32) -> (i32, i32, i32, i32) {
    %c0_i32 = arith.constant 0 : i32
    %c0_i32_0 = arith.constant 0 : i32
    %c0_i32_1 = arith.constant 0 : i32
    return %arg0, %c0_i32, %arg1, %c0_i32_0 : i32, i32, i32, i32
  }
  func.func @transform_1(%arg0: i32, %arg1: i32) -> (i32, i32, i32, i32) {
    %c0_i32 = arith.constant 0 : i32
    %c0_i32_0 = arith.constant 0 : i32
    %c0_i32_1 = arith.constant 0 : i32
    %c0_i32_2 = arith.constant 0 : i32
    return %arg0, %c0_i32, %c0_i32_0, %c0_i32_1 : i32, i32, i32, i32
  }
  func.func @transform_2(%arg0: i32, %arg1: i32) -> (i32, i32, i32, i32) {
    %c0_i32 = arith.constant 0 : i32
    %c0_i32_0 = arith.constant 0 : i32
    %c0_i32_1 = arith.constant 0 : i32
    %c0_i32_2 = arith.constant 0 : i32
    return %arg0, %c0_i32, %c0_i32_0, %c0_i32_1 : i32, i32, i32, i32
  }
  func.func @transform_3(%arg0: i32, %arg1: i32) -> (i32, i32, i32) {
    %c0_i32 = arith.constant 0 : i32
    %c0_i32_0 = arith.constant 0 : i32
    %c0_i32_1 = arith.constant 0 : i32
    return %arg0, %c0_i32, %c0_i32_0 : i32, i32, i32
  }
  func.func @transform_4(%arg0: i32, %arg1: i32) -> (i32, i32, i32) {
    %c0_i32 = arith.constant 0 : i32
    %c0_i32_0 = arith.constant 0 : i32
    return %arg0, %arg1, %c0_i32 : i32, i32, i32
  }
}

module attributes {stable_mosaic.version = 11 : i64} {
  func.func @kernel(%arg0: i32, %arg1: memref<16x32xf32, #tpu.memory_space<vmem>>, %arg2: memref<1x32xf32, #tpu.memory_space<vmem>>, %arg3: memref<1x32xf32, #tpu.memory_space<vmem>>, %arg4: memref<16x32xf32, #tpu.memory_space<vmem>>) attributes {dimension_semantics = [#tpu.dimension_semantics<parallel>], iteration_bounds = array<i64: 1>, scalar_prefetch = 0 : i64, scratch_operands = 0 : i64, tpu.core_type = #tpu.core_type<tc>, window_params = [{transform_indices = @transform_0, window_bounds = array<i64: 16, 32>}, {pipeline_mode = #tpu.pipeline_mode<synchronous>, transform_indices = @transform_1, window_bounds = array<i64: 1, 32>}, {pipeline_mode = #tpu.pipeline_mode<synchronous>, transform_indices = @transform_2, window_bounds = array<i64: 1, 32>}, {transform_indices = @transform_3, window_bounds = array<i64: 16, 32>}]} {
    %c0 = arith.constant 0 : index
    %c0_0 = arith.constant 0 : index
    %0 = vector.load %arg1[%c0, %c0_0] : memref<16x32xf32, #tpu.memory_space<vmem>>, vector<16x32xf32>
    %cst = arith.constant dense<0.000000e+00> : vector<16xf32>
    %1 = vector.multi_reduction <add>, %0, %cst [1] : vector<16x32xf32> to vector<16xf32>
    %2 = vector.shape_cast %1 : vector<16xf32> to vector<16x1xf32>
    %cst_1 = arith.constant 3.200000e+01 : f32
    %3 = vector.broadcast %cst_1 : f32 to vector<16x1xf32>
    %4 = arith.divf %2, %3 : vector<16x1xf32>
    %5 = vector.broadcast %4 : vector<16x1xf32> to vector<16x32xf32>
    %6 = arith.subf %0, %5 : vector<16x32xf32>
    %7 = arith.mulf %6, %6 : vector<16x32xf32>
    %cst_2 = arith.constant dense<0.000000e+00> : vector<16xf32>
    %8 = vector.multi_reduction <add>, %7, %cst_2 [1] : vector<16x32xf32> to vector<16xf32>
    %9 = vector.shape_cast %8 : vector<16xf32> to vector<16x1xf32>
    %cst_3 = arith.constant 3.200000e+01 : f32
    %10 = vector.broadcast %cst_3 : f32 to vector<16x1xf32>
    %11 = arith.divf %9, %10 : vector<16x1xf32>
    %12 = vector.broadcast %4 : vector<16x1xf32> to vector<16x32xf32>
    %13 = arith.subf %0, %12 : vector<16x32xf32>
    %cst_4 = arith.constant 9.99999974E-6 : f32
    %14 = vector.broadcast %cst_4 : f32 to vector<16x1xf32>
    %15 = arith.addf %11, %14 : vector<16x1xf32>
    %16 = math.rsqrt %15 : vector<16x1xf32>
    %17 = vector.broadcast %16 : vector<16x1xf32> to vector<16x32xf32>
    %18 = arith.mulf %13, %17 : vector<16x32xf32>
    %c0_5 = arith.constant 0 : index
    %c0_6 = arith.constant 0 : index
    %19 = vector.load %arg2[%c0_5, %c0_6] : memref<1x32xf32, #tpu.memory_space<vmem>>, vector<1x32xf32>
    %20 = vector.broadcast %19 : vector<1x32xf32> to vector<16x32xf32>
    %21 = arith.mulf %18, %20 : vector<16x32xf32>
    %c0_7 = arith.constant 0 : index
    %c0_8 = arith.constant 0 : index
    %22 = vector.load %arg3[%c0_7, %c0_8] : memref<1x32xf32, #tpu.memory_space<vmem>>, vector<1x32xf32>
    %23 = vector.broadcast %22 : vector<1x32xf32> to vector<16x32xf32>
    %24 = arith.addf %21, %23 : vector<16x32xf32>
    %c0_9 = arith.constant 0 : index
    %c0_10 = arith.constant 0 : index
    %25 = vector.load %arg4[%c0_9, %c0_10] : memref<16x32xf32, #tpu.memory_space<vmem>>, vector<16x32xf32>
    tpu.vector_store %arg4[%c0_9, %c0_10], %24 {strides = array<i32>} : memref<16x32xf32, #tpu.memory_space<vmem>>, vector<16x32xf32>,
    return
  }
  func.func @transform_0(%arg0: i32) -> (i32, i32) {
    %c0_i32 = arith.constant 0 : i32
    %c0_i32_0 = arith.constant 0 : i32
    return %arg0, %c0_i32 : i32, i32
  }
  func.func @transform_1(%arg0: i32) -> (i32, i32) {
    %c0_i32 = arith.constant 0 : i32
    %c0_i32_0 = arith.constant 0 : i32
    %c0_i32_1 = arith.constant 0 : i32
    return %c0_i32, %c0_i32_0 : i32, i32
  }
  func.func @transform_2(%arg0: i32) -> (i32, i32) {
    %c0_i32 = arith.constant 0 : i32
    %c0_i32_0 = arith.constant 0 : i32
    %c0_i32_1 = arith.constant 0 : i32
    return %c0_i32, %c0_i32_0 : i32, i32
  }
  func.func @transform_3(%arg0: i32) -> (i32, i32) {
    %c0_i32 = arith.constant 0 : i32
    %c0_i32_0 = arith.constant 0 : i32
    return %arg0, %c0_i32 : i32, i32
  }
}

module attributes {stable_mosaic.version = 11 : i64} {
  func.func @kernel(%arg0: i32, %arg1: memref<16x32xf32, #tpu.memory_space<vmem>>, %arg2: memref<32x128xbf16, #tpu.memory_space<vmem>>, %arg3: memref<1x128xf32, #tpu.memory_space<vmem>>, %arg4: memref<32x32xbf16, #tpu.memory_space<vmem>>, %arg5: memref<1x32xf32, #tpu.memory_space<vmem>>, %arg6: memref<32x32xbf16, #tpu.memory_space<vmem>>, %arg7: memref<1x32xf32, #tpu.memory_space<vmem>>, %arg8: memref<32x128xbf16, #tpu.memory_space<vmem>>, %arg9: memref<1x128xf32, #tpu.memory_space<vmem>>, %arg10: memref<16x128xf32, #tpu.memory_space<vmem>>, %arg11: memref<16x128xf32, #tpu.memory_space<vmem>>) attributes {dimension_semantics = [#tpu.dimension_semantics<parallel>], iteration_bounds = array<i64: 1>, scalar_prefetch = 0 : i64, scratch_operands = 0 : i64, tpu.core_type = #tpu.core_type<tc>, window_params = [{transform_indices = @transform_0, window_bounds = array<i64: 16, 32>}, {pipeline_mode = #tpu.pipeline_mode<synchronous>, transform_indices = @transform_1, window_bounds = array<i64: 32, 128>}, {pipeline_mode = #tpu.pipeline_mode<synchronous>, transform_indices = @transform_2, window_bounds = array<i64: 1, 128>}, {pipeline_mode = #tpu.pipeline_mode<synchronous>, transform_indices = @transform_3, window_bounds = array<i64: 32, 32>}, {pipeline_mode = #tpu.pipeline_mode<synchronous>, transform_indices = @transform_4, window_bounds = array<i64: 1, 32>}, {pipeline_mode = #tpu.pipeline_mode<synchronous>, transform_indices = @transform_5, window_bounds = array<i64: 32, 32>}, {pipeline_mode = #tpu.pipeline_mode<synchronous>, transform_indices = @transform_6, window_bounds = array<i64: 1, 32>}, {pipeline_mode = #tpu.pipeline_mode<synchronous>, transform_indices = @transform_7, window_bounds = array<i64: 32, 128>}, {pipeline_mode = #tpu.pipeline_mode<synchronous>, transform_indices = @transform_8, window_bounds = array<i64: 1, 128>}, {transform_indices = @transform_9, window_bounds = array<i64: 16, 128>}, {transform_indices = @transform_10, window_bounds = array<i64: 16, 128>}]} {
    %c0 = arith.constant 0 : index
    %c0_0 = arith.constant 0 : index
    %0 = vector.load %arg1[%c0, %c0_0] : memref<16x32xf32, #tpu.memory_space<vmem>>, vector<16x32xf32>
    %1 = arith.truncf %0 : vector<16x32xf32> to vector<16x32xbf16>
    %c0_1 = arith.constant 0 : index
    %c0_2 = arith.constant 0 : index
    %2 = vector.load %arg2[%c0_1, %c0_2] : memref<32x128xbf16, #tpu.memory_space<vmem>>, vector<32x128xbf16>
    %cst = arith.constant dense<0.000000e+00> : vector<16x128xf32>
    %3 = tpu.matmul %1, %2, %cst {dimension_numbers = #tpu.dot_dimension_numbers<[1], [0], [0], [1], [0, 0, 1, 1], [], []>} : vector<16x32xbf16>, vector<32x128xbf16>, vector<16x128xf32> -> vector<16x128xf32>
    %c0_3 = arith.constant 0 : index
    %c0_4 = arith.constant 0 : index
    %4 = vector.load %arg3[%c0_3, %c0_4] : memref<1x128xf32, #tpu.memory_space<vmem>>, vector<1x128xf32>
    %5 = vector.broadcast %4 : vector<1x128xf32> to vector<16x128xf32>
    %6 = arith.addf %3, %5 : vector<16x128xf32>
    %c0_5 = arith.constant 0 : index
    %c0_6 = arith.constant 0 : index
    %7 = vector.load %arg10[%c0_5, %c0_6] : memref<16x128xf32, #tpu.memory_space<vmem>>, vector<16x128xf32>
    tpu.vector_store %arg10[%c0_5, %c0_6], %6 {strides = array<i32>} : memref<16x128xf32, #tpu.memory_space<vmem>>, vector<16x128xf32>,
    %c0_7 = arith.constant 0 : index
    %c0_8 = arith.constant 0 : index
    %8 = vector.load %arg4[%c0_7, %c0_8] : memref<32x32xbf16, #tpu.memory_space<vmem>>, vector<32x32xbf16>
    %cst_9 = arith.constant dense<0.000000e+00> : vector<16x32xf32>
    %9 = tpu.matmul %1, %8, %cst_9 {dimension_numbers = #tpu.dot_dimension_numbers<[1], [0], [0], [1], [0, 0, 1, 1], [], []>} : vector<16x32xbf16>, vector<32x32xbf16>, vector<16x32xf32> -> vector<16x32xf32>
    %c0_10 = arith.constant 0 : index
    %c0_11 = arith.constant 0 : index
    %10 = vector.load %arg5[%c0_10, %c0_11] : memref<1x32xf32, #tpu.memory_space<vmem>>, vector<1x32xf32>
    %11 = vector.broadcast %10 : vector<1x32xf32> to vector<16x32xf32>
    %12 = arith.addf %9, %11 : vector<16x32xf32>
    %cst_12 = arith.constant 0.000000e+00 : f32
    %13 = vector.broadcast %cst_12 : f32 to vector<16x32xf32>
    %14 = arith.maximumf %12, %13 : vector<16x32xf32>
    %15 = arith.truncf %14 : vector<16x32xf32> to vector<16x32xbf16>
    %c0_13 = arith.constant 0 : index
    %c0_14 = arith.constant 0 : index
    %16 = vector.load %arg6[%c0_13, %c0_14] : memref<32x32xbf16, #tpu.memory_space<vmem>>, vector<32x32xbf16>
    %cst_15 = arith.constant dense<0.000000e+00> : vector<16x32xf32>
    %17 = tpu.matmul %15, %16, %cst_15 {dimension_numbers = #tpu.dot_dimension_numbers<[1], [0], [0], [1], [0, 0, 1, 1], [], []>} : vector<16x32xbf16>, vector<32x32xbf16>, vector<16x32xf32> -> vector<16x32xf32>
    %c0_16 = arith.constant 0 : index
    %c0_17 = arith.constant 0 : index
    %18 = vector.load %arg7[%c0_16, %c0_17] : memref<1x32xf32, #tpu.memory_space<vmem>>, vector<1x32xf32>
    %19 = vector.broadcast %18 : vector<1x32xf32> to vector<16x32xf32>
    %20 = arith.addf %17, %19 : vector<16x32xf32>
    %cst_18 = arith.constant 0.000000e+00 : f32
    %21 = vector.broadcast %cst_18 : f32 to vector<16x32xf32>
    %22 = arith.maximumf %20, %21 : vector<16x32xf32>
    %23 = arith.truncf %22 : vector<16x32xf32> to vector<16x32xbf16>
    %c0_19 = arith.constant 0 : index
    %c0_20 = arith.constant 0 : index
    %24 = vector.load %arg8[%c0_19, %c0_20] : memref<32x128xbf16, #tpu.memory_space<vmem>>, vector<32x128xbf16>
    %cst_21 = arith.constant dense<0.000000e+00> : vector<16x128xf32>
    %25 = tpu.matmul %23, %24, %cst_21 {dimension_numbers = #tpu.dot_dimension_numbers<[1], [0], [0], [1], [0, 0, 1, 1], [], []>} : vector<16x32xbf16>, vector<32x128xbf16>, vector<16x128xf32> -> vector<16x128xf32>
    %c0_22 = arith.constant 0 : index
    %c0_23 = arith.constant 0 : index
    %26 = vector.load %arg9[%c0_22, %c0_23] : memref<1x128xf32, #tpu.memory_space<vmem>>, vector<1x128xf32>
    %27 = vector.broadcast %26 : vector<1x128xf32> to vector<16x128xf32>
    %28 = arith.addf %25, %27 : vector<16x128xf32>
    %cst_24 = arith.constant 0.000000e+00 : f32
    %29 = vector.broadcast %cst_24 : f32 to vector<16x128xf32>
    %30 = arith.subf %29, %28 : vector<16x128xf32>
    %31 = math.exp %30 : vector<16x128xf32>
    %cst_25 = arith.constant 1.000000e+00 : f32
    %32 = vector.broadcast %cst_25 : f32 to vector<16x128xf32>
    %33 = arith.addf %32, %31 : vector<16x128xf32>
    %cst_26 = arith.constant 1.000000e+00 : f32
    %34 = vector.broadcast %cst_26 : f32 to vector<16x128xf32>
    %35 = arith.divf %34, %33 : vector<16x128xf32>
    %c0_27 = arith.constant 0 : index
    %c0_28 = arith.constant 0 : index
    %36 = vector.load %arg11[%c0_27, %c0_28] : memref<16x128xf32, #tpu.memory_space<vmem>>, vector<16x128xf32>
    tpu.vector_store %arg11[%c0_27, %c0_28], %35 {strides = array<i32>} : memref<16x128xf32, #tpu.memory_space<vmem>>, vector<16x128xf32>,
    return
  }
  func.func @transform_0(%arg0: i32) -> (i32, i32) {
    %c0_i32 = arith.constant 0 : i32
    %c0_i32_0 = arith.constant 0 : i32
    return %arg0, %c0_i32 : i32, i32
  }
  func.func @transform_1(%arg0: i32) -> (i32, i32) {
    %c0_i32 = arith.constant 0 : i32
    %c0_i32_0 = arith.constant 0 : i32
    %c0_i32_1 = arith.constant 0 : i32
    return %c0_i32, %c0_i32_0 : i32, i32
  }
  func.func @transform_2(%arg0: i32) -> (i32, i32) {
    %c0_i32 = arith.constant 0 : i32
    %c0_i32_0 = arith.constant 0 : i32
    %c0_i32_1 = arith.constant 0 : i32
    return %c0_i32, %c0_i32_0 : i32, i32
  }
  func.func @transform_3(%arg0: i32) -> (i32, i32) {
    %c0_i32 = arith.constant 0 : i32
    %c0_i32_0 = arith.constant 0 : i32
    %c0_i32_1 = arith.constant 0 : i32
    return %c0_i32, %c0_i32_0 : i32, i32
  }
  func.func @transform_4(%arg0: i32) -> (i32, i32) {
    %c0_i32 = arith.constant 0 : i32
    %c0_i32_0 = arith.constant 0 : i32
    %c0_i32_1 = arith.constant 0 : i32
    return %c0_i32, %c0_i32_0 : i32, i32
  }
  func.func @transform_5(%arg0: i32) -> (i32, i32) {
    %c0_i32 = arith.constant 0 : i32
    %c0_i32_0 = arith.constant 0 : i32
    %c0_i32_1 = arith.constant 0 : i32
    return %c0_i32, %c0_i32_0 : i32, i32
  }
  func.func @transform_6(%arg0: i32) -> (i32, i32) {
    %c0_i32 = arith.constant 0 : i32
    %c0_i32_0 = arith.constant 0 : i32
    %c0_i32_1 = arith.constant 0 : i32
    return %c0_i32, %c0_i32_0 : i32, i32
  }
  func.func @transform_7(%arg0: i32) -> (i32, i32) {
    %c0_i32 = arith.constant 0 : i32
    %c0_i32_0 = arith.constant 0 : i32
    %c0_i32_1 = arith.constant 0 : i32
    return %c0_i32, %c0_i32_0 : i32, i32
  }
  func.func @transform_8(%arg0: i32) -> (i32, i32) {
    %c0_i32 = arith.constant 0 : i32
    %c0_i32_0 = arith.constant 0 : i32
    %c0_i32_1 = arith.constant 0 : i32
    return %c0_i32, %c0_i32_0 : i32, i32
  }
  func.func @transform_9(%arg0: i32) -> (i32, i32) {
    %c0_i32 = arith.constant 0 : i32
    %c0_i32_0 = arith.constant 0 : i32
    return %arg0, %c0_i32 : i32, i32
  }
  func.func @transform_10(%arg0: i32) -> (i32, i32) {
    %c0_i32 = arith.constant 0 : i32
    %c0_i32_0 = arith.constant 0 : i32
    return %arg0, %c0_i32 : i32, i32
  }
}

</mosaic_0001>

<llo_original>
// kernel: tile.13
$region0: #{tile.13}
  #allocation0 [shape = 's32[1]{0}', space=sflag, size = 0x4, scoped, tag = 'scoped memory for tile.13']
  %s0 = inlined_call_operand.vmem [shape: f32[3], index: 0, kind: input, shape index: {}]
  %s1 = inlined_call_operand.vmem [shape: f32[2,3], index: 1, kind: output, shape index: {}]
  // Predicated region
  $region2: #{tile.13} parent=0 // pred_check
    _
  $region3: #{tile.13} parent=0 // pred_check_branch
    %3 = sbr.rel (0) target = $region5
  $region4: #{tile.13} parent=0 // pred_region
    _
  $region5: #{tile.13} parent=0 // pred_fallthru
    _
  %v4 = vld [vmem:[%s0] ss:$0 sm:$0xff]
  %5 = vst [vmem:[%s1] sm:$0x3] %v4

// kernel: tile.0
$region0: #{tile.0}
  %s0 = inlined_call_operand.vmem [shape: f32[2,3], index: 0, kind: input, shape index: {}]
  %s1 = inlined_call_operand.vmem [shape: f32[6,1], index: 1, kind: output, shape index: {}]
  $region1: #{tile.0} parent=0
    #allocation0 [shape = 'u8[4096]{0}', space=vmem, size = 0x1000, scoped, tag = 'scoped mem for input reshape']
    %s3 = sshllo.u32 0, 2
    %v4 = vld [vmem:[%s0] sm:%s3]
    %5 = vst [vmem:[#allocation0] sm:%s3] %v4
    %v6 = vld [vmem:[#allocation0] sm:$0x3]
    %vm7 = vcmask 7168
    %8 = vst.msk [vmem:[%s1] ss:$3 sm:$0x3] %vm7, %v6
    %v9 = vld [vmem:[#allocation0] sm:$0x3]
    %10 = vrot.lane.b32.xlu0 %v9, 127
    %v11 = vpop.permute.xlu0 %10
    %vm12 = vcmask 7168
    %s13 = scalar_lea.vmem %s1, 1
    %14 = vst.msk [vmem:[%s13] ss:$3 sm:$0x3] %vm12, %v11
    %v15 = vld [vmem:[#allocation0] sm:$0x3]
    %16 = vrot.lane.b32.xlu0 %v15, 126
    %v17 = vpop.permute.xlu0 %16
    %vm18 = vcmask 7168
    %s19 = scalar_lea.vmem %s1, 2
    %20 = vst.msk [vmem:[%s19] ss:$3 sm:$0x3] %vm18, %v17

// kernel: _lambda_.48
$region0: #{_lambda_.48}
  #allocation0 [shape = 'u32[]', space=smem, size = 0x4, offset = 0x4, fixed_abs, tag = 'smem constant byte address 0x4 - core index']
  #allocation1 [shape = 'u32[144,128]{1,0:T(1,128)}', space=vmem, size = 0x12000, scoped, tag = 'internal scratch']
  %s0 = inlined_call_operand.vmem [shape: bf16[16,128], index: 0, kind: input, shape index: {}]
  %s1 = inlined_call_operand.vmem [shape: bf16[128,128], index: 1, kind: input, shape index: {}]
  %s2 = inlined_call_operand.vmem [shape: f32[1,128], index: 2, kind: input, shape index: {}]
  %s3 = inlined_call_operand.vmem [shape: bf16[16,128], index: 3, kind: output, shape index: {}]
  %s4 = sld [smem:[#allocation0]]
  $region22: #{_lambda_.48} parent=0
    _
  %s6 = ssub.s32 1, %s4
  %s7 = scalar_select 0, %s6, %s4
  // Predicated region
  $region2: #{_lambda_.48} parent=0 // pred_check
    _
  $region3: #{_lambda_.48} parent=0 // pred_check_branch
    %9 = sbr.rel (0) target = $region5
  $region4: #{_lambda_.48} parent=0 // pred_region
    _
  $region5: #{_lambda_.48} parent=0 // pred_fallthru
    _
  // Predicated region
  $region6: #{_lambda_.48} parent=0 // pred_check
    _
  $region7: #{_lambda_.48} parent=0 // pred_check_branch
    %11 = sbr.rel (0) target = $region9
  $region8: #{_lambda_.48} parent=0 // pred_region
    _
  $region9: #{_lambda_.48} parent=0 // pred_fallthru
    _
  // Predicated region
  $region10: #{_lambda_.48} parent=0 // pred_check
    _
  $region11: #{_lambda_.48} parent=0 // pred_check_branch
    %13 = sbr.rel (0) target = $region13
  $region12: #{_lambda_.48} parent=0 // pred_region
    _
  $region13: #{_lambda_.48} parent=0 // pred_fallthru
    _
  %v15 = vld [vmem:[%s0] sm:$0xf]
  %v16 = vld [vmem:[%s0 + $0x4] sm:$0xf]
  %v17 = vld [vmem:[%s1] sm:$0xf]
  %v18 = vld [vmem:[%s1 + $0x4] sm:$0xf]
  %v19 = vld [vmem:[%s1 + $0x8] sm:$0xf]
  %v20 = vld [vmem:[%s1 + $0xc] sm:$0xf]
  %v21 = vld [vmem:[%s1 + $0x10] sm:$0xf]
  %v22 = vld [vmem:[%s1 + $0x14] sm:$0xf]
  %v23 = vld [vmem:[%s1 + $0x18] sm:$0xf]
  %v24 = vld [vmem:[%s1 + $0x1c] sm:$0xf]
  %v25 = vld [vmem:[%s1 + $0x20] sm:$0xf]
  %v26 = vld [vmem:[%s1 + $0x24] sm:$0xf]
  %v27 = vld [vmem:[%s1 + $0x28] sm:$0xf]
  %v28 = vld [vmem:[%s1 + $0x2c] sm:$0xf]
  %v29 = vld [vmem:[%s1 + $0x30] sm:$0xf]
  %v30 = vld [vmem:[%s1 + $0x34] sm:$0xf]
  %v31 = vld [vmem:[%s1 + $0x38] sm:$0xf]
  %v32 = vld [vmem:[%s1 + $0x3c] sm:$0xf]
  %v33 = vld [vmem:[%s2] sm:$0x1]
  %v35 = vlaneseq
  %v36 = vshrl.u32 %v35, 7
  %v37 = vsub.s32 0, %v36
  %v38 = vrot.slane %v33, %v37
  %v42 = vunpack.c.l.b16 %v15
  %v43 = vunpack.c.l.b16 %v16
  %v44 = vpack.c.b16 %v43, %v42
  %v62 = vunpack.c.l.b16 %v17
  %v63 = vunpack.c.l.b16 %v18
  %v64 = vunpack.c.l.b16 %v19
  %v65 = vunpack.c.l.b16 %v20
  %v66 = vunpack.c.l.b16 %v21
  %v67 = vunpack.c.l.b16 %v22
  %v68 = vunpack.c.l.b16 %v23
  %v69 = vunpack.c.l.b16 %v24
  %v70 = vunpack.c.l.b16 %v25
  %v71 = vunpack.c.l.b16 %v26
  %v72 = vunpack.c.l.b16 %v27
  %v73 = vunpack.c.l.b16 %v28
  %v74 = vunpack.c.l.b16 %v29
  %v75 = vunpack.c.l.b16 %v30
  %v76 = vunpack.c.l.b16 %v31
  %v77 = vunpack.c.l.b16 %v32
  %v78 = vpack.c.b16 %v63, %v62
  %v79 = vpack.c.b16 %v65, %v64
  %v80 = vpack.c.b16 %v67, %v66
  %v81 = vpack.c.b16 %v69, %v68
  %v82 = vpack.c.b16 %v71, %v70
  %v83 = vpack.c.b16 %v73, %v72
  %v84 = vpack.c.b16 %v75, %v74
  %v85 = vpack.c.b16 %v77, %v76
  %94 = vmatprep.subr.bf16.mxu0 0
  %95 = vmatpush1.bf16.msra.mxu0 %v78
  %96 = vmatprep.subr.bf16.mxu0 0
  %97 = vmatpush1.bf16.msra.mxu0 %v79
  %98 = vmatprep.subr.bf16.mxu0 0
  %99 = vmatpush1.bf16.msra.mxu0 %v80
  %100 = vmatprep.subr.bf16.mxu0 0
  %101 = vmatpush1.bf16.msra.mxu0 %v81
  %102 = vmatprep.subr.bf16.mxu0 0
  %103 = vmatpush1.bf16.msra.mxu0 %v82
  %104 = vmatprep.subr.bf16.mxu0 0
  %105 = vmatpush1.bf16.msra.mxu0 %v83
  %106 = vmatprep.subr.bf16.mxu0 0
  %107 = vmatpush1.bf16.msra.mxu0 %v84
  %108 = vmatprep.subr.bf16.mxu0 0
  %109 = vmatpush1.bf16.msra.mxu0 %v85
  %110 = vmatprep.subr.bf16.mxu0 0
  %111 = vmatpush1.bf16.msra.mxu0 0
  %112 = vmatprep.subr.bf16.mxu0 0
  %113 = vmatpush1.bf16.msra.mxu0 0
  %114 = vmatprep.subr.bf16.mxu0 0
  %115 = vmatpush1.bf16.msra.mxu0 0
  %116 = vmatprep.subr.bf16.mxu0 0
  %117 = vmatpush1.bf16.msra.mxu0 0
  %118 = vmatprep.subr.bf16.mxu0 0
  %119 = vmatpush1.bf16.msra.mxu0 0
  %120 = vmatprep.subr.bf16.mxu0 0
  %121 = vmatpush1.bf16.msra.mxu0 0
  %122 = vmatprep.subr.bf16.mxu0 0
  %123 = vmatpush1.bf16.msra.mxu0 0
  %124 = vmatprep.subr.bf16.mxu0 0
  %125 = vmatpush1.bf16.msra.mxu0 0
  %126 = vmatprep.mubr.bf16.mxu0 0
  %127 = vmatmul.mubr.bf16.gmra.mrb[0].mxu0 %v44
  %v128 = vpop.f32.mrb[0].mxu0
  %v129 = vadd.f32 %v38, %v128
  %v130 = vpop.f32.mrb[0].mxu0
  %v131 = vpop.f32.mrb[0].mxu0
  %v132 = vadd.f32 %v38, %v131
  %v133 = vpop.f32.mrb[0].mxu0
  %134 = vdwg.mxu0
  %v135 = vpack.c.bf16 %v132, %v129
  %v137 = vunpack.c.l.b16 %v135
  %v138 = vunpack.c.h.b16 %v135
  %v139 = vpack.c.b16 %v137, %v137
  %v140 = vpack.c.b16 %v138, %v138
  %143 = vst [vmem:[%s3] sm:$0xf] %v139
  %144 = vst [vmem:[%s3 + $0x4] sm:$0xf] %v140
  // Predicated region
  $region14: #{_lambda_.48} parent=0 // pred_check
    _
  $region15: #{_lambda_.48} parent=0 // pred_check_branch
    %146 = sbr.rel (0) target = $region17
  $region16: #{_lambda_.48} parent=0 // pred_region
    _
  $region17: #{_lambda_.48} parent=0 // pred_fallthru
    _
  // Predicated region
  $region18: #{_lambda_.48} parent=0 // pred_check
    _
  $region19: #{_lambda_.48} parent=0 // pred_check_branch
    %148 = sbr.rel (0) target = $region21
  $region20: #{_lambda_.48} parent=0 // pred_region
    _
  $region21: #{_lambda_.48} parent=0 // pred_fallthru
    _

// kernel: _lambda_.51
$region0: #{_lambda_.51}
  #allocation0 [shape = 'u32[]', space=smem, size = 0x4, offset = 0x4, fixed_abs, tag = 'smem constant byte address 0x4 - core index']
  #allocation1 [shape = 'u32[144,128]{1,0:T(1,128)}', space=vmem, size = 0x12000, scoped, tag = 'internal scratch']
  %s0 = inlined_call_operand.vmem [shape: bf16[16,32], index: 0, kind: input, shape index: {}]
  %s1 = inlined_call_operand.vmem [shape: bf16[32,32], index: 1, kind: input, shape index: {}]
  %s2 = inlined_call_operand.vmem [shape: f32[1,32], index: 2, kind: input, shape index: {}]
  %s3 = inlined_call_operand.vmem [shape: f32[16,32], index: 3, kind: input, shape index: {}]
  %s4 = inlined_call_operand.vmem [shape: f32[1,32], index: 4, kind: input, shape index: {}]
  %s5 = inlined_call_operand.vmem [shape: f32[1,32], index: 5, kind: input, shape index: {}]
  %s6 = inlined_call_operand.vmem [shape: f32[16,32], index: 6, kind: output, shape index: {}]
  %s7 = sld [smem:[#allocation0]]
  $region34: #{_lambda_.51} parent=0
    _
  %s9 = ssub.s32 1, %s7
  %s10 = scalar_select 0, %s9, %s7
  // Predicated region
  $region2: #{_lambda_.51} parent=0 // pred_check
    _
  $region3: #{_lambda_.51} parent=0 // pred_check_branch
    %12 = sbr.rel (0) target = $region5
  $region4: #{_lambda_.51} parent=0 // pred_region
    _
  $region5: #{_lambda_.51} parent=0 // pred_fallthru
    _
  // Predicated region
  $region6: #{_lambda_.51} parent=0 // pred_check
    _
  $region7: #{_lambda_.51} parent=0 // pred_check_branch
    %14 = sbr.rel (0) target = $region9
  $region8: #{_lambda_.51} parent=0 // pred_region
    _
  $region9: #{_lambda_.51} parent=0 // pred_fallthru
    _
  // Predicated region
  $region10: #{_lambda_.51} parent=0 // pred_check
    _
  $region11: #{_lambda_.51} parent=0 // pred_check_branch
    %16 = sbr.rel (0) target = $region13
  $region12: #{_lambda_.51} parent=0 // pred_region
    _
  $region13: #{_lambda_.51} parent=0 // pred_fallthru
    _
  // Predicated region
  $region14: #{_lambda_.51} parent=0 // pred_check
    _
  $region15: #{_lambda_.51} parent=0 // pred_check_branch
    %18 = sbr.rel (0) target = $region17
  $region16: #{_lambda_.51} parent=0 // pred_region
    _
  $region17: #{_lambda_.51} parent=0 // pred_fallthru
    _
  // Predicated region
  $region18: #{_lambda_.51} parent=0 // pred_check
    _
  $region19: #{_lambda_.51} parent=0 // pred_check_branch
    %20 = sbr.rel (0) target = $region21
  $region20: #{_lambda_.51} parent=0 // pred_region
    _
  $region21: #{_lambda_.51} parent=0 // pred_fallthru
    _
  // Predicated region
  $region22: #{_lambda_.51} parent=0 // pred_check
    _
  $region23: #{_lambda_.51} parent=0 // pred_check_branch
    %22 = sbr.rel (0) target = $region25
  $region24: #{_lambda_.51} parent=0 // pred_region
    _
  $region25: #{_lambda_.51} parent=0 // pred_fallthru
    _
  %v24 = vld [vmem:[%s3] sm:$0xff]
  %v25 = vld [vmem:[%s3 + $0x8] sm:$0xff]
  %v26 = vld [vmem:[%s0] sm:$0xf]
  %v27 = vld [vmem:[%s0 + $0x4] sm:$0xf]
  %v28 = vld [vmem:[%s1] sm:$0xf]
  %v29 = vld [vmem:[%s1 + $0x4] sm:$0xf]
  %v30 = vld [vmem:[%s1 + $0x8] sm:$0xf]
  %v31 = vld [vmem:[%s1 + $0xc] sm:$0xf]
  %v34 = vunpack.c.l.b16 %v26
  %v35 = vunpack.c.l.b16 %v27
  %v36 = vpack.c.b16 %v35, %v34
  %v41 = vunpack.c.l.b16 %v28
  %v42 = vunpack.c.l.b16 %v29
  %v43 = vunpack.c.l.b16 %v30
  %v44 = vunpack.c.l.b16 %v31
  %v45 = vpack.c.b16 %v42, %v41
  %v46 = vpack.c.b16 %v44, %v43
  %vm49 = vcmask 261120
  %v51 = vsel %vm49, %v36, 0
  %53 = vmatprep.subr.bf16.mxu0 0
  %54 = vmatpush1.bf16.msra.mxu0 %v45
  %55 = vmatprep.subr.bf16.mxu0 0
  %56 = vmatpush1.bf16.msra.mxu0 %v46
  %57 = vmatprep.subr.bf16.mxu0 0
  %58 = vmatpush1.bf16.msra.mxu0 0
  %59 = vmatprep.subr.bf16.mxu0 0
  %60 = vmatpush1.bf16.msra.mxu0 0
  %61 = vmatprep.subr.bf16.mxu0 0
  %62 = vmatpush1.bf16.msra.mxu0 0
  %63 = vmatprep.subr.bf16.mxu0 0
  %64 = vmatpush1.bf16.msra.mxu0 0
  %65 = vmatprep.subr.bf16.mxu0 0
  %66 = vmatpush1.bf16.msra.mxu0 0
  %67 = vmatprep.subr.bf16.mxu0 0
  %68 = vmatpush1.bf16.msra.mxu0 0
  %69 = vmatprep.subr.bf16.mxu0 0
  %70 = vmatpush1.bf16.msra.mxu0 0
  %71 = vmatprep.subr.bf16.mxu0 0
  %72 = vmatpush1.bf16.msra.mxu0 0
  %73 = vmatprep.subr.bf16.mxu0 0
  %74 = vmatpush1.bf16.msra.mxu0 0
  %75 = vmatprep.subr.bf16.mxu0 0
  %76 = vmatpush1.bf16.msra.mxu0 0
  %77 = vmatprep.subr.bf16.mxu0 0
  %78 = vmatpush1.bf16.msra.mxu0 0
  %79 = vmatprep.subr.bf16.mxu0 0
  %80 = vmatpush1.bf16.msra.mxu0 0
  %81 = vmatprep.subr.bf16.mxu0 0
  %82 = vmatpush1.bf16.msra.mxu0 0
  %83 = vmatprep.subr.bf16.mxu0 0
  %84 = vmatpush1.bf16.msra.mxu0 0
  %85 = vmatprep.mubr.bf16.mxu0 0
  %86 = vmatmul.mubr.bf16.gmra.mrb[0].mxu0 %v51
  %v87 = vpop.f32.mrb[0].mxu0
  %v88 = vadd.f32 0.0, %v87
  %v89 = vpop.f32.mrb[0].mxu0
  %v90 = vpop.f32.mrb[0].mxu0
  %v91 = vadd.f32 0.0, %v90
  %v92 = vpop.f32.mrb[0].mxu0
  %93 = vdwg.mxu0
  %v94 = vadd.f32 %v24, %v88
  %v95 = vadd.f32 %v25, %v91
  %v96 = vld [vmem:[%s2] sm:$0x1]
  %v98 = vlaneseq
  %v99 = vshrl.u32 %v98, 7
  %v100 = vsub.s32 0, %v99
  %v101 = vrot.slane %v96, %v100
  %v103 = vadd.f32 %v94, %v101
  %v104 = vadd.f32 %v95, %v101
  %v105 = vsel %vm49, %v103, 0.0
  %106 = vadd.xlane.f32.xlu0 %v105
  %v107 = vpop.xlane.xlu0 %106
  %v108 = vsel %vm49, %v104, 0.0
  %109 = vadd.xlane.f32.xlu0 %v108
  %v110 = vpop.xlane.xlu0 %109
  %v111 = vrcp.pop 32.0
  %v112 = vmul.f32 %v107, %v111
  %v113 = vmul.f32 %v110, %v111
  %v114 = vsub.f32 %v103, %v112
  %v115 = vsub.f32 %v104, %v113
  %v116 = vmul.f32 %v114, %v114
  %v117 = vmul.f32 %v115, %v115
  %v118 = vsel %vm49, %v116, 0.0
  %119 = vadd.xlane.f32.xlu0 %v118
  %v120 = vpop.xlane.xlu0 %119
  %v121 = vsel %vm49, %v117, 0.0
  %122 = vadd.xlane.f32.xlu0 %v121
  %v123 = vpop.xlane.xlu0 %122
  %v124 = vmul.f32 %v120, %v111
  %v125 = vmul.f32 %v123, %v111
  %v126 = vadd.f32 %v124, 1e-05
  %v127 = vadd.f32 %v125, 1e-05
  %v128 = vrsqrt.pop %v126
  %v129 = vrsqrt.pop %v127
  %v130 = vmul.f32 %v114, %v128
  %v131 = vmul.f32 %v115, %v129
  %v132 = vld [vmem:[%s4] sm:$0x1]
  %v134 = vlaneseq
  %v135 = vshrl.u32 %v134, 7
  %v136 = vsub.s32 0, %v135
  %v137 = vrot.slane %v132, %v136
  %v139 = vmul.f32 %v130, %v137
  %v140 = vmul.f32 %v131, %v137
  %v141 = vld [vmem:[%s5] sm:$0x1]
  %v143 = vlaneseq
  %v144 = vshrl.u32 %v143, 7
  %v145 = vsub.s32 0, %v144
  %v146 = vrot.slane %v141, %v145
  %v148 = vadd.f32 %v139, %v146
  %v149 = vadd.f32 %v140, %v146
  %150 = vst.msk [vmem:[%s6] sm:$0xff] %vm49, %v148
  %151 = vst.msk [vmem:[%s6 + $0x8] sm:$0xff] %vm49, %v149
  // Predicated region
  $region26: #{_lambda_.51} parent=0 // pred_check
    _
  $region27: #{_lambda_.51} parent=0 // pred_check_branch
    %153 = sbr.rel (0) target = $region29
  $region28: #{_lambda_.51} parent=0 // pred_region
    _
  $region29: #{_lambda_.51} parent=0 // pred_fallthru
    _
  // Predicated region
  $region30: #{_lambda_.51} parent=0 // pred_check
    _
  $region31: #{_lambda_.51} parent=0 // pred_check_branch
    %155 = sbr.rel (0) target = $region33
  $region32: #{_lambda_.51} parent=0 // pred_region
    _
  $region33: #{_lambda_.51} parent=0 // pred_fallthru
    _

// kernel: _lambda_.50
$region0: #{_lambda_.50}
  #allocation0 [shape = 'u32[]', space=smem, size = 0x4, offset = 0x4, fixed_abs, tag = 'smem constant byte address 0x4 - core index']
  #allocation1 [shape = 'u32[144,128]{1,0:T(1,128)}', space=vmem, size = 0x12000, scoped, tag = 'internal scratch']
  %s0 = inlined_call_operand.vmem [shape: bf16[2,4,8,8], index: 0, kind: input, shape index: {}]
  %s1 = inlined_call_operand.vmem [shape: bf16[2,4,8,8], index: 1, kind: input, shape index: {}]
  %s2 = inlined_call_operand.vmem [shape: bf16[2,4,8,8], index: 2, kind: input, shape index: {}]
  %s3 = inlined_call_operand.vmem [shape: f32[2,1,8], index: 3, kind: input, shape index: {}]
  %s4 = inlined_call_operand.vmem [shape: bf16[2,8,32], index: 4, kind: output, shape index: {}]
  %s5 = sld [smem:[#allocation0]]
  $region49: #{_lambda_.50} parent=0
    _
  %s7 = ssub.s32 1, %s5
  %s8 = scalar_select 0, %s7, %s5
  loop: start=0, step=1, limit=4
  $region2: #{_lambda_.50} parent=0 // loop_pre_header
    _
  $region3: #{_lambda_.50} parent=0 // loop_header
    %s10 = sphi 0, %s14
    %p11 = scmp.ge.s32.totalorder %s10, 4
    %s17 = sphi 0, %s29
    %s18 = sphi 0, %s25
    %s19 = sphi 0, %s17
    %s20 = sphi 0, %s18
    %s21 = sphi 0, %s19
    %s22 = sphi 0, %s20
    %s34 = sphi 0, %s36
    %s37 = sphi 0, %s34
    %s38 = sphi 0, %s37
    %s54 = sphi 0, %s38
    %s60 = sphi 0, %s62
    %s63 = sphi 0, %s60
    %s64 = sphi 0, %s63
    %s80 = sphi 0, %s64
    %s86 = sphi 0, %s88
    %s89 = sphi 0, %s86
    %s90 = sphi 0, %s89
    %s106 = sphi 0, %s90
    %s112 = sphi 0, %s114
    %s115 = sphi 0, %s112
    %s116 = sphi 0, %s115
    %s132 = sphi 0, %s116
    %s140 = sphi 0, %s142
    %s143 = sphi 0, %s140
    %s144 = sphi 0, %s143
    %s160 = sphi 0, %s144
  $region4: #{_lambda_.50} parent=0 // loop_header_branch
    %13 = sbr.rel (%p11) target = $region8
  $region5: #{_lambda_.50} parent=0 // loop_body
    %s15 = ssub.s32 %s10, 1
    %s16 = ssub.s32 %s10, 2
    %s23 = sadd.s32 1, %s18
    %p24 = scmp.ge.s32.totalorder %s23, 1
    %s25 = scalar_select %p24, 0, %s23
    %s26 = sadd.s32 1, %s17
    %s27 = scalar_select %p24, %s26, %s17
    %p28 = scmp.ge.s32.totalorder %s27, 2
    %s29 = scalar_select %p28, 0, %s27
    %s30 = ssub.s32 %s17, %s29
    %s31 = ssub.s32 %s18, %s25
    %s32 = sor.u32 %s30, %s31
    %p33 = scmp.eq.s32.totalorder %s32, 0
    %s35 = sadd.s32 %s34, 1
    %s36 = scalar_select %p33, %s34, %s35
    %p39 = pneg %p33
    %p40 = scmp.eq.s32.totalorder %s10, 1
    %p41 = por %p39, %p40
    %p42 = scmp.ne.s32.totalorder %s34, %s37
    %p43 = scmp.eq.s32.totalorder %s10, 0
    %p44 = por %p42, %p43
    %p45 = scmp.ne.s32.totalorder %s34, %s37
    %p46 = scmp.eq.s32.totalorder %s15, 1
    %p47 = por %p45, %p46
    %p48 = scmp.ne.s32.totalorder %s37, %s38
    %p49 = scmp.eq.s32.totalorder %s15, 0
    %p50 = por %p48, %p49
    %p51 = scmp.ne.s32.totalorder %s37, %s38
    %p52 = scmp.eq.s32.totalorder %s16, 1
    %p53 = por %p51, %p52
    %p55 = scmp.ne.s32.totalorder %s38, %s54
    %p56 = scmp.eq.s32.totalorder %s16, 0
    %p57 = por %p55, %p56
    %s58 = ssub.s32 %s17, %s29
    %p59 = scmp.eq.s32.totalorder %s58, 0
    %s61 = sadd.s32 %s60, 1
    %s62 = scalar_select %p59, %s60, %s61
    %p65 = pneg %p59
    %p66 = scmp.eq.s32.totalorder %s10, 1
    %p67 = por %p65, %p66
    %p68 = scmp.ne.s32.totalorder %s60, %s63
    %p69 = scmp.eq.s32.totalorder %s10, 0
    %p70 = por %p68, %p69
    %p71 = scmp.ne.s32.totalorder %s60, %s63
    %p72 = scmp.eq.s32.totalorder %s15, 1
    %p73 = por %p71, %p72
    %p74 = scmp.ne.s32.totalorder %s63, %s64
    %p75 = scmp.eq.s32.totalorder %s15, 0
    %p76 = por %p74, %p75
    %p77 = scmp.ne.s32.totalorder %s63, %s64
    %p78 = scmp.eq.s32.totalorder %s16, 1
    %p79 = por %p77, %p78
    %p81 = scmp.ne.s32.totalorder %s64, %s80
    %p82 = scmp.eq.s32.totalorder %s16, 0
    %p83 = por %p81, %p82
    %s84 = ssub.s32 %s17, %s29
    %p85 = scmp.eq.s32.totalorder %s84, 0
    %s87 = sadd.s32 %s86, 1
    %s88 = scalar_select %p85, %s86, %s87
    %p91 = pneg %p85
    %p92 = scmp.eq.s32.totalorder %s10, 1
    %p93 = por %p91, %p92
    %p94 = scmp.ne.s32.totalorder %s86, %s89
    %p95 = scmp.eq.s32.totalorder %s10, 0
    %p96 = por %p94, %p95
    %p97 = scmp.ne.s32.totalorder %s86, %s89
    %p98 = scmp.eq.s32.totalorder %s15, 1
    %p99 = por %p97, %p98
    %p100 = scmp.ne.s32.totalorder %s89, %s90
    %p101 = scmp.eq.s32.totalorder %s15, 0
    %p102 = por %p100, %p101
    %p103 = scmp.ne.s32.totalorder %s89, %s90
    %p104 = scmp.eq.s32.totalorder %s16, 1
    %p105 = por %p103, %p104
    %p107 = scmp.ne.s32.totalorder %s90, %s106
    %p108 = scmp.eq.s32.totalorder %s16, 0
    %p109 = por %p107, %p108
    %s110 = ssub.s32 %s17, %s29
    %p111 = scmp.eq.s32.totalorder %s110, 0
    %s113 = sadd.s32 %s112, 1
    %s114 = scalar_select %p111, %s112, %s113
    %p117 = pneg %p111
    %p118 = scmp.eq.s32.totalorder %s10, 1
    %p119 = por %p117, %p118
    %p120 = scmp.ne.s32.totalorder %s112, %s115
    %p121 = scmp.eq.s32.totalorder %s10, 0
    %p122 = por %p120, %p121
    %p123 = scmp.ne.s32.totalorder %s112, %s115
    %p124 = scmp.eq.s32.totalorder %s15, 1
    %p125 = por %p123, %p124
    %p126 = scmp.ne.s32.totalorder %s115, %s116
    %p127 = scmp.eq.s32.totalorder %s15, 0
    %p128 = por %p126, %p127
    %p129 = scmp.ne.s32.totalorder %s115, %s116
    %p130 = scmp.eq.s32.totalorder %s16, 1
    %p131 = por %p129, %p130
    %p133 = scmp.ne.s32.totalorder %s116, %s132
    %p134 = scmp.eq.s32.totalorder %s16, 0
    %p135 = por %p133, %p134
    %s136 = ssub.s32 %s17, %s29
    %s137 = ssub.s32 %s18, %s25
    %s138 = sor.u32 %s136, %s137
    %p139 = scmp.eq.s32.totalorder %s138, 0
    %s141 = sadd.s32 %s140, 1
    %s142 = scalar_select %p139, %s140, %s141
    %p145 = pneg %p139
    %p146 = scmp.eq.s32.totalorder %s10, 1
    %p147 = por %p145, %p146
    %p148 = scmp.ne.s32.totalorder %s140, %s143
    %p149 = scmp.eq.s32.totalorder %s10, 0
    %p150 = por %p148, %p149
    %p151 = scmp.ne.s32.totalorder %s140, %s143
    %p152 = scmp.eq.s32.totalorder %s15, 1
    %p153 = por %p151, %p152
    %p154 = scmp.ne.s32.totalorder %s143, %s144
    %p155 = scmp.eq.s32.totalorder %s15, 0
    %p156 = por %p154, %p155
    %p157 = scmp.ne.s32.totalorder %s143, %s144
    %p158 = scmp.eq.s32.totalorder %s16, 1
    %p159 = por %p157, %p158
    %p161 = scmp.ne.s32.totalorder %s144, %s160
    %p162 = scmp.eq.s32.totalorder %s16, 0
    %p163 = por %p161, %p162
    %p164 = scmp.le.s32.totalorder 1, %s10
    %p165 = scmp.lt.s32.totalorder %s10, 3
    %p166 = pnand %p164, %p165
    %p167 = pneg %p166
    // Predicated region
    $region9: #{_lambda_.50} parent=5 // pred_check
      _
    $region10: #{_lambda_.50} parent=5 // pred_check_branch
      %169 = sbr.rel (%p166) target = $region12
    $region11: #{_lambda_.50} parent=5 // pred_region
      %s170 = ssub.s32 %s10, 1
    $region12: #{_lambda_.50} parent=5 // pred_fallthru
      _
    %p171 = scmp.lt.s32.totalorder %s10, 2
    // Predicated region
    $region13: #{_lambda_.50} parent=5 // pred_check
      %p172 = pneg %p171
    $region14: #{_lambda_.50} parent=5 // pred_check_branch
      %174 = sbr.rel (%p172) target = $region16
    $region15: #{_lambda_.50} parent=5 // pred_region
      // Predicated region
      $region17: #{_lambda_.50} parent=15 // pred_check
        %p175 = pneg %p44
      $region18: #{_lambda_.50} parent=15 // pred_check_branch
        %177 = sbr.rel (%p175) target = $region20
      $region19: #{_lambda_.50} parent=15 // pred_region
        %p178 = scmp.lt.s32.totalorder %s17, 1
        %s179 = scalar_select %p178, %s17, 1
        %p180 = scmp.lt.s32.totalorder %s18, 0
        %s181 = scalar_select %p180, %s18, 0
        %s182 = smul.addr %s179, 4
        %s183 = sadd.s32 %s181, %s182
        %s184 = smul.addr %s183, 4
        %s185 = scalar_lea.vmem %s0, %s184
      $region20: #{_lambda_.50} parent=15 // pred_fallthru
        _
      // Predicated region
      $region21: #{_lambda_.50} parent=15 // pred_check
        %p186 = pneg %p70
      $region22: #{_lambda_.50} parent=15 // pred_check_branch
        %188 = sbr.rel (%p186) target = $region24
      $region23: #{_lambda_.50} parent=15 // pred_region
        %p189 = scmp.lt.s32.totalorder %s17, 1
        %s190 = scalar_select %p189, %s17, 1
        %s191 = smul.addr %s190, 4
        %s192 = smul.addr %s191, 4
        %s193 = scalar_lea.vmem %s1, %s192
      $region24: #{_lambda_.50} parent=15 // pred_fallthru
        _
      // Predicated region
      $region25: #{_lambda_.50} parent=15 // pred_check
        %p194 = pneg %p96
      $region26: #{_lambda_.50} parent=15 // pred_check_branch
        %196 = sbr.rel (%p194) target = $region28
      $region27: #{_lambda_.50} parent=15 // pred_region
        %p197 = scmp.lt.s32.totalorder %s17, 1
        %s198 = scalar_select %p197, %s17, 1
        %s199 = smul.addr %s198, 4
        %s200 = smul.addr %s199, 4
        %s201 = scalar_lea.vmem %s2, %s200
      $region28: #{_lambda_.50} parent=15 // pred_fallthru
        _
      // Predicated region
      $region29: #{_lambda_.50} parent=15 // pred_check
        %p202 = pneg %p122
      $region30: #{_lambda_.50} parent=15 // pred_check_branch
        %204 = sbr.rel (%p202) target = $region32
      $region31: #{_lambda_.50} parent=15 // pred_region
        %p205 = scmp.lt.s32.totalorder %s17, 1
        %s206 = scalar_select %p205, %s17, 1
        %s207 = scalar_lea.vmem %s3, %s206
      $region32: #{_lambda_.50} parent=15 // pred_fallthru
        _
    $region16: #{_lambda_.50} parent=5 // pred_fallthru
      _
    %p208 = scmp.le.s32.totalorder 1, %s10
    %p209 = scmp.lt.s32.totalorder %s10, 3
    %p210 = pnand %p208, %p209
    %p211 = pneg %p210
    // Predicated region
    $region33: #{_lambda_.50} parent=5 // pred_check
      _
    $region34: #{_lambda_.50} parent=5 // pred_check_branch
      %213 = sbr.rel (%p210) target = $region36
    $region35: #{_lambda_.50} parent=5 // pred_region
      %s214 = ssub.s32 %s10, 1
      %p215 = scmp.lt.s32.totalorder %s19, 1
      %s216 = scalar_select %p215, %s19, 1
      %p217 = scmp.lt.s32.totalorder %s20, 0
      %s218 = scalar_select %p217, %s20, 0
      %s219 = smul.addr %s216, 4
      %s220 = sadd.s32 %s218, %s219
      %s221 = smul.addr %s220, 4
      %s222 = scalar_lea.vmem %s0, %s221
      %p223 = pneg %p50
      %p224 = pneg %p47
      %p225 = scmp.lt.s32.totalorder %s19, 1
      %s226 = scalar_select %p225, %s19, 1
      %s227 = smul.addr %s226, 4
      %s228 = smul.addr %s227, 4
      %s229 = scalar_lea.vmem %s1, %s228
      %p230 = pneg %p76
      %p231 = pneg %p73
      %p232 = scmp.lt.s32.totalorder %s19, 1
      %s233 = scalar_select %p232, %s19, 1
      %s234 = smul.addr %s233, 4
      %s235 = smul.addr %s234, 4
      %s236 = scalar_lea.vmem %s2, %s235
      %p237 = pneg %p102
      %p238 = pneg %p99
      %p239 = scmp.lt.s32.totalorder %s19, 1
      %s240 = scalar_select %p239, %s19, 1
      %s241 = scalar_lea.vmem %s3, %s240
      %p242 = pneg %p128
      %p243 = pneg %p125
      %p244 = pneg %p156
      %p245 = pneg %p153
      %p246 = scmp.lt.s32.totalorder %s19, 1
      %s247 = scalar_select %p246, %s19, 1
      %p248 = scmp.lt.s32.totalorder %s20, 0
      %s249 = scalar_select %p248, %s20, 0
      %s250 = sadd.s32 %s249, %s247
      %s251 = smul.addr %s250, 4
      %s252 = scalar_lea.vmem %s4, %s251
      %p253 = scmp.lt.s32.totalorder %s19, 1
      %s254 = scalar_select %p253, %s19, 1
      %p255 = scmp.lt.s32.totalorder %s20, 0
      %s256 = scalar_select %p255, %s20, 0
      %s257 = smul.addr %s254, 4
      %s258 = sadd.s32 %s256, %s257
      %s259 = smul.addr %s258, 4
      %s260 = scalar_lea.vmem %s0, %s259
      %p261 = scmp.lt.s32.totalorder %s19, 1
      %s262 = scalar_select %p261, %s19, 1
      %s263 = smul.addr %s262, 4
      %s264 = smul.addr %s263, 4
      %s265 = scalar_lea.vmem %s1, %s264
      %p266 = scmp.lt.s32.totalorder %s19, 1
      %s267 = scalar_select %p266, %s19, 1
      %s268 = smul.addr %s267, 4
      %s269 = smul.addr %s268, 4
      %s270 = scalar_lea.vmem %s2, %s269
      %p271 = scmp.lt.s32.totalorder %s19, 1
      %s272 = scalar_select %p271, %s19, 1
      %s273 = scalar_lea.vmem %s3, %s272
      %p274 = scmp.lt.s32.totalorder %s19, 1
      %s275 = scalar_select %p274, %s19, 1
      %p276 = scmp.lt.s32.totalorder %s20, 0
      %s277 = scalar_select %p276, %s20, 0
      %s278 = sadd.s32 %s277, %s275
      %s279 = smul.addr %s278, 4
      %s280 = scalar_lea.vmem %s4, %s279
      %v282 = vld [vmem:[%s260] sm:$0xf]
      %v283 = vld [vmem:[%s260 + $0x4] sm:$0xf]
      %v284 = vld [vmem:[%s260 + $0x8] sm:$0xf]
      %v285 = vld [vmem:[%s260 + $0xc] sm:$0xf]
      %v286 = vld [vmem:[%s265] sm:$0xf]
      %v287 = vld [vmem:[%s265 + $0x4] sm:$0xf]
      %v288 = vld [vmem:[%s265 + $0x8] sm:$0xf]
      %v289 = vld [vmem:[%s265 + $0xc] sm:$0xf]
      %v290 = vld [vmem:[%s270] sm:$0xf]
      %v291 = vld [vmem:[%s270 + $0x4] sm:$0xf]
      %v292 = vld [vmem:[%s270 + $0x8] sm:$0xf]
      %v293 = vld [vmem:[%s270 + $0xc] sm:$0xf]
      %vm294 = vcmask 64512
      %v296 = vsel %vm294, %v282, 0
      %v299 = vsel %vm294, %v286, 0
      %301 = vmatprep.subr.bf16.mxu0 0
      %302 = vmatpush1.bf16.xpose.msra.mxu0 %v299
      %303 = vmatprep.subr.bf16.mxu0 0
      %304 = vmatpush1.bf16.xpose.msra.mxu0 0
      %305 = vmatprep.subr.bf16.mxu0 0
      %306 = vmatpush1.bf16.xpose.msra.mxu0 0
      %307 = vmatprep.subr.bf16.mxu0 0
      %308 = vmatpush1.bf16.xpose.msra.mxu0 0
      %309 = vmatprep.subr.bf16.mxu0 0
      %310 = vmatpush1.bf16.xpose.msra.mxu0 0
      %311 = vmatprep.subr.bf16.mxu0 0
      %312 = vmatpush1.bf16.xpose.msra.mxu0 0
      %313 = vmatprep.subr.bf16.mxu0 0
      %314 = vmatpush1.bf16.xpose.msra.mxu0 0
      %315 = vmatprep.subr.bf16.mxu0 0
      %316 = vmatpush1.bf16.xpose.msra.mxu0 0
      %317 = vmatprep.subr.bf16.mxu0 0
      %318 = vmatpush1.bf16.xpose.msra.mxu0 0
      %319 = vmatprep.subr.bf16.mxu0 0
      %320 = vmatpush1.bf16.xpose.msra.mxu0 0
      %321 = vmatprep.subr.bf16.mxu0 0
      %322 = vmatpush1.bf16.xpose.msra.mxu0 0
      %323 = vmatprep.subr.bf16.mxu0 0
      %324 = vmatpush1.bf16.xpose.msra.mxu0 0
      %325 = vmatprep.subr.bf16.mxu0 0
      %326 = vmatpush1.bf16.xpose.msra.mxu0 0
      %327 = vmatprep.subr.bf16.mxu0 0
      %328 = vmatpush1.bf16.xpose.msra.mxu0 0
      %329 = vmatprep.subr.bf16.mxu0 0
      %330 = vmatpush1.bf16.xpose.msra.mxu0 0
      %331 = vmatprep.subr.bf16.mxu0 0
      %332 = vmatpush1.bf16.xpose.msra.mxu0 0
      %333 = vmatprep.mubr.bf16.mxu0 0
      %334 = vmatmul.mubr.bf16.gmra.mrb[0].mxu0 %v296
      %v335 = vpop.f32.mrb[0].mxu0
      %v336 = vadd.f32 0.0, %v335
      %v337 = vpop.f32.mrb[0].mxu0
      %v338 = vpop.f32.mrb[0].mxu0
      %v339 = vpop.f32.mrb[0].mxu0
      %340 = vdwg.mxu0
      %v342 = vsel %vm294, %v283, 0
      %v345 = vsel %vm294, %v287, 0
      %347 = vmatprep.subr.bf16.mxu0 0
      %348 = vmatpush1.bf16.xpose.msra.mxu0 %v345
      %349 = vmatprep.subr.bf16.mxu0 0
      %350 = vmatpush1.bf16.xpose.msra.mxu0 0
      %351 = vmatprep.subr.bf16.mxu0 0
      %352 = vmatpush1.bf16.xpose.msra.mxu0 0
      %353 = vmatprep.subr.bf16.mxu0 0
      %354 = vmatpush1.bf16.xpose.msra.mxu0 0
      %355 = vmatprep.subr.bf16.mxu0 0
      %356 = vmatpush1.bf16.xpose.msra.mxu0 0
      %357 = vmatprep.subr.bf16.mxu0 0
      %358 = vmatpush1.bf16.xpose.msra.mxu0 0
      %359 = vmatprep.subr.bf16.mxu0 0
      %360 = vmatpush1.bf16.xpose.msra.mxu0 0
      %361 = vmatprep.subr.bf16.mxu0 0
      %362 = vmatpush1.bf16.xpose.msra.mxu0 0
      %363 = vmatprep.subr.bf16.mxu0 0
      %364 = vmatpush1.bf16.xpose.msra.mxu0 0
      %365 = vmatprep.subr.bf16.mxu0 0
      %366 = vmatpush1.bf16.xpose.msra.mxu0 0
      %367 = vmatprep.subr.bf16.mxu0 0
      %368 = vmatpush1.bf16.xpose.msra.mxu0 0
      %369 = vmatprep.subr.bf16.mxu0 0
      %370 = vmatpush1.bf16.xpose.msra.mxu0 0
      %371 = vmatprep.subr.bf16.mxu0 0
      %372 = vmatpush1.bf16.xpose.msra.mxu0 0
      %373 = vmatprep.subr.bf16.mxu0 0
      %374 = vmatpush1.bf16.xpose.msra.mxu0 0
      %375 = vmatprep.subr.bf16.mxu0 0
      %376 = vmatpush1.bf16.xpose.msra.mxu0 0
      %377 = vmatprep.subr.bf16.mxu0 0
      %378 = vmatpush1.bf16.xpose.msra.mxu0 0
      %379 = vmatprep.mubr.bf16.mxu0 0
      %380 = vmatmul.mubr.bf16.gmra.mrb[0].mxu0 %v342
      %v381 = vpop.f32.mrb[0].mxu0
      %v382 = vadd.f32 0.0, %v381
      %v383 = vpop.f32.mrb[0].mxu0
      %v384 = vpop.f32.mrb[0].mxu0
      %v385 = vpop.f32.mrb[0].mxu0
      %386 = vdwg.mxu0
      %v388 = vsel %vm294, %v284, 0
      %v391 = vsel %vm294, %v288, 0
      %393 = vmatprep.subr.bf16.mxu0 0
      %394 = vmatpush1.bf16.xpose.msra.mxu0 %v391
      %395 = vmatprep.subr.bf16.mxu0 0
      %396 = vmatpush1.bf16.xpose.msra.mxu0 0
      %397 = vmatprep.subr.bf16.mxu0 0
      %398 = vmatpush1.bf16.xpose.msra.mxu0 0
      %399 = vmatprep.subr.bf16.mxu0 0
      %400 = vmatpush1.bf16.xpose.msra.mxu0 0
      %401 = vmatprep.subr.bf16.mxu0 0
      %402 = vmatpush1.bf16.xpose.msra.mxu0 0
      %403 = vmatprep.subr.bf16.mxu0 0
      %404 = vmatpush1.bf16.xpose.msra.mxu0 0
      %405 = vmatprep.subr.bf16.mxu0 0
      %406 = vmatpush1.bf16.xpose.msra.mxu0 0
      %407 = vmatprep.subr.bf16.mxu0 0
      %408 = vmatpush1.bf16.xpose.msra.mxu0 0
      %409 = vmatprep.subr.bf16.mxu0 0
      %410 = vmatpush1.bf16.xpose.msra.mxu0 0
      %411 = vmatprep.subr.bf16.mxu0 0
      %412 = vmatpush1.bf16.xpose.msra.mxu0 0
      %413 = vmatprep.subr.bf16.mxu0 0
      %414 = vmatpush1.bf16.xpose.msra.mxu0 0
      %415 = vmatprep.subr.bf16.mxu0 0
      %416 = vmatpush1.bf16.xpose.msra.mxu0 0
      %417 = vmatprep.subr.bf16.mxu0 0
      %418 = vmatpush1.bf16.xpose.msra.mxu0 0
      %419 = vmatprep.subr.bf16.mxu0 0
      %420 = vmatpush1.bf16.xpose.msra.mxu0 0
      %421 = vmatprep.subr.bf16.mxu0 0
      %422 = vmatpush1.bf16.xpose.msra.mxu0 0
      %423 = vmatprep.subr.bf16.mxu0 0
      %424 = vmatpush1.bf16.xpose.msra.mxu0 0
      %425 = vmatprep.mubr.bf16.mxu0 0
      %426 = vmatmul.mubr.bf16.gmra.mrb[0].mxu0 %v388
      %v427 = vpop.f32.mrb[0].mxu0
      %v428 = vadd.f32 0.0, %v427
      %v429 = vpop.f32.mrb[0].mxu0
      %v430 = vpop.f32.mrb[0].mxu0
      %v431 = vpop.f32.mrb[0].mxu0
      %432 = vdwg.mxu0
      %v434 = vsel %vm294, %v285, 0
      %v437 = vsel %vm294, %v289, 0
      %439 = vmatprep.subr.bf16.mxu0 0
      %440 = vmatpush1.bf16.xpose.msra.mxu0 %v437
      %441 = vmatprep.subr.bf16.mxu0 0
      %442 = vmatpush1.bf16.xpose.msra.mxu0 0
      %443 = vmatprep.subr.bf16.mxu0 0
      %444 = vmatpush1.bf16.xpose.msra.mxu0 0
      %445 = vmatprep.subr.bf16.mxu0 0
      %446 = vmatpush1.bf16.xpose.msra.mxu0 0
      %447 = vmatprep.subr.bf16.mxu0 0
      %448 = vmatpush1.bf16.xpose.msra.mxu0 0
      %449 = vmatprep.subr.bf16.mxu0 0
      %450 = vmatpush1.bf16.xpose.msra.mxu0 0
      %451 = vmatprep.subr.bf16.mxu0 0
      %452 = vmatpush1.bf16.xpose.msra.mxu0 0
      %453 = vmatprep.subr.bf16.mxu0 0
      %454 = vmatpush1.bf16.xpose.msra.mxu0 0
      %455 = vmatprep.subr.bf16.mxu0 0
      %456 = vmatpush1.bf16.xpose.msra.mxu0 0
      %457 = vmatprep.subr.bf16.mxu0 0
      %458 = vmatpush1.bf16.xpose.msra.mxu0 0
      %459 = vmatprep.subr.bf16.mxu0 0
      %460 = vmatpush1.bf16.xpose.msra.mxu0 0
      %461 = vmatprep.subr.bf16.mxu0 0
      %462 = vmatpush1.bf16.xpose.msra.mxu0 0
      %463 = vmatprep.subr.bf16.mxu0 0
      %464 = vmatpush1.bf16.xpose.msra.mxu0 0
      %465 = vmatprep.subr.bf16.mxu0 0
      %466 = vmatpush1.bf16.xpose.msra.mxu0 0
      %467 = vmatprep.subr.bf16.mxu0 0
      %468 = vmatpush1.bf16.xpose.msra.mxu0 0
      %469 = vmatprep.subr.bf16.mxu0 0
      %470 = vmatpush1.bf16.xpose.msra.mxu0 0
      %471 = vmatprep.mubr.bf16.mxu0 0
      %472 = vmatmul.mubr.bf16.gmra.mrb[0].mxu0 %v434
      %v473 = vpop.f32.mrb[0].mxu0
      %v474 = vadd.f32 0.0, %v473
      %v475 = vpop.f32.mrb[0].mxu0
      %v476 = vpop.f32.mrb[0].mxu0
      %v477 = vpop.f32.mrb[0].mxu0
      %478 = vdwg.mxu0
      %v479 = vmul.f32 %v336, 0.35355338
      %v480 = vmul.f32 %v382, 0.35355338
      %v481 = vmul.f32 %v428, 0.35355338
      %v482 = vmul.f32 %v474, 0.35355338
      %v483 = vld [vmem:[%s273] sm:$0x1]
      %v485 = vlaneseq
      %v486 = vshrl.u32 %v485, 7
      %v487 = vsub.s32 0, %v486
      %v488 = vrot.slane %v483, %v487
      %v490 = vadd.f32 %v479, %v488
      %v491 = vadd.f32 %v480, %v488
      %v492 = vadd.f32 %v481, %v488
      %v493 = vadd.f32 %v482, %v488
      %v494 = vsel %vm294, %v490, -inf
      %495 = vmax.xlane.f32.xlu0 %v494
      %v496 = vpop.xlane.xlu0 %495
      %v497 = vsel %vm294, %v491, -inf
      %498 = vmax.xlane.f32.xlu0 %v497
      %v499 = vpop.xlane.xlu0 %498
      %v500 = vsel %vm294, %v492, -inf
      %501 = vmax.xlane.f32.xlu0 %v500
      %v502 = vpop.xlane.xlu0 %501
      %v503 = vsel %vm294, %v493, -inf
      %504 = vmax.xlane.f32.xlu0 %v503
      %v505 = vpop.xlane.xlu0 %504
      %v506 = vsub.f32 %v490, %v496
      %v507 = vsub.f32 %v491, %v499
      %v508 = vsub.f32 %v492, %v502
      %v509 = vsub.f32 %v493, %v505
      %v510 = vmul.f32 %v506, 1.442695
      %v511 = vpow.pop %v510
      %v512 = vmul.f32 %v507, 1.442695
      %v513 = vpow.pop %v512
      %v514 = vmul.f32 %v508, 1.442695
      %v515 = vpow.pop %v514
      %v516 = vmul.f32 %v509, 1.442695
      %v517 = vpow.pop %v516
      %v518 = vsel %vm294, %v511, 0.0
      %519 = vadd.xlane.f32.xlu0 %v518
      %v520 = vpop.xlane.xlu0 %519
      %v521 = vsel %vm294, %v513, 0.0
      %522 = vadd.xlane.f32.xlu0 %v521
      %v523 = vpop.xlane.xlu0 %522
      %v524 = vsel %vm294, %v515, 0.0
      %525 = vadd.xlane.f32.xlu0 %v524
      %v526 = vpop.xlane.xlu0 %525
      %v527 = vsel %vm294, %v517, 0.0
      %528 = vadd.xlane.f32.xlu0 %v527
      %v529 = vpop.xlane.xlu0 %528
      %v530 = vrcp.pop %v520
      %v531 = vrcp.pop %v523
      %v532 = vrcp.pop %v526
      %v533 = vrcp.pop %v529
      %v534 = vmul.f32 %v511, %v530
      %v535 = vmul.f32 %v513, %v531
      %v536 = vmul.f32 %v515, %v532
      %v537 = vmul.f32 %v517, %v533
      %v538 = vpack.c.bf16 %v534, %v534
      %v539 = vpack.c.bf16 %v535, %v535
      %v540 = vpack.c.bf16 %v536, %v536
      %v541 = vpack.c.bf16 %v537, %v537
      %v543 = vsel %vm294, %v538, 0
      %vm545 = vcmask 1043456
      %v547 = vsel %vm545, %v290, 0
      %549 = vmatprep.subr.bf16.mxu0 0
      %550 = vmatpush1.bf16.msra.mxu0 %v547
      %551 = vmatprep.subr.bf16.mxu0 0
      %552 = vmatpush1.bf16.msra.mxu0 0
      %553 = vmatprep.subr.bf16.mxu0 0
      %554 = vmatpush1.bf16.msra.mxu0 0
      %555 = vmatprep.subr.bf16.mxu0 0
      %556 = vmatpush1.bf16.msra.mxu0 0
      %557 = vmatprep.subr.bf16.mxu0 0
      %558 = vmatpush1.bf16.msra.mxu0 0
      %559 = vmatprep.subr.bf16.mxu0 0
      %560 = vmatpush1.bf16.msra.mxu0 0
      %561 = vmatprep.subr.bf16.mxu0 0
      %562 = vmatpush1.bf16.msra.mxu0 0
      %563 = vmatprep.subr.bf16.mxu0 0
      %564 = vmatpush1.bf16.msra.mxu0 0
      %565 = vmatprep.subr.bf16.mxu0 0
      %566 = vmatpush1.bf16.msra.mxu0 0
      %567 = vmatprep.subr.bf16.mxu0 0
      %568 = vmatpush1.bf16.msra.mxu0 0
      %569 = vmatprep.subr.bf16.mxu0 0
      %570 = vmatpush1.bf16.msra.mxu0 0
      %571 = vmatprep.subr.bf16.mxu0 0
      %572 = vmatpush1.bf16.msra.mxu0 0
      %573 = vmatprep.subr.bf16.mxu0 0
      %574 = vmatpush1.bf16.msra.mxu0 0
      %575 = vmatprep.subr.bf16.mxu0 0
      %576 = vmatpush1.bf16.msra.mxu0 0
      %577 = vmatprep.subr.bf16.mxu0 0
      %578 = vmatpush1.bf16.msra.mxu0 0
      %579 = vmatprep.subr.bf16.mxu0 0
      %580 = vmatpush1.bf16.msra.mxu0 0
      %581 = vmatprep.mubr.bf16.mxu0 0
      %582 = vmatmul.mubr.bf16.gmra.mrb[0].mxu0 %v543
      %v583 = vpop.f32.mrb[0].mxu0
      %v584 = vadd.f32 0.0, %v583
      %v585 = vpop.f32.mrb[0].mxu0
      %v586 = vpop.f32.mrb[0].mxu0
      %v587 = vpop.f32.mrb[0].mxu0
      %588 = vdwg.mxu0
      %v590 = vsel %vm294, %v539, 0
      %v593 = vsel %vm545, %v291, 0
      %595 = vmatprep.subr.bf16.mxu0 0
      %596 = vmatpush1.bf16.msra.mxu0 %v593
      %597 = vmatprep.subr.bf16.mxu0 0
      %598 = vmatpush1.bf16.msra.mxu0 0
      %599 = vmatprep.subr.bf16.mxu0 0
      %600 = vmatpush1.bf16.msra.mxu0 0
      %601 = vmatprep.subr.bf16.mxu0 0
      %602 = vmatpush1.bf16.msra.mxu0 0
      %603 = vmatprep.subr.bf16.mxu0 0
      %604 = vmatpush1.bf16.msra.mxu0 0
      %605 = vmatprep.subr.bf16.mxu0 0
      %606 = vmatpush1.bf16.msra.mxu0 0
      %607 = vmatprep.subr.bf16.mxu0 0
      %608 = vmatpush1.bf16.msra.mxu0 0
      %609 = vmatprep.subr.bf16.mxu0 0
      %610 = vmatpush1.bf16.msra.mxu0 0
      %611 = vmatprep.subr.bf16.mxu0 0
      %612 = vmatpush1.bf16.msra.mxu0 0
      %613 = vmatprep.subr.bf16.mxu0 0
      %614 = vmatpush1.bf16.msra.mxu0 0
      %615 = vmatprep.subr.bf16.mxu0 0
      %616 = vmatpush1.bf16.msra.mxu0 0
      %617 = vmatprep.subr.bf16.mxu0 0
      %618 = vmatpush1.bf16.msra.mxu0 0
      %619 = vmatprep.subr.bf16.mxu0 0
      %620 = vmatpush1.bf16.msra.mxu0 0
      %621 = vmatprep.subr.bf16.mxu0 0
      %622 = vmatpush1.bf16.msra.mxu0 0
      %623 = vmatprep.subr.bf16.mxu0 0
      %624 = vmatpush1.bf16.msra.mxu0 0
      %625 = vmatprep.subr.bf16.mxu0 0
      %626 = vmatpush1.bf16.msra.mxu0 0
      %627 = vmatprep.mubr.bf16.mxu0 0
      %628 = vmatmul.mubr.bf16.gmra.mrb[0].mxu0 %v590
      %v629 = vpop.f32.mrb[0].mxu0
      %v630 = vadd.f32 0.0, %v629
      %v631 = vpop.f32.mrb[0].mxu0
      %v632 = vpop.f32.mrb[0].mxu0
      %v633 = vpop.f32.mrb[0].mxu0
      %634 = vdwg.mxu0
      %v636 = vsel %vm294, %v540, 0
      %v639 = vsel %vm545, %v292, 0
      %641 = vmatprep.subr.bf16.mxu0 0
      %642 = vmatpush1.bf16.msra.mxu0 %v639
      %643 = vmatprep.subr.bf16.mxu0 0
      %644 = vmatpush1.bf16.msra.mxu0 0
      %645 = vmatprep.subr.bf16.mxu0 0
      %646 = vmatpush1.bf16.msra.mxu0 0
      %647 = vmatprep.subr.bf16.mxu0 0
      %648 = vmatpush1.bf16.msra.mxu0 0
      %649 = vmatprep.subr.bf16.mxu0 0
      %650 = vmatpush1.bf16.msra.mxu0 0
      %651 = vmatprep.subr.bf16.mxu0 0
      %652 = vmatpush1.bf16.msra.mxu0 0
      %653 = vmatprep.subr.bf16.mxu0 0
      %654 = vmatpush1.bf16.msra.mxu0 0
      %655 = vmatprep.subr.bf16.mxu0 0
      %656 = vmatpush1.bf16.msra.mxu0 0
      %657 = vmatprep.subr.bf16.mxu0 0
      %658 = vmatpush1.bf16.msra.mxu0 0
      %659 = vmatprep.subr.bf16.mxu0 0
      %660 = vmatpush1.bf16.msra.mxu0 0
      %661 = vmatprep.subr.bf16.mxu0 0
      %662 = vmatpush1.bf16.msra.mxu0 0
      %663 = vmatprep.subr.bf16.mxu0 0
      %664 = vmatpush1.bf16.msra.mxu0 0
      %665 = vmatprep.subr.bf16.mxu0 0
      %666 = vmatpush1.bf16.msra.mxu0 0
      %667 = vmatprep.subr.bf16.mxu0 0
      %668 = vmatpush1.bf16.msra.mxu0 0
      %669 = vmatprep.subr.bf16.mxu0 0
      %670 = vmatpush1.bf16.msra.mxu0 0
      %671 = vmatprep.subr.bf16.mxu0 0
      %672 = vmatpush1.bf16.msra.mxu0 0
      %673 = vmatprep.mubr.bf16.mxu0 0
      %674 = vmatmul.mubr.bf16.gmra.mrb[0].mxu0 %v636
      %v675 = vpop.f32.mrb[0].mxu0
      %v676 = vadd.f32 0.0, %v675
      %v677 = vpop.f32.mrb[0].mxu0
      %v678 = vpop.f32.mrb[0].mxu0
      %v679 = vpop.f32.mrb[0].mxu0
      %680 = vdwg.mxu0
      %v682 = vsel %vm294, %v541, 0
      %v685 = vsel %vm545, %v293, 0
      %687 = vmatprep.subr.bf16.mxu0 0
      %688 = vmatpush1.bf16.msra.mxu0 %v685
      %689 = vmatprep.subr.bf16.mxu0 0
      %690 = vmatpush1.bf16.msra.mxu0 0
      %691 = vmatprep.subr.bf16.mxu0 0
      %692 = vmatpush1.bf16.msra.mxu0 0
      %693 = vmatprep.subr.bf16.mxu0 0
      %694 = vmatpush1.bf16.msra.mxu0 0
      %695 = vmatprep.subr.bf16.mxu0 0
      %696 = vmatpush1.bf16.msra.mxu0 0
      %697 = vmatprep.subr.bf16.mxu0 0
      %698 = vmatpush1.bf16.msra.mxu0 0
      %699 = vmatprep.subr.bf16.mxu0 0
      %700 = vmatpush1.bf16.msra.mxu0 0
      %701 = vmatprep.subr.bf16.mxu0 0
      %702 = vmatpush1.bf16.msra.mxu0 0
      %703 = vmatprep.subr.bf16.mxu0 0
      %704 = vmatpush1.bf16.msra.mxu0 0
      %705 = vmatprep.subr.bf16.mxu0 0
      %706 = vmatpush1.bf16.msra.mxu0 0
      %707 = vmatprep.subr.bf16.mxu0 0
      %708 = vmatpush1.bf16.msra.mxu0 0
      %709 = vmatprep.subr.bf16.mxu0 0
      %710 = vmatpush1.bf16.msra.mxu0 0
      %711 = vmatprep.subr.bf16.mxu0 0
      %712 = vmatpush1.bf16.msra.mxu0 0
      %713 = vmatprep.subr.bf16.mxu0 0
      %714 = vmatpush1.bf16.msra.mxu0 0
      %715 = vmatprep.subr.bf16.mxu0 0
      %716 = vmatpush1.bf16.msra.mxu0 0
      %717 = vmatprep.subr.bf16.mxu0 0
      %718 = vmatpush1.bf16.msra.mxu0 0
      %719 = vmatprep.mubr.bf16.mxu0 0
      %720 = vmatmul.mubr.bf16.gmra.mrb[0].mxu0 %v682
      %v721 = vpop.f32.mrb[0].mxu0
      %v722 = vadd.f32 0.0, %v721
      %v723 = vpop.f32.mrb[0].mxu0
      %v724 = vpop.f32.mrb[0].mxu0
      %v725 = vpop.f32.mrb[0].mxu0
      %726 = vdwg.mxu0
      %728 = vrot.lane.b32.xlu0 %v630, 8
      %v729 = vpop.permute.xlu0 %728
      %732 = vrot.lane.b32.xlu0 %v676, 16
      %v733 = vpop.permute.xlu0 %732
      %736 = vrot.lane.b32.xlu0 %v722, 24
      %v737 = vpop.permute.xlu0 %736
      %v739 = vsel %vm294, %v584, %v729
      %vm740 = vcmask 130048
      %v741 = vsel %vm740, %v739, %v733
      %vm742 = vcmask 195584
      %v743 = vsel %vm742, %v741, %v737
      %v744 = vpack.c.bf16 %v743, %v743
      %vm745 = vcmask 257024
      %746 = vst.msk [vmem:[%s280] sm:$0xf] %vm745, %v744
      %p747 = scmp.lt.s32.totalorder %s19, 1
      %s748 = scalar_select %p747, %s19, 1
      %p749 = scmp.lt.s32.totalorder %s20, 0
      %s750 = scalar_select %p749, %s20, 0
      %s751 = sadd.s32 %s750, %s748
      %s752 = smul.addr %s751, 4
      %s753 = scalar_lea.vmem %s4, %s752
      // Predicated region
      $region37: #{_lambda_.50} parent=35 // pred_check
        %p754 = pneg %p153
      $region38: #{_lambda_.50} parent=35 // pred_check_branch
        %756 = sbr.rel (%p754) target = $region40
      $region39: #{_lambda_.50} parent=35 // pred_region
        _
      $region40: #{_lambda_.50} parent=35 // pred_fallthru
        _
    $region36: #{_lambda_.50} parent=5 // pred_fallthru
      _
    %p757 = scmp.le.s32.totalorder 2, %s10
    // Predicated region
    $region41: #{_lambda_.50} parent=5 // pred_check
      %p758 = pneg %p757
    $region42: #{_lambda_.50} parent=5 // pred_check_branch
      %760 = sbr.rel (%p758) target = $region44
    $region43: #{_lambda_.50} parent=5 // pred_region
      %s761 = ssub.s32 %s10, 2
      // Predicated region
      $region45: #{_lambda_.50} parent=43 // pred_check
        %p762 = pneg %p159
      $region46: #{_lambda_.50} parent=43 // pred_check_branch
        %764 = sbr.rel (%p762) target = $region48
      $region47: #{_lambda_.50} parent=43 // pred_region
        %p765 = scmp.lt.s32.totalorder %s21, 1
        %s766 = scalar_select %p765, %s21, 1
        %p767 = scmp.lt.s32.totalorder %s22, 0
        %s768 = scalar_select %p767, %s22, 0
        %s769 = sadd.s32 %s768, %s766
        %s770 = smul.addr %s769, 4
        %s771 = scalar_lea.vmem %s4, %s770
      $region48: #{_lambda_.50} parent=43 // pred_fallthru
        _
    $region44: #{_lambda_.50} parent=5 // pred_fallthru
      _
  $region6: #{_lambda_.50} parent=0 // loop_footer
    %s14 = sadd.s32 1, %s10
  $region7: #{_lambda_.50} parent=0 // loop_footer_branch
    %9 = sbr.rel target = $region3
  $region8: #{_lambda_.50} parent=0 // loop_exit
    _

// kernel: _lambda_.35
$region0: #{_lambda_.35}
  #allocation0 [shape = 'u32[]', space=smem, size = 0x4, offset = 0x4, fixed_abs, tag = 'smem constant byte address 0x4 - core index']
  #allocation1 [shape = 'u32[144,128]{1,0:T(1,128)}', space=vmem, size = 0x12000, scoped, tag = 'internal scratch']
  %s0 = inlined_call_operand.vmem [shape: f32[8,1024], index: 0, kind: input, shape index: {}]
  %s1 = inlined_call_operand.vmem [shape: f32[8,1], index: 1, kind: input, shape index: {}]
  %s2 = inlined_call_operand.vmem [shape: f32[8,1], index: 2, kind: input, shape index: {}]
  %s3 = inlined_call_operand.vmem [shape: f32[8,1024], index: 3, kind: output, shape index: {}]
  %s4 = sld [smem:[#allocation0]]
  $region22: #{_lambda_.35} parent=0
    _
  %s6 = ssub.s32 1, %s4
  %s7 = scalar_select 0, %s6, %s4
  // Predicated region
  $region2: #{_lambda_.35} parent=0 // pred_check
    _
  $region3: #{_lambda_.35} parent=0 // pred_check_branch
    %9 = sbr.rel (0) target = $region5
  $region4: #{_lambda_.35} parent=0 // pred_region
    _
  $region5: #{_lambda_.35} parent=0 // pred_fallthru
    _
  // Predicated region
  $region6: #{_lambda_.35} parent=0 // pred_check
    _
  $region7: #{_lambda_.35} parent=0 // pred_check_branch
    %11 = sbr.rel (0) target = $region9
  $region8: #{_lambda_.35} parent=0 // pred_region
    _
  $region9: #{_lambda_.35} parent=0 // pred_fallthru
    _
  // Predicated region
  $region10: #{_lambda_.35} parent=0 // pred_check
    _
  $region11: #{_lambda_.35} parent=0 // pred_check_branch
    %13 = sbr.rel (0) target = $region13
  $region12: #{_lambda_.35} parent=0 // pred_region
    _
  $region13: #{_lambda_.35} parent=0 // pred_fallthru
    _
  %v14 = vld [vmem:[%s0] sm:$0xff]
  %v15 = vld [vmem:[%s0 + $0x8] sm:$0xff]
  %v16 = vld [vmem:[%s0 + $0x10] sm:$0xff]
  %v17 = vld [vmem:[%s0 + $0x18] sm:$0xff]
  %v18 = vld [vmem:[%s0 + $0x20] sm:$0xff]
  %v19 = vld [vmem:[%s0 + $0x28] sm:$0xff]
  %v20 = vld [vmem:[%s0 + $0x30] sm:$0xff]
  %v21 = vld [vmem:[%s0 + $0x38] sm:$0xff]
  %v22 = vld [vmem:[%s1] sm:$0xff]
  %24 = vset.pattern.permute.xlu0 0
  %25 = vperm.xlu0 %24, %v22
  %v26 = vpop.permute.xlu0 %25
  %v28 = vmul.f32 %v14, %v26
  %v29 = vmul.f32 %v15, %v26
  %v30 = vmul.f32 %v16, %v26
  %v31 = vmul.f32 %v17, %v26
  %v32 = vmul.f32 %v18, %v26
  %v33 = vmul.f32 %v19, %v26
  %v34 = vmul.f32 %v20, %v26
  %v35 = vmul.f32 %v21, %v26
  %v36 = vld [vmem:[%s2] sm:$0xff]
  %38 = vset.pattern.permute.xlu0 0
  %39 = vperm.xlu0 %38, %v36
  %v40 = vpop.permute.xlu0 %39
  %v42 = vadd.f32 %v28, %v40
  %v43 = vadd.f32 %v29, %v40
  %v44 = vadd.f32 %v30, %v40
  %v45 = vadd.f32 %v31, %v40
  %v46 = vadd.f32 %v32, %v40
  %v47 = vadd.f32 %v33, %v40
  %v48 = vadd.f32 %v34, %v40
  %v49 = vadd.f32 %v35, %v40
  %50 = vst [vmem:[%s3] sm:$0xff] %v42
  %51 = vst [vmem:[%s3 + $0x8] sm:$0xff] %v43
  %52 = vst [vmem:[%s3 + $0x10] sm:$0xff] %v44
  %53 = vst [vmem:[%s3 + $0x18] sm:$0xff] %v45
  %54 = vst [vmem:[%s3 + $0x20] sm:$0xff] %v46
  %55 = vst [vmem:[%s3 + $0x28] sm:$0xff] %v47
  %56 = vst [vmem:[%s3 + $0x30] sm:$0xff] %v48
  %57 = vst [vmem:[%s3 + $0x38] sm:$0xff] %v49
  // Predicated region
  $region14: #{_lambda_.35} parent=0 // pred_check
    _
  $region15: #{_lambda_.35} parent=0 // pred_check_branch
    %59 = sbr.rel (0) target = $region17
  $region16: #{_lambda_.35} parent=0 // pred_region
    _
  $region17: #{_lambda_.35} parent=0 // pred_fallthru
    _
  // Predicated region
  $region18: #{_lambda_.35} parent=0 // pred_check
    _
  $region19: #{_lambda_.35} parent=0 // pred_check_branch
    %61 = sbr.rel (0) target = $region21
  $region20: #{_lambda_.35} parent=0 // pred_region
    _
  $region21: #{_lambda_.35} parent=0 // pred_fallthru
    _

// kernel: _lambda_.36
$region0: #{_lambda_.36}
  #allocation0 [shape = 'u32[]', space=smem, size = 0x4, offset = 0x4, fixed_abs, tag = 'smem constant byte address 0x4 - core index']
  #allocation1 [shape = 'u32[144,128]{1,0:T(1,128)}', space=vmem, size = 0x12000, scoped, tag = 'internal scratch']
  %s0 = inlined_call_operand.vmem [shape: bf16[32,256], index: 0, kind: input, shape index: {}]
  %s1 = inlined_call_operand.vmem [shape: bf16[256,128], index: 1, kind: input, shape index: {}]
  %s2 = inlined_call_operand.vmem [shape: f32[1,128], index: 2, kind: input, shape index: {}]
  %s3 = inlined_call_operand.vmem [shape: f32[32,128], index: 3, kind: output, shape index: {}]
  %s4 = sld [smem:[#allocation0]]
  $region22: #{_lambda_.36} parent=0
    _
  %s6 = ssub.s32 1, %s4
  %s7 = scalar_select 0, %s6, %s4
  // Predicated region
  $region2: #{_lambda_.36} parent=0 // pred_check
    _
  $region3: #{_lambda_.36} parent=0 // pred_check_branch
    %9 = sbr.rel (0) target = $region5
  $region4: #{_lambda_.36} parent=0 // pred_region
    _
  $region5: #{_lambda_.36} parent=0 // pred_fallthru
    _
  // Predicated region
  $region6: #{_lambda_.36} parent=0 // pred_check
    _
  $region7: #{_lambda_.36} parent=0 // pred_check_branch
    %11 = sbr.rel (0) target = $region9
  $region8: #{_lambda_.36} parent=0 // pred_region
    _
  $region9: #{_lambda_.36} parent=0 // pred_fallthru
    _
  // Predicated region
  $region10: #{_lambda_.36} parent=0 // pred_check
    _
  $region11: #{_lambda_.36} parent=0 // pred_check_branch
    %13 = sbr.rel (0) target = $region13
  $region12: #{_lambda_.36} parent=0 // pred_region
    _
  $region13: #{_lambda_.36} parent=0 // pred_fallthru
    _
  %v15 = vld [vmem:[%s0] sm:$0xff]
  %v16 = vld [vmem:[%s0 + $0x8] sm:$0xff]
  %v17 = vld [vmem:[%s0 + $0x10] sm:$0xff]
  %v18 = vld [vmem:[%s0 + $0x18] sm:$0xff]
  %v19 = vld [vmem:[%s1] sm:$0xf]
  %v20 = vld [vmem:[%s1 + $0x4] sm:$0xf]
  %v21 = vld [vmem:[%s1 + $0x8] sm:$0xf]
  %v22 = vld [vmem:[%s1 + $0xc] sm:$0xf]
  %v23 = vld [vmem:[%s1 + $0x10] sm:$0xf]
  %v24 = vld [vmem:[%s1 + $0x14] sm:$0xf]
  %v25 = vld [vmem:[%s1 + $0x18] sm:$0xf]
  %v26 = vld [vmem:[%s1 + $0x1c] sm:$0xf]
  %v27 = vld [vmem:[%s1 + $0x20] sm:$0xf]
  %v28 = vld [vmem:[%s1 + $0x24] sm:$0xf]
  %v29 = vld [vmem:[%s1 + $0x28] sm:$0xf]
  %v30 = vld [vmem:[%s1 + $0x2c] sm:$0xf]
  %v31 = vld [vmem:[%s1 + $0x30] sm:$0xf]
  %v32 = vld [vmem:[%s1 + $0x34] sm:$0xf]
  %v33 = vld [vmem:[%s1 + $0x38] sm:$0xf]
  %v34 = vld [vmem:[%s1 + $0x3c] sm:$0xf]
  %v35 = vld [vmem:[%s1 + $0x40] sm:$0xf]
  %v36 = vld [vmem:[%s1 + $0x44] sm:$0xf]
  %v37 = vld [vmem:[%s1 + $0x48] sm:$0xf]
  %v38 = vld [vmem:[%s1 + $0x4c] sm:$0xf]
  %v39 = vld [vmem:[%s1 + $0x50] sm:$0xf]
  %v40 = vld [vmem:[%s1 + $0x54] sm:$0xf]
  %v41 = vld [vmem:[%s1 + $0x58] sm:$0xf]
  %v42 = vld [vmem:[%s1 + $0x5c] sm:$0xf]
  %v43 = vld [vmem:[%s1 + $0x60] sm:$0xf]
  %v44 = vld [vmem:[%s1 + $0x64] sm:$0xf]
  %v45 = vld [vmem:[%s1 + $0x68] sm:$0xf]
  %v46 = vld [vmem:[%s1 + $0x6c] sm:$0xf]
  %v47 = vld [vmem:[%s1 + $0x70] sm:$0xf]
  %v48 = vld [vmem:[%s1 + $0x74] sm:$0xf]
  %v49 = vld [vmem:[%s1 + $0x78] sm:$0xf]
  %v50 = vld [vmem:[%s1 + $0x7c] sm:$0xf]
  %v51 = vld [vmem:[%s2] sm:$0x1]
  %v53 = vlaneseq
  %v54 = vshrl.u32 %v53, 7
  %v55 = vsub.s32 0, %v54
  %v56 = vrot.slane %v51, %v55
  %v62 = vunpack.c.l.b16 %v15
  %v63 = vunpack.c.h.b16 %v15
  %v64 = vunpack.c.l.b16 %v16
  %v65 = vunpack.c.h.b16 %v16
  %v66 = vunpack.c.l.b16 %v17
  %v67 = vunpack.c.h.b16 %v17
  %v68 = vunpack.c.l.b16 %v18
  %v69 = vunpack.c.h.b16 %v18
  %v70 = vpack.c.b16 %v64, %v62
  %v71 = vpack.c.b16 %v65, %v63
  %v72 = vpack.c.b16 %v68, %v66
  %v73 = vpack.c.b16 %v69, %v67
  %v110 = vunpack.c.l.b16 %v19
  %v111 = vunpack.c.l.b16 %v20
  %v112 = vunpack.c.l.b16 %v21
  %v113 = vunpack.c.l.b16 %v22
  %v114 = vunpack.c.l.b16 %v23
  %v115 = vunpack.c.l.b16 %v24
  %v116 = vunpack.c.l.b16 %v25
  %v117 = vunpack.c.l.b16 %v26
  %v118 = vunpack.c.l.b16 %v27
  %v119 = vunpack.c.l.b16 %v28
  %v120 = vunpack.c.l.b16 %v29
  %v121 = vunpack.c.l.b16 %v30
  %v122 = vunpack.c.l.b16 %v31
  %v123 = vunpack.c.l.b16 %v32
  %v124 = vunpack.c.l.b16 %v33
  %v125 = vunpack.c.l.b16 %v34
  %v126 = vunpack.c.l.b16 %v35
  %v127 = vunpack.c.l.b16 %v36
  %v128 = vunpack.c.l.b16 %v37
  %v129 = vunpack.c.l.b16 %v38
  %v130 = vunpack.c.l.b16 %v39
  %v131 = vunpack.c.l.b16 %v40
  %v132 = vunpack.c.l.b16 %v41
  %v133 = vunpack.c.l.b16 %v42
  %v134 = vunpack.c.l.b16 %v43
  %v135 = vunpack.c.l.b16 %v44
  %v136 = vunpack.c.l.b16 %v45
  %v137 = vunpack.c.l.b16 %v46
  %v138 = vunpack.c.l.b16 %v47
  %v139 = vunpack.c.l.b16 %v48
  %v140 = vunpack.c.l.b16 %v49
  %v141 = vunpack.c.l.b16 %v50
  %v142 = vpack.c.b16 %v111, %v110
  %v143 = vpack.c.b16 %v113, %v112
  %v144 = vpack.c.b16 %v115, %v114
  %v145 = vpack.c.b16 %v117, %v116
  %v146 = vpack.c.b16 %v119, %v118
  %v147 = vpack.c.b16 %v121, %v120
  %v148 = vpack.c.b16 %v123, %v122
  %v149 = vpack.c.b16 %v125, %v124
  %v150 = vpack.c.b16 %v127, %v126
  %v151 = vpack.c.b16 %v129, %v128
  %v152 = vpack.c.b16 %v131, %v130
  %v153 = vpack.c.b16 %v133, %v132
  %v154 = vpack.c.b16 %v135, %v134
  %v155 = vpack.c.b16 %v137, %v136
  %v156 = vpack.c.b16 %v139, %v138
  %v157 = vpack.c.b16 %v141, %v140
  %174 = vmatprep.subr.bf16.mxu0 0
  %175 = vmatpush1.bf16.msra.mxu0 %v142
  %176 = vmatprep.subr.bf16.mxu0 0
  %177 = vmatpush1.bf16.msra.mxu0 %v143
  %178 = vmatprep.subr.bf16.mxu0 0
  %179 = vmatpush1.bf16.msra.mxu0 %v144
  %180 = vmatprep.subr.bf16.mxu0 0
  %181 = vmatpush1.bf16.msra.mxu0 %v145
  %182 = vmatprep.subr.bf16.mxu0 0
  %183 = vmatpush1.bf16.msra.mxu0 %v146
  %184 = vmatprep.subr.bf16.mxu0 0
  %185 = vmatpush1.bf16.msra.mxu0 %v147
  %186 = vmatprep.subr.bf16.mxu0 0
  %187 = vmatpush1.bf16.msra.mxu0 %v148
  %188 = vmatprep.subr.bf16.mxu0 0
  %189 = vmatpush1.bf16.msra.mxu0 %v149
  %190 = vmatprep.subr.bf16.mxu0 0
  %191 = vmatpush1.bf16.msra.mxu0 %v150
  %192 = vmatprep.subr.bf16.mxu0 0
  %193 = vmatpush1.bf16.msra.mxu0 %v151
  %194 = vmatprep.subr.bf16.mxu0 0
  %195 = vmatpush1.bf16.msra.mxu0 %v152
  %196 = vmatprep.subr.bf16.mxu0 0
  %197 = vmatpush1.bf16.msra.mxu0 %v153
  %198 = vmatprep.subr.bf16.mxu0 0
  %199 = vmatpush1.bf16.msra.mxu0 %v154
  %200 = vmatprep.subr.bf16.mxu0 0
  %201 = vmatpush1.bf16.msra.mxu0 %v155
  %202 = vmatprep.subr.bf16.mxu0 0
  %203 = vmatpush1.bf16.msra.mxu0 %v156
  %204 = vmatprep.subr.bf16.mxu0 0
  %205 = vmatpush1.bf16.msra.mxu0 %v157
  %206 = vmatprep.mubr.bf16.mxu0 %v71
  %207 = vmatmul.mubr.bf16.gmra.mrb[0].mxu0 %v70
  %v208 = vpop.f32.mrb[0].mxu0
  %v209 = vadd.f32 %v56, %v208
  %v210 = vpop.f32.mrb[0].mxu0
  %v211 = vpop.f32.mrb[0].mxu0
  %v212 = vadd.f32 %v56, %v211
  %v213 = vpop.f32.mrb[0].mxu0
  %214 = vmatprep.mubr.bf16.mxu0 %v73
  %215 = vmatmul.mubr.bf16.gmra.mrb[0].mxu0 %v72
  %v216 = vpop.f32.mrb[0].mxu0
  %v217 = vadd.f32 %v56, %v216
  %v218 = vpop.f32.mrb[0].mxu0
  %v219 = vpop.f32.mrb[0].mxu0
  %v220 = vadd.f32 %v56, %v219
  %v221 = vpop.f32.mrb[0].mxu0
  %222 = vdwg.mxu0
  %v223 = vmax.f32 %v209, 0.0
  %v224 = vmax.f32 %v212, 0.0
  %v225 = vmax.f32 %v217, 0.0
  %v226 = vmax.f32 %v220, 0.0
  %227 = vst [vmem:[%s3] sm:$0xff] %v223
  %228 = vst [vmem:[%s3 + $0x8] sm:$0xff] %v224
  %229 = vst [vmem:[%s3 + $0x10] sm:$0xff] %v225
  %230 = vst [vmem:[%s3 + $0x18] sm:$0xff] %v226
  // Predicated region
  $region14: #{_lambda_.36} parent=0 // pred_check
    _
  $region15: #{_lambda_.36} parent=0 // pred_check_branch
    %232 = sbr.rel (0) target = $region17
  $region16: #{_lambda_.36} parent=0 // pred_region
    _
  $region17: #{_lambda_.36} parent=0 // pred_fallthru
    _
  // Predicated region
  $region18: #{_lambda_.36} parent=0 // pred_check
    _
  $region19: #{_lambda_.36} parent=0 // pred_check_branch
    %234 = sbr.rel (0) target = $region21
  $region20: #{_lambda_.36} parent=0 // pred_region
    _
  $region21: #{_lambda_.36} parent=0 // pred_fallthru
    _

// kernel: _lambda_.37
$region0: #{_lambda_.37}
  #allocation0 [shape = 'u32[]', space=smem, size = 0x4, offset = 0x4, fixed_abs, tag = 'smem constant byte address 0x4 - core index']
  #allocation1 [shape = 'u32[144,128]{1,0:T(1,128)}', space=vmem, size = 0x12000, scoped, tag = 'internal scratch']
  %s0 = inlined_call_operand.vmem [shape: bf16[32,128], index: 0, kind: input, shape index: {}]
  %s1 = inlined_call_operand.vmem [shape: bf16[128,128], index: 1, kind: input, shape index: {}]
  %s2 = inlined_call_operand.vmem [shape: f32[1,128], index: 2, kind: input, shape index: {}]
  %s3 = inlined_call_operand.vmem [shape: f32[32,128], index: 3, kind: output, shape index: {}]
  %s4 = sld [smem:[#allocation0]]
  $region22: #{_lambda_.37} parent=0
    _
  %s6 = ssub.s32 1, %s4
  %s7 = scalar_select 0, %s6, %s4
  // Predicated region
  $region2: #{_lambda_.37} parent=0 // pred_check
    _
  $region3: #{_lambda_.37} parent=0 // pred_check_branch
    %9 = sbr.rel (0) target = $region5
  $region4: #{_lambda_.37} parent=0 // pred_region
    _
  $region5: #{_lambda_.37} parent=0 // pred_fallthru
    _
  // Predicated region
  $region6: #{_lambda_.37} parent=0 // pred_check
    _
  $region7: #{_lambda_.37} parent=0 // pred_check_branch
    %11 = sbr.rel (0) target = $region9
  $region8: #{_lambda_.37} parent=0 // pred_region
    _
  $region9: #{_lambda_.37} parent=0 // pred_fallthru
    _
  // Predicated region
  $region10: #{_lambda_.37} parent=0 // pred_check
    _
  $region11: #{_lambda_.37} parent=0 // pred_check_branch
    %13 = sbr.rel (0) target = $region13
  $region12: #{_lambda_.37} parent=0 // pred_region
    _
  $region13: #{_lambda_.37} parent=0 // pred_fallthru
    _
  %v15 = vld [vmem:[%s0] sm:$0xf]
  %v16 = vld [vmem:[%s0 + $0x4] sm:$0xf]
  %v17 = vld [vmem:[%s0 + $0x8] sm:$0xf]
  %v18 = vld [vmem:[%s0 + $0xc] sm:$0xf]
  %v19 = vld [vmem:[%s1] sm:$0xf]
  %v20 = vld [vmem:[%s1 + $0x4] sm:$0xf]
  %v21 = vld [vmem:[%s1 + $0x8] sm:$0xf]
  %v22 = vld [vmem:[%s1 + $0xc] sm:$0xf]
  %v23 = vld [vmem:[%s1 + $0x10] sm:$0xf]
  %v24 = vld [vmem:[%s1 + $0x14] sm:$0xf]
  %v25 = vld [vmem:[%s1 + $0x18] sm:$0xf]
  %v26 = vld [vmem:[%s1 + $0x1c] sm:$0xf]
  %v27 = vld [vmem:[%s1 + $0x20] sm:$0xf]
  %v28 = vld [vmem:[%s1 + $0x24] sm:$0xf]
  %v29 = vld [vmem:[%s1 + $0x28] sm:$0xf]
  %v30 = vld [vmem:[%s1 + $0x2c] sm:$0xf]
  %v31 = vld [vmem:[%s1 + $0x30] sm:$0xf]
  %v32 = vld [vmem:[%s1 + $0x34] sm:$0xf]
  %v33 = vld [vmem:[%s1 + $0x38] sm:$0xf]
  %v34 = vld [vmem:[%s1 + $0x3c] sm:$0xf]
  %v35 = vld [vmem:[%s2] sm:$0x1]
  %v37 = vlaneseq
  %v38 = vshrl.u32 %v37, 7
  %v39 = vsub.s32 0, %v38
  %v40 = vrot.slane %v35, %v39
  %v46 = vunpack.c.l.b16 %v15
  %v47 = vunpack.c.l.b16 %v16
  %v48 = vunpack.c.l.b16 %v17
  %v49 = vunpack.c.l.b16 %v18
  %v50 = vpack.c.b16 %v47, %v46
  %v51 = vpack.c.b16 %v49, %v48
  %v70 = vunpack.c.l.b16 %v19
  %v71 = vunpack.c.l.b16 %v20
  %v72 = vunpack.c.l.b16 %v21
  %v73 = vunpack.c.l.b16 %v22
  %v74 = vunpack.c.l.b16 %v23
  %v75 = vunpack.c.l.b16 %v24
  %v76 = vunpack.c.l.b16 %v25
  %v77 = vunpack.c.l.b16 %v26
  %v78 = vunpack.c.l.b16 %v27
  %v79 = vunpack.c.l.b16 %v28
  %v80 = vunpack.c.l.b16 %v29
  %v81 = vunpack.c.l.b16 %v30
  %v82 = vunpack.c.l.b16 %v31
  %v83 = vunpack.c.l.b16 %v32
  %v84 = vunpack.c.l.b16 %v33
  %v85 = vunpack.c.l.b16 %v34
  %v86 = vpack.c.b16 %v71, %v70
  %v87 = vpack.c.b16 %v73, %v72
  %v88 = vpack.c.b16 %v75, %v74
  %v89 = vpack.c.b16 %v77, %v76
  %v90 = vpack.c.b16 %v79, %v78
  %v91 = vpack.c.b16 %v81, %v80
  %v92 = vpack.c.b16 %v83, %v82
  %v93 = vpack.c.b16 %v85, %v84
  %102 = vmatprep.subr.bf16.mxu0 0
  %103 = vmatpush1.bf16.msra.mxu0 %v86
  %104 = vmatprep.subr.bf16.mxu0 0
  %105 = vmatpush1.bf16.msra.mxu0 %v87
  %106 = vmatprep.subr.bf16.mxu0 0
  %107 = vmatpush1.bf16.msra.mxu0 %v88
  %108 = vmatprep.subr.bf16.mxu0 0
  %109 = vmatpush1.bf16.msra.mxu0 %v89
  %110 = vmatprep.subr.bf16.mxu0 0
  %111 = vmatpush1.bf16.msra.mxu0 %v90
  %112 = vmatprep.subr.bf16.mxu0 0
  %113 = vmatpush1.bf16.msra.mxu0 %v91
  %114 = vmatprep.subr.bf16.mxu0 0
  %115 = vmatpush1.bf16.msra.mxu0 %v92
  %116 = vmatprep.subr.bf16.mxu0 0
  %117 = vmatpush1.bf16.msra.mxu0 %v93
  %118 = vmatprep.subr.bf16.mxu0 0
  %119 = vmatpush1.bf16.msra.mxu0 0
  %120 = vmatprep.subr.bf16.mxu0 0
  %121 = vmatpush1.bf16.msra.mxu0 0
  %122 = vmatprep.subr.bf16.mxu0 0
  %123 = vmatpush1.bf16.msra.mxu0 0
  %124 = vmatprep.subr.bf16.mxu0 0
  %125 = vmatpush1.bf16.msra.mxu0 0
  %126 = vmatprep.subr.bf16.mxu0 0
  %127 = vmatpush1.bf16.msra.mxu0 0
  %128 = vmatprep.subr.bf16.mxu0 0
  %129 = vmatpush1.bf16.msra.mxu0 0
  %130 = vmatprep.subr.bf16.mxu0 0
  %131 = vmatpush1.bf16.msra.mxu0 0
  %132 = vmatprep.subr.bf16.mxu0 0
  %133 = vmatpush1.bf16.msra.mxu0 0
  %134 = vmatprep.mubr.bf16.mxu0 0
  %135 = vmatmul.mubr.bf16.gmra.mrb[0].mxu0 %v50
  %v136 = vpop.f32.mrb[0].mxu0
  %v137 = vadd.f32 %v40, %v136
  %v138 = vpop.f32.mrb[0].mxu0
  %v139 = vpop.f32.mrb[0].mxu0
  %v140 = vadd.f32 %v40, %v139
  %v141 = vpop.f32.mrb[0].mxu0
  %142 = vmatprep.mubr.bf16.mxu0 0
  %143 = vmatmul.mubr.bf16.gmra.mrb[0].mxu0 %v51
  %v144 = vpop.f32.mrb[0].mxu0
  %v145 = vadd.f32 %v40, %v144
  %v146 = vpop.f32.mrb[0].mxu0
  %v147 = vpop.f32.mrb[0].mxu0
  %v148 = vadd.f32 %v40, %v147
  %v149 = vpop.f32.mrb[0].mxu0
  %150 = vdwg.mxu0
  %151 = vst [vmem:[%s3] sm:$0xff] %v137
  %152 = vst [vmem:[%s3 + $0x8] sm:$0xff] %v140
  %153 = vst [vmem:[%s3 + $0x10] sm:$0xff] %v145
  %154 = vst [vmem:[%s3 + $0x18] sm:$0xff] %v148
  // Predicated region
  $region14: #{_lambda_.37} parent=0 // pred_check
    _
  $region15: #{_lambda_.37} parent=0 // pred_check_branch
    %156 = sbr.rel (0) target = $region17
  $region16: #{_lambda_.37} parent=0 // pred_region
    _
  $region17: #{_lambda_.37} parent=0 // pred_fallthru
    _
  // Predicated region
  $region18: #{_lambda_.37} parent=0 // pred_check
    _
  $region19: #{_lambda_.37} parent=0 // pred_check_branch
    %158 = sbr.rel (0) target = $region21
  $region20: #{_lambda_.37} parent=0 // pred_region
    _
  $region21: #{_lambda_.37} parent=0 // pred_fallthru
    _

// kernel: _lambda_.38
$region0: #{_lambda_.38}
  #allocation0 [shape = 'u32[]', space=smem, size = 0x4, offset = 0x4, fixed_abs, tag = 'smem constant byte address 0x4 - core index']
  #allocation1 [shape = 'u32[144,128]{1,0:T(1,128)}', space=vmem, size = 0x12000, scoped, tag = 'internal scratch']
  %s0 = inlined_call_operand.vmem [shape: bf16[32,128], index: 0, kind: input, shape index: {}]
  %s1 = inlined_call_operand.vmem [shape: bf16[128,128], index: 1, kind: input, shape index: {}]
  %s2 = inlined_call_operand.vmem [shape: f32[1,128], index: 2, kind: input, shape index: {}]
  %s3 = inlined_call_operand.vmem [shape: bf16[32,128], index: 3, kind: output, shape index: {}]
  %s4 = sld [smem:[#allocation0]]
  $region22: #{_lambda_.38} parent=0
    _
  %s6 = ssub.s32 1, %s4
  %s7 = scalar_select 0, %s6, %s4
  // Predicated region
  $region2: #{_lambda_.38} parent=0 // pred_check
    _
  $region3: #{_lambda_.38} parent=0 // pred_check_branch
    %9 = sbr.rel (0) target = $region5
  $region4: #{_lambda_.38} parent=0 // pred_region
    _
  $region5: #{_lambda_.38} parent=0 // pred_fallthru
    _
  // Predicated region
  $region6: #{_lambda_.38} parent=0 // pred_check
    _
  $region7: #{_lambda_.38} parent=0 // pred_check_branch
    %11 = sbr.rel (0) target = $region9
  $region8: #{_lambda_.38} parent=0 // pred_region
    _
  $region9: #{_lambda_.38} parent=0 // pred_fallthru
    _
  // Predicated region
  $region10: #{_lambda_.38} parent=0 // pred_check
    _
  $region11: #{_lambda_.38} parent=0 // pred_check_branch
    %13 = sbr.rel (0) target = $region13
  $region12: #{_lambda_.38} parent=0 // pred_region
    _
  $region13: #{_lambda_.38} parent=0 // pred_fallthru
    _
  %v15 = vld [vmem:[%s0] sm:$0xf]
  %v16 = vld [vmem:[%s0 + $0x4] sm:$0xf]
  %v17 = vld [vmem:[%s0 + $0x8] sm:$0xf]
  %v18 = vld [vmem:[%s0 + $0xc] sm:$0xf]
  %v19 = vld [vmem:[%s1] sm:$0xf]
  %v20 = vld [vmem:[%s1 + $0x4] sm:$0xf]
  %v21 = vld [vmem:[%s1 + $0x8] sm:$0xf]
  %v22 = vld [vmem:[%s1 + $0xc] sm:$0xf]
  %v23 = vld [vmem:[%s1 + $0x10] sm:$0xf]
  %v24 = vld [vmem:[%s1 + $0x14] sm:$0xf]
  %v25 = vld [vmem:[%s1 + $0x18] sm:$0xf]
  %v26 = vld [vmem:[%s1 + $0x1c] sm:$0xf]
  %v27 = vld [vmem:[%s1 + $0x20] sm:$0xf]
  %v28 = vld [vmem:[%s1 + $0x24] sm:$0xf]
  %v29 = vld [vmem:[%s1 + $0x28] sm:$0xf]
  %v30 = vld [vmem:[%s1 + $0x2c] sm:$0xf]
  %v31 = vld [vmem:[%s1 + $0x30] sm:$0xf]
  %v32 = vld [vmem:[%s1 + $0x34] sm:$0xf]
  %v33 = vld [vmem:[%s1 + $0x38] sm:$0xf]
  %v34 = vld [vmem:[%s1 + $0x3c] sm:$0xf]
  %v35 = vld [vmem:[%s2] sm:$0x1]
  %v37 = vlaneseq
  %v38 = vshrl.u32 %v37, 7
  %v39 = vsub.s32 0, %v38
  %v40 = vrot.slane %v35, %v39
  %v46 = vunpack.c.l.b16 %v15
  %v47 = vunpack.c.l.b16 %v16
  %v48 = vunpack.c.l.b16 %v17
  %v49 = vunpack.c.l.b16 %v18
  %v50 = vpack.c.b16 %v47, %v46
  %v51 = vpack.c.b16 %v49, %v48
  %v70 = vunpack.c.l.b16 %v19
  %v71 = vunpack.c.l.b16 %v20
  %v72 = vunpack.c.l.b16 %v21
  %v73 = vunpack.c.l.b16 %v22
  %v74 = vunpack.c.l.b16 %v23
  %v75 = vunpack.c.l.b16 %v24
  %v76 = vunpack.c.l.b16 %v25
  %v77 = vunpack.c.l.b16 %v26
  %v78 = vunpack.c.l.b16 %v27
  %v79 = vunpack.c.l.b16 %v28
  %v80 = vunpack.c.l.b16 %v29
  %v81 = vunpack.c.l.b16 %v30
  %v82 = vunpack.c.l.b16 %v31
  %v83 = vunpack.c.l.b16 %v32
  %v84 = vunpack.c.l.b16 %v33
  %v85 = vunpack.c.l.b16 %v34
  %v86 = vpack.c.b16 %v71, %v70
  %v87 = vpack.c.b16 %v73, %v72
  %v88 = vpack.c.b16 %v75, %v74
  %v89 = vpack.c.b16 %v77, %v76
  %v90 = vpack.c.b16 %v79, %v78
  %v91 = vpack.c.b16 %v81, %v80
  %v92 = vpack.c.b16 %v83, %v82
  %v93 = vpack.c.b16 %v85, %v84
  %102 = vmatprep.subr.bf16.mxu0 0
  %103 = vmatpush1.bf16.msra.mxu0 %v86
  %104 = vmatprep.subr.bf16.mxu0 0
  %105 = vmatpush1.bf16.msra.mxu0 %v87
  %106 = vmatprep.subr.bf16.mxu0 0
  %107 = vmatpush1.bf16.msra.mxu0 %v88
  %108 = vmatprep.subr.bf16.mxu0 0
  %109 = vmatpush1.bf16.msra.mxu0 %v89
  %110 = vmatprep.subr.bf16.mxu0 0
  %111 = vmatpush1.bf16.msra.mxu0 %v90
  %112 = vmatprep.subr.bf16.mxu0 0
  %113 = vmatpush1.bf16.msra.mxu0 %v91
  %114 = vmatprep.subr.bf16.mxu0 0
  %115 = vmatpush1.bf16.msra.mxu0 %v92
  %116 = vmatprep.subr.bf16.mxu0 0
  %117 = vmatpush1.bf16.msra.mxu0 %v93
  %118 = vmatprep.subr.bf16.mxu0 0
  %119 = vmatpush1.bf16.msra.mxu0 0
  %120 = vmatprep.subr.bf16.mxu0 0
  %121 = vmatpush1.bf16.msra.mxu0 0
  %122 = vmatprep.subr.bf16.mxu0 0
  %123 = vmatpush1.bf16.msra.mxu0 0
  %124 = vmatprep.subr.bf16.mxu0 0
  %125 = vmatpush1.bf16.msra.mxu0 0
  %126 = vmatprep.subr.bf16.mxu0 0
  %127 = vmatpush1.bf16.msra.mxu0 0
  %128 = vmatprep.subr.bf16.mxu0 0
  %129 = vmatpush1.bf16.msra.mxu0 0
  %130 = vmatprep.subr.bf16.mxu0 0
  %131 = vmatpush1.bf16.msra.mxu0 0
  %132 = vmatprep.subr.bf16.mxu0 0
  %133 = vmatpush1.bf16.msra.mxu0 0
  %134 = vmatprep.mubr.bf16.mxu0 0
  %135 = vmatmul.mubr.bf16.gmra.mrb[0].mxu0 %v50
  %v136 = vpop.f32.mrb[0].mxu0
  %v137 = vadd.f32 %v40, %v136
  %v138 = vpop.f32.mrb[0].mxu0
  %v139 = vpop.f32.mrb[0].mxu0
  %v140 = vadd.f32 %v40, %v139
  %v141 = vpop.f32.mrb[0].mxu0
  %142 = vmatprep.mubr.bf16.mxu0 0
  %143 = vmatmul.mubr.bf16.gmra.mrb[0].mxu0 %v51
  %v144 = vpop.f32.mrb[0].mxu0
  %v145 = vadd.f32 %v40, %v144
  %v146 = vpop.f32.mrb[0].mxu0
  %v147 = vpop.f32.mrb[0].mxu0
  %v148 = vadd.f32 %v40, %v147
  %v149 = vpop.f32.mrb[0].mxu0
  %150 = vdwg.mxu0
  %v151 = vpack.c.bf16 %v140, %v137
  %v152 = vpack.c.bf16 %v148, %v145
  %v155 = vunpack.c.l.b16 %v151
  %v156 = vunpack.c.h.b16 %v151
  %v157 = vunpack.c.l.b16 %v152
  %v158 = vunpack.c.h.b16 %v152
  %v159 = vpack.c.b16 %v155, %v155
  %v160 = vpack.c.b16 %v156, %v156
  %v161 = vpack.c.b16 %v157, %v157
  %v162 = vpack.c.b16 %v158, %v158
  %167 = vst [vmem:[%s3] sm:$0xf] %v159
  %168 = vst [vmem:[%s3 + $0x4] sm:$0xf] %v160
  %169 = vst [vmem:[%s3 + $0x8] sm:$0xf] %v161
  %170 = vst [vmem:[%s3 + $0xc] sm:$0xf] %v162
  // Predicated region
  $region14: #{_lambda_.38} parent=0 // pred_check
    _
  $region15: #{_lambda_.38} parent=0 // pred_check_branch
    %172 = sbr.rel (0) target = $region17
  $region16: #{_lambda_.38} parent=0 // pred_region
    _
  $region17: #{_lambda_.38} parent=0 // pred_fallthru
    _
  // Predicated region
  $region18: #{_lambda_.38} parent=0 // pred_check
    _
  $region19: #{_lambda_.38} parent=0 // pred_check_branch
    %174 = sbr.rel (0) target = $region21
  $region20: #{_lambda_.38} parent=0 // pred_region
    _
  $region21: #{_lambda_.38} parent=0 // pred_fallthru
    _

// kernel: _lambda_.41
$region0: #{_lambda_.41}
  #allocation0 [shape = 'u32[]', space=smem, size = 0x4, offset = 0x4, fixed_abs, tag = 'smem constant byte address 0x4 - core index']
  #allocation1 [shape = 'u32[144,128]{1,0:T(1,128)}', space=vmem, size = 0x12000, scoped, tag = 'internal scratch']
  %s0 = inlined_call_operand.vmem [shape: bf16[32,32], index: 0, kind: input, shape index: {}]
  %s1 = inlined_call_operand.vmem [shape: bf16[32,32], index: 1, kind: input, shape index: {}]
  %s2 = inlined_call_operand.vmem [shape: f32[1,32], index: 2, kind: input, shape index: {}]
  %s3 = inlined_call_operand.vmem [shape: f32[32,32], index: 3, kind: input, shape index: {}]
  %s4 = inlined_call_operand.vmem [shape: f32[1,32], index: 4, kind: input, shape index: {}]
  %s5 = inlined_call_operand.vmem [shape: f32[1,32], index: 5, kind: input, shape index: {}]
  %s6 = inlined_call_operand.vmem [shape: f32[32,32], index: 6, kind: output, shape index: {}]
  %s7 = sld [smem:[#allocation0]]
  $region34: #{_lambda_.41} parent=0
    _
  %s9 = ssub.s32 1, %s7
  %s10 = scalar_select 0, %s9, %s7
  // Predicated region
  $region2: #{_lambda_.41} parent=0 // pred_check
    _
  $region3: #{_lambda_.41} parent=0 // pred_check_branch
    %12 = sbr.rel (0) target = $region5
  $region4: #{_lambda_.41} parent=0 // pred_region
    _
  $region5: #{_lambda_.41} parent=0 // pred_fallthru
    _
  // Predicated region
  $region6: #{_lambda_.41} parent=0 // pred_check
    _
  $region7: #{_lambda_.41} parent=0 // pred_check_branch
    %14 = sbr.rel (0) target = $region9
  $region8: #{_lambda_.41} parent=0 // pred_region
    _
  $region9: #{_lambda_.41} parent=0 // pred_fallthru
    _
  // Predicated region
  $region10: #{_lambda_.41} parent=0 // pred_check
    _
  $region11: #{_lambda_.41} parent=0 // pred_check_branch
    %16 = sbr.rel (0) target = $region13
  $region12: #{_lambda_.41} parent=0 // pred_region
    _
  $region13: #{_lambda_.41} parent=0 // pred_fallthru
    _
  // Predicated region
  $region14: #{_lambda_.41} parent=0 // pred_check
    _
  $region15: #{_lambda_.41} parent=0 // pred_check_branch
    %18 = sbr.rel (0) target = $region17
  $region16: #{_lambda_.41} parent=0 // pred_region
    _
  $region17: #{_lambda_.41} parent=0 // pred_fallthru
    _
  // Predicated region
  $region18: #{_lambda_.41} parent=0 // pred_check
    _
  $region19: #{_lambda_.41} parent=0 // pred_check_branch
    %20 = sbr.rel (0) target = $region21
  $region20: #{_lambda_.41} parent=0 // pred_region
    _
  $region21: #{_lambda_.41} parent=0 // pred_fallthru
    _
  // Predicated region
  $region22: #{_lambda_.41} parent=0 // pred_check
    _
  $region23: #{_lambda_.41} parent=0 // pred_check_branch
    %22 = sbr.rel (0) target = $region25
  $region24: #{_lambda_.41} parent=0 // pred_region
    _
  $region25: #{_lambda_.41} parent=0 // pred_fallthru
    _
  %v24 = vld [vmem:[%s3] sm:$0xff]
  %v25 = vld [vmem:[%s3 + $0x8] sm:$0xff]
  %v26 = vld [vmem:[%s3 + $0x10] sm:$0xff]
  %v27 = vld [vmem:[%s3 + $0x18] sm:$0xff]
  %v28 = vld [vmem:[%s0] sm:$0xf]
  %v29 = vld [vmem:[%s0 + $0x4] sm:$0xf]
  %v30 = vld [vmem:[%s0 + $0x8] sm:$0xf]
  %v31 = vld [vmem:[%s0 + $0xc] sm:$0xf]
  %v32 = vld [vmem:[%s1] sm:$0xf]
  %v33 = vld [vmem:[%s1 + $0x4] sm:$0xf]
  %v34 = vld [vmem:[%s1 + $0x8] sm:$0xf]
  %v35 = vld [vmem:[%s1 + $0xc] sm:$0xf]
  %v40 = vunpack.c.l.b16 %v28
  %v41 = vunpack.c.l.b16 %v29
  %v42 = vunpack.c.l.b16 %v30
  %v43 = vunpack.c.l.b16 %v31
  %v44 = vpack.c.b16 %v41, %v40
  %v45 = vpack.c.b16 %v43, %v42
  %v50 = vunpack.c.l.b16 %v32
  %v51 = vunpack.c.l.b16 %v33
  %v52 = vunpack.c.l.b16 %v34
  %v53 = vunpack.c.l.b16 %v35
  %v54 = vpack.c.b16 %v51, %v50
  %v55 = vpack.c.b16 %v53, %v52
  %vm58 = vcmask 261120
  %v60 = vsel %vm58, %v44, 0
  %v63 = vsel %vm58, %v45, 0
  %65 = vmatprep.subr.bf16.mxu0 0
  %66 = vmatpush1.bf16.msra.mxu0 %v54
  %67 = vmatprep.subr.bf16.mxu0 0
  %68 = vmatpush1.bf16.msra.mxu0 %v55
  %69 = vmatprep.subr.bf16.mxu0 0
  %70 = vmatpush1.bf16.msra.mxu0 0
  %71 = vmatprep.subr.bf16.mxu0 0
  %72 = vmatpush1.bf16.msra.mxu0 0
  %73 = vmatprep.subr.bf16.mxu0 0
  %74 = vmatpush1.bf16.msra.mxu0 0
  %75 = vmatprep.subr.bf16.mxu0 0
  %76 = vmatpush1.bf16.msra.mxu0 0
  %77 = vmatprep.subr.bf16.mxu0 0
  %78 = vmatpush1.bf16.msra.mxu0 0
  %79 = vmatprep.subr.bf16.mxu0 0
  %80 = vmatpush1.bf16.msra.mxu0 0
  %81 = vmatprep.subr.bf16.mxu0 0
  %82 = vmatpush1.bf16.msra.mxu0 0
  %83 = vmatprep.subr.bf16.mxu0 0
  %84 = vmatpush1.bf16.msra.mxu0 0
  %85 = vmatprep.subr.bf16.mxu0 0
  %86 = vmatpush1.bf16.msra.mxu0 0
  %87 = vmatprep.subr.bf16.mxu0 0
  %88 = vmatpush1.bf16.msra.mxu0 0
  %89 = vmatprep.subr.bf16.mxu0 0
  %90 = vmatpush1.bf16.msra.mxu0 0
  %91 = vmatprep.subr.bf16.mxu0 0
  %92 = vmatpush1.bf16.msra.mxu0 0
  %93 = vmatprep.subr.bf16.mxu0 0
  %94 = vmatpush1.bf16.msra.mxu0 0
  %95 = vmatprep.subr.bf16.mxu0 0
  %96 = vmatpush1.bf16.msra.mxu0 0
  %97 = vmatprep.mubr.bf16.mxu0 0
  %98 = vmatmul.mubr.bf16.gmra.mrb[0].mxu0 %v60
  %v99 = vpop.f32.mrb[0].mxu0
  %v100 = vadd.f32 0.0, %v99
  %v101 = vpop.f32.mrb[0].mxu0
  %v102 = vpop.f32.mrb[0].mxu0
  %v103 = vadd.f32 0.0, %v102
  %v104 = vpop.f32.mrb[0].mxu0
  %105 = vmatprep.mubr.bf16.mxu0 0
  %106 = vmatmul.mubr.bf16.gmra.mrb[0].mxu0 %v63
  %v107 = vpop.f32.mrb[0].mxu0
  %v108 = vadd.f32 0.0, %v107
  %v109 = vpop.f32.mrb[0].mxu0
  %v110 = vpop.f32.mrb[0].mxu0
  %v111 = vadd.f32 0.0, %v110
  %v112 = vpop.f32.mrb[0].mxu0
  %113 = vdwg.mxu0
  %v114 = vadd.f32 %v24, %v100
  %v115 = vadd.f32 %v25, %v103
  %v116 = vadd.f32 %v26, %v108
  %v117 = vadd.f32 %v27, %v111
  %v118 = vld [vmem:[%s2] sm:$0x1]
  %v120 = vlaneseq
  %v121 = vshrl.u32 %v120, 7
  %v122 = vsub.s32 0, %v121
  %v123 = vrot.slane %v118, %v122
  %v125 = vadd.f32 %v114, %v123
  %v126 = vadd.f32 %v115, %v123
  %v127 = vadd.f32 %v116, %v123
  %v128 = vadd.f32 %v117, %v123
  %v129 = vsel %vm58, %v125, 0.0
  %130 = vadd.xlane.f32.xlu0 %v129
  %v131 = vpop.xlane.xlu0 %130
  %v132 = vsel %vm58, %v126, 0.0
  %133 = vadd.xlane.f32.xlu0 %v132
  %v134 = vpop.xlane.xlu0 %133
  %v135 = vsel %vm58, %v127, 0.0
  %136 = vadd.xlane.f32.xlu0 %v135
  %v137 = vpop.xlane.xlu0 %136
  %v138 = vsel %vm58, %v128, 0.0
  %139 = vadd.xlane.f32.xlu0 %v138
  %v140 = vpop.xlane.xlu0 %139
  %v141 = vrcp.pop 32.0
  %v142 = vmul.f32 %v131, %v141
  %v143 = vmul.f32 %v134, %v141
  %v144 = vmul.f32 %v137, %v141
  %v145 = vmul.f32 %v140, %v141
  %v146 = vsub.f32 %v125, %v142
  %v147 = vsub.f32 %v126, %v143
  %v148 = vsub.f32 %v127, %v144
  %v149 = vsub.f32 %v128, %v145
  %v150 = vmul.f32 %v146, %v146
  %v151 = vmul.f32 %v147, %v147
  %v152 = vmul.f32 %v148, %v148
  %v153 = vmul.f32 %v149, %v149
  %v154 = vsel %vm58, %v150, 0.0
  %155 = vadd.xlane.f32.xlu0 %v154
  %v156 = vpop.xlane.xlu0 %155
  %v157 = vsel %vm58, %v151, 0.0
  %158 = vadd.xlane.f32.xlu0 %v157
  %v159 = vpop.xlane.xlu0 %158
  %v160 = vsel %vm58, %v152, 0.0
  %161 = vadd.xlane.f32.xlu0 %v160
  %v162 = vpop.xlane.xlu0 %161
  %v163 = vsel %vm58, %v153, 0.0
  %164 = vadd.xlane.f32.xlu0 %v163
  %v165 = vpop.xlane.xlu0 %164
  %v166 = vmul.f32 %v156, %v141
  %v167 = vmul.f32 %v159, %v141
  %v168 = vmul.f32 %v162, %v141
  %v169 = vmul.f32 %v165, %v141
  %v170 = vadd.f32 %v166, 1e-05
  %v171 = vadd.f32 %v167, 1e-05
  %v172 = vadd.f32 %v168, 1e-05
  %v173 = vadd.f32 %v169, 1e-05
  %v174 = vrsqrt.pop %v170
  %v175 = vrsqrt.pop %v171
  %v176 = vrsqrt.pop %v172
  %v177 = vrsqrt.pop %v173
  %v178 = vmul.f32 %v146, %v174
  %v179 = vmul.f32 %v147, %v175
  %v180 = vmul.f32 %v148, %v176
  %v181 = vmul.f32 %v149, %v177
  %v182 = vld [vmem:[%s4] sm:$0x1]
  %v184 = vlaneseq
  %v185 = vshrl.u32 %v184, 7
  %v186 = vsub.s32 0, %v185
  %v187 = vrot.slane %v182, %v186
  %v189 = vmul.f32 %v178, %v187
  %v190 = vmul.f32 %v179, %v187
  %v191 = vmul.f32 %v180, %v187
  %v192 = vmul.f32 %v181, %v187
  %v193 = vld [vmem:[%s5] sm:$0x1]
  %v195 = vlaneseq
  %v196 = vshrl.u32 %v195, 7
  %v197 = vsub.s32 0, %v196
  %v198 = vrot.slane %v193, %v197
  %v200 = vadd.f32 %v189, %v198
  %v201 = vadd.f32 %v190, %v198
  %v202 = vadd.f32 %v191, %v198
  %v203 = vadd.f32 %v192, %v198
  %204 = vst.msk [vmem:[%s6] sm:$0xff] %vm58, %v200
  %205 = vst.msk [vmem:[%s6 + $0x8] sm:$0xff] %vm58, %v201
  %206 = vst.msk [vmem:[%s6 + $0x10] sm:$0xff] %vm58, %v202
  %207 = vst.msk [vmem:[%s6 + $0x18] sm:$0xff] %vm58, %v203
  // Predicated region
  $region26: #{_lambda_.41} parent=0 // pred_check
    _
  $region27: #{_lambda_.41} parent=0 // pred_check_branch
    %209 = sbr.rel (0) target = $region29
  $region28: #{_lambda_.41} parent=0 // pred_region
    _
  $region29: #{_lambda_.41} parent=0 // pred_fallthru
    _
  // Predicated region
  $region30: #{_lambda_.41} parent=0 // pred_check
    _
  $region31: #{_lambda_.41} parent=0 // pred_check_branch
    %211 = sbr.rel (0) target = $region33
  $region32: #{_lambda_.41} parent=0 // pred_region
    _
  $region33: #{_lambda_.41} parent=0 // pred_fallthru
    _

// kernel: _lambda_.40
$region0: #{_lambda_.40}
  #allocation0 [shape = 'u32[]', space=smem, size = 0x4, offset = 0x4, fixed_abs, tag = 'smem constant byte address 0x4 - core index']
  #allocation1 [shape = 'u32[144,128]{1,0:T(1,128)}', space=vmem, size = 0x12000, scoped, tag = 'internal scratch']
  %s0 = inlined_call_operand.vmem [shape: bf16[2,4,16,8], index: 0, kind: input, shape index: {}]
  %s1 = inlined_call_operand.vmem [shape: bf16[2,4,16,8], index: 1, kind: input, shape index: {}]
  %s2 = inlined_call_operand.vmem [shape: bf16[2,4,16,8], index: 2, kind: input, shape index: {}]
  %s3 = inlined_call_operand.vmem [shape: f32[2,1,16], index: 3, kind: input, shape index: {}]
  %s4 = inlined_call_operand.vmem [shape: bf16[2,16,32], index: 4, kind: output, shape index: {}]
  %s5 = sld [smem:[#allocation0]]
  $region49: #{_lambda_.40} parent=0
    _
  %s7 = ssub.s32 1, %s5
  %s8 = scalar_select 0, %s7, %s5
  loop: start=0, step=1, limit=4
  $region2: #{_lambda_.40} parent=0 // loop_pre_header
    _
  $region3: #{_lambda_.40} parent=0 // loop_header
    %s10 = sphi 0, %s14
    %p11 = scmp.ge.s32.totalorder %s10, 4
    %s17 = sphi 0, %s29
    %s18 = sphi 0, %s25
    %s19 = sphi 0, %s17
    %s20 = sphi 0, %s18
    %s21 = sphi 0, %s19
    %s22 = sphi 0, %s20
    %s34 = sphi 0, %s36
    %s37 = sphi 0, %s34
    %s38 = sphi 0, %s37
    %s54 = sphi 0, %s38
    %s60 = sphi 0, %s62
    %s63 = sphi 0, %s60
    %s64 = sphi 0, %s63
    %s80 = sphi 0, %s64
    %s86 = sphi 0, %s88
    %s89 = sphi 0, %s86
    %s90 = sphi 0, %s89
    %s106 = sphi 0, %s90
    %s112 = sphi 0, %s114
    %s115 = sphi 0, %s112
    %s116 = sphi 0, %s115
    %s132 = sphi 0, %s116
    %s140 = sphi 0, %s142
    %s143 = sphi 0, %s140
    %s144 = sphi 0, %s143
    %s160 = sphi 0, %s144
  $region4: #{_lambda_.40} parent=0 // loop_header_branch
    %13 = sbr.rel (%p11) target = $region8
  $region5: #{_lambda_.40} parent=0 // loop_body
    %s15 = ssub.s32 %s10, 1
    %s16 = ssub.s32 %s10, 2
    %s23 = sadd.s32 1, %s18
    %p24 = scmp.ge.s32.totalorder %s23, 1
    %s25 = scalar_select %p24, 0, %s23
    %s26 = sadd.s32 1, %s17
    %s27 = scalar_select %p24, %s26, %s17
    %p28 = scmp.ge.s32.totalorder %s27, 2
    %s29 = scalar_select %p28, 0, %s27
    %s30 = ssub.s32 %s17, %s29
    %s31 = ssub.s32 %s18, %s25
    %s32 = sor.u32 %s30, %s31
    %p33 = scmp.eq.s32.totalorder %s32, 0
    %s35 = sadd.s32 %s34, 1
    %s36 = scalar_select %p33, %s34, %s35
    %p39 = pneg %p33
    %p40 = scmp.eq.s32.totalorder %s10, 1
    %p41 = por %p39, %p40
    %p42 = scmp.ne.s32.totalorder %s34, %s37
    %p43 = scmp.eq.s32.totalorder %s10, 0
    %p44 = por %p42, %p43
    %p45 = scmp.ne.s32.totalorder %s34, %s37
    %p46 = scmp.eq.s32.totalorder %s15, 1
    %p47 = por %p45, %p46
    %p48 = scmp.ne.s32.totalorder %s37, %s38
    %p49 = scmp.eq.s32.totalorder %s15, 0
    %p50 = por %p48, %p49
    %p51 = scmp.ne.s32.totalorder %s37, %s38
    %p52 = scmp.eq.s32.totalorder %s16, 1
    %p53 = por %p51, %p52
    %p55 = scmp.ne.s32.totalorder %s38, %s54
    %p56 = scmp.eq.s32.totalorder %s16, 0
    %p57 = por %p55, %p56
    %s58 = ssub.s32 %s17, %s29
    %p59 = scmp.eq.s32.totalorder %s58, 0
    %s61 = sadd.s32 %s60, 1
    %s62 = scalar_select %p59, %s60, %s61
    %p65 = pneg %p59
    %p66 = scmp.eq.s32.totalorder %s10, 1
    %p67 = por %p65, %p66
    %p68 = scmp.ne.s32.totalorder %s60, %s63
    %p69 = scmp.eq.s32.totalorder %s10, 0
    %p70 = por %p68, %p69
    %p71 = scmp.ne.s32.totalorder %s60, %s63
    %p72 = scmp.eq.s32.totalorder %s15, 1
    %p73 = por %p71, %p72
    %p74 = scmp.ne.s32.totalorder %s63, %s64
    %p75 = scmp.eq.s32.totalorder %s15, 0
    %p76 = por %p74, %p75
    %p77 = scmp.ne.s32.totalorder %s63, %s64
    %p78 = scmp.eq.s32.totalorder %s16, 1
    %p79 = por %p77, %p78
    %p81 = scmp.ne.s32.totalorder %s64, %s80
    %p82 = scmp.eq.s32.totalorder %s16, 0
    %p83 = por %p81, %p82
    %s84 = ssub.s32 %s17, %s29
    %p85 = scmp.eq.s32.totalorder %s84, 0
    %s87 = sadd.s32 %s86, 1
    %s88 = scalar_select %p85, %s86, %s87
    %p91 = pneg %p85
    %p92 = scmp.eq.s32.totalorder %s10, 1
    %p93 = por %p91, %p92
    %p94 = scmp.ne.s32.totalorder %s86, %s89
    %p95 = scmp.eq.s32.totalorder %s10, 0
    %p96 = por %p94, %p95
    %p97 = scmp.ne.s32.totalorder %s86, %s89
    %p98 = scmp.eq.s32.totalorder %s15, 1
    %p99 = por %p97, %p98
    %p100 = scmp.ne.s32.totalorder %s89, %s90
    %p101 = scmp.eq.s32.totalorder %s15, 0
    %p102 = por %p100, %p101
    %p103 = scmp.ne.s32.totalorder %s89, %s90
    %p104 = scmp.eq.s32.totalorder %s16, 1
    %p105 = por %p103, %p104
    %p107 = scmp.ne.s32.totalorder %s90, %s106
    %p108 = scmp.eq.s32.totalorder %s16, 0
    %p109 = por %p107, %p108
    %s110 = ssub.s32 %s17, %s29
    %p111 = scmp.eq.s32.totalorder %s110, 0
    %s113 = sadd.s32 %s112, 1
    %s114 = scalar_select %p111, %s112, %s113
    %p117 = pneg %p111
    %p118 = scmp.eq.s32.totalorder %s10, 1
    %p119 = por %p117, %p118
    %p120 = scmp.ne.s32.totalorder %s112, %s115
    %p121 = scmp.eq.s32.totalorder %s10, 0
    %p122 = por %p120, %p121
    %p123 = scmp.ne.s32.totalorder %s112, %s115
    %p124 = scmp.eq.s32.totalorder %s15, 1
    %p125 = por %p123, %p124
    %p126 = scmp.ne.s32.totalorder %s115, %s116
    %p127 = scmp.eq.s32.totalorder %s15, 0
    %p128 = por %p126, %p127
    %p129 = scmp.ne.s32.totalorder %s115, %s116
    %p130 = scmp.eq.s32.totalorder %s16, 1
    %p131 = por %p129, %p130
    %p133 = scmp.ne.s32.totalorder %s116, %s132
    %p134 = scmp.eq.s32.totalorder %s16, 0
    %p135 = por %p133, %p134
    %s136 = ssub.s32 %s17, %s29
    %s137 = ssub.s32 %s18, %s25
    %s138 = sor.u32 %s136, %s137
    %p139 = scmp.eq.s32.totalorder %s138, 0
    %s141 = sadd.s32 %s140, 1
    %s142 = scalar_select %p139, %s140, %s141
    %p145 = pneg %p139
    %p146 = scmp.eq.s32.totalorder %s10, 1
    %p147 = por %p145, %p146
    %p148 = scmp.ne.s32.totalorder %s140, %s143
    %p149 = scmp.eq.s32.totalorder %s10, 0
    %p150 = por %p148, %p149
    %p151 = scmp.ne.s32.totalorder %s140, %s143
    %p152 = scmp.eq.s32.totalorder %s15, 1
    %p153 = por %p151, %p152
    %p154 = scmp.ne.s32.totalorder %s143, %s144
    %p155 = scmp.eq.s32.totalorder %s15, 0
    %p156 = por %p154, %p155
    %p157 = scmp.ne.s32.totalorder %s143, %s144
    %p158 = scmp.eq.s32.totalorder %s16, 1
    %p159 = por %p157, %p158
    %p161 = scmp.ne.s32.totalorder %s144, %s160
    %p162 = scmp.eq.s32.totalorder %s16, 0
    %p163 = por %p161, %p162
    %p164 = scmp.le.s32.totalorder 1, %s10
    %p165 = scmp.lt.s32.totalorder %s10, 3
    %p166 = pnand %p164, %p165
    %p167 = pneg %p166
    // Predicated region
    $region9: #{_lambda_.40} parent=5 // pred_check
      _
    $region10: #{_lambda_.40} parent=5 // pred_check_branch
      %169 = sbr.rel (%p166) target = $region12
    $region11: #{_lambda_.40} parent=5 // pred_region
      %s170 = ssub.s32 %s10, 1
    $region12: #{_lambda_.40} parent=5 // pred_fallthru
      _
    %p171 = scmp.lt.s32.totalorder %s10, 2
    // Predicated region
    $region13: #{_lambda_.40} parent=5 // pred_check
      %p172 = pneg %p171
    $region14: #{_lambda_.40} parent=5 // pred_check_branch
      %174 = sbr.rel (%p172) target = $region16
    $region15: #{_lambda_.40} parent=5 // pred_region
      // Predicated region
      $region17: #{_lambda_.40} parent=15 // pred_check
        %p175 = pneg %p44
      $region18: #{_lambda_.40} parent=15 // pred_check_branch
        %177 = sbr.rel (%p175) target = $region20
      $region19: #{_lambda_.40} parent=15 // pred_region
        %s178 = smul.u32 2, %s18
        %p179 = scmp.lt.s32.totalorder %s17, 1
        %s180 = scalar_select %p179, %s17, 1
        %p181 = scmp.lt.s32.totalorder %s178, 1
        %s182 = scalar_select %p181, %s178, 1
        %s183 = smul.addr %s180, 8
        %s184 = sadd.s32 %s182, %s183
        %s185 = smul.addr %s184, 4
        %s186 = scalar_lea.vmem %s0, %s185
        %s187 = smul.u32 2, %s18
      $region20: #{_lambda_.40} parent=15 // pred_fallthru
        _
      // Predicated region
      $region21: #{_lambda_.40} parent=15 // pred_check
        %p188 = pneg %p70
      $region22: #{_lambda_.40} parent=15 // pred_check_branch
        %190 = sbr.rel (%p188) target = $region24
      $region23: #{_lambda_.40} parent=15 // pred_region
        %p191 = scmp.lt.s32.totalorder %s17, 1
        %s192 = scalar_select %p191, %s17, 1
        %s193 = smul.addr %s192, 8
        %s194 = smul.addr %s193, 4
        %s195 = scalar_lea.vmem %s1, %s194
      $region24: #{_lambda_.40} parent=15 // pred_fallthru
        _
      // Predicated region
      $region25: #{_lambda_.40} parent=15 // pred_check
        %p196 = pneg %p96
      $region26: #{_lambda_.40} parent=15 // pred_check_branch
        %198 = sbr.rel (%p196) target = $region28
      $region27: #{_lambda_.40} parent=15 // pred_region
        %p199 = scmp.lt.s32.totalorder %s17, 1
        %s200 = scalar_select %p199, %s17, 1
        %s201 = smul.addr %s200, 8
        %s202 = smul.addr %s201, 4
        %s203 = scalar_lea.vmem %s2, %s202
      $region28: #{_lambda_.40} parent=15 // pred_fallthru
        _
      // Predicated region
      $region29: #{_lambda_.40} parent=15 // pred_check
        %p204 = pneg %p122
      $region30: #{_lambda_.40} parent=15 // pred_check_branch
        %206 = sbr.rel (%p204) target = $region32
      $region31: #{_lambda_.40} parent=15 // pred_region
        %p207 = scmp.lt.s32.totalorder %s17, 1
        %s208 = scalar_select %p207, %s17, 1
        %s209 = scalar_lea.vmem %s3, %s208
      $region32: #{_lambda_.40} parent=15 // pred_fallthru
        _
    $region16: #{_lambda_.40} parent=5 // pred_fallthru
      _
    %p210 = scmp.le.s32.totalorder 1, %s10
    %p211 = scmp.lt.s32.totalorder %s10, 3
    %p212 = pnand %p210, %p211
    %p213 = pneg %p212
    // Predicated region
    $region33: #{_lambda_.40} parent=5 // pred_check
      _
    $region34: #{_lambda_.40} parent=5 // pred_check_branch
      %215 = sbr.rel (%p212) target = $region36
    $region35: #{_lambda_.40} parent=5 // pred_region
      %s216 = ssub.s32 %s10, 1
      %s217 = smul.u32 2, %s20
      %p218 = scmp.lt.s32.totalorder %s19, 1
      %s219 = scalar_select %p218, %s19, 1
      %p220 = scmp.lt.s32.totalorder %s217, 1
      %s221 = scalar_select %p220, %s217, 1
      %s222 = smul.addr %s219, 8
      %s223 = sadd.s32 %s221, %s222
      %s224 = smul.addr %s223, 4
      %s225 = scalar_lea.vmem %s0, %s224
      %p226 = pneg %p50
      %p227 = pneg %p47
      %p228 = scmp.lt.s32.totalorder %s19, 1
      %s229 = scalar_select %p228, %s19, 1
      %s230 = smul.addr %s229, 8
      %s231 = smul.addr %s230, 4
      %s232 = scalar_lea.vmem %s1, %s231
      %p233 = pneg %p76
      %p234 = pneg %p73
      %p235 = scmp.lt.s32.totalorder %s19, 1
      %s236 = scalar_select %p235, %s19, 1
      %s237 = smul.addr %s236, 8
      %s238 = smul.addr %s237, 4
      %s239 = scalar_lea.vmem %s2, %s238
      %p240 = pneg %p102
      %p241 = pneg %p99
      %p242 = scmp.lt.s32.totalorder %s19, 1
      %s243 = scalar_select %p242, %s19, 1
      %s244 = scalar_lea.vmem %s3, %s243
      %p245 = pneg %p128
      %p246 = pneg %p125
      %p247 = pneg %p156
      %p248 = pneg %p153
      %s249 = smul.u32 2, %s20
      %p250 = scmp.lt.s32.totalorder %s19, 1
      %s251 = scalar_select %p250, %s19, 1
      %p252 = scmp.lt.s32.totalorder %s249, 1
      %s253 = scalar_select %p252, %s249, 1
      %s254 = smul.addr %s251, 2
      %s255 = sadd.s32 %s253, %s254
      %s256 = smul.addr %s255, 4
      %s257 = scalar_lea.vmem %s4, %s256
      %s258 = smul.u32 2, %s20
      %p259 = scmp.lt.s32.totalorder %s19, 1
      %s260 = scalar_select %p259, %s19, 1
      %p261 = scmp.lt.s32.totalorder %s258, 1
      %s262 = scalar_select %p261, %s258, 1
      %s263 = smul.addr %s260, 8
      %s264 = sadd.s32 %s262, %s263
      %s265 = smul.addr %s264, 4
      %s266 = scalar_lea.vmem %s0, %s265
      %s267 = smul.u32 2, %s20
      %p268 = scmp.lt.s32.totalorder %s19, 1
      %s269 = scalar_select %p268, %s19, 1
      %s270 = smul.addr %s269, 8
      %s271 = smul.addr %s270, 4
      %s272 = scalar_lea.vmem %s1, %s271
      %p273 = scmp.lt.s32.totalorder %s19, 1
      %s274 = scalar_select %p273, %s19, 1
      %s275 = smul.addr %s274, 8
      %s276 = smul.addr %s275, 4
      %s277 = scalar_lea.vmem %s2, %s276
      %p278 = scmp.lt.s32.totalorder %s19, 1
      %s279 = scalar_select %p278, %s19, 1
      %s280 = scalar_lea.vmem %s3, %s279
      %s281 = smul.u32 2, %s20
      %p282 = scmp.lt.s32.totalorder %s19, 1
      %s283 = scalar_select %p282, %s19, 1
      %p284 = scmp.lt.s32.totalorder %s281, 1
      %s285 = scalar_select %p284, %s281, 1
      %s286 = smul.addr %s283, 2
      %s287 = sadd.s32 %s285, %s286
      %s288 = smul.addr %s287, 4
      %s289 = scalar_lea.vmem %s4, %s288
      %s290 = smul.u32 2, %s20
      %v292 = vld [vmem:[%s266] sm:$0xf]
      %v293 = vld [vmem:[%s266 + $0x4] sm:$0xf]
      %v294 = vld [vmem:[%s266 + $0x8] sm:$0xf]
      %v295 = vld [vmem:[%s266 + $0xc] sm:$0xf]
      %v296 = vld [vmem:[%s266 + $0x10] sm:$0xf]
      %v297 = vld [vmem:[%s266 + $0x14] sm:$0xf]
      %v298 = vld [vmem:[%s266 + $0x18] sm:$0xf]
      %v299 = vld [vmem:[%s266 + $0x1c] sm:$0xf]
      %v300 = vld [vmem:[%s272] sm:$0xf]
      %v301 = vld [vmem:[%s272 + $0x4] sm:$0xf]
      %v302 = vld [vmem:[%s272 + $0x8] sm:$0xf]
      %v303 = vld [vmem:[%s272 + $0xc] sm:$0xf]
      %v304 = vld [vmem:[%s272 + $0x10] sm:$0xf]
      %v305 = vld [vmem:[%s272 + $0x14] sm:$0xf]
      %v306 = vld [vmem:[%s272 + $0x18] sm:$0xf]
      %v307 = vld [vmem:[%s272 + $0x1c] sm:$0xf]
      %v308 = vld [vmem:[%s277] sm:$0xf]
      %v309 = vld [vmem:[%s277 + $0x4] sm:$0xf]
      %v310 = vld [vmem:[%s277 + $0x8] sm:$0xf]
      %v311 = vld [vmem:[%s277 + $0xc] sm:$0xf]
      %v312 = vld [vmem:[%s277 + $0x10] sm:$0xf]
      %v313 = vld [vmem:[%s277 + $0x14] sm:$0xf]
      %v314 = vld [vmem:[%s277 + $0x18] sm:$0xf]
      %v315 = vld [vmem:[%s277 + $0x1c] sm:$0xf]
      %v318 = vunpack.c.l.b16 %v292
      %v319 = vunpack.c.l.b16 %v293
      %v320 = vpack.c.b16 %v319, %v318
      %v323 = vunpack.c.l.b16 %v300
      %v324 = vunpack.c.l.b16 %v301
      %v325 = vpack.c.b16 %v324, %v323
      %vm326 = vcmask 64512
      %v328 = vsel %vm326, %v320, 0
      %v331 = vsel %vm326, %v325, 0
      %333 = vmatprep.subr.bf16.mxu0 0
      %334 = vmatpush1.bf16.xpose.msra.mxu0 %v331
      %335 = vmatprep.subr.bf16.mxu0 0
      %336 = vmatpush1.bf16.xpose.msra.mxu0 0
      %337 = vmatprep.subr.bf16.mxu0 0
      %338 = vmatpush1.bf16.xpose.msra.mxu0 0
      %339 = vmatprep.subr.bf16.mxu0 0
      %340 = vmatpush1.bf16.xpose.msra.mxu0 0
      %341 = vmatprep.subr.bf16.mxu0 0
      %342 = vmatpush1.bf16.xpose.msra.mxu0 0
      %343 = vmatprep.subr.bf16.mxu0 0
      %344 = vmatpush1.bf16.xpose.msra.mxu0 0
      %345 = vmatprep.subr.bf16.mxu0 0
      %346 = vmatpush1.bf16.xpose.msra.mxu0 0
      %347 = vmatprep.subr.bf16.mxu0 0
      %348 = vmatpush1.bf16.xpose.msra.mxu0 0
      %349 = vmatprep.subr.bf16.mxu0 0
      %350 = vmatpush1.bf16.xpose.msra.mxu0 0
      %351 = vmatprep.subr.bf16.mxu0 0
      %352 = vmatpush1.bf16.xpose.msra.mxu0 0
      %353 = vmatprep.subr.bf16.mxu0 0
      %354 = vmatpush1.bf16.xpose.msra.mxu0 0
      %355 = vmatprep.subr.bf16.mxu0 0
      %356 = vmatpush1.bf16.xpose.msra.mxu0 0
      %357 = vmatprep.subr.bf16.mxu0 0
      %358 = vmatpush1.bf16.xpose.msra.mxu0 0
      %359 = vmatprep.subr.bf16.mxu0 0
      %360 = vmatpush1.bf16.xpose.msra.mxu0 0
      %361 = vmatprep.subr.bf16.mxu0 0
      %362 = vmatpush1.bf16.xpose.msra.mxu0 0
      %363 = vmatprep.subr.bf16.mxu0 0
      %364 = vmatpush1.bf16.xpose.msra.mxu0 0
      %365 = vmatprep.mubr.bf16.mxu0 0
      %366 = vmatmul.mubr.bf16.gmra.mrb[0].mxu0 %v328
      %v367 = vpop.f32.mrb[0].mxu0
      %v368 = vadd.f32 0.0, %v367
      %v369 = vpop.f32.mrb[0].mxu0
      %v370 = vpop.f32.mrb[0].mxu0
      %v371 = vadd.f32 0.0, %v370
      %v372 = vpop.f32.mrb[0].mxu0
      %373 = vdwg.mxu0
      %v376 = vunpack.c.l.b16 %v294
      %v377 = vunpack.c.l.b16 %v295
      %v378 = vpack.c.b16 %v377, %v376
      %v381 = vunpack.c.l.b16 %v302
      %v382 = vunpack.c.l.b16 %v303
      %v383 = vpack.c.b16 %v382, %v381
      %v385 = vsel %vm326, %v378, 0
      %v388 = vsel %vm326, %v383, 0
      %390 = vmatprep.subr.bf16.mxu0 0
      %391 = vmatpush1.bf16.xpose.msra.mxu0 %v388
      %392 = vmatprep.subr.bf16.mxu0 0
      %393 = vmatpush1.bf16.xpose.msra.mxu0 0
      %394 = vmatprep.subr.bf16.mxu0 0
      %395 = vmatpush1.bf16.xpose.msra.mxu0 0
      %396 = vmatprep.subr.bf16.mxu0 0
      %397 = vmatpush1.bf16.xpose.msra.mxu0 0
      %398 = vmatprep.subr.bf16.mxu0 0
      %399 = vmatpush1.bf16.xpose.msra.mxu0 0
      %400 = vmatprep.subr.bf16.mxu0 0
      %401 = vmatpush1.bf16.xpose.msra.mxu0 0
      %402 = vmatprep.subr.bf16.mxu0 0
      %403 = vmatpush1.bf16.xpose.msra.mxu0 0
      %404 = vmatprep.subr.bf16.mxu0 0
      %405 = vmatpush1.bf16.xpose.msra.mxu0 0
      %406 = vmatprep.subr.bf16.mxu0 0
      %407 = vmatpush1.bf16.xpose.msra.mxu0 0
      %408 = vmatprep.subr.bf16.mxu0 0
      %409 = vmatpush1.bf16.xpose.msra.mxu0 0
      %410 = vmatprep.subr.bf16.mxu0 0
      %411 = vmatpush1.bf16.xpose.msra.mxu0 0
      %412 = vmatprep.subr.bf16.mxu0 0
      %413 = vmatpush1.bf16.xpose.msra.mxu0 0
      %414 = vmatprep.subr.bf16.mxu0 0
      %415 = vmatpush1.bf16.xpose.msra.mxu0 0
      %416 = vmatprep.subr.bf16.mxu0 0
      %417 = vmatpush1.bf16.xpose.msra.mxu0 0
      %418 = vmatprep.subr.bf16.mxu0 0
      %419 = vmatpush1.bf16.xpose.msra.mxu0 0
      %420 = vmatprep.subr.bf16.mxu0 0
      %421 = vmatpush1.bf16.xpose.msra.mxu0 0
      %422 = vmatprep.mubr.bf16.mxu0 0
      %423 = vmatmul.mubr.bf16.gmra.mrb[0].mxu0 %v385
      %v424 = vpop.f32.mrb[0].mxu0
      %v425 = vadd.f32 0.0, %v424
      %v426 = vpop.f32.mrb[0].mxu0
      %v427 = vpop.f32.mrb[0].mxu0
      %v428 = vadd.f32 0.0, %v427
      %v429 = vpop.f32.mrb[0].mxu0
      %430 = vdwg.mxu0
      %v433 = vunpack.c.l.b16 %v296
      %v434 = vunpack.c.l.b16 %v297
      %v435 = vpack.c.b16 %v434, %v433
      %v438 = vunpack.c.l.b16 %v304
      %v439 = vunpack.c.l.b16 %v305
      %v440 = vpack.c.b16 %v439, %v438
      %v442 = vsel %vm326, %v435, 0
      %v445 = vsel %vm326, %v440, 0
      %447 = vmatprep.subr.bf16.mxu0 0
      %448 = vmatpush1.bf16.xpose.msra.mxu0 %v445
      %449 = vmatprep.subr.bf16.mxu0 0
      %450 = vmatpush1.bf16.xpose.msra.mxu0 0
      %451 = vmatprep.subr.bf16.mxu0 0
      %452 = vmatpush1.bf16.xpose.msra.mxu0 0
      %453 = vmatprep.subr.bf16.mxu0 0
      %454 = vmatpush1.bf16.xpose.msra.mxu0 0
      %455 = vmatprep.subr.bf16.mxu0 0
      %456 = vmatpush1.bf16.xpose.msra.mxu0 0
      %457 = vmatprep.subr.bf16.mxu0 0
      %458 = vmatpush1.bf16.xpose.msra.mxu0 0
      %459 = vmatprep.subr.bf16.mxu0 0
      %460 = vmatpush1.bf16.xpose.msra.mxu0 0
      %461 = vmatprep.subr.bf16.mxu0 0
      %462 = vmatpush1.bf16.xpose.msra.mxu0 0
      %463 = vmatprep.subr.bf16.mxu0 0
      %464 = vmatpush1.bf16.xpose.msra.mxu0 0
      %465 = vmatprep.subr.bf16.mxu0 0
      %466 = vmatpush1.bf16.xpose.msra.mxu0 0
      %467 = vmatprep.subr.bf16.mxu0 0
      %468 = vmatpush1.bf16.xpose.msra.mxu0 0
      %469 = vmatprep.subr.bf16.mxu0 0
      %470 = vmatpush1.bf16.xpose.msra.mxu0 0
      %471 = vmatprep.subr.bf16.mxu0 0
      %472 = vmatpush1.bf16.xpose.msra.mxu0 0
      %473 = vmatprep.subr.bf16.mxu0 0
      %474 = vmatpush1.bf16.xpose.msra.mxu0 0
      %475 = vmatprep.subr.bf16.mxu0 0
      %476 = vmatpush1.bf16.xpose.msra.mxu0 0
      %477 = vmatprep.subr.bf16.mxu0 0
      %478 = vmatpush1.bf16.xpose.msra.mxu0 0
      %479 = vmatprep.mubr.bf16.mxu0 0
      %480 = vmatmul.mubr.bf16.gmra.mrb[0].mxu0 %v442
      %v481 = vpop.f32.mrb[0].mxu0
      %v482 = vadd.f32 0.0, %v481
      %v483 = vpop.f32.mrb[0].mxu0
      %v484 = vpop.f32.mrb[0].mxu0
      %v485 = vadd.f32 0.0, %v484
      %v486 = vpop.f32.mrb[0].mxu0
      %487 = vdwg.mxu0
      %v490 = vunpack.c.l.b16 %v298
      %v491 = vunpack.c.l.b16 %v299
      %v492 = vpack.c.b16 %v491, %v490
      %v495 = vunpack.c.l.b16 %v306
      %v496 = vunpack.c.l.b16 %v307
      %v497 = vpack.c.b16 %v496, %v495
      %v499 = vsel %vm326, %v492, 0
      %v502 = vsel %vm326, %v497, 0
      %504 = vmatprep.subr.bf16.mxu0 0
      %505 = vmatpush1.bf16.xpose.msra.mxu0 %v502
      %506 = vmatprep.subr.bf16.mxu0 0
      %507 = vmatpush1.bf16.xpose.msra.mxu0 0
      %508 = vmatprep.subr.bf16.mxu0 0
      %509 = vmatpush1.bf16.xpose.msra.mxu0 0
      %510 = vmatprep.subr.bf16.mxu0 0
      %511 = vmatpush1.bf16.xpose.msra.mxu0 0
      %512 = vmatprep.subr.bf16.mxu0 0
      %513 = vmatpush1.bf16.xpose.msra.mxu0 0
      %514 = vmatprep.subr.bf16.mxu0 0
      %515 = vmatpush1.bf16.xpose.msra.mxu0 0
      %516 = vmatprep.subr.bf16.mxu0 0
      %517 = vmatpush1.bf16.xpose.msra.mxu0 0
      %518 = vmatprep.subr.bf16.mxu0 0
      %519 = vmatpush1.bf16.xpose.msra.mxu0 0
      %520 = vmatprep.subr.bf16.mxu0 0
      %521 = vmatpush1.bf16.xpose.msra.mxu0 0
      %522 = vmatprep.subr.bf16.mxu0 0
      %523 = vmatpush1.bf16.xpose.msra.mxu0 0
      %524 = vmatprep.subr.bf16.mxu0 0
      %525 = vmatpush1.bf16.xpose.msra.mxu0 0
      %526 = vmatprep.subr.bf16.mxu0 0
      %527 = vmatpush1.bf16.xpose.msra.mxu0 0
      %528 = vmatprep.subr.bf16.mxu0 0
      %529 = vmatpush1.bf16.xpose.msra.mxu0 0
      %530 = vmatprep.subr.bf16.mxu0 0
      %531 = vmatpush1.bf16.xpose.msra.mxu0 0
      %532 = vmatprep.subr.bf16.mxu0 0
      %533 = vmatpush1.bf16.xpose.msra.mxu0 0
      %534 = vmatprep.subr.bf16.mxu0 0
      %535 = vmatpush1.bf16.xpose.msra.mxu0 0
      %536 = vmatprep.mubr.bf16.mxu0 0
      %537 = vmatmul.mubr.bf16.gmra.mrb[0].mxu0 %v499
      %v538 = vpop.f32.mrb[0].mxu0
      %v539 = vadd.f32 0.0, %v538
      %v540 = vpop.f32.mrb[0].mxu0
      %v541 = vpop.f32.mrb[0].mxu0
      %v542 = vadd.f32 0.0, %v541
      %v543 = vpop.f32.mrb[0].mxu0
      %544 = vdwg.mxu0
      %v545 = vmul.f32 %v368, 0.35355338
      %v546 = vmul.f32 %v371, 0.35355338
      %v547 = vmul.f32 %v425, 0.35355338
      %v548 = vmul.f32 %v428, 0.35355338
      %v549 = vmul.f32 %v482, 0.35355338
      %v550 = vmul.f32 %v485, 0.35355338
      %v551 = vmul.f32 %v539, 0.35355338
      %v552 = vmul.f32 %v542, 0.35355338
      %v553 = vld [vmem:[%s280] sm:$0x1]
      %v555 = vlaneseq
      %v556 = vshrl.u32 %v555, 7
      %v557 = vsub.s32 0, %v556
      %v558 = vrot.slane %v553, %v557
      %v560 = vadd.f32 %v545, %v558
      %v561 = vadd.f32 %v546, %v558
      %v562 = vadd.f32 %v547, %v558
      %v563 = vadd.f32 %v548, %v558
      %v564 = vadd.f32 %v549, %v558
      %v565 = vadd.f32 %v550, %v558
      %v566 = vadd.f32 %v551, %v558
      %v567 = vadd.f32 %v552, %v558
      %vm568 = vcmask 130048
      %v569 = vsel %vm568, %v560, -inf
      %570 = vmax.xlane.f32.xlu0 %v569
      %v571 = vpop.xlane.xlu0 %570
      %v572 = vsel %vm568, %v561, -inf
      %573 = vmax.xlane.f32.xlu0 %v572
      %v574 = vpop.xlane.xlu0 %573
      %v575 = vsel %vm568, %v562, -inf
      %576 = vmax.xlane.f32.xlu0 %v575
      %v577 = vpop.xlane.xlu0 %576
      %v578 = vsel %vm568, %v563, -inf
      %579 = vmax.xlane.f32.xlu0 %v578
      %v580 = vpop.xlane.xlu0 %579
      %v581 = vsel %vm568, %v564, -inf
      %582 = vmax.xlane.f32.xlu0 %v581
      %v583 = vpop.xlane.xlu0 %582
      %v584 = vsel %vm568, %v565, -inf
      %585 = vmax.xlane.f32.xlu0 %v584
      %v586 = vpop.xlane.xlu0 %585
      %v587 = vsel %vm568, %v566, -inf
      %588 = vmax.xlane.f32.xlu0 %v587
      %v589 = vpop.xlane.xlu0 %588
      %v590 = vsel %vm568, %v567, -inf
      %591 = vmax.xlane.f32.xlu0 %v590
      %v592 = vpop.xlane.xlu0 %591
      %v593 = vsub.f32 %v560, %v571
      %v594 = vsub.f32 %v561, %v574
      %v595 = vsub.f32 %v562, %v577
      %v596 = vsub.f32 %v563, %v580
      %v597 = vsub.f32 %v564, %v583
      %v598 = vsub.f32 %v565, %v586
      %v599 = vsub.f32 %v566, %v589
      %v600 = vsub.f32 %v567, %v592
      %v601 = vmul.f32 %v593, 1.442695
      %v602 = vpow.pop %v601
      %v603 = vmul.f32 %v594, 1.442695
      %v604 = vpow.pop %v603
      %v605 = vmul.f32 %v595, 1.442695
      %v606 = vpow.pop %v605
      %v607 = vmul.f32 %v596, 1.442695
      %v608 = vpow.pop %v607
      %v609 = vmul.f32 %v597, 1.442695
      %v610 = vpow.pop %v609
      %v611 = vmul.f32 %v598, 1.442695
      %v612 = vpow.pop %v611
      %v613 = vmul.f32 %v599, 1.442695
      %v614 = vpow.pop %v613
      %v615 = vmul.f32 %v600, 1.442695
      %v616 = vpow.pop %v615
      %v617 = vsel %vm568, %v602, 0.0
      %618 = vadd.xlane.f32.xlu0 %v617
      %v619 = vpop.xlane.xlu0 %618
      %v620 = vsel %vm568, %v604, 0.0
      %621 = vadd.xlane.f32.xlu0 %v620
      %v622 = vpop.xlane.xlu0 %621
      %v623 = vsel %vm568, %v606, 0.0
      %624 = vadd.xlane.f32.xlu0 %v623
      %v625 = vpop.xlane.xlu0 %624
      %v626 = vsel %vm568, %v608, 0.0
      %627 = vadd.xlane.f32.xlu0 %v626
      %v628 = vpop.xlane.xlu0 %627
      %v629 = vsel %vm568, %v610, 0.0
      %630 = vadd.xlane.f32.xlu0 %v629
      %v631 = vpop.xlane.xlu0 %630
      %v632 = vsel %vm568, %v612, 0.0
      %633 = vadd.xlane.f32.xlu0 %v632
      %v634 = vpop.xlane.xlu0 %633
      %v635 = vsel %vm568, %v614, 0.0
      %636 = vadd.xlane.f32.xlu0 %v635
      %v637 = vpop.xlane.xlu0 %636
      %v638 = vsel %vm568, %v616, 0.0
      %639 = vadd.xlane.f32.xlu0 %v638
      %v640 = vpop.xlane.xlu0 %639
      %v641 = vrcp.pop %v619
      %v642 = vrcp.pop %v622
      %v643 = vrcp.pop %v625
      %v644 = vrcp.pop %v628
      %v645 = vrcp.pop %v631
      %v646 = vrcp.pop %v634
      %v647 = vrcp.pop %v637
      %v648 = vrcp.pop %v640
      %v649 = vmul.f32 %v602, %v641
      %v650 = vmul.f32 %v604, %v642
      %v651 = vmul.f32 %v606, %v643
      %v652 = vmul.f32 %v608, %v644
      %v653 = vmul.f32 %v610, %v645
      %v654 = vmul.f32 %v612, %v646
      %v655 = vmul.f32 %v614, %v647
      %v656 = vmul.f32 %v616, %v648
      %v657 = vpack.c.bf16 %v650, %v649
      %v658 = vpack.c.bf16 %v652, %v651
      %v659 = vpack.c.bf16 %v654, %v653
      %v660 = vpack.c.bf16 %v656, %v655
      %v663 = vunpack.c.l.b16 %v308
      %v664 = vunpack.c.l.b16 %v309
      %v665 = vpack.c.b16 %v664, %v663
      %v668 = vsel %vm568, %v657, 0
      %670 = vmatprep.subr.bf16.mxu0 0
      %671 = vmatpush1.bf16.msra.mxu0 %v665
      %672 = vmatprep.subr.bf16.mxu0 0
      %673 = vmatpush1.bf16.msra.mxu0 0
      %674 = vmatprep.subr.bf16.mxu0 0
      %675 = vmatpush1.bf16.msra.mxu0 0
      %676 = vmatprep.subr.bf16.mxu0 0
      %677 = vmatpush1.bf16.msra.mxu0 0
      %678 = vmatprep.subr.bf16.mxu0 0
      %679 = vmatpush1.bf16.msra.mxu0 0
      %680 = vmatprep.subr.bf16.mxu0 0
      %681 = vmatpush1.bf16.msra.mxu0 0
      %682 = vmatprep.subr.bf16.mxu0 0
      %683 = vmatpush1.bf16.msra.mxu0 0
      %684 = vmatprep.subr.bf16.mxu0 0
      %685 = vmatpush1.bf16.msra.mxu0 0
      %686 = vmatprep.subr.bf16.mxu0 0
      %687 = vmatpush1.bf16.msra.mxu0 0
      %688 = vmatprep.subr.bf16.mxu0 0
      %689 = vmatpush1.bf16.msra.mxu0 0
      %690 = vmatprep.subr.bf16.mxu0 0
      %691 = vmatpush1.bf16.msra.mxu0 0
      %692 = vmatprep.subr.bf16.mxu0 0
      %693 = vmatpush1.bf16.msra.mxu0 0
      %694 = vmatprep.subr.bf16.mxu0 0
      %695 = vmatpush1.bf16.msra.mxu0 0
      %696 = vmatprep.subr.bf16.mxu0 0
      %697 = vmatpush1.bf16.msra.mxu0 0
      %698 = vmatprep.subr.bf16.mxu0 0
      %699 = vmatpush1.bf16.msra.mxu0 0
      %700 = vmatprep.subr.bf16.mxu0 0
      %701 = vmatpush1.bf16.msra.mxu0 0
      %702 = vmatprep.mubr.bf16.mxu0 0
      %703 = vmatmul.mubr.bf16.gmra.mrb[0].mxu0 %v668
      %v704 = vpop.f32.mrb[0].mxu0
      %v705 = vadd.f32 0.0, %v704
      %v706 = vpop.f32.mrb[0].mxu0
      %v707 = vpop.f32.mrb[0].mxu0
      %v708 = vadd.f32 0.0, %v707
      %v709 = vpop.f32.mrb[0].mxu0
      %710 = vdwg.mxu0
      %v713 = vunpack.c.l.b16 %v310
      %v714 = vunpack.c.l.b16 %v311
      %v715 = vpack.c.b16 %v714, %v713
      %v718 = vsel %vm568, %v658, 0
      %720 = vmatprep.subr.bf16.mxu0 0
      %721 = vmatpush1.bf16.msra.mxu0 %v715
      %722 = vmatprep.subr.bf16.mxu0 0
      %723 = vmatpush1.bf16.msra.mxu0 0
      %724 = vmatprep.subr.bf16.mxu0 0
      %725 = vmatpush1.bf16.msra.mxu0 0
      %726 = vmatprep.subr.bf16.mxu0 0
      %727 = vmatpush1.bf16.msra.mxu0 0
      %728 = vmatprep.subr.bf16.mxu0 0
      %729 = vmatpush1.bf16.msra.mxu0 0
      %730 = vmatprep.subr.bf16.mxu0 0
      %731 = vmatpush1.bf16.msra.mxu0 0
      %732 = vmatprep.subr.bf16.mxu0 0
      %733 = vmatpush1.bf16.msra.mxu0 0
      %734 = vmatprep.subr.bf16.mxu0 0
      %735 = vmatpush1.bf16.msra.mxu0 0
      %736 = vmatprep.subr.bf16.mxu0 0
      %737 = vmatpush1.bf16.msra.mxu0 0
      %738 = vmatprep.subr.bf16.mxu0 0
      %739 = vmatpush1.bf16.msra.mxu0 0
      %740 = vmatprep.subr.bf16.mxu0 0
      %741 = vmatpush1.bf16.msra.mxu0 0
      %742 = vmatprep.subr.bf16.mxu0 0
      %743 = vmatpush1.bf16.msra.mxu0 0
      %744 = vmatprep.subr.bf16.mxu0 0
      %745 = vmatpush1.bf16.msra.mxu0 0
      %746 = vmatprep.subr.bf16.mxu0 0
      %747 = vmatpush1.bf16.msra.mxu0 0
      %748 = vmatprep.subr.bf16.mxu0 0
      %749 = vmatpush1.bf16.msra.mxu0 0
      %750 = vmatprep.subr.bf16.mxu0 0
      %751 = vmatpush1.bf16.msra.mxu0 0
      %752 = vmatprep.mubr.bf16.mxu0 0
      %753 = vmatmul.mubr.bf16.gmra.mrb[0].mxu0 %v718
      %v754 = vpop.f32.mrb[0].mxu0
      %v755 = vadd.f32 0.0, %v754
      %v756 = vpop.f32.mrb[0].mxu0
      %v757 = vpop.f32.mrb[0].mxu0
      %v758 = vadd.f32 0.0, %v757
      %v759 = vpop.f32.mrb[0].mxu0
      %760 = vdwg.mxu0
      %v763 = vunpack.c.l.b16 %v312
      %v764 = vunpack.c.l.b16 %v313
      %v765 = vpack.c.b16 %v764, %v763
      %v768 = vsel %vm568, %v659, 0
      %770 = vmatprep.subr.bf16.mxu0 0
      %771 = vmatpush1.bf16.msra.mxu0 %v765
      %772 = vmatprep.subr.bf16.mxu0 0
      %773 = vmatpush1.bf16.msra.mxu0 0
      %774 = vmatprep.subr.bf16.mxu0 0
      %775 = vmatpush1.bf16.msra.mxu0 0
      %776 = vmatprep.subr.bf16.mxu0 0
      %777 = vmatpush1.bf16.msra.mxu0 0
      %778 = vmatprep.subr.bf16.mxu0 0
      %779 = vmatpush1.bf16.msra.mxu0 0
      %780 = vmatprep.subr.bf16.mxu0 0
      %781 = vmatpush1.bf16.msra.mxu0 0
      %782 = vmatprep.subr.bf16.mxu0 0
      %783 = vmatpush1.bf16.msra.mxu0 0
      %784 = vmatprep.subr.bf16.mxu0 0
      %785 = vmatpush1.bf16.msra.mxu0 0
      %786 = vmatprep.subr.bf16.mxu0 0
      %787 = vmatpush1.bf16.msra.mxu0 0
      %788 = vmatprep.subr.bf16.mxu0 0
      %789 = vmatpush1.bf16.msra.mxu0 0
      %790 = vmatprep.subr.bf16.mxu0 0
      %791 = vmatpush1.bf16.msra.mxu0 0
      %792 = vmatprep.subr.bf16.mxu0 0
      %793 = vmatpush1.bf16.msra.mxu0 0
      %794 = vmatprep.subr.bf16.mxu0 0
      %795 = vmatpush1.bf16.msra.mxu0 0
      %796 = vmatprep.subr.bf16.mxu0 0
      %797 = vmatpush1.bf16.msra.mxu0 0
      %798 = vmatprep.subr.bf16.mxu0 0
      %799 = vmatpush1.bf16.msra.mxu0 0
      %800 = vmatprep.subr.bf16.mxu0 0
      %801 = vmatpush1.bf16.msra.mxu0 0
      %802 = vmatprep.mubr.bf16.mxu0 0
      %803 = vmatmul.mubr.bf16.gmra.mrb[0].mxu0 %v768
      %v804 = vpop.f32.mrb[0].mxu0
      %v805 = vadd.f32 0.0, %v804
      %v806 = vpop.f32.mrb[0].mxu0
      %v807 = vpop.f32.mrb[0].mxu0
      %v808 = vadd.f32 0.0, %v807
      %v809 = vpop.f32.mrb[0].mxu0
      %810 = vdwg.mxu0
      %v813 = vunpack.c.l.b16 %v314
      %v814 = vunpack.c.l.b16 %v315
      %v815 = vpack.c.b16 %v814, %v813
      %v818 = vsel %vm568, %v660, 0
      %820 = vmatprep.subr.bf16.mxu0 0
      %821 = vmatpush1.bf16.msra.mxu0 %v815
      %822 = vmatprep.subr.bf16.mxu0 0
      %823 = vmatpush1.bf16.msra.mxu0 0
      %824 = vmatprep.subr.bf16.mxu0 0
      %825 = vmatpush1.bf16.msra.mxu0 0
      %826 = vmatprep.subr.bf16.mxu0 0
      %827 = vmatpush1.bf16.msra.mxu0 0
      %828 = vmatprep.subr.bf16.mxu0 0
      %829 = vmatpush1.bf16.msra.mxu0 0
      %830 = vmatprep.subr.bf16.mxu0 0
      %831 = vmatpush1.bf16.msra.mxu0 0
      %832 = vmatprep.subr.bf16.mxu0 0
      %833 = vmatpush1.bf16.msra.mxu0 0
      %834 = vmatprep.subr.bf16.mxu0 0
      %835 = vmatpush1.bf16.msra.mxu0 0
      %836 = vmatprep.subr.bf16.mxu0 0
      %837 = vmatpush1.bf16.msra.mxu0 0
      %838 = vmatprep.subr.bf16.mxu0 0
      %839 = vmatpush1.bf16.msra.mxu0 0
      %840 = vmatprep.subr.bf16.mxu0 0
      %841 = vmatpush1.bf16.msra.mxu0 0
      %842 = vmatprep.subr.bf16.mxu0 0
      %843 = vmatpush1.bf16.msra.mxu0 0
      %844 = vmatprep.subr.bf16.mxu0 0
      %845 = vmatpush1.bf16.msra.mxu0 0
      %846 = vmatprep.subr.bf16.mxu0 0
      %847 = vmatpush1.bf16.msra.mxu0 0
      %848 = vmatprep.subr.bf16.mxu0 0
      %849 = vmatpush1.bf16.msra.mxu0 0
      %850 = vmatprep.subr.bf16.mxu0 0
      %851 = vmatpush1.bf16.msra.mxu0 0
      %852 = vmatprep.mubr.bf16.mxu0 0
      %853 = vmatmul.mubr.bf16.gmra.mrb[0].mxu0 %v818
      %v854 = vpop.f32.mrb[0].mxu0
      %v855 = vadd.f32 0.0, %v854
      %v856 = vpop.f32.mrb[0].mxu0
      %v857 = vpop.f32.mrb[0].mxu0
      %v858 = vadd.f32 0.0, %v857
      %v859 = vpop.f32.mrb[0].mxu0
      %860 = vdwg.mxu0
      %863 = vrot.lane.b32.xlu0 %v755, 8
      %v864 = vpop.permute.xlu0 %863
      %865 = vrot.lane.b32.xlu0 %v758, 8
      %v866 = vpop.permute.xlu0 %865
      %871 = vrot.lane.b32.xlu0 %v805, 16
      %v872 = vpop.permute.xlu0 %871
      %873 = vrot.lane.b32.xlu0 %v808, 16
      %v874 = vpop.permute.xlu0 %873
      %879 = vrot.lane.b32.xlu0 %v855, 24
      %v880 = vpop.permute.xlu0 %879
      %881 = vrot.lane.b32.xlu0 %v858, 24
      %v882 = vpop.permute.xlu0 %881
      %v885 = vsel %vm326, %v705, %v864
      %v886 = vsel %vm326, %v708, %v866
      %v887 = vsel %vm568, %v885, %v872
      %v888 = vsel %vm568, %v886, %v874
      %vm889 = vcmask 195584
      %v890 = vsel %vm889, %v887, %v880
      %v891 = vsel %vm889, %v888, %v882
      %v892 = vpack.c.bf16 %v891, %v890
      %v894 = vunpack.c.l.b16 %v892
      %v895 = vunpack.c.h.b16 %v892
      %v896 = vpack.c.b16 %v894, %v894
      %v897 = vpack.c.b16 %v895, %v895
      %vm900 = vcmask 257024
      %901 = vst.msk [vmem:[%s289] sm:$0xf] %vm900, %v896
      %902 = vst.msk [vmem:[%s289 + $0x4] sm:$0xf] %vm900, %v897
      %s903 = smul.u32 2, %s20
      %p904 = scmp.lt.s32.totalorder %s19, 1
      %s905 = scalar_select %p904, %s19, 1
      %p906 = scmp.lt.s32.totalorder %s903, 1
      %s907 = scalar_select %p906, %s903, 1
      %s908 = smul.addr %s905, 2
      %s909 = sadd.s32 %s907, %s908
      %s910 = smul.addr %s909, 4
      %s911 = scalar_lea.vmem %s4, %s910
      // Predicated region
      $region37: #{_lambda_.40} parent=35 // pred_check
        %p912 = pneg %p153
      $region38: #{_lambda_.40} parent=35 // pred_check_branch
        %914 = sbr.rel (%p912) target = $region40
      $region39: #{_lambda_.40} parent=35 // pred_region
        %s915 = smul.u32 2, %s20
      $region40: #{_lambda_.40} parent=35 // pred_fallthru
        _
    $region36: #{_lambda_.40} parent=5 // pred_fallthru
      _
    %p916 = scmp.le.s32.totalorder 2, %s10
    // Predicated region
    $region41: #{_lambda_.40} parent=5 // pred_check
      %p917 = pneg %p916
    $region42: #{_lambda_.40} parent=5 // pred_check_branch
      %919 = sbr.rel (%p917) target = $region44
    $region43: #{_lambda_.40} parent=5 // pred_region
      %s920 = ssub.s32 %s10, 2
      // Predicated region
      $region45: #{_lambda_.40} parent=43 // pred_check
        %p921 = pneg %p159
      $region46: #{_lambda_.40} parent=43 // pred_check_branch
        %923 = sbr.rel (%p921) target = $region48
      $region47: #{_lambda_.40} parent=43 // pred_region
        %s924 = smul.u32 2, %s22
        %p925 = scmp.lt.s32.totalorder %s21, 1
        %s926 = scalar_select %p925, %s21, 1
        %p927 = scmp.lt.s32.totalorder %s924, 1
        %s928 = scalar_select %p927, %s924, 1
        %s929 = smul.addr %s926, 2
        %s930 = sadd.s32 %s928, %s929
        %s931 = smul.addr %s930, 4
        %s932 = scalar_lea.vmem %s4, %s931
      $region48: #{_lambda_.40} parent=43 // pred_fallthru
        _
    $region44: #{_lambda_.40} parent=5 // pred_fallthru
      _
  $region6: #{_lambda_.40} parent=0 // loop_footer
    %s14 = sadd.s32 1, %s10
  $region7: #{_lambda_.40} parent=0 // loop_footer_branch
    %9 = sbr.rel target = $region3
  $region8: #{_lambda_.40} parent=0 // loop_exit
    _

// kernel: _lambda_.68
$region0: #{_lambda_.68}
  #allocation0 [shape = 'u32[]', space=smem, size = 0x4, offset = 0x4, fixed_abs, tag = 'smem constant byte address 0x4 - core index']
  #allocation1 [shape = 'u32[144,128]{1,0:T(1,128)}', space=vmem, size = 0x12000, scoped, tag = 'internal scratch']
  %s0 = inlined_call_operand.vmem [shape: f32[16,32], index: 0, kind: input, shape index: {}]
  %s1 = inlined_call_operand.vmem [shape: f32[1,32], index: 1, kind: input, shape index: {}]
  %s2 = inlined_call_operand.vmem [shape: f32[1,32], index: 2, kind: input, shape index: {}]
  %s3 = inlined_call_operand.vmem [shape: f32[16,32], index: 3, kind: output, shape index: {}]
  %s4 = sld [smem:[#allocation0]]
  $region22: #{_lambda_.68} parent=0
    _
  %s6 = ssub.s32 1, %s4
  %s7 = scalar_select 0, %s6, %s4
  // Predicated region
  $region2: #{_lambda_.68} parent=0 // pred_check
    _
  $region3: #{_lambda_.68} parent=0 // pred_check_branch
    %9 = sbr.rel (0) target = $region5
  $region4: #{_lambda_.68} parent=0 // pred_region
    _
  $region5: #{_lambda_.68} parent=0 // pred_fallthru
    _
  // Predicated region
  $region6: #{_lambda_.68} parent=0 // pred_check
    _
  $region7: #{_lambda_.68} parent=0 // pred_check_branch
    %11 = sbr.rel (0) target = $region9
  $region8: #{_lambda_.68} parent=0 // pred_region
    _
  $region9: #{_lambda_.68} parent=0 // pred_fallthru
    _
  // Predicated region
  $region10: #{_lambda_.68} parent=0 // pred_check
    _
  $region11: #{_lambda_.68} parent=0 // pred_check_branch
    %13 = sbr.rel (0) target = $region13
  $region12: #{_lambda_.68} parent=0 // pred_region
    _
  $region13: #{_lambda_.68} parent=0 // pred_fallthru
    _
  %v14 = vld [vmem:[%s0] sm:$0xff]
  %v15 = vld [vmem:[%s0 + $0x8] sm:$0xff]
  %vm16 = vcmask 261120
  %v17 = vsel %vm16, %v14, 0.0
  %18 = vadd.xlane.f32.xlu0 %v17
  %v19 = vpop.xlane.xlu0 %18
  %v20 = vsel %vm16, %v15, 0.0
  %21 = vadd.xlane.f32.xlu0 %v20
  %v22 = vpop.xlane.xlu0 %21
  %v23 = vrcp.pop 32.0
  %v24 = vmul.f32 %v19, %v23
  %v25 = vmul.f32 %v22, %v23
  %v26 = vsub.f32 %v14, %v24
  %v27 = vsub.f32 %v15, %v25
  %v28 = vmul.f32 %v26, %v26
  %v29 = vmul.f32 %v27, %v27
  %v30 = vsel %vm16, %v28, 0.0
  %31 = vadd.xlane.f32.xlu0 %v30
  %v32 = vpop.xlane.xlu0 %31
  %v33 = vsel %vm16, %v29, 0.0
  %34 = vadd.xlane.f32.xlu0 %v33
  %v35 = vpop.xlane.xlu0 %34
  %v36 = vmul.f32 %v32, %v23
  %v37 = vmul.f32 %v35, %v23
  %v38 = vadd.f32 %v36, 1e-05
  %v39 = vadd.f32 %v37, 1e-05
  %v40 = vrsqrt.pop %v38
  %v41 = vrsqrt.pop %v39
  %v42 = vmul.f32 %v26, %v40
  %v43 = vmul.f32 %v27, %v41
  %v44 = vld [vmem:[%s1] sm:$0x1]
  %v46 = vlaneseq
  %v47 = vshrl.u32 %v46, 7
  %v48 = vsub.s32 0, %v47
  %v49 = vrot.slane %v44, %v48
  %v51 = vmul.f32 %v42, %v49
  %v52 = vmul.f32 %v43, %v49
  %v53 = vld [vmem:[%s2] sm:$0x1]
  %v55 = vlaneseq
  %v56 = vshrl.u32 %v55, 7
  %v57 = vsub.s32 0, %v56
  %v58 = vrot.slane %v53, %v57
  %v60 = vadd.f32 %v51, %v58
  %v61 = vadd.f32 %v52, %v58
  %62 = vst.msk [vmem:[%s3] sm:$0xff] %vm16, %v60
  %63 = vst.msk [vmem:[%s3 + $0x8] sm:$0xff] %vm16, %v61
  // Predicated region
  $region14: #{_lambda_.68} parent=0 // pred_check
    _
  $region15: #{_lambda_.68} parent=0 // pred_check_branch
    %65 = sbr.rel (0) target = $region17
  $region16: #{_lambda_.68} parent=0 // pred_region
    _
  $region17: #{_lambda_.68} parent=0 // pred_fallthru
    _
  // Predicated region
  $region18: #{_lambda_.68} parent=0 // pred_check
    _
  $region19: #{_lambda_.68} parent=0 // pred_check_branch
    %67 = sbr.rel (0) target = $region21
  $region20: #{_lambda_.68} parent=0 // pred_region
    _
  $region21: #{_lambda_.68} parent=0 // pred_fallthru
    _

// kernel: _lambda_.57
$region0: #{_lambda_.57}
  #allocation0 [shape = 'u32[]', space=smem, size = 0x4, offset = 0x4, fixed_abs, tag = 'smem constant byte address 0x4 - core index']
  #allocation1 [shape = 'u32[144,128]{1,0:T(1,128)}', space=vmem, size = 0x12000, scoped, tag = 'internal scratch']
  %s0 = inlined_call_operand.vmem [shape: f32[16,32], index: 0, kind: input, shape index: {}]
  %s1 = inlined_call_operand.vmem [shape: bf16[32,64], index: 1, kind: input, shape index: {}]
  %s2 = inlined_call_operand.vmem [shape: f32[1,64], index: 2, kind: input, shape index: {}]
  %s3 = inlined_call_operand.vmem [shape: bf16[64,32], index: 3, kind: input, shape index: {}]
  %s4 = inlined_call_operand.vmem [shape: f32[1,32], index: 4, kind: input, shape index: {}]
  %s5 = inlined_call_operand.vmem [shape: f32[1,32], index: 5, kind: input, shape index: {}]
  %s6 = inlined_call_operand.vmem [shape: f32[1,32], index: 6, kind: input, shape index: {}]
  %s7 = inlined_call_operand.vmem [shape: f32[16,32], index: 7, kind: output, shape index: {}]
  %s8 = sld [smem:[#allocation0]]
  $region38: #{_lambda_.57} parent=0
    _
  %s10 = ssub.s32 1, %s8
  %s11 = scalar_select 0, %s10, %s8
  // Predicated region
  $region2: #{_lambda_.57} parent=0 // pred_check
    _
  $region3: #{_lambda_.57} parent=0 // pred_check_branch
    %13 = sbr.rel (0) target = $region5
  $region4: #{_lambda_.57} parent=0 // pred_region
    _
  $region5: #{_lambda_.57} parent=0 // pred_fallthru
    _
  // Predicated region
  $region6: #{_lambda_.57} parent=0 // pred_check
    _
  $region7: #{_lambda_.57} parent=0 // pred_check_branch
    %15 = sbr.rel (0) target = $region9
  $region8: #{_lambda_.57} parent=0 // pred_region
    _
  $region9: #{_lambda_.57} parent=0 // pred_fallthru
    _
  // Predicated region
  $region10: #{_lambda_.57} parent=0 // pred_check
    _
  $region11: #{_lambda_.57} parent=0 // pred_check_branch
    %17 = sbr.rel (0) target = $region13
  $region12: #{_lambda_.57} parent=0 // pred_region
    _
  $region13: #{_lambda_.57} parent=0 // pred_fallthru
    _
  // Predicated region
  $region14: #{_lambda_.57} parent=0 // pred_check
    _
  $region15: #{_lambda_.57} parent=0 // pred_check_branch
    %19 = sbr.rel (0) target = $region17
  $region16: #{_lambda_.57} parent=0 // pred_region
    _
  $region17: #{_lambda_.57} parent=0 // pred_fallthru
    _
  // Predicated region
  $region18: #{_lambda_.57} parent=0 // pred_check
    _
  $region19: #{_lambda_.57} parent=0 // pred_check_branch
    %21 = sbr.rel (0) target = $region21
  $region20: #{_lambda_.57} parent=0 // pred_region
    _
  $region21: #{_lambda_.57} parent=0 // pred_fallthru
    _
  // Predicated region
  $region22: #{_lambda_.57} parent=0 // pred_check
    _
  $region23: #{_lambda_.57} parent=0 // pred_check_branch
    %23 = sbr.rel (0) target = $region25
  $region24: #{_lambda_.57} parent=0 // pred_region
    _
  $region25: #{_lambda_.57} parent=0 // pred_fallthru
    _
  // Predicated region
  $region26: #{_lambda_.57} parent=0 // pred_check
    _
  $region27: #{_lambda_.57} parent=0 // pred_check_branch
    %25 = sbr.rel (0) target = $region29
  $region28: #{_lambda_.57} parent=0 // pred_region
    _
  $region29: #{_lambda_.57} parent=0 // pred_fallthru
    _
  %v27 = vld [vmem:[%s0] sm:$0xff]
  %v28 = vld [vmem:[%s0 + $0x8] sm:$0xff]
  %v29 = vpack.c.bf16 %v28, %v27
  %v30 = vld [vmem:[%s1] sm:$0xf]
  %v31 = vld [vmem:[%s1 + $0x4] sm:$0xf]
  %v32 = vld [vmem:[%s1 + $0x8] sm:$0xf]
  %v33 = vld [vmem:[%s1 + $0xc] sm:$0xf]
  %v34 = vld [vmem:[%s2] sm:$0x1]
  %v36 = vlaneseq
  %v37 = vshrl.u32 %v36, 7
  %v38 = vsub.s32 0, %v37
  %v39 = vrot.slane %v34, %v38
  %v45 = vunpack.c.l.b16 %v30
  %v46 = vunpack.c.l.b16 %v31
  %v47 = vunpack.c.l.b16 %v32
  %v48 = vunpack.c.l.b16 %v33
  %v49 = vpack.c.b16 %v46, %v45
  %v50 = vpack.c.b16 %v48, %v47
  %vm53 = vcmask 261120
  %v55 = vsel %vm53, %v29, 0
  %57 = vmatprep.subr.bf16.mxu0 0
  %58 = vmatpush1.bf16.msra.mxu0 %v49
  %59 = vmatprep.subr.bf16.mxu0 0
  %60 = vmatpush1.bf16.msra.mxu0 %v50
  %61 = vmatprep.subr.bf16.mxu0 0
  %62 = vmatpush1.bf16.msra.mxu0 0
  %63 = vmatprep.subr.bf16.mxu0 0
  %64 = vmatpush1.bf16.msra.mxu0 0
  %65 = vmatprep.subr.bf16.mxu0 0
  %66 = vmatpush1.bf16.msra.mxu0 0
  %67 = vmatprep.subr.bf16.mxu0 0
  %68 = vmatpush1.bf16.msra.mxu0 0
  %69 = vmatprep.subr.bf16.mxu0 0
  %70 = vmatpush1.bf16.msra.mxu0 0
  %71 = vmatprep.subr.bf16.mxu0 0
  %72 = vmatpush1.bf16.msra.mxu0 0
  %73 = vmatprep.subr.bf16.mxu0 0
  %74 = vmatpush1.bf16.msra.mxu0 0
  %75 = vmatprep.subr.bf16.mxu0 0
  %76 = vmatpush1.bf16.msra.mxu0 0
  %77 = vmatprep.subr.bf16.mxu0 0
  %78 = vmatpush1.bf16.msra.mxu0 0
  %79 = vmatprep.subr.bf16.mxu0 0
  %80 = vmatpush1.bf16.msra.mxu0 0
  %81 = vmatprep.subr.bf16.mxu0 0
  %82 = vmatpush1.bf16.msra.mxu0 0
  %83 = vmatprep.subr.bf16.mxu0 0
  %84 = vmatpush1.bf16.msra.mxu0 0
  %85 = vmatprep.subr.bf16.mxu0 0
  %86 = vmatpush1.bf16.msra.mxu0 0
  %87 = vmatprep.subr.bf16.mxu0 0
  %88 = vmatpush1.bf16.msra.mxu0 0
  %89 = vmatprep.mubr.bf16.mxu0 0
  %90 = vmatmul.mubr.bf16.gmra.mrb[0].mxu0 %v55
  %v91 = vpop.f32.mrb[0].mxu0
  %v92 = vadd.f32 %v39, %v91
  %v93 = vpop.f32.mrb[0].mxu0
  %v94 = vpop.f32.mrb[0].mxu0
  %v95 = vadd.f32 %v39, %v94
  %v96 = vpop.f32.mrb[0].mxu0
  %97 = vdwg.mxu0
  %v98 = vmax.f32 %v92, 0.0
  %v99 = vmax.f32 %v95, 0.0
  %v100 = vpack.c.bf16 %v99, %v98
  %v101 = vld [vmem:[%s3] sm:$0xf]
  %v102 = vld [vmem:[%s3 + $0x4] sm:$0xf]
  %v103 = vld [vmem:[%s3 + $0x8] sm:$0xf]
  %v104 = vld [vmem:[%s3 + $0xc] sm:$0xf]
  %v105 = vld [vmem:[%s3 + $0x10] sm:$0xf]
  %v106 = vld [vmem:[%s3 + $0x14] sm:$0xf]
  %v107 = vld [vmem:[%s3 + $0x18] sm:$0xf]
  %v108 = vld [vmem:[%s3 + $0x1c] sm:$0xf]
  %v117 = vunpack.c.l.b16 %v101
  %v118 = vunpack.c.l.b16 %v102
  %v119 = vunpack.c.l.b16 %v103
  %v120 = vunpack.c.l.b16 %v104
  %v121 = vunpack.c.l.b16 %v105
  %v122 = vunpack.c.l.b16 %v106
  %v123 = vunpack.c.l.b16 %v107
  %v124 = vunpack.c.l.b16 %v108
  %v125 = vpack.c.b16 %v118, %v117
  %v126 = vpack.c.b16 %v120, %v119
  %v127 = vpack.c.b16 %v122, %v121
  %v128 = vpack.c.b16 %v124, %v123
  %vm133 = vcmask 523264
  %v135 = vsel %vm133, %v100, 0
  %137 = vmatprep.subr.bf16.mxu0 0
  %138 = vmatpush1.bf16.msra.mxu0 %v125
  %139 = vmatprep.subr.bf16.mxu0 0
  %140 = vmatpush1.bf16.msra.mxu0 %v126
  %141 = vmatprep.subr.bf16.mxu0 0
  %142 = vmatpush1.bf16.msra.mxu0 %v127
  %143 = vmatprep.subr.bf16.mxu0 0
  %144 = vmatpush1.bf16.msra.mxu0 %v128
  %145 = vmatprep.subr.bf16.mxu0 0
  %146 = vmatpush1.bf16.msra.mxu0 0
  %147 = vmatprep.subr.bf16.mxu0 0
  %148 = vmatpush1.bf16.msra.mxu0 0
  %149 = vmatprep.subr.bf16.mxu0 0
  %150 = vmatpush1.bf16.msra.mxu0 0
  %151 = vmatprep.subr.bf16.mxu0 0
  %152 = vmatpush1.bf16.msra.mxu0 0
  %153 = vmatprep.subr.bf16.mxu0 0
  %154 = vmatpush1.bf16.msra.mxu0 0
  %155 = vmatprep.subr.bf16.mxu0 0
  %156 = vmatpush1.bf16.msra.mxu0 0
  %157 = vmatprep.subr.bf16.mxu0 0
  %158 = vmatpush1.bf16.msra.mxu0 0
  %159 = vmatprep.subr.bf16.mxu0 0
  %160 = vmatpush1.bf16.msra.mxu0 0
  %161 = vmatprep.subr.bf16.mxu0 0
  %162 = vmatpush1.bf16.msra.mxu0 0
  %163 = vmatprep.subr.bf16.mxu0 0
  %164 = vmatpush1.bf16.msra.mxu0 0
  %165 = vmatprep.subr.bf16.mxu0 0
  %166 = vmatpush1.bf16.msra.mxu0 0
  %167 = vmatprep.subr.bf16.mxu0 0
  %168 = vmatpush1.bf16.msra.mxu0 0
  %169 = vmatprep.mubr.bf16.mxu0 0
  %170 = vmatmul.mubr.bf16.gmra.mrb[0].mxu0 %v135
  %v171 = vpop.f32.mrb[0].mxu0
  %v172 = vadd.f32 0.0, %v171
  %v173 = vpop.f32.mrb[0].mxu0
  %v174 = vpop.f32.mrb[0].mxu0
  %v175 = vadd.f32 0.0, %v174
  %v176 = vpop.f32.mrb[0].mxu0
  %177 = vdwg.mxu0
  %v178 = vadd.f32 %v27, %v172
  %v179 = vadd.f32 %v28, %v175
  %v180 = vld [vmem:[%s4] sm:$0x1]
  %v182 = vlaneseq
  %v183 = vshrl.u32 %v182, 7
  %v184 = vsub.s32 0, %v183
  %v185 = vrot.slane %v180, %v184
  %v187 = vadd.f32 %v178, %v185
  %v188 = vadd.f32 %v179, %v185
  %v189 = vsel %vm53, %v187, 0.0
  %190 = vadd.xlane.f32.xlu0 %v189
  %v191 = vpop.xlane.xlu0 %190
  %v192 = vsel %vm53, %v188, 0.0
  %193 = vadd.xlane.f32.xlu0 %v192
  %v194 = vpop.xlane.xlu0 %193
  %v195 = vrcp.pop 32.0
  %v196 = vmul.f32 %v191, %v195
  %v197 = vmul.f32 %v194, %v195
  %v198 = vsub.f32 %v187, %v196
  %v199 = vsub.f32 %v188, %v197
  %v200 = vmul.f32 %v198, %v198
  %v201 = vmul.f32 %v199, %v199
  %v202 = vsel %vm53, %v200, 0.0
  %203 = vadd.xlane.f32.xlu0 %v202
  %v204 = vpop.xlane.xlu0 %203
  %v205 = vsel %vm53, %v201, 0.0
  %206 = vadd.xlane.f32.xlu0 %v205
  %v207 = vpop.xlane.xlu0 %206
  %v208 = vmul.f32 %v204, %v195
  %v209 = vmul.f32 %v207, %v195
  %v210 = vadd.f32 %v208, 1e-05
  %v211 = vadd.f32 %v209, 1e-05
  %v212 = vrsqrt.pop %v210
  %v213 = vrsqrt.pop %v211
  %v214 = vmul.f32 %v198, %v212
  %v215 = vmul.f32 %v199, %v213
  %v216 = vld [vmem:[%s5] sm:$0x1]
  %v218 = vlaneseq
  %v219 = vshrl.u32 %v218, 7
  %v220 = vsub.s32 0, %v219
  %v221 = vrot.slane %v216, %v220
  %v223 = vmul.f32 %v214, %v221
  %v224 = vmul.f32 %v215, %v221
  %v225 = vld [vmem:[%s6] sm:$0x1]
  %v227 = vlaneseq
  %v228 = vshrl.u32 %v227, 7
  %v229 = vsub.s32 0, %v228
  %v230 = vrot.slane %v225, %v229
  %v232 = vadd.f32 %v223, %v230
  %v233 = vadd.f32 %v224, %v230
  %234 = vst.msk [vmem:[%s7] sm:$0xff] %vm53, %v232
  %235 = vst.msk [vmem:[%s7 + $0x8] sm:$0xff] %vm53, %v233
  // Predicated region
  $region30: #{_lambda_.57} parent=0 // pred_check
    _
  $region31: #{_lambda_.57} parent=0 // pred_check_branch
    %237 = sbr.rel (0) target = $region33
  $region32: #{_lambda_.57} parent=0 // pred_region
    _
  $region33: #{_lambda_.57} parent=0 // pred_fallthru
    _
  // Predicated region
  $region34: #{_lambda_.57} parent=0 // pred_check
    _
  $region35: #{_lambda_.57} parent=0 // pred_check_branch
    %239 = sbr.rel (0) target = $region37
  $region36: #{_lambda_.57} parent=0 // pred_region
    _
  $region37: #{_lambda_.57} parent=0 // pred_fallthru
    _

// kernel: _lambda_.42
$region0: #{_lambda_.42}
  #allocation0 [shape = 'u32[]', space=smem, size = 0x4, offset = 0x4, fixed_abs, tag = 'smem constant byte address 0x4 - core index']
  #allocation1 [shape = 'u32[144,128]{1,0:T(1,128)}', space=vmem, size = 0x12000, scoped, tag = 'internal scratch']
  %s0 = inlined_call_operand.vmem [shape: f32[32,32], index: 0, kind: input, shape index: {}]
  %s1 = inlined_call_operand.vmem [shape: bf16[32,64], index: 1, kind: input, shape index: {}]
  %s2 = inlined_call_operand.vmem [shape: f32[1,64], index: 2, kind: input, shape index: {}]
  %s3 = inlined_call_operand.vmem [shape: bf16[64,32], index: 3, kind: input, shape index: {}]
  %s4 = inlined_call_operand.vmem [shape: f32[1,32], index: 4, kind: input, shape index: {}]
  %s5 = inlined_call_operand.vmem [shape: f32[1,32], index: 5, kind: input, shape index: {}]
  %s6 = inlined_call_operand.vmem [shape: f32[1,32], index: 6, kind: input, shape index: {}]
  %s7 = inlined_call_operand.vmem [shape: f32[32,32], index: 7, kind: output, shape index: {}]
  %s8 = sld [smem:[#allocation0]]
  $region38: #{_lambda_.42} parent=0
    _
  %s10 = ssub.s32 1, %s8
  %s11 = scalar_select 0, %s10, %s8
  // Predicated region
  $region2: #{_lambda_.42} parent=0 // pred_check
    _
  $region3: #{_lambda_.42} parent=0 // pred_check_branch
    %13 = sbr.rel (0) target = $region5
  $region4: #{_lambda_.42} parent=0 // pred_region
    _
  $region5: #{_lambda_.42} parent=0 // pred_fallthru
    _
  // Predicated region
  $region6: #{_lambda_.42} parent=0 // pred_check
    _
  $region7: #{_lambda_.42} parent=0 // pred_check_branch
    %15 = sbr.rel (0) target = $region9
  $region8: #{_lambda_.42} parent=0 // pred_region
    _
  $region9: #{_lambda_.42} parent=0 // pred_fallthru
    _
  // Predicated region
  $region10: #{_lambda_.42} parent=0 // pred_check
    _
  $region11: #{_lambda_.42} parent=0 // pred_check_branch
    %17 = sbr.rel (0) target = $region13
  $region12: #{_lambda_.42} parent=0 // pred_region
    _
  $region13: #{_lambda_.42} parent=0 // pred_fallthru
    _
  // Predicated region
  $region14: #{_lambda_.42} parent=0 // pred_check
    _
  $region15: #{_lambda_.42} parent=0 // pred_check_branch
    %19 = sbr.rel (0) target = $region17
  $region16: #{_lambda_.42} parent=0 // pred_region
    _
  $region17: #{_lambda_.42} parent=0 // pred_fallthru
    _
  // Predicated region
  $region18: #{_lambda_.42} parent=0 // pred_check
    _
  $region19: #{_lambda_.42} parent=0 // pred_check_branch
    %21 = sbr.rel (0) target = $region21
  $region20: #{_lambda_.42} parent=0 // pred_region
    _
  $region21: #{_lambda_.42} parent=0 // pred_fallthru
    _
  // Predicated region
  $region22: #{_lambda_.42} parent=0 // pred_check
    _
  $region23: #{_lambda_.42} parent=0 // pred_check_branch
    %23 = sbr.rel (0) target = $region25
  $region24: #{_lambda_.42} parent=0 // pred_region
    _
  $region25: #{_lambda_.42} parent=0 // pred_fallthru
    _
  // Predicated region
  $region26: #{_lambda_.42} parent=0 // pred_check
    _
  $region27: #{_lambda_.42} parent=0 // pred_check_branch
    %25 = sbr.rel (0) target = $region29
  $region28: #{_lambda_.42} parent=0 // pred_region
    _
  $region29: #{_lambda_.42} parent=0 // pred_fallthru
    _
  %v27 = vld [vmem:[%s0] sm:$0xff]
  %v28 = vld [vmem:[%s0 + $0x8] sm:$0xff]
  %v29 = vld [vmem:[%s0 + $0x10] sm:$0xff]
  %v30 = vld [vmem:[%s0 + $0x18] sm:$0xff]
  %v31 = vpack.c.bf16 %v28, %v27
  %v32 = vpack.c.bf16 %v30, %v29
  %v33 = vld [vmem:[%s1] sm:$0xf]
  %v34 = vld [vmem:[%s1 + $0x4] sm:$0xf]
  %v35 = vld [vmem:[%s1 + $0x8] sm:$0xf]
  %v36 = vld [vmem:[%s1 + $0xc] sm:$0xf]
  %v37 = vld [vmem:[%s2] sm:$0x1]
  %v39 = vlaneseq
  %v40 = vshrl.u32 %v39, 7
  %v41 = vsub.s32 0, %v40
  %v42 = vrot.slane %v37, %v41
  %v48 = vunpack.c.l.b16 %v33
  %v49 = vunpack.c.l.b16 %v34
  %v50 = vunpack.c.l.b16 %v35
  %v51 = vunpack.c.l.b16 %v36
  %v52 = vpack.c.b16 %v49, %v48
  %v53 = vpack.c.b16 %v51, %v50
  %vm56 = vcmask 261120
  %v58 = vsel %vm56, %v31, 0
  %v61 = vsel %vm56, %v32, 0
  %63 = vmatprep.subr.bf16.mxu0 0
  %64 = vmatpush1.bf16.msra.mxu0 %v52
  %65 = vmatprep.subr.bf16.mxu0 0
  %66 = vmatpush1.bf16.msra.mxu0 %v53
  %67 = vmatprep.subr.bf16.mxu0 0
  %68 = vmatpush1.bf16.msra.mxu0 0
  %69 = vmatprep.subr.bf16.mxu0 0
  %70 = vmatpush1.bf16.msra.mxu0 0
  %71 = vmatprep.subr.bf16.mxu0 0
  %72 = vmatpush1.bf16.msra.mxu0 0
  %73 = vmatprep.subr.bf16.mxu0 0
  %74 = vmatpush1.bf16.msra.mxu0 0
  %75 = vmatprep.subr.bf16.mxu0 0
  %76 = vmatpush1.bf16.msra.mxu0 0
  %77 = vmatprep.subr.bf16.mxu0 0
  %78 = vmatpush1.bf16.msra.mxu0 0
  %79 = vmatprep.subr.bf16.mxu0 0
  %80 = vmatpush1.bf16.msra.mxu0 0
  %81 = vmatprep.subr.bf16.mxu0 0
  %82 = vmatpush1.bf16.msra.mxu0 0
  %83 = vmatprep.subr.bf16.mxu0 0
  %84 = vmatpush1.bf16.msra.mxu0 0
  %85 = vmatprep.subr.bf16.mxu0 0
  %86 = vmatpush1.bf16.msra.mxu0 0
  %87 = vmatprep.subr.bf16.mxu0 0
  %88 = vmatpush1.bf16.msra.mxu0 0
  %89 = vmatprep.subr.bf16.mxu0 0
  %90 = vmatpush1.bf16.msra.mxu0 0
  %91 = vmatprep.subr.bf16.mxu0 0
  %92 = vmatpush1.bf16.msra.mxu0 0
  %93 = vmatprep.subr.bf16.mxu0 0
  %94 = vmatpush1.bf16.msra.mxu0 0
  %95 = vmatprep.mubr.bf16.mxu0 0
  %96 = vmatmul.mubr.bf16.gmra.mrb[0].mxu0 %v58
  %v97 = vpop.f32.mrb[0].mxu0
  %v98 = vadd.f32 %v42, %v97
  %v99 = vpop.f32.mrb[0].mxu0
  %v100 = vpop.f32.mrb[0].mxu0
  %v101 = vadd.f32 %v42, %v100
  %v102 = vpop.f32.mrb[0].mxu0
  %103 = vmatprep.mubr.bf16.mxu0 0
  %104 = vmatmul.mubr.bf16.gmra.mrb[0].mxu0 %v61
  %v105 = vpop.f32.mrb[0].mxu0
  %v106 = vadd.f32 %v42, %v105
  %v107 = vpop.f32.mrb[0].mxu0
  %v108 = vpop.f32.mrb[0].mxu0
  %v109 = vadd.f32 %v42, %v108
  %v110 = vpop.f32.mrb[0].mxu0
  %111 = vdwg.mxu0
  %v112 = vmax.f32 %v98, 0.0
  %v113 = vmax.f32 %v101, 0.0
  %v114 = vmax.f32 %v106, 0.0
  %v115 = vmax.f32 %v109, 0.0
  %v116 = vpack.c.bf16 %v113, %v112
  %v117 = vpack.c.bf16 %v115, %v114
  %v118 = vld [vmem:[%s3] sm:$0xf]
  %v119 = vld [vmem:[%s3 + $0x4] sm:$0xf]
  %v120 = vld [vmem:[%s3 + $0x8] sm:$0xf]
  %v121 = vld [vmem:[%s3 + $0xc] sm:$0xf]
  %v122 = vld [vmem:[%s3 + $0x10] sm:$0xf]
  %v123 = vld [vmem:[%s3 + $0x14] sm:$0xf]
  %v124 = vld [vmem:[%s3 + $0x18] sm:$0xf]
  %v125 = vld [vmem:[%s3 + $0x1c] sm:$0xf]
  %v134 = vunpack.c.l.b16 %v118
  %v135 = vunpack.c.l.b16 %v119
  %v136 = vunpack.c.l.b16 %v120
  %v137 = vunpack.c.l.b16 %v121
  %v138 = vunpack.c.l.b16 %v122
  %v139 = vunpack.c.l.b16 %v123
  %v140 = vunpack.c.l.b16 %v124
  %v141 = vunpack.c.l.b16 %v125
  %v142 = vpack.c.b16 %v135, %v134
  %v143 = vpack.c.b16 %v137, %v136
  %v144 = vpack.c.b16 %v139, %v138
  %v145 = vpack.c.b16 %v141, %v140
  %vm150 = vcmask 523264
  %v152 = vsel %vm150, %v116, 0
  %v155 = vsel %vm150, %v117, 0
  %157 = vmatprep.subr.bf16.mxu0 0
  %158 = vmatpush1.bf16.msra.mxu0 %v142
  %159 = vmatprep.subr.bf16.mxu0 0
  %160 = vmatpush1.bf16.msra.mxu0 %v143
  %161 = vmatprep.subr.bf16.mxu0 0
  %162 = vmatpush1.bf16.msra.mxu0 %v144
  %163 = vmatprep.subr.bf16.mxu0 0
  %164 = vmatpush1.bf16.msra.mxu0 %v145
  %165 = vmatprep.subr.bf16.mxu0 0
  %166 = vmatpush1.bf16.msra.mxu0 0
  %167 = vmatprep.subr.bf16.mxu0 0
  %168 = vmatpush1.bf16.msra.mxu0 0
  %169 = vmatprep.subr.bf16.mxu0 0
  %170 = vmatpush1.bf16.msra.mxu0 0
  %171 = vmatprep.subr.bf16.mxu0 0
  %172 = vmatpush1.bf16.msra.mxu0 0
  %173 = vmatprep.subr.bf16.mxu0 0
  %174 = vmatpush1.bf16.msra.mxu0 0
  %175 = vmatprep.subr.bf16.mxu0 0
  %176 = vmatpush1.bf16.msra.mxu0 0
  %177 = vmatprep.subr.bf16.mxu0 0
  %178 = vmatpush1.bf16.msra.mxu0 0
  %179 = vmatprep.subr.bf16.mxu0 0
  %180 = vmatpush1.bf16.msra.mxu0 0
  %181 = vmatprep.subr.bf16.mxu0 0
  %182 = vmatpush1.bf16.msra.mxu0 0
  %183 = vmatprep.subr.bf16.mxu0 0
  %184 = vmatpush1.bf16.msra.mxu0 0
  %185 = vmatprep.subr.bf16.mxu0 0
  %186 = vmatpush1.bf16.msra.mxu0 0
  %187 = vmatprep.subr.bf16.mxu0 0
  %188 = vmatpush1.bf16.msra.mxu0 0
  %189 = vmatprep.mubr.bf16.mxu0 0
  %190 = vmatmul.mubr.bf16.gmra.mrb[0].mxu0 %v152
  %v191 = vpop.f32.mrb[0].mxu0
  %v192 = vadd.f32 0.0, %v191
  %v193 = vpop.f32.mrb[0].mxu0
  %v194 = vpop.f32.mrb[0].mxu0
  %v195 = vadd.f32 0.0, %v194
  %v196 = vpop.f32.mrb[0].mxu0
  %197 = vmatprep.mubr.bf16.mxu0 0
  %198 = vmatmul.mubr.bf16.gmra.mrb[0].mxu0 %v155
  %v199 = vpop.f32.mrb[0].mxu0
  %v200 = vadd.f32 0.0, %v199
  %v201 = vpop.f32.mrb[0].mxu0
  %v202 = vpop.f32.mrb[0].mxu0
  %v203 = vadd.f32 0.0, %v202
  %v204 = vpop.f32.mrb[0].mxu0
  %205 = vdwg.mxu0
  %v206 = vadd.f32 %v27, %v192
  %v207 = vadd.f32 %v28, %v195
  %v208 = vadd.f32 %v29, %v200
  %v209 = vadd.f32 %v30, %v203
  %v210 = vld [vmem:[%s4] sm:$0x1]
  %v212 = vlaneseq
  %v213 = vshrl.u32 %v212, 7
  %v214 = vsub.s32 0, %v213
  %v215 = vrot.slane %v210, %v214
  %v217 = vadd.f32 %v206, %v215
  %v218 = vadd.f32 %v207, %v215
  %v219 = vadd.f32 %v208, %v215
  %v220 = vadd.f32 %v209, %v215
  %v221 = vsel %vm56, %v217, 0.0
  %222 = vadd.xlane.f32.xlu0 %v221
  %v223 = vpop.xlane.xlu0 %222
  %v224 = vsel %vm56, %v218, 0.0
  %225 = vadd.xlane.f32.xlu0 %v224
  %v226 = vpop.xlane.xlu0 %225
  %v227 = vsel %vm56, %v219, 0.0
  %228 = vadd.xlane.f32.xlu0 %v227
  %v229 = vpop.xlane.xlu0 %228
  %v230 = vsel %vm56, %v220, 0.0
  %231 = vadd.xlane.f32.xlu0 %v230
  %v232 = vpop.xlane.xlu0 %231
  %v233 = vrcp.pop 32.0
  %v234 = vmul.f32 %v223, %v233
  %v235 = vmul.f32 %v226, %v233
  %v236 = vmul.f32 %v229, %v233
  %v237 = vmul.f32 %v232, %v233
  %v238 = vsub.f32 %v217, %v234
  %v239 = vsub.f32 %v218, %v235
  %v240 = vsub.f32 %v219, %v236
  %v241 = vsub.f32 %v220, %v237
  %v242 = vmul.f32 %v238, %v238
  %v243 = vmul.f32 %v239, %v239
  %v244 = vmul.f32 %v240, %v240
  %v245 = vmul.f32 %v241, %v241
  %v246 = vsel %vm56, %v242, 0.0
  %247 = vadd.xlane.f32.xlu0 %v246
  %v248 = vpop.xlane.xlu0 %247
  %v249 = vsel %vm56, %v243, 0.0
  %250 = vadd.xlane.f32.xlu0 %v249
  %v251 = vpop.xlane.xlu0 %250
  %v252 = vsel %vm56, %v244, 0.0
  %253 = vadd.xlane.f32.xlu0 %v252
  %v254 = vpop.xlane.xlu0 %253
  %v255 = vsel %vm56, %v245, 0.0
  %256 = vadd.xlane.f32.xlu0 %v255
  %v257 = vpop.xlane.xlu0 %256
  %v258 = vmul.f32 %v248, %v233
  %v259 = vmul.f32 %v251, %v233
  %v260 = vmul.f32 %v254, %v233
  %v261 = vmul.f32 %v257, %v233
  %v262 = vadd.f32 %v258, 1e-05
  %v263 = vadd.f32 %v259, 1e-05
  %v264 = vadd.f32 %v260, 1e-05
  %v265 = vadd.f32 %v261, 1e-05
  %v266 = vrsqrt.pop %v262
  %v267 = vrsqrt.pop %v263
  %v268 = vrsqrt.pop %v264
  %v269 = vrsqrt.pop %v265
  %v270 = vmul.f32 %v238, %v266
  %v271 = vmul.f32 %v239, %v267
  %v272 = vmul.f32 %v240, %v268
  %v273 = vmul.f32 %v241, %v269
  %v274 = vld [vmem:[%s5] sm:$0x1]
  %v276 = vlaneseq
  %v277 = vshrl.u32 %v276, 7
  %v278 = vsub.s32 0, %v277
  %v279 = vrot.slane %v274, %v278
  %v281 = vmul.f32 %v270, %v279
  %v282 = vmul.f32 %v271, %v279
  %v283 = vmul.f32 %v272, %v279
  %v284 = vmul.f32 %v273, %v279
  %v285 = vld [vmem:[%s6] sm:$0x1]
  %v287 = vlaneseq
  %v288 = vshrl.u32 %v287, 7
  %v289 = vsub.s32 0, %v288
  %v290 = vrot.slane %v285, %v289
  %v292 = vadd.f32 %v281, %v290
  %v293 = vadd.f32 %v282, %v290
  %v294 = vadd.f32 %v283, %v290
  %v295 = vadd.f32 %v284, %v290
  %296 = vst.msk [vmem:[%s7] sm:$0xff] %vm56, %v292
  %297 = vst.msk [vmem:[%s7 + $0x8] sm:$0xff] %vm56, %v293
  %298 = vst.msk [vmem:[%s7 + $0x10] sm:$0xff] %vm56, %v294
  %299 = vst.msk [vmem:[%s7 + $0x18] sm:$0xff] %vm56, %v295
  // Predicated region
  $region30: #{_lambda_.42} parent=0 // pred_check
    _
  $region31: #{_lambda_.42} parent=0 // pred_check_branch
    %301 = sbr.rel (0) target = $region33
  $region32: #{_lambda_.42} parent=0 // pred_region
    _
  $region33: #{_lambda_.42} parent=0 // pred_fallthru
    _
  // Predicated region
  $region34: #{_lambda_.42} parent=0 // pred_check
    _
  $region35: #{_lambda_.42} parent=0 // pred_check_branch
    %303 = sbr.rel (0) target = $region37
  $region36: #{_lambda_.42} parent=0 // pred_region
    _
  $region37: #{_lambda_.42} parent=0 // pred_fallthru
    _

// kernel: _lambda_.55
$region0: #{_lambda_.55}
  #allocation0 [shape = 'u32[]', space=smem, size = 0x4, offset = 0x4, fixed_abs, tag = 'smem constant byte address 0x4 - core index']
  #allocation1 [shape = 'u32[144,128]{1,0:T(1,128)}', space=vmem, size = 0x12000, scoped, tag = 'internal scratch']
  %s0 = inlined_call_operand.vmem [shape: bf16[2,4,8,8], index: 0, kind: input, shape index: {}]
  %s1 = inlined_call_operand.vmem [shape: bf16[2,4,16,8], index: 1, kind: input, shape index: {}]
  %s2 = inlined_call_operand.vmem [shape: bf16[2,4,16,8], index: 2, kind: input, shape index: {}]
  %s3 = inlined_call_operand.vmem [shape: f32[2,1,16], index: 3, kind: input, shape index: {}]
  %s4 = inlined_call_operand.vmem [shape: bf16[2,8,32], index: 4, kind: output, shape index: {}]
  %s5 = sld [smem:[#allocation0]]
  $region49: #{_lambda_.55} parent=0
    _
  %s7 = ssub.s32 1, %s5
  %s8 = scalar_select 0, %s7, %s5
  loop: start=0, step=1, limit=4
  $region2: #{_lambda_.55} parent=0 // loop_pre_header
    _
  $region3: #{_lambda_.55} parent=0 // loop_header
    %s10 = sphi 0, %s14
    %p11 = scmp.ge.s32.totalorder %s10, 4
    %s17 = sphi 0, %s29
    %s18 = sphi 0, %s25
    %s19 = sphi 0, %s17
    %s20 = sphi 0, %s18
    %s21 = sphi 0, %s19
    %s22 = sphi 0, %s20
    %s34 = sphi 0, %s36
    %s37 = sphi 0, %s34
    %s38 = sphi 0, %s37
    %s54 = sphi 0, %s38
    %s60 = sphi 0, %s62
    %s63 = sphi 0, %s60
    %s64 = sphi 0, %s63
    %s80 = sphi 0, %s64
    %s86 = sphi 0, %s88
    %s89 = sphi 0, %s86
    %s90 = sphi 0, %s89
    %s106 = sphi 0, %s90
    %s112 = sphi 0, %s114
    %s115 = sphi 0, %s112
    %s116 = sphi 0, %s115
    %s132 = sphi 0, %s116
    %s140 = sphi 0, %s142
    %s143 = sphi 0, %s140
    %s144 = sphi 0, %s143
    %s160 = sphi 0, %s144
  $region4: #{_lambda_.55} parent=0 // loop_header_branch
    %13 = sbr.rel (%p11) target = $region8
  $region5: #{_lambda_.55} parent=0 // loop_body
    %s15 = ssub.s32 %s10, 1
    %s16 = ssub.s32 %s10, 2
    %s23 = sadd.s32 1, %s18
    %p24 = scmp.ge.s32.totalorder %s23, 1
    %s25 = scalar_select %p24, 0, %s23
    %s26 = sadd.s32 1, %s17
    %s27 = scalar_select %p24, %s26, %s17
    %p28 = scmp.ge.s32.totalorder %s27, 2
    %s29 = scalar_select %p28, 0, %s27
    %s30 = ssub.s32 %s17, %s29
    %s31 = ssub.s32 %s18, %s25
    %s32 = sor.u32 %s30, %s31
    %p33 = scmp.eq.s32.totalorder %s32, 0
    %s35 = sadd.s32 %s34, 1
    %s36 = scalar_select %p33, %s34, %s35
    %p39 = pneg %p33
    %p40 = scmp.eq.s32.totalorder %s10, 1
    %p41 = por %p39, %p40
    %p42 = scmp.ne.s32.totalorder %s34, %s37
    %p43 = scmp.eq.s32.totalorder %s10, 0
    %p44 = por %p42, %p43
    %p45 = scmp.ne.s32.totalorder %s34, %s37
    %p46 = scmp.eq.s32.totalorder %s15, 1
    %p47 = por %p45, %p46
    %p48 = scmp.ne.s32.totalorder %s37, %s38
    %p49 = scmp.eq.s32.totalorder %s15, 0
    %p50 = por %p48, %p49
    %p51 = scmp.ne.s32.totalorder %s37, %s38
    %p52 = scmp.eq.s32.totalorder %s16, 1
    %p53 = por %p51, %p52
    %p55 = scmp.ne.s32.totalorder %s38, %s54
    %p56 = scmp.eq.s32.totalorder %s16, 0
    %p57 = por %p55, %p56
    %s58 = ssub.s32 %s17, %s29
    %p59 = scmp.eq.s32.totalorder %s58, 0
    %s61 = sadd.s32 %s60, 1
    %s62 = scalar_select %p59, %s60, %s61
    %p65 = pneg %p59
    %p66 = scmp.eq.s32.totalorder %s10, 1
    %p67 = por %p65, %p66
    %p68 = scmp.ne.s32.totalorder %s60, %s63
    %p69 = scmp.eq.s32.totalorder %s10, 0
    %p70 = por %p68, %p69
    %p71 = scmp.ne.s32.totalorder %s60, %s63
    %p72 = scmp.eq.s32.totalorder %s15, 1
    %p73 = por %p71, %p72
    %p74 = scmp.ne.s32.totalorder %s63, %s64
    %p75 = scmp.eq.s32.totalorder %s15, 0
    %p76 = por %p74, %p75
    %p77 = scmp.ne.s32.totalorder %s63, %s64
    %p78 = scmp.eq.s32.totalorder %s16, 1
    %p79 = por %p77, %p78
    %p81 = scmp.ne.s32.totalorder %s64, %s80
    %p82 = scmp.eq.s32.totalorder %s16, 0
    %p83 = por %p81, %p82
    %s84 = ssub.s32 %s17, %s29
    %p85 = scmp.eq.s32.totalorder %s84, 0
    %s87 = sadd.s32 %s86, 1
    %s88 = scalar_select %p85, %s86, %s87
    %p91 = pneg %p85
    %p92 = scmp.eq.s32.totalorder %s10, 1
    %p93 = por %p91, %p92
    %p94 = scmp.ne.s32.totalorder %s86, %s89
    %p95 = scmp.eq.s32.totalorder %s10, 0
    %p96 = por %p94, %p95
    %p97 = scmp.ne.s32.totalorder %s86, %s89
    %p98 = scmp.eq.s32.totalorder %s15, 1
    %p99 = por %p97, %p98
    %p100 = scmp.ne.s32.totalorder %s89, %s90
    %p101 = scmp.eq.s32.totalorder %s15, 0
    %p102 = por %p100, %p101
    %p103 = scmp.ne.s32.totalorder %s89, %s90
    %p104 = scmp.eq.s32.totalorder %s16, 1
    %p105 = por %p103, %p104
    %p107 = scmp.ne.s32.totalorder %s90, %s106
    %p108 = scmp.eq.s32.totalorder %s16, 0
    %p109 = por %p107, %p108
    %s110 = ssub.s32 %s17, %s29
    %p111 = scmp.eq.s32.totalorder %s110, 0
    %s113 = sadd.s32 %s112, 1
    %s114 = scalar_select %p111, %s112, %s113
    %p117 = pneg %p111
    %p118 = scmp.eq.s32.totalorder %s10, 1
    %p119 = por %p117, %p118
    %p120 = scmp.ne.s32.totalorder %s112, %s115
    %p121 = scmp.eq.s32.totalorder %s10, 0
    %p122 = por %p120, %p121
    %p123 = scmp.ne.s32.totalorder %s112, %s115
    %p124 = scmp.eq.s32.totalorder %s15, 1
    %p125 = por %p123, %p124
    %p126 = scmp.ne.s32.totalorder %s115, %s116
    %p127 = scmp.eq.s32.totalorder %s15, 0
    %p128 = por %p126, %p127
    %p129 = scmp.ne.s32.totalorder %s115, %s116
    %p130 = scmp.eq.s32.totalorder %s16, 1
    %p131 = por %p129, %p130
    %p133 = scmp.ne.s32.totalorder %s116, %s132
    %p134 = scmp.eq.s32.totalorder %s16, 0
    %p135 = por %p133, %p134
    %s136 = ssub.s32 %s17, %s29
    %s137 = ssub.s32 %s18, %s25
    %s138 = sor.u32 %s136, %s137
    %p139 = scmp.eq.s32.totalorder %s138, 0
    %s141 = sadd.s32 %s140, 1
    %s142 = scalar_select %p139, %s140, %s141
    %p145 = pneg %p139
    %p146 = scmp.eq.s32.totalorder %s10, 1
    %p147 = por %p145, %p146
    %p148 = scmp.ne.s32.totalorder %s140, %s143
    %p149 = scmp.eq.s32.totalorder %s10, 0
    %p150 = por %p148, %p149
    %p151 = scmp.ne.s32.totalorder %s140, %s143
    %p152 = scmp.eq.s32.totalorder %s15, 1
    %p153 = por %p151, %p152
    %p154 = scmp.ne.s32.totalorder %s143, %s144
    %p155 = scmp.eq.s32.totalorder %s15, 0
    %p156 = por %p154, %p155
    %p157 = scmp.ne.s32.totalorder %s143, %s144
    %p158 = scmp.eq.s32.totalorder %s16, 1
    %p159 = por %p157, %p158
    %p161 = scmp.ne.s32.totalorder %s144, %s160
    %p162 = scmp.eq.s32.totalorder %s16, 0
    %p163 = por %p161, %p162
    %p164 = scmp.le.s32.totalorder 1, %s10
    %p165 = scmp.lt.s32.totalorder %s10, 3
    %p166 = pnand %p164, %p165
    %p167 = pneg %p166
    // Predicated region
    $region9: #{_lambda_.55} parent=5 // pred_check
      _
    $region10: #{_lambda_.55} parent=5 // pred_check_branch
      %169 = sbr.rel (%p166) target = $region12
    $region11: #{_lambda_.55} parent=5 // pred_region
      %s170 = ssub.s32 %s10, 1
    $region12: #{_lambda_.55} parent=5 // pred_fallthru
      _
    %p171 = scmp.lt.s32.totalorder %s10, 2
    // Predicated region
    $region13: #{_lambda_.55} parent=5 // pred_check
      %p172 = pneg %p171
    $region14: #{_lambda_.55} parent=5 // pred_check_branch
      %174 = sbr.rel (%p172) target = $region16
    $region15: #{_lambda_.55} parent=5 // pred_region
      // Predicated region
      $region17: #{_lambda_.55} parent=15 // pred_check
        %p175 = pneg %p44
      $region18: #{_lambda_.55} parent=15 // pred_check_branch
        %177 = sbr.rel (%p175) target = $region20
      $region19: #{_lambda_.55} parent=15 // pred_region
        %p178 = scmp.lt.s32.totalorder %s17, 1
        %s179 = scalar_select %p178, %s17, 1
        %p180 = scmp.lt.s32.totalorder %s18, 0
        %s181 = scalar_select %p180, %s18, 0
        %s182 = smul.addr %s179, 4
        %s183 = sadd.s32 %s181, %s182
        %s184 = smul.addr %s183, 4
        %s185 = scalar_lea.vmem %s0, %s184
      $region20: #{_lambda_.55} parent=15 // pred_fallthru
        _
      // Predicated region
      $region21: #{_lambda_.55} parent=15 // pred_check
        %p186 = pneg %p70
      $region22: #{_lambda_.55} parent=15 // pred_check_branch
        %188 = sbr.rel (%p186) target = $region24
      $region23: #{_lambda_.55} parent=15 // pred_region
        %p189 = scmp.lt.s32.totalorder %s17, 1
        %s190 = scalar_select %p189, %s17, 1
        %s191 = smul.addr %s190, 8
        %s192 = smul.addr %s191, 4
        %s193 = scalar_lea.vmem %s1, %s192
      $region24: #{_lambda_.55} parent=15 // pred_fallthru
        _
      // Predicated region
      $region25: #{_lambda_.55} parent=15 // pred_check
        %p194 = pneg %p96
      $region26: #{_lambda_.55} parent=15 // pred_check_branch
        %196 = sbr.rel (%p194) target = $region28
      $region27: #{_lambda_.55} parent=15 // pred_region
        %p197 = scmp.lt.s32.totalorder %s17, 1
        %s198 = scalar_select %p197, %s17, 1
        %s199 = smul.addr %s198, 8
        %s200 = smul.addr %s199, 4
        %s201 = scalar_lea.vmem %s2, %s200
      $region28: #{_lambda_.55} parent=15 // pred_fallthru
        _
      // Predicated region
      $region29: #{_lambda_.55} parent=15 // pred_check
        %p202 = pneg %p122
      $region30: #{_lambda_.55} parent=15 // pred_check_branch
        %204 = sbr.rel (%p202) target = $region32
      $region31: #{_lambda_.55} parent=15 // pred_region
        %p205 = scmp.lt.s32.totalorder %s17, 1
        %s206 = scalar_select %p205, %s17, 1
        %s207 = scalar_lea.vmem %s3, %s206
      $region32: #{_lambda_.55} parent=15 // pred_fallthru
        _
    $region16: #{_lambda_.55} parent=5 // pred_fallthru
      _
    %p208 = scmp.le.s32.totalorder 1, %s10
    %p209 = scmp.lt.s32.totalorder %s10, 3
    %p210 = pnand %p208, %p209
    %p211 = pneg %p210
    // Predicated region
    $region33: #{_lambda_.55} parent=5 // pred_check
      _
    $region34: #{_lambda_.55} parent=5 // pred_check_branch
      %213 = sbr.rel (%p210) target = $region36
    $region35: #{_lambda_.55} parent=5 // pred_region
      %s214 = ssub.s32 %s10, 1
      %p215 = scmp.lt.s32.totalorder %s19, 1
      %s216 = scalar_select %p215, %s19, 1
      %p217 = scmp.lt.s32.totalorder %s20, 0
      %s218 = scalar_select %p217, %s20, 0
      %s219 = smul.addr %s216, 4
      %s220 = sadd.s32 %s218, %s219
      %s221 = smul.addr %s220, 4
      %s222 = scalar_lea.vmem %s0, %s221
      %p223 = pneg %p50
      %p224 = pneg %p47
      %p225 = scmp.lt.s32.totalorder %s19, 1
      %s226 = scalar_select %p225, %s19, 1
      %s227 = smul.addr %s226, 8
      %s228 = smul.addr %s227, 4
      %s229 = scalar_lea.vmem %s1, %s228
      %p230 = pneg %p76
      %p231 = pneg %p73
      %p232 = scmp.lt.s32.totalorder %s19, 1
      %s233 = scalar_select %p232, %s19, 1
      %s234 = smul.addr %s233, 8
      %s235 = smul.addr %s234, 4
      %s236 = scalar_lea.vmem %s2, %s235
      %p237 = pneg %p102
      %p238 = pneg %p99
      %p239 = scmp.lt.s32.totalorder %s19, 1
      %s240 = scalar_select %p239, %s19, 1
      %s241 = scalar_lea.vmem %s3, %s240
      %p242 = pneg %p128
      %p243 = pneg %p125
      %p244 = pneg %p156
      %p245 = pneg %p153
      %p246 = scmp.lt.s32.totalorder %s19, 1
      %s247 = scalar_select %p246, %s19, 1
      %p248 = scmp.lt.s32.totalorder %s20, 0
      %s249 = scalar_select %p248, %s20, 0
      %s250 = sadd.s32 %s249, %s247
      %s251 = smul.addr %s250, 4
      %s252 = scalar_lea.vmem %s4, %s251
      %p253 = scmp.lt.s32.totalorder %s19, 1
      %s254 = scalar_select %p253, %s19, 1
      %p255 = scmp.lt.s32.totalorder %s20, 0
      %s256 = scalar_select %p255, %s20, 0
      %s257 = smul.addr %s254, 4
      %s258 = sadd.s32 %s256, %s257
      %s259 = smul.addr %s258, 4
      %s260 = scalar_lea.vmem %s0, %s259
      %p261 = scmp.lt.s32.totalorder %s19, 1
      %s262 = scalar_select %p261, %s19, 1
      %s263 = smul.addr %s262, 8
      %s264 = smul.addr %s263, 4
      %s265 = scalar_lea.vmem %s1, %s264
      %p266 = scmp.lt.s32.totalorder %s19, 1
      %s267 = scalar_select %p266, %s19, 1
      %s268 = smul.addr %s267, 8
      %s269 = smul.addr %s268, 4
      %s270 = scalar_lea.vmem %s2, %s269
      %p271 = scmp.lt.s32.totalorder %s19, 1
      %s272 = scalar_select %p271, %s19, 1
      %s273 = scalar_lea.vmem %s3, %s272
      %p274 = scmp.lt.s32.totalorder %s19, 1
      %s275 = scalar_select %p274, %s19, 1
      %p276 = scmp.lt.s32.totalorder %s20, 0
      %s277 = scalar_select %p276, %s20, 0
      %s278 = sadd.s32 %s277, %s275
      %s279 = smul.addr %s278, 4
      %s280 = scalar_lea.vmem %s4, %s279
      %v282 = vld [vmem:[%s260] sm:$0xf]
      %v283 = vld [vmem:[%s260 + $0x4] sm:$0xf]
      %v284 = vld [vmem:[%s260 + $0x8] sm:$0xf]
      %v285 = vld [vmem:[%s260 + $0xc] sm:$0xf]
      %v286 = vld [vmem:[%s265] sm:$0xf]
      %v287 = vld [vmem:[%s265 + $0x4] sm:$0xf]
      %v288 = vld [vmem:[%s265 + $0x8] sm:$0xf]
      %v289 = vld [vmem:[%s265 + $0xc] sm:$0xf]
      %v290 = vld [vmem:[%s265 + $0x10] sm:$0xf]
      %v291 = vld [vmem:[%s265 + $0x14] sm:$0xf]
      %v292 = vld [vmem:[%s265 + $0x18] sm:$0xf]
      %v293 = vld [vmem:[%s265 + $0x1c] sm:$0xf]
      %v294 = vld [vmem:[%s270] sm:$0xf]
      %v295 = vld [vmem:[%s270 + $0x4] sm:$0xf]
      %v296 = vld [vmem:[%s270 + $0x8] sm:$0xf]
      %v297 = vld [vmem:[%s270 + $0xc] sm:$0xf]
      %v298 = vld [vmem:[%s270 + $0x10] sm:$0xf]
      %v299 = vld [vmem:[%s270 + $0x14] sm:$0xf]
      %v300 = vld [vmem:[%s270 + $0x18] sm:$0xf]
      %v301 = vld [vmem:[%s270 + $0x1c] sm:$0xf]
      %v304 = vunpack.c.l.b16 %v286
      %v305 = vunpack.c.l.b16 %v287
      %v306 = vpack.c.b16 %v305, %v304
      %vm307 = vcmask 64512
      %v309 = vsel %vm307, %v282, 0
      %v312 = vsel %vm307, %v306, 0
      %314 = vmatprep.subr.bf16.mxu0 0
      %315 = vmatpush1.bf16.xpose.msra.mxu0 %v312
      %316 = vmatprep.subr.bf16.mxu0 0
      %317 = vmatpush1.bf16.xpose.msra.mxu0 0
      %318 = vmatprep.subr.bf16.mxu0 0
      %319 = vmatpush1.bf16.xpose.msra.mxu0 0
      %320 = vmatprep.subr.bf16.mxu0 0
      %321 = vmatpush1.bf16.xpose.msra.mxu0 0
      %322 = vmatprep.subr.bf16.mxu0 0
      %323 = vmatpush1.bf16.xpose.msra.mxu0 0
      %324 = vmatprep.subr.bf16.mxu0 0
      %325 = vmatpush1.bf16.xpose.msra.mxu0 0
      %326 = vmatprep.subr.bf16.mxu0 0
      %327 = vmatpush1.bf16.xpose.msra.mxu0 0
      %328 = vmatprep.subr.bf16.mxu0 0
      %329 = vmatpush1.bf16.xpose.msra.mxu0 0
      %330 = vmatprep.subr.bf16.mxu0 0
      %331 = vmatpush1.bf16.xpose.msra.mxu0 0
      %332 = vmatprep.subr.bf16.mxu0 0
      %333 = vmatpush1.bf16.xpose.msra.mxu0 0
      %334 = vmatprep.subr.bf16.mxu0 0
      %335 = vmatpush1.bf16.xpose.msra.mxu0 0
      %336 = vmatprep.subr.bf16.mxu0 0
      %337 = vmatpush1.bf16.xpose.msra.mxu0 0
      %338 = vmatprep.subr.bf16.mxu0 0
      %339 = vmatpush1.bf16.xpose.msra.mxu0 0
      %340 = vmatprep.subr.bf16.mxu0 0
      %341 = vmatpush1.bf16.xpose.msra.mxu0 0
      %342 = vmatprep.subr.bf16.mxu0 0
      %343 = vmatpush1.bf16.xpose.msra.mxu0 0
      %344 = vmatprep.subr.bf16.mxu0 0
      %345 = vmatpush1.bf16.xpose.msra.mxu0 0
      %346 = vmatprep.mubr.bf16.mxu0 0
      %347 = vmatmul.mubr.bf16.gmra.mrb[0].mxu0 %v309
      %v348 = vpop.f32.mrb[0].mxu0
      %v349 = vadd.f32 0.0, %v348
      %v350 = vpop.f32.mrb[0].mxu0
      %v351 = vpop.f32.mrb[0].mxu0
      %v352 = vpop.f32.mrb[0].mxu0
      %353 = vdwg.mxu0
      %v356 = vunpack.c.l.b16 %v288
      %v357 = vunpack.c.l.b16 %v289
      %v358 = vpack.c.b16 %v357, %v356
      %v360 = vsel %vm307, %v283, 0
      %v363 = vsel %vm307, %v358, 0
      %365 = vmatprep.subr.bf16.mxu0 0
      %366 = vmatpush1.bf16.xpose.msra.mxu0 %v363
      %367 = vmatprep.subr.bf16.mxu0 0
      %368 = vmatpush1.bf16.xpose.msra.mxu0 0
      %369 = vmatprep.subr.bf16.mxu0 0
      %370 = vmatpush1.bf16.xpose.msra.mxu0 0
      %371 = vmatprep.subr.bf16.mxu0 0
      %372 = vmatpush1.bf16.xpose.msra.mxu0 0
      %373 = vmatprep.subr.bf16.mxu0 0
      %374 = vmatpush1.bf16.xpose.msra.mxu0 0
      %375 = vmatprep.subr.bf16.mxu0 0
      %376 = vmatpush1.bf16.xpose.msra.mxu0 0
      %377 = vmatprep.subr.bf16.mxu0 0
      %378 = vmatpush1.bf16.xpose.msra.mxu0 0
      %379 = vmatprep.subr.bf16.mxu0 0
      %380 = vmatpush1.bf16.xpose.msra.mxu0 0
      %381 = vmatprep.subr.bf16.mxu0 0
      %382 = vmatpush1.bf16.xpose.msra.mxu0 0
      %383 = vmatprep.subr.bf16.mxu0 0
      %384 = vmatpush1.bf16.xpose.msra.mxu0 0
      %385 = vmatprep.subr.bf16.mxu0 0
      %386 = vmatpush1.bf16.xpose.msra.mxu0 0
      %387 = vmatprep.subr.bf16.mxu0 0
      %388 = vmatpush1.bf16.xpose.msra.mxu0 0
      %389 = vmatprep.subr.bf16.mxu0 0
      %390 = vmatpush1.bf16.xpose.msra.mxu0 0
      %391 = vmatprep.subr.bf16.mxu0 0
      %392 = vmatpush1.bf16.xpose.msra.mxu0 0
      %393 = vmatprep.subr.bf16.mxu0 0
      %394 = vmatpush1.bf16.xpose.msra.mxu0 0
      %395 = vmatprep.subr.bf16.mxu0 0
      %396 = vmatpush1.bf16.xpose.msra.mxu0 0
      %397 = vmatprep.mubr.bf16.mxu0 0
      %398 = vmatmul.mubr.bf16.gmra.mrb[0].mxu0 %v360
      %v399 = vpop.f32.mrb[0].mxu0
      %v400 = vadd.f32 0.0, %v399
      %v401 = vpop.f32.mrb[0].mxu0
      %v402 = vpop.f32.mrb[0].mxu0
      %v403 = vpop.f32.mrb[0].mxu0
      %404 = vdwg.mxu0
      %v407 = vunpack.c.l.b16 %v290
      %v408 = vunpack.c.l.b16 %v291
      %v409 = vpack.c.b16 %v408, %v407
      %v411 = vsel %vm307, %v284, 0
      %v414 = vsel %vm307, %v409, 0
      %416 = vmatprep.subr.bf16.mxu0 0
      %417 = vmatpush1.bf16.xpose.msra.mxu0 %v414
      %418 = vmatprep.subr.bf16.mxu0 0
      %419 = vmatpush1.bf16.xpose.msra.mxu0 0
      %420 = vmatprep.subr.bf16.mxu0 0
      %421 = vmatpush1.bf16.xpose.msra.mxu0 0
      %422 = vmatprep.subr.bf16.mxu0 0
      %423 = vmatpush1.bf16.xpose.msra.mxu0 0
      %424 = vmatprep.subr.bf16.mxu0 0
      %425 = vmatpush1.bf16.xpose.msra.mxu0 0
      %426 = vmatprep.subr.bf16.mxu0 0
      %427 = vmatpush1.bf16.xpose.msra.mxu0 0
      %428 = vmatprep.subr.bf16.mxu0 0
      %429 = vmatpush1.bf16.xpose.msra.mxu0 0
      %430 = vmatprep.subr.bf16.mxu0 0
      %431 = vmatpush1.bf16.xpose.msra.mxu0 0
      %432 = vmatprep.subr.bf16.mxu0 0
      %433 = vmatpush1.bf16.xpose.msra.mxu0 0
      %434 = vmatprep.subr.bf16.mxu0 0
      %435 = vmatpush1.bf16.xpose.msra.mxu0 0
      %436 = vmatprep.subr.bf16.mxu0 0
      %437 = vmatpush1.bf16.xpose.msra.mxu0 0
      %438 = vmatprep.subr.bf16.mxu0 0
      %439 = vmatpush1.bf16.xpose.msra.mxu0 0
      %440 = vmatprep.subr.bf16.mxu0 0
      %441 = vmatpush1.bf16.xpose.msra.mxu0 0
      %442 = vmatprep.subr.bf16.mxu0 0
      %443 = vmatpush1.bf16.xpose.msra.mxu0 0
      %444 = vmatprep.subr.bf16.mxu0 0
      %445 = vmatpush1.bf16.xpose.msra.mxu0 0
      %446 = vmatprep.subr.bf16.mxu0 0
      %447 = vmatpush1.bf16.xpose.msra.mxu0 0
      %448 = vmatprep.mubr.bf16.mxu0 0
      %449 = vmatmul.mubr.bf16.gmra.mrb[0].mxu0 %v411
      %v450 = vpop.f32.mrb[0].mxu0
      %v451 = vadd.f32 0.0, %v450
      %v452 = vpop.f32.mrb[0].mxu0
      %v453 = vpop.f32.mrb[0].mxu0
      %v454 = vpop.f32.mrb[0].mxu0
      %455 = vdwg.mxu0
      %v458 = vunpack.c.l.b16 %v292
      %v459 = vunpack.c.l.b16 %v293
      %v460 = vpack.c.b16 %v459, %v458
      %v462 = vsel %vm307, %v285, 0
      %v465 = vsel %vm307, %v460, 0
      %467 = vmatprep.subr.bf16.mxu0 0
      %468 = vmatpush1.bf16.xpose.msra.mxu0 %v465
      %469 = vmatprep.subr.bf16.mxu0 0
      %470 = vmatpush1.bf16.xpose.msra.mxu0 0
      %471 = vmatprep.subr.bf16.mxu0 0
      %472 = vmatpush1.bf16.xpose.msra.mxu0 0
      %473 = vmatprep.subr.bf16.mxu0 0
      %474 = vmatpush1.bf16.xpose.msra.mxu0 0
      %475 = vmatprep.subr.bf16.mxu0 0
      %476 = vmatpush1.bf16.xpose.msra.mxu0 0
      %477 = vmatprep.subr.bf16.mxu0 0
      %478 = vmatpush1.bf16.xpose.msra.mxu0 0
      %479 = vmatprep.subr.bf16.mxu0 0
      %480 = vmatpush1.bf16.xpose.msra.mxu0 0
      %481 = vmatprep.subr.bf16.mxu0 0
      %482 = vmatpush1.bf16.xpose.msra.mxu0 0
      %483 = vmatprep.subr.bf16.mxu0 0
      %484 = vmatpush1.bf16.xpose.msra.mxu0 0
      %485 = vmatprep.subr.bf16.mxu0 0
      %486 = vmatpush1.bf16.xpose.msra.mxu0 0
      %487 = vmatprep.subr.bf16.mxu0 0
      %488 = vmatpush1.bf16.xpose.msra.mxu0 0
      %489 = vmatprep.subr.bf16.mxu0 0
      %490 = vmatpush1.bf16.xpose.msra.mxu0 0
      %491 = vmatprep.subr.bf16.mxu0 0
      %492 = vmatpush1.bf16.xpose.msra.mxu0 0
      %493 = vmatprep.subr.bf16.mxu0 0
      %494 = vmatpush1.bf16.xpose.msra.mxu0 0
      %495 = vmatprep.subr.bf16.mxu0 0
      %496 = vmatpush1.bf16.xpose.msra.mxu0 0
      %497 = vmatprep.subr.bf16.mxu0 0
      %498 = vmatpush1.bf16.xpose.msra.mxu0 0
      %499 = vmatprep.mubr.bf16.mxu0 0
      %500 = vmatmul.mubr.bf16.gmra.mrb[0].mxu0 %v462
      %v501 = vpop.f32.mrb[0].mxu0
      %v502 = vadd.f32 0.0, %v501
      %v503 = vpop.f32.mrb[0].mxu0
      %v504 = vpop.f32.mrb[0].mxu0
      %v505 = vpop.f32.mrb[0].mxu0
      %506 = vdwg.mxu0
      %v507 = vmul.f32 %v349, 0.35355338
      %v508 = vmul.f32 %v400, 0.35355338
      %v509 = vmul.f32 %v451, 0.35355338
      %v510 = vmul.f32 %v502, 0.35355338
      %v511 = vld [vmem:[%s273] sm:$0x1]
      %v513 = vlaneseq
      %v514 = vshrl.u32 %v513, 7
      %v515 = vsub.s32 0, %v514
      %v516 = vrot.slane %v511, %v515
      %v518 = vadd.f32 %v507, %v516
      %v519 = vadd.f32 %v508, %v516
      %v520 = vadd.f32 %v509, %v516
      %v521 = vadd.f32 %v510, %v516
      %vm522 = vcmask 130048
      %v523 = vsel %vm522, %v518, -inf
      %524 = vmax.xlane.f32.xlu0 %v523
      %v525 = vpop.xlane.xlu0 %524
      %v526 = vsel %vm522, %v519, -inf
      %527 = vmax.xlane.f32.xlu0 %v526
      %v528 = vpop.xlane.xlu0 %527
      %v529 = vsel %vm522, %v520, -inf
      %530 = vmax.xlane.f32.xlu0 %v529
      %v531 = vpop.xlane.xlu0 %530
      %v532 = vsel %vm522, %v521, -inf
      %533 = vmax.xlane.f32.xlu0 %v532
      %v534 = vpop.xlane.xlu0 %533
      %v535 = vsub.f32 %v518, %v525
      %v536 = vsub.f32 %v519, %v528
      %v537 = vsub.f32 %v520, %v531
      %v538 = vsub.f32 %v521, %v534
      %v539 = vmul.f32 %v535, 1.442695
      %v540 = vpow.pop %v539
      %v541 = vmul.f32 %v536, 1.442695
      %v542 = vpow.pop %v541
      %v543 = vmul.f32 %v537, 1.442695
      %v544 = vpow.pop %v543
      %v545 = vmul.f32 %v538, 1.442695
      %v546 = vpow.pop %v545
      %v547 = vsel %vm522, %v540, 0.0
      %548 = vadd.xlane.f32.xlu0 %v547
      %v549 = vpop.xlane.xlu0 %548
      %v550 = vsel %vm522, %v542, 0.0
      %551 = vadd.xlane.f32.xlu0 %v550
      %v552 = vpop.xlane.xlu0 %551
      %v553 = vsel %vm522, %v544, 0.0
      %554 = vadd.xlane.f32.xlu0 %v553
      %v555 = vpop.xlane.xlu0 %554
      %v556 = vsel %vm522, %v546, 0.0
      %557 = vadd.xlane.f32.xlu0 %v556
      %v558 = vpop.xlane.xlu0 %557
      %v559 = vrcp.pop %v549
      %v560 = vrcp.pop %v552
      %v561 = vrcp.pop %v555
      %v562 = vrcp.pop %v558
      %v563 = vmul.f32 %v540, %v559
      %v564 = vmul.f32 %v542, %v560
      %v565 = vmul.f32 %v544, %v561
      %v566 = vmul.f32 %v546, %v562
      %v567 = vpack.c.bf16 %v563, %v563
      %v568 = vpack.c.bf16 %v564, %v564
      %v569 = vpack.c.bf16 %v565, %v565
      %v570 = vpack.c.bf16 %v566, %v566
      %v573 = vunpack.c.l.b16 %v294
      %v574 = vunpack.c.l.b16 %v295
      %v575 = vpack.c.b16 %v574, %v573
      %v578 = vsel %vm522, %v567, 0
      %580 = vmatprep.subr.bf16.mxu0 0
      %581 = vmatpush1.bf16.msra.mxu0 %v575
      %582 = vmatprep.subr.bf16.mxu0 0
      %583 = vmatpush1.bf16.msra.mxu0 0
      %584 = vmatprep.subr.bf16.mxu0 0
      %585 = vmatpush1.bf16.msra.mxu0 0
      %586 = vmatprep.subr.bf16.mxu0 0
      %587 = vmatpush1.bf16.msra.mxu0 0
      %588 = vmatprep.subr.bf16.mxu0 0
      %589 = vmatpush1.bf16.msra.mxu0 0
      %590 = vmatprep.subr.bf16.mxu0 0
      %591 = vmatpush1.bf16.msra.mxu0 0
      %592 = vmatprep.subr.bf16.mxu0 0
      %593 = vmatpush1.bf16.msra.mxu0 0
      %594 = vmatprep.subr.bf16.mxu0 0
      %595 = vmatpush1.bf16.msra.mxu0 0
      %596 = vmatprep.subr.bf16.mxu0 0
      %597 = vmatpush1.bf16.msra.mxu0 0
      %598 = vmatprep.subr.bf16.mxu0 0
      %599 = vmatpush1.bf16.msra.mxu0 0
      %600 = vmatprep.subr.bf16.mxu0 0
      %601 = vmatpush1.bf16.msra.mxu0 0
      %602 = vmatprep.subr.bf16.mxu0 0
      %603 = vmatpush1.bf16.msra.mxu0 0
      %604 = vmatprep.subr.bf16.mxu0 0
      %605 = vmatpush1.bf16.msra.mxu0 0
      %606 = vmatprep.subr.bf16.mxu0 0
      %607 = vmatpush1.bf16.msra.mxu0 0
      %608 = vmatprep.subr.bf16.mxu0 0
      %609 = vmatpush1.bf16.msra.mxu0 0
      %610 = vmatprep.subr.bf16.mxu0 0
      %611 = vmatpush1.bf16.msra.mxu0 0
      %612 = vmatprep.mubr.bf16.mxu0 0
      %613 = vmatmul.mubr.bf16.gmra.mrb[0].mxu0 %v578
      %v614 = vpop.f32.mrb[0].mxu0
      %v615 = vadd.f32 0.0, %v614
      %v616 = vpop.f32.mrb[0].mxu0
      %v617 = vpop.f32.mrb[0].mxu0
      %v618 = vpop.f32.mrb[0].mxu0
      %619 = vdwg.mxu0
      %v622 = vunpack.c.l.b16 %v296
      %v623 = vunpack.c.l.b16 %v297
      %v624 = vpack.c.b16 %v623, %v622
      %v627 = vsel %vm522, %v568, 0
      %629 = vmatprep.subr.bf16.mxu0 0
      %630 = vmatpush1.bf16.msra.mxu0 %v624
      %631 = vmatprep.subr.bf16.mxu0 0
      %632 = vmatpush1.bf16.msra.mxu0 0
      %633 = vmatprep.subr.bf16.mxu0 0
      %634 = vmatpush1.bf16.msra.mxu0 0
      %635 = vmatprep.subr.bf16.mxu0 0
      %636 = vmatpush1.bf16.msra.mxu0 0
      %637 = vmatprep.subr.bf16.mxu0 0
      %638 = vmatpush1.bf16.msra.mxu0 0
      %639 = vmatprep.subr.bf16.mxu0 0
      %640 = vmatpush1.bf16.msra.mxu0 0
      %641 = vmatprep.subr.bf16.mxu0 0
      %642 = vmatpush1.bf16.msra.mxu0 0
      %643 = vmatprep.subr.bf16.mxu0 0
      %644 = vmatpush1.bf16.msra.mxu0 0
      %645 = vmatprep.subr.bf16.mxu0 0
      %646 = vmatpush1.bf16.msra.mxu0 0
      %647 = vmatprep.subr.bf16.mxu0 0
      %648 = vmatpush1.bf16.msra.mxu0 0
      %649 = vmatprep.subr.bf16.mxu0 0
      %650 = vmatpush1.bf16.msra.mxu0 0
      %651 = vmatprep.subr.bf16.mxu0 0
      %652 = vmatpush1.bf16.msra.mxu0 0
      %653 = vmatprep.subr.bf16.mxu0 0
      %654 = vmatpush1.bf16.msra.mxu0 0
      %655 = vmatprep.subr.bf16.mxu0 0
      %656 = vmatpush1.bf16.msra.mxu0 0
      %657 = vmatprep.subr.bf16.mxu0 0
      %658 = vmatpush1.bf16.msra.mxu0 0
      %659 = vmatprep.subr.bf16.mxu0 0
      %660 = vmatpush1.bf16.msra.mxu0 0
      %661 = vmatprep.mubr.bf16.mxu0 0
      %662 = vmatmul.mubr.bf16.gmra.mrb[0].mxu0 %v627
      %v663 = vpop.f32.mrb[0].mxu0
      %v664 = vadd.f32 0.0, %v663
      %v665 = vpop.f32.mrb[0].mxu0
      %v666 = vpop.f32.mrb[0].mxu0
      %v667 = vpop.f32.mrb[0].mxu0
      %668 = vdwg.mxu0
      %v671 = vunpack.c.l.b16 %v298
      %v672 = vunpack.c.l.b16 %v299
      %v673 = vpack.c.b16 %v672, %v671
      %v676 = vsel %vm522, %v569, 0
      %678 = vmatprep.subr.bf16.mxu0 0
      %679 = vmatpush1.bf16.msra.mxu0 %v673
      %680 = vmatprep.subr.bf16.mxu0 0
      %681 = vmatpush1.bf16.msra.mxu0 0
      %682 = vmatprep.subr.bf16.mxu0 0
      %683 = vmatpush1.bf16.msra.mxu0 0
      %684 = vmatprep.subr.bf16.mxu0 0
      %685 = vmatpush1.bf16.msra.mxu0 0
      %686 = vmatprep.subr.bf16.mxu0 0
      %687 = vmatpush1.bf16.msra.mxu0 0
      %688 = vmatprep.subr.bf16.mxu0 0
      %689 = vmatpush1.bf16.msra.mxu0 0
      %690 = vmatprep.subr.bf16.mxu0 0
      %691 = vmatpush1.bf16.msra.mxu0 0
      %692 = vmatprep.subr.bf16.mxu0 0
      %693 = vmatpush1.bf16.msra.mxu0 0
      %694 = vmatprep.subr.bf16.mxu0 0
      %695 = vmatpush1.bf16.msra.mxu0 0
      %696 = vmatprep.subr.bf16.mxu0 0
      %697 = vmatpush1.bf16.msra.mxu0 0
      %698 = vmatprep.subr.bf16.mxu0 0
      %699 = vmatpush1.bf16.msra.mxu0 0
      %700 = vmatprep.subr.bf16.mxu0 0
      %701 = vmatpush1.bf16.msra.mxu0 0
      %702 = vmatprep.subr.bf16.mxu0 0
      %703 = vmatpush1.bf16.msra.mxu0 0
      %704 = vmatprep.subr.bf16.mxu0 0
      %705 = vmatpush1.bf16.msra.mxu0 0
      %706 = vmatprep.subr.bf16.mxu0 0
      %707 = vmatpush1.bf16.msra.mxu0 0
      %708 = vmatprep.subr.bf16.mxu0 0
      %709 = vmatpush1.bf16.msra.mxu0 0
      %710 = vmatprep.mubr.bf16.mxu0 0
      %711 = vmatmul.mubr.bf16.gmra.mrb[0].mxu0 %v676
      %v712 = vpop.f32.mrb[0].mxu0
      %v713 = vadd.f32 0.0, %v712
      %v714 = vpop.f32.mrb[0].mxu0
      %v715 = vpop.f32.mrb[0].mxu0
      %v716 = vpop.f32.mrb[0].mxu0
      %717 = vdwg.mxu0
      %v720 = vunpack.c.l.b16 %v300
      %v721 = vunpack.c.l.b16 %v301
      %v722 = vpack.c.b16 %v721, %v720
      %v725 = vsel %vm522, %v570, 0
      %727 = vmatprep.subr.bf16.mxu0 0
      %728 = vmatpush1.bf16.msra.mxu0 %v722
      %729 = vmatprep.subr.bf16.mxu0 0
      %730 = vmatpush1.bf16.msra.mxu0 0
      %731 = vmatprep.subr.bf16.mxu0 0
      %732 = vmatpush1.bf16.msra.mxu0 0
      %733 = vmatprep.subr.bf16.mxu0 0
      %734 = vmatpush1.bf16.msra.mxu0 0
      %735 = vmatprep.subr.bf16.mxu0 0
      %736 = vmatpush1.bf16.msra.mxu0 0
      %737 = vmatprep.subr.bf16.mxu0 0
      %738 = vmatpush1.bf16.msra.mxu0 0
      %739 = vmatprep.subr.bf16.mxu0 0
      %740 = vmatpush1.bf16.msra.mxu0 0
      %741 = vmatprep.subr.bf16.mxu0 0
      %742 = vmatpush1.bf16.msra.mxu0 0
      %743 = vmatprep.subr.bf16.mxu0 0
      %744 = vmatpush1.bf16.msra.mxu0 0
      %745 = vmatprep.subr.bf16.mxu0 0
      %746 = vmatpush1.bf16.msra.mxu0 0
      %747 = vmatprep.subr.bf16.mxu0 0
      %748 = vmatpush1.bf16.msra.mxu0 0
      %749 = vmatprep.subr.bf16.mxu0 0
      %750 = vmatpush1.bf16.msra.mxu0 0
      %751 = vmatprep.subr.bf16.mxu0 0
      %752 = vmatpush1.bf16.msra.mxu0 0
      %753 = vmatprep.subr.bf16.mxu0 0
      %754 = vmatpush1.bf16.msra.mxu0 0
      %755 = vmatprep.subr.bf16.mxu0 0
      %756 = vmatpush1.bf16.msra.mxu0 0
      %757 = vmatprep.subr.bf16.mxu0 0
      %758 = vmatpush1.bf16.msra.mxu0 0
      %759 = vmatprep.mubr.bf16.mxu0 0
      %760 = vmatmul.mubr.bf16.gmra.mrb[0].mxu0 %v725
      %v761 = vpop.f32.mrb[0].mxu0
      %v762 = vadd.f32 0.0, %v761
      %v763 = vpop.f32.mrb[0].mxu0
      %v764 = vpop.f32.mrb[0].mxu0
      %v765 = vpop.f32.mrb[0].mxu0
      %766 = vdwg.mxu0
      %768 = vrot.lane.b32.xlu0 %v664, 8
      %v769 = vpop.permute.xlu0 %768
      %772 = vrot.lane.b32.xlu0 %v713, 16
      %v773 = vpop.permute.xlu0 %772
      %776 = vrot.lane.b32.xlu0 %v762, 24
      %v777 = vpop.permute.xlu0 %776
      %v779 = vsel %vm307, %v615, %v769
      %v780 = vsel %vm522, %v779, %v773
      %vm781 = vcmask 195584
      %v782 = vsel %vm781, %v780, %v777
      %v783 = vpack.c.bf16 %v782, %v782
      %vm784 = vcmask 257024
      %785 = vst.msk [vmem:[%s280] sm:$0xf] %vm784, %v783
      %p786 = scmp.lt.s32.totalorder %s19, 1
      %s787 = scalar_select %p786, %s19, 1
      %p788 = scmp.lt.s32.totalorder %s20, 0
      %s789 = scalar_select %p788, %s20, 0
      %s790 = sadd.s32 %s789, %s787
      %s791 = smul.addr %s790, 4
      %s792 = scalar_lea.vmem %s4, %s791
      // Predicated region
      $region37: #{_lambda_.55} parent=35 // pred_check
        %p793 = pneg %p153
      $region38: #{_lambda_.55} parent=35 // pred_check_branch
        %795 = sbr.rel (%p793) target = $region40
      $region39: #{_lambda_.55} parent=35 // pred_region
        _
      $region40: #{_lambda_.55} parent=35 // pred_fallthru
        _
    $region36: #{_lambda_.55} parent=5 // pred_fallthru
      _
    %p796 = scmp.le.s32.totalorder 2, %s10
    // Predicated region
    $region41: #{_lambda_.55} parent=5 // pred_check
      %p797 = pneg %p796
    $region42: #{_lambda_.55} parent=5 // pred_check_branch
      %799 = sbr.rel (%p797) target = $region44
    $region43: #{_lambda_.55} parent=5 // pred_region
      %s800 = ssub.s32 %s10, 2
      // Predicated region
      $region45: #{_lambda_.55} parent=43 // pred_check
        %p801 = pneg %p159
      $region46: #{_lambda_.55} parent=43 // pred_check_branch
        %803 = sbr.rel (%p801) target = $region48
      $region47: #{_lambda_.55} parent=43 // pred_region
        %p804 = scmp.lt.s32.totalorder %s21, 1
        %s805 = scalar_select %p804, %s21, 1
        %p806 = scmp.lt.s32.totalorder %s22, 0
        %s807 = scalar_select %p806, %s22, 0
        %s808 = sadd.s32 %s807, %s805
        %s809 = smul.addr %s808, 4
        %s810 = scalar_lea.vmem %s4, %s809
      $region48: #{_lambda_.55} parent=43 // pred_fallthru
        _
    $region44: #{_lambda_.55} parent=5 // pred_fallthru
      _
  $region6: #{_lambda_.55} parent=0 // loop_footer
    %s14 = sadd.s32 1, %s10
  $region7: #{_lambda_.55} parent=0 // loop_footer_branch
    %9 = sbr.rel target = $region3
  $region8: #{_lambda_.55} parent=0 // loop_exit
    _

// kernel: _lambda_.69
$region0: #{_lambda_.69}
  #allocation0 [shape = 'u32[]', space=smem, size = 0x4, offset = 0x4, fixed_abs, tag = 'smem constant byte address 0x4 - core index']
  #allocation1 [shape = 'u32[144,128]{1,0:T(1,128)}', space=vmem, size = 0x12000, scoped, tag = 'internal scratch']
  %s0 = inlined_call_operand.vmem [shape: f32[16,32], index: 0, kind: input, shape index: {}]
  %s1 = inlined_call_operand.vmem [shape: bf16[32,128], index: 1, kind: input, shape index: {}]
  %s2 = inlined_call_operand.vmem [shape: f32[1,128], index: 2, kind: input, shape index: {}]
  %s3 = inlined_call_operand.vmem [shape: bf16[32,32], index: 3, kind: input, shape index: {}]
  %s4 = inlined_call_operand.vmem [shape: f32[1,32], index: 4, kind: input, shape index: {}]
  %s5 = inlined_call_operand.vmem [shape: bf16[32,32], index: 5, kind: input, shape index: {}]
  %s6 = inlined_call_operand.vmem [shape: f32[1,32], index: 6, kind: input, shape index: {}]
  %s7 = inlined_call_operand.vmem [shape: bf16[32,128], index: 7, kind: input, shape index: {}]
  %s8 = inlined_call_operand.vmem [shape: f32[1,128], index: 8, kind: input, shape index: {}]
  %s9 = inlined_call_operand.vmem [shape: f32[16,128], index: 9, kind: output, shape index: {0}]
  %s10 = inlined_call_operand.vmem [shape: f32[16,128], index: 10, kind: output, shape index: {1}]
  %11 = xla_tuple %s9, %s10
  %s12 = sld [smem:[#allocation0]]
  $region54: #{_lambda_.69} parent=0
    _
  %s14 = ssub.s32 1, %s12
  %s15 = scalar_select 0, %s14, %s12
  // Predicated region
  $region2: #{_lambda_.69} parent=0 // pred_check
    _
  $region3: #{_lambda_.69} parent=0 // pred_check_branch
    %17 = sbr.rel (0) target = $region5
  $region4: #{_lambda_.69} parent=0 // pred_region
    _
  $region5: #{_lambda_.69} parent=0 // pred_fallthru
    _
  // Predicated region
  $region6: #{_lambda_.69} parent=0 // pred_check
    _
  $region7: #{_lambda_.69} parent=0 // pred_check_branch
    %19 = sbr.rel (0) target = $region9
  $region8: #{_lambda_.69} parent=0 // pred_region
    _
  $region9: #{_lambda_.69} parent=0 // pred_fallthru
    _
  // Predicated region
  $region10: #{_lambda_.69} parent=0 // pred_check
    _
  $region11: #{_lambda_.69} parent=0 // pred_check_branch
    %21 = sbr.rel (0) target = $region13
  $region12: #{_lambda_.69} parent=0 // pred_region
    _
  $region13: #{_lambda_.69} parent=0 // pred_fallthru
    _
  // Predicated region
  $region14: #{_lambda_.69} parent=0 // pred_check
    _
  $region15: #{_lambda_.69} parent=0 // pred_check_branch
    %23 = sbr.rel (0) target = $region17
  $region16: #{_lambda_.69} parent=0 // pred_region
    _
  $region17: #{_lambda_.69} parent=0 // pred_fallthru
    _
  // Predicated region
  $region18: #{_lambda_.69} parent=0 // pred_check
    _
  $region19: #{_lambda_.69} parent=0 // pred_check_branch
    %25 = sbr.rel (0) target = $region21
  $region20: #{_lambda_.69} parent=0 // pred_region
    _
  $region21: #{_lambda_.69} parent=0 // pred_fallthru
    _
  // Predicated region
  $region22: #{_lambda_.69} parent=0 // pred_check
    _
  $region23: #{_lambda_.69} parent=0 // pred_check_branch
    %27 = sbr.rel (0) target = $region25
  $region24: #{_lambda_.69} parent=0 // pred_region
    _
  $region25: #{_lambda_.69} parent=0 // pred_fallthru
    _
  // Predicated region
  $region26: #{_lambda_.69} parent=0 // pred_check
    _
  $region27: #{_lambda_.69} parent=0 // pred_check_branch
    %29 = sbr.rel (0) target = $region29
  $region28: #{_lambda_.69} parent=0 // pred_region
    _
  $region29: #{_lambda_.69} parent=0 // pred_fallthru
    _
  // Predicated region
  $region30: #{_lambda_.69} parent=0 // pred_check
    _
  $region31: #{_lambda_.69} parent=0 // pred_check_branch
    %31 = sbr.rel (0) target = $region33
  $region32: #{_lambda_.69} parent=0 // pred_region
    _
  $region33: #{_lambda_.69} parent=0 // pred_fallthru
    _
  // Predicated region
  $region34: #{_lambda_.69} parent=0 // pred_check
    _
  $region35: #{_lambda_.69} parent=0 // pred_check_branch
    %33 = sbr.rel (0) target = $region37
  $region36: #{_lambda_.69} parent=0 // pred_region
    _
  $region37: #{_lambda_.69} parent=0 // pred_fallthru
    _
  %v35 = vld [vmem:[%s0] sm:$0xff]
  %v36 = vld [vmem:[%s0 + $0x8] sm:$0xff]
  %v37 = vpack.c.bf16 %v36, %v35
  %v38 = vld [vmem:[%s1] sm:$0xf]
  %v39 = vld [vmem:[%s1 + $0x4] sm:$0xf]
  %v40 = vld [vmem:[%s1 + $0x8] sm:$0xf]
  %v41 = vld [vmem:[%s1 + $0xc] sm:$0xf]
  %v42 = vld [vmem:[%s2] sm:$0x1]
  %v44 = vlaneseq
  %v45 = vshrl.u32 %v44, 7
  %v46 = vsub.s32 0, %v45
  %v47 = vrot.slane %v42, %v46
  %v53 = vunpack.c.l.b16 %v38
  %v54 = vunpack.c.l.b16 %v39
  %v55 = vunpack.c.l.b16 %v40
  %v56 = vunpack.c.l.b16 %v41
  %v57 = vpack.c.b16 %v54, %v53
  %v58 = vpack.c.b16 %v56, %v55
  %vm61 = vcmask 261120
  %v63 = vsel %vm61, %v37, 0
  %65 = vmatprep.subr.bf16.mxu0 0
  %66 = vmatpush1.bf16.msra.mxu0 %v57
  %67 = vmatprep.subr.bf16.mxu0 0
  %68 = vmatpush1.bf16.msra.mxu0 %v58
  %69 = vmatprep.subr.bf16.mxu0 0
  %70 = vmatpush1.bf16.msra.mxu0 0
  %71 = vmatprep.subr.bf16.mxu0 0
  %72 = vmatpush1.bf16.msra.mxu0 0
  %73 = vmatprep.subr.bf16.mxu0 0
  %74 = vmatpush1.bf16.msra.mxu0 0
  %75 = vmatprep.subr.bf16.mxu0 0
  %76 = vmatpush1.bf16.msra.mxu0 0
  %77 = vmatprep.subr.bf16.mxu0 0
  %78 = vmatpush1.bf16.msra.mxu0 0
  %79 = vmatprep.subr.bf16.mxu0 0
  %80 = vmatpush1.bf16.msra.mxu0 0
  %81 = vmatprep.subr.bf16.mxu0 0
  %82 = vmatpush1.bf16.msra.mxu0 0
  %83 = vmatprep.subr.bf16.mxu0 0
  %84 = vmatpush1.bf16.msra.mxu0 0
  %85 = vmatprep.subr.bf16.mxu0 0
  %86 = vmatpush1.bf16.msra.mxu0 0
  %87 = vmatprep.subr.bf16.mxu0 0
  %88 = vmatpush1.bf16.msra.mxu0 0
  %89 = vmatprep.subr.bf16.mxu0 0
  %90 = vmatpush1.bf16.msra.mxu0 0
  %91 = vmatprep.subr.bf16.mxu0 0
  %92 = vmatpush1.bf16.msra.mxu0 0
  %93 = vmatprep.subr.bf16.mxu0 0
  %94 = vmatpush1.bf16.msra.mxu0 0
  %95 = vmatprep.subr.bf16.mxu0 0
  %96 = vmatpush1.bf16.msra.mxu0 0
  %97 = vmatprep.mubr.bf16.mxu0 0
  %98 = vmatmul.mubr.bf16.gmra.mrb[0].mxu0 %v63
  %v99 = vpop.f32.mrb[0].mxu0
  %v100 = vadd.f32 %v47, %v99
  %v101 = vpop.f32.mrb[0].mxu0
  %v102 = vpop.f32.mrb[0].mxu0
  %v103 = vadd.f32 %v47, %v102
  %v104 = vpop.f32.mrb[0].mxu0
  %105 = vdwg.mxu0
  %106 = vst [vmem:[%s9] sm:$0xff] %v100
  %107 = vst [vmem:[%s9 + $0x8] sm:$0xff] %v103
  %v108 = vld [vmem:[%s3] sm:$0xf]
  %v109 = vld [vmem:[%s3 + $0x4] sm:$0xf]
  %v110 = vld [vmem:[%s3 + $0x8] sm:$0xf]
  %v111 = vld [vmem:[%s3 + $0xc] sm:$0xf]
  %v112 = vld [vmem:[%s4] sm:$0x1]
  %v114 = vlaneseq
  %v115 = vshrl.u32 %v114, 7
  %v116 = vsub.s32 0, %v115
  %v117 = vrot.slane %v112, %v116
  %v123 = vunpack.c.l.b16 %v108
  %v124 = vunpack.c.l.b16 %v109
  %v125 = vunpack.c.l.b16 %v110
  %v126 = vunpack.c.l.b16 %v111
  %v127 = vpack.c.b16 %v124, %v123
  %v128 = vpack.c.b16 %v126, %v125
  %131 = vmatprep.subr.bf16.mxu0 0
  %132 = vmatpush1.bf16.msra.mxu0 %v127
  %133 = vmatprep.subr.bf16.mxu0 0
  %134 = vmatpush1.bf16.msra.mxu0 %v128
  %135 = vmatprep.subr.bf16.mxu0 0
  %136 = vmatpush1.bf16.msra.mxu0 0
  %137 = vmatprep.subr.bf16.mxu0 0
  %138 = vmatpush1.bf16.msra.mxu0 0
  %139 = vmatprep.subr.bf16.mxu0 0
  %140 = vmatpush1.bf16.msra.mxu0 0
  %141 = vmatprep.subr.bf16.mxu0 0
  %142 = vmatpush1.bf16.msra.mxu0 0
  %143 = vmatprep.subr.bf16.mxu0 0
  %144 = vmatpush1.bf16.msra.mxu0 0
  %145 = vmatprep.subr.bf16.mxu0 0
  %146 = vmatpush1.bf16.msra.mxu0 0
  %147 = vmatprep.subr.bf16.mxu0 0
  %148 = vmatpush1.bf16.msra.mxu0 0
  %149 = vmatprep.subr.bf16.mxu0 0
  %150 = vmatpush1.bf16.msra.mxu0 0
  %151 = vmatprep.subr.bf16.mxu0 0
  %152 = vmatpush1.bf16.msra.mxu0 0
  %153 = vmatprep.subr.bf16.mxu0 0
  %154 = vmatpush1.bf16.msra.mxu0 0
  %155 = vmatprep.subr.bf16.mxu0 0
  %156 = vmatpush1.bf16.msra.mxu0 0
  %157 = vmatprep.subr.bf16.mxu0 0
  %158 = vmatpush1.bf16.msra.mxu0 0
  %159 = vmatprep.subr.bf16.mxu0 0
  %160 = vmatpush1.bf16.msra.mxu0 0
  %161 = vmatprep.subr.bf16.mxu0 0
  %162 = vmatpush1.bf16.msra.mxu0 0
  %163 = vmatprep.mubr.bf16.mxu0 0
  %164 = vmatmul.mubr.bf16.gmra.mrb[0].mxu0 %v63
  %v165 = vpop.f32.mrb[0].mxu0
  %v166 = vadd.f32 %v117, %v165
  %v167 = vpop.f32.mrb[0].mxu0
  %v168 = vpop.f32.mrb[0].mxu0
  %v169 = vadd.f32 %v117, %v168
  %v170 = vpop.f32.mrb[0].mxu0
  %171 = vdwg.mxu0
  %v172 = vmax.f32 %v166, 0.0
  %v173 = vmax.f32 %v169, 0.0
  %v174 = vpack.c.bf16 %v173, %v172
  %v175 = vld [vmem:[%s5] sm:$0xf]
  %v176 = vld [vmem:[%s5 + $0x4] sm:$0xf]
  %v177 = vld [vmem:[%s5 + $0x8] sm:$0xf]
  %v178 = vld [vmem:[%s5 + $0xc] sm:$0xf]
  %v179 = vld [vmem:[%s6] sm:$0x1]
  %v181 = vlaneseq
  %v182 = vshrl.u32 %v181, 7
  %v183 = vsub.s32 0, %v182
  %v184 = vrot.slane %v179, %v183
  %v190 = vunpack.c.l.b16 %v175
  %v191 = vunpack.c.l.b16 %v176
  %v192 = vunpack.c.l.b16 %v177
  %v193 = vunpack.c.l.b16 %v178
  %v194 = vpack.c.b16 %v191, %v190
  %v195 = vpack.c.b16 %v193, %v192
  %v199 = vsel %vm61, %v174, 0
  %201 = vmatprep.subr.bf16.mxu0 0
  %202 = vmatpush1.bf16.msra.mxu0 %v194
  %203 = vmatprep.subr.bf16.mxu0 0
  %204 = vmatpush1.bf16.msra.mxu0 %v195
  %205 = vmatprep.subr.bf16.mxu0 0
  %206 = vmatpush1.bf16.msra.mxu0 0
  %207 = vmatprep.subr.bf16.mxu0 0
  %208 = vmatpush1.bf16.msra.mxu0 0
  %209 = vmatprep.subr.bf16.mxu0 0
  %210 = vmatpush1.bf16.msra.mxu0 0
  %211 = vmatprep.subr.bf16.mxu0 0
  %212 = vmatpush1.bf16.msra.mxu0 0
  %213 = vmatprep.subr.bf16.mxu0 0
  %214 = vmatpush1.bf16.msra.mxu0 0
  %215 = vmatprep.subr.bf16.mxu0 0
  %216 = vmatpush1.bf16.msra.mxu0 0
  %217 = vmatprep.subr.bf16.mxu0 0
  %218 = vmatpush1.bf16.msra.mxu0 0
  %219 = vmatprep.subr.bf16.mxu0 0
  %220 = vmatpush1.bf16.msra.mxu0 0
  %221 = vmatprep.subr.bf16.mxu0 0
  %222 = vmatpush1.bf16.msra.mxu0 0
  %223 = vmatprep.subr.bf16.mxu0 0
  %224 = vmatpush1.bf16.msra.mxu0 0
  %225 = vmatprep.subr.bf16.mxu0 0
  %226 = vmatpush1.bf16.msra.mxu0 0
  %227 = vmatprep.subr.bf16.mxu0 0
  %228 = vmatpush1.bf16.msra.mxu0 0
  %229 = vmatprep.subr.bf16.mxu0 0
  %230 = vmatpush1.bf16.msra.mxu0 0
  %231 = vmatprep.subr.bf16.mxu0 0
  %232 = vmatpush1.bf16.msra.mxu0 0
  %233 = vmatprep.mubr.bf16.mxu0 0
  %234 = vmatmul.mubr.bf16.gmra.mrb[0].mxu0 %v199
  %v235 = vpop.f32.mrb[0].mxu0
  %v236 = vadd.f32 %v184, %v235
  %v237 = vpop.f32.mrb[0].mxu0
  %v238 = vpop.f32.mrb[0].mxu0
  %v239 = vadd.f32 %v184, %v238
  %v240 = vpop.f32.mrb[0].mxu0
  %241 = vdwg.mxu0
  %v242 = vmax.f32 %v236, 0.0
  %v243 = vmax.f32 %v239, 0.0
  %v244 = vpack.c.bf16 %v243, %v242
  %v245 = vld [vmem:[%s7] sm:$0xf]
  %v246 = vld [vmem:[%s7 + $0x4] sm:$0xf]
  %v247 = vld [vmem:[%s7 + $0x8] sm:$0xf]
  %v248 = vld [vmem:[%s7 + $0xc] sm:$0xf]
  %v249 = vld [vmem:[%s8] sm:$0x1]
  %v251 = vlaneseq
  %v252 = vshrl.u32 %v251, 7
  %v253 = vsub.s32 0, %v252
  %v254 = vrot.slane %v249, %v253
  %v260 = vunpack.c.l.b16 %v245
  %v261 = vunpack.c.l.b16 %v246
  %v262 = vunpack.c.l.b16 %v247
  %v263 = vunpack.c.l.b16 %v248
  %v264 = vpack.c.b16 %v261, %v260
  %v265 = vpack.c.b16 %v263, %v262
  %v269 = vsel %vm61, %v244, 0
  %271 = vmatprep.subr.bf16.mxu0 0
  %272 = vmatpush1.bf16.msra.mxu0 %v264
  %273 = vmatprep.subr.bf16.mxu0 0
  %274 = vmatpush1.bf16.msra.mxu0 %v265
  %275 = vmatprep.subr.bf16.mxu0 0
  %276 = vmatpush1.bf16.msra.mxu0 0
  %277 = vmatprep.subr.bf16.mxu0 0
  %278 = vmatpush1.bf16.msra.mxu0 0
  %279 = vmatprep.subr.bf16.mxu0 0
  %280 = vmatpush1.bf16.msra.mxu0 0
  %281 = vmatprep.subr.bf16.mxu0 0
  %282 = vmatpush1.bf16.msra.mxu0 0
  %283 = vmatprep.subr.bf16.mxu0 0
  %284 = vmatpush1.bf16.msra.mxu0 0
  %285 = vmatprep.subr.bf16.mxu0 0
  %286 = vmatpush1.bf16.msra.mxu0 0
  %287 = vmatprep.subr.bf16.mxu0 0
  %288 = vmatpush1.bf16.msra.mxu0 0
  %289 = vmatprep.subr.bf16.mxu0 0
  %290 = vmatpush1.bf16.msra.mxu0 0
  %291 = vmatprep.subr.bf16.mxu0 0
  %292 = vmatpush1.bf16.msra.mxu0 0
  %293 = vmatprep.subr.bf16.mxu0 0
  %294 = vmatpush1.bf16.msra.mxu0 0
  %295 = vmatprep.subr.bf16.mxu0 0
  %296 = vmatpush1.bf16.msra.mxu0 0
  %297 = vmatprep.subr.bf16.mxu0 0
  %298 = vmatpush1.bf16.msra.mxu0 0
  %299 = vmatprep.subr.bf16.mxu0 0
  %300 = vmatpush1.bf16.msra.mxu0 0
  %301 = vmatprep.subr.bf16.mxu0 0
  %302 = vmatpush1.bf16.msra.mxu0 0
  %303 = vmatprep.mubr.bf16.mxu0 0
  %304 = vmatmul.mubr.bf16.gmra.mrb[0].mxu0 %v269
  %v305 = vpop.f32.mrb[0].mxu0
  %v306 = vadd.f32 %v254, %v305
  %v307 = vpop.f32.mrb[0].mxu0
  %v308 = vpop.f32.mrb[0].mxu0
  %v309 = vadd.f32 %v254, %v308
  %v310 = vpop.f32.mrb[0].mxu0
  %311 = vdwg.mxu0
  %v312 = vsub.f32 0.0, %v306
  %v313 = vsub.f32 0.0, %v309
  %v314 = vmul.f32 %v312, 1.442695
  %v315 = vpow.pop %v314
  %v316 = vmul.f32 %v313, 1.442695
  %v317 = vpow.pop %v316
  %v318 = vadd.f32 %v315, 1.0
  %v319 = vadd.f32 %v317, 1.0
  %v320 = vrcp.pop %v318
  %v321 = vmul.f32 1.0, %v320
  %v322 = vrcp.pop %v319
  %v323 = vmul.f32 1.0, %v322
  %324 = vst [vmem:[%s10] sm:$0xff] %v321
  %325 = vst [vmem:[%s10 + $0x8] sm:$0xff] %v323
  // Predicated region
  $region38: #{_lambda_.69} parent=0 // pred_check
    _
  $region39: #{_lambda_.69} parent=0 // pred_check_branch
    %327 = sbr.rel (0) target = $region41
  $region40: #{_lambda_.69} parent=0 // pred_region
    _
  $region41: #{_lambda_.69} parent=0 // pred_fallthru
    _
  // Predicated region
  $region42: #{_lambda_.69} parent=0 // pred_check
    _
  $region43: #{_lambda_.69} parent=0 // pred_check_branch
    %329 = sbr.rel (0) target = $region45
  $region44: #{_lambda_.69} parent=0 // pred_region
    _
  $region45: #{_lambda_.69} parent=0 // pred_fallthru
    _
  // Predicated region
  $region46: #{_lambda_.69} parent=0 // pred_check
    _
  $region47: #{_lambda_.69} parent=0 // pred_check_branch
    %331 = sbr.rel (0) target = $region49
  $region48: #{_lambda_.69} parent=0 // pred_region
    _
  $region49: #{_lambda_.69} parent=0 // pred_fallthru
    _
  // Predicated region
  $region50: #{_lambda_.69} parent=0 // pred_check
    _
  $region51: #{_lambda_.69} parent=0 // pred_check_branch
    %333 = sbr.rel (0) target = $region53
  $region52: #{_lambda_.69} parent=0 // pred_region
    _
  $region53: #{_lambda_.69} parent=0 // pred_fallthru
    _

</llo_original>
